<compile_context>
chip_gen: v6e
topology: v6e:2x2x1
jax: 0.10.0
libtpu: 0.0.40
codegen_flags: <defaults>
</compile_context>

<pallas_src>
import functools

import jax
import jax.numpy as jnp
from jax import lax
from jax.experimental import pallas as pl
from jax.experimental.pallas import tpu as pltpu


def _round_up(x, m):
    return (x + m - 1) // m * m


def _fused_compressor_kernel(x_ref, mask_ref,
                             w1_ref, b1_ref, w2_ref, b2_ref, w3_ref, b3_ref,
                             o_ref, *, cp, wp, lp):
    """Fused 3x (conv3x3 + folded-BN + ReLU), single invocation (no grid).

    x_ref   : (Cp, Lp)   padded "canvas": channels on sublanes, flattened
                         (n, y, x) padded spatial on lanes (zero border/tail).
    mask_ref: (1, Lp)    1.0 on interior canvas positions, 0.0 on border & tail.
    w*_ref  : (Cp, 9*Cp) folded conv*BN weights, columns tap-major, chan-minor.
    b*_ref  : (Cp, 1)    folded conv+BN bias.
    o_ref   : (Cp, Lp)
    """
    # Broadcast the border/tail mask exactly once and reuse it (JAX does not
    # CSE broadcast_in_dim, so per-use broadcasts would be re-emitted).
    mask = jnp.broadcast_to(mask_ref[...], (cp, lp))

    # Flat lane offset of tap (ky, kx): (ky-1)*Wp + (kx-1).
    shifts = [(ky - 1) * wp + (kx - 1) for ky in range(3) for kx in range(3)]

    def conv_bn_relu(act, w_ref, b_ref, apply_mask):
        # im2col-free conv: 9 accumulating per-tap matmuls.  Each tap is a lane
        # rotation (XLU) of the canvas; the (9*Cp, Lp) patch matrix is never
        # materialized, so there is no patch store/reload VMEM traffic.
        y = None
        for t, d in enumerate(shifts):
            tap = act if d == 0 else pltpu.roll(act, shift=(-d) % lp, axis=1)
            part = jnp.dot(w_ref[:, t * cp:(t + 1) * cp], tap,
                           preferred_element_type=jnp.float32)
            y = part if y is None else y + part
        y = jnp.maximum(y + b_ref[...], 0.0)
        # Re-zero border/tail lanes => zero padding for the next conv layer
        # (also cancels roll wrap-around that landed on border/tail lanes).
        return y * mask if apply_mask else y

    a = conv_bn_relu(x_ref[...], w1_ref, b1_ref, apply_mask=True)
    a = conv_bn_relu(a, w2_ref, b2_ref, apply_mask=True)
    # Last layer: the wrapper crops the interior, so the mask multiply is dead
    # work and is dropped.
    o_ref[...] = conv_bn_relu(a, w3_ref, b3_ref, apply_mask=False)


def _pack_layer(w, scale, bias, cinp, coutp):
    """(3,3,cin,cout) conv weight + folded BN scale/bias -> kernel operands."""
    _, _, cin, cout = w.shape
    w_scaled = w * scale                                   # fold BN scale into W
    w_t = jnp.transpose(w_scaled, (3, 0, 1, 2))            # (cout, 3, 3, cin)
    w_t = jnp.pad(w_t, ((0, coutp - cout), (0, 0), (0, 0), (0, cinp - cin)))
    w2d = w_t.reshape(coutp, 9 * cinp)                     # cols: tap-major, chan-minor
    b2d = jnp.pad(bias, (0, coutp - cout)).reshape(coutp, 1)
    return w2d.astype(jnp.float32), b2d.astype(jnp.float32)


@jax.jit
def naive_compressor_forward(x_nchw, params):
    """Full NaiveCompressor forward. Input/output layout: NCHW (PyTorch)."""
    N, C, H, W = x_nchw.shape
    hp, wp = H + 2, W + 2
    l = N * hp * wp
    lp = _round_up(l, 128)

    # One padded channel width for every stage (keeps operands (8,128)-aligned).
    cp = _round_up(max([C] + [p[0].shape[-1] for p in params]), 8)
    packed = [_pack_layer(w, s, b, cp, cp) for (w, s, b) in params]

    # Build the padded canvas (Cp, Lp): channels x flattened padded spatial.
    xc = jnp.transpose(x_nchw, (1, 0, 2, 3)).astype(jnp.float32)   # (C, N, H, W)
    xc = jnp.pad(xc, ((0, cp - C), (0, 0), (1, 1), (1, 1)))        # (Cp, N, Hp, Wp)
    xc = jnp.pad(xc.reshape(cp, l), ((0, 0), (0, lp - l)))         # (Cp, Lp)

    mask = jnp.pad(jnp.ones((N, H, W), jnp.float32), ((0, 0), (1, 1), (1, 1)))
    mask = jnp.pad(mask.reshape(1, l), ((0, 0), (0, lp - l)))      # (1, Lp)

    kernel = functools.partial(_fused_compressor_kernel, cp=cp, wp=wp, lp=lp)
    vmem_spec = pl.BlockSpec(memory_space=pltpu.MemorySpace.VMEM)
    out = pl.pallas_call(
        kernel,
        out_shape=jax.ShapeDtypeStruct((cp, lp), jnp.float32),
        in_specs=[vmem_spec] * 8,
        out_specs=vmem_spec,
    )(xc, mask,
      packed[0][0], packed[0][1],
      packed[1][0], packed[1][1],
      packed[2][0], packed[2][1])

    cout_final = params[-1][0].shape[-1]
    out = out[:, :l].reshape(cp, N, hp, wp)[:cout_final, :, 1:H + 1, 1:W + 1]
    return jnp.transpose(out, (1, 0, 2, 3))                        # -> NCHW


def _fold_bn(conv_bias, gamma, beta, mean, var, eps=1e-3):
    # eps=1e-3 matches nn.BatchNorm2d(..., eps=0.001) in the module spec.
    scale = gamma / jnp.sqrt(var + eps)
    bias = (conv_bias - mean) * scale + beta
    return scale, bias


def make_params(key, input_dim, compress_ratio):
    """Deterministic synthetic parameters for the 3 conv+BN stages."""
    cdim = input_dim // compress_ratio
    dims = [(input_dim, cdim), (cdim, input_dim), (input_dim, input_dim)]
    params = []
    for i, (cin, cout) in enumerate(dims):
        k = jax.random.fold_in(key, i)
        kw, kb, kg, kbt, km, kv = jax.random.split(k, 6)
        w = 0.1 * jax.random.normal(kw, (3, 3, cin, cout), jnp.float32)
        b = 0.05 * jax.random.normal(kb, (cout,), jnp.float32)
        gamma = 1.0 + 0.1 * jax.random.normal(kg, (cout,), jnp.float32)
        beta = 0.1 * jax.random.normal(kbt, (cout,), jnp.float32)
        mean = 0.1 * jax.random.normal(km, (cout,), jnp.float32)
        var = jnp.abs(1.0 + 0.1 * jax.random.normal(kv, (cout,), jnp.float32))
        scale, bias = _fold_bn(b, gamma, beta, mean, var)
        params.append((w, scale, bias))
    return params


def _reference_forward(x_nchw, params):
    """Pure-JAX reference (lax conv) for a correctness sanity check."""
    x = x_nchw
    for (w, scale, bias) in params:
        w_oihw = jnp.transpose(w, (3, 2, 0, 1))   # (kh,kw,cin,cout) -> (O,I,kh,kw)
        y = lax.conv_general_dilated(
            x, w_oihw, window_strides=(1, 1), padding=((1, 1), (1, 1)),
            dimension_numbers=("NCHW", "OIHW", "NCHW"))
        y = y * scale[None, :, None, None] + bias[None, :, None, None]
        x = jnp.maximum(y, 0.0)
    return x


if __name__ == "__main__":
    key = jax.random.PRNGKey(0)
    kx, kp = jax.random.split(key)

    # Small shapes consistent with the module: input_dim=8, compress_ratio=2.
    N, C, H, W = 2, 8, 16, 16
    x = jax.random.normal(kx, (N, C, H, W), jnp.float32)
    params = make_params(kp, input_dim=C, compress_ratio=2)

    out = naive_compressor_forward(x, params)
    out = jax.block_until_ready(out)

    ref = _reference_forward(x, params)
    assert out.shape == (N, C, H, W), out.shape
    assert jnp.allclose(out, ref, atol=1e-4, rtol=1e-4), float(
        jnp.max(jnp.abs(out - ref)))

    print("KERNEL_OK")
</pallas_src>

<mosaic_0001>
module attributes {stable_mosaic.version = 11 : i64} {
  func.func @_fused_compressor_kernel(%arg0: memref<8x768xf32, #tpu.memory_space<vmem>>, %arg1: memref<1x768xf32, #tpu.memory_space<vmem>>, %arg2: memref<8x72xf32, #tpu.memory_space<vmem>>, %arg3: memref<8x1xf32, #tpu.memory_space<vmem>>, %arg4: memref<8x72xf32, #tpu.memory_space<vmem>>, %arg5: memref<8x1xf32, #tpu.memory_space<vmem>>, %arg6: memref<8x72xf32, #tpu.memory_space<vmem>>, %arg7: memref<8x1xf32, #tpu.memory_space<vmem>>, %arg8: memref<8x768xf32, #tpu.memory_space<vmem>>) attributes {dimension_semantics = [], scalar_prefetch = 0 : i64, scratch_operands = 0 : i64, tpu.core_type = #tpu.core_type<tc>} {
    %c0 = arith.constant 0 : index
    %c0_0 = arith.constant 0 : index
    %0 = vector.load %arg1[%c0, %c0_0] : memref<1x768xf32, #tpu.memory_space<vmem>>, vector<1x768xf32>
    %1 = vector.shape_cast %0 : vector<1x768xf32> to vector<1x768xf32>
    %2 = vector.broadcast %1 : vector<1x768xf32> to vector<8x768xf32>
    %c0_1 = arith.constant 0 : index
    %c0_2 = arith.constant 0 : index
    %3 = vector.load %arg0[%c0_1, %c0_2] : memref<8x768xf32, #tpu.memory_space<vmem>>, vector<8x768xf32>
    %c19_i32 = arith.constant 19 : i32
    %4 = tpu.dynamic_rotate %3 by %c19_i32 dim 1 : vector<8x768xf32>, i32 -> vector<8x768xf32>
    %c0_3 = arith.constant 0 : index
    %c0_4 = arith.constant 0 : index
    %5 = vector.load %arg2[%c0_3, %c0_4] : memref<8x72xf32, #tpu.memory_space<vmem>>, vector<8x8xf32>
    %cst = arith.constant dense<0.000000e+00> : vector<8x768xf32>
    %6 = tpu.matmul %5, %4, %cst {dimension_numbers = #tpu.dot_dimension_numbers<[1], [0], [0], [1], [0, 0, 1, 1], [], []>} : vector<8x8xf32>, vector<8x768xf32>, vector<8x768xf32> -> vector<8x768xf32>
    %c18_i32 = arith.constant 18 : i32
    %7 = tpu.dynamic_rotate %3 by %c18_i32 dim 1 : vector<8x768xf32>, i32 -> vector<8x768xf32>
    %c0_5 = arith.constant 0 : index
    %c8 = arith.constant 8 : index
    %8 = vector.load %arg2[%c0_5, %c8] : memref<8x72xf32, #tpu.memory_space<vmem>>, vector<8x8xf32>
    %cst_6 = arith.constant dense<0.000000e+00> : vector<8x768xf32>
    %9 = tpu.matmul %8, %7, %cst_6 {dimension_numbers = #tpu.dot_dimension_numbers<[1], [0], [0], [1], [0, 0, 1, 1], [], []>} : vector<8x8xf32>, vector<8x768xf32>, vector<8x768xf32> -> vector<8x768xf32>
    %10 = arith.addf %6, %9 : vector<8x768xf32>
    %c17_i32 = arith.constant 17 : i32
    %11 = tpu.dynamic_rotate %3 by %c17_i32 dim 1 : vector<8x768xf32>, i32 -> vector<8x768xf32>
    %c0_7 = arith.constant 0 : index
    %c16 = arith.constant 16 : index
    %12 = vector.load %arg2[%c0_7, %c16] : memref<8x72xf32, #tpu.memory_space<vmem>>, vector<8x8xf32>
    %cst_8 = arith.constant dense<0.000000e+00> : vector<8x768xf32>
    %13 = tpu.matmul %12, %11, %cst_8 {dimension_numbers = #tpu.dot_dimension_numbers<[1], [0], [0], [1], [0, 0, 1, 1], [], []>} : vector<8x8xf32>, vector<8x768xf32>, vector<8x768xf32> -> vector<8x768xf32>
    %14 = arith.addf %10, %13 : vector<8x768xf32>
    %c1_i32 = arith.constant 1 : i32
    %15 = tpu.dynamic_rotate %3 by %c1_i32 dim 1 : vector<8x768xf32>, i32 -> vector<8x768xf32>
    %c0_9 = arith.constant 0 : index
    %c24 = arith.constant 24 : index
    %16 = vector.load %arg2[%c0_9, %c24] : memref<8x72xf32, #tpu.memory_space<vmem>>, vector<8x8xf32>
    %cst_10 = arith.constant dense<0.000000e+00> : vector<8x768xf32>
    %17 = tpu.matmul %16, %15, %cst_10 {dimension_numbers = #tpu.dot_dimension_numbers<[1], [0], [0], [1], [0, 0, 1, 1], [], []>} : vector<8x8xf32>, vector<8x768xf32>, vector<8x768xf32> -> vector<8x768xf32>
    %18 = arith.addf %14, %17 : vector<8x768xf32>
    %c0_11 = arith.constant 0 : index
    %c32 = arith.constant 32 : index
    %19 = vector.load %arg2[%c0_11, %c32] : memref<8x72xf32, #tpu.memory_space<vmem>>, vector<8x8xf32>
    %cst_12 = arith.constant dense<0.000000e+00> : vector<8x768xf32>
    %20 = tpu.matmul %19, %3, %cst_12 {dimension_numbers = #tpu.dot_dimension_numbers<[1], [0], [0], [1], [0, 0, 1, 1], [], []>} : vector<8x8xf32>, vector<8x768xf32>, vector<8x768xf32> -> vector<8x768xf32>
    %21 = arith.addf %18, %20 : vector<8x768xf32>
    %c767_i32 = arith.constant 767 : i32
    %22 = tpu.dynamic_rotate %3 by %c767_i32 dim 1 : vector<8x768xf32>, i32 -> vector<8x768xf32>
    %c0_13 = arith.constant 0 : index
    %c40 = arith.constant 40 : index
    %23 = vector.load %arg2[%c0_13, %c40] : memref<8x72xf32, #tpu.memory_space<vmem>>, vector<8x8xf32>
    %cst_14 = arith.constant dense<0.000000e+00> : vector<8x768xf32>
    %24 = tpu.matmul %23, %22, %cst_14 {dimension_numbers = #tpu.dot_dimension_numbers<[1], [0], [0], [1], [0, 0, 1, 1], [], []>} : vector<8x8xf32>, vector<8x768xf32>, vector<8x768xf32> -> vector<8x768xf32>
    %25 = arith.addf %21, %24 : vector<8x768xf32>
    %c751_i32 = arith.constant 751 : i32
    %26 = tpu.dynamic_rotate %3 by %c751_i32 dim 1 : vector<8x768xf32>, i32 -> vector<8x768xf32>
    %c0_15 = arith.constant 0 : index
    %c48 = arith.constant 48 : index
    %27 = vector.load %arg2[%c0_15, %c48] : memref<8x72xf32, #tpu.memory_space<vmem>>, vector<8x8xf32>
    %cst_16 = arith.constant dense<0.000000e+00> : vector<8x768xf32>
    %28 = tpu.matmul %27, %26, %cst_16 {dimension_numbers = #tpu.dot_dimension_numbers<[1], [0], [0], [1], [0, 0, 1, 1], [], []>} : vector<8x8xf32>, vector<8x768xf32>, vector<8x768xf32> -> vector<8x768xf32>
    %29 = arith.addf %25, %28 : vector<8x768xf32>
    %c750_i32 = arith.constant 750 : i32
    %30 = tpu.dynamic_rotate %3 by %c750_i32 dim 1 : vector<8x768xf32>, i32 -> vector<8x768xf32>
    %c0_17 = arith.constant 0 : index
    %c56 = arith.constant 56 : index
    %31 = vector.load %arg2[%c0_17, %c56] : memref<8x72xf32, #tpu.memory_space<vmem>>, vector<8x8xf32>
    %cst_18 = arith.constant dense<0.000000e+00> : vector<8x768xf32>
    %32 = tpu.matmul %31, %30, %cst_18 {dimension_numbers = #tpu.dot_dimension_numbers<[1], [0], [0], [1], [0, 0, 1, 1], [], []>} : vector<8x8xf32>, vector<8x768xf32>, vector<8x768xf32> -> vector<8x768xf32>
    %33 = arith.addf %29, %32 : vector<8x768xf32>
    %c749_i32 = arith.constant 749 : i32
    %34 = tpu.dynamic_rotate %3 by %c749_i32 dim 1 : vector<8x768xf32>, i32 -> vector<8x768xf32>
    %c0_19 = arith.constant 0 : index
    %c64 = arith.constant 64 : index
    %35 = vector.load %arg2[%c0_19, %c64] : memref<8x72xf32, #tpu.memory_space<vmem>>, vector<8x8xf32>
    %cst_20 = arith.constant dense<0.000000e+00> : vector<8x768xf32>
    %36 = tpu.matmul %35, %34, %cst_20 {dimension_numbers = #tpu.dot_dimension_numbers<[1], [0], [0], [1], [0, 0, 1, 1], [], []>} : vector<8x8xf32>, vector<8x768xf32>, vector<8x768xf32> -> vector<8x768xf32>
    %37 = arith.addf %33, %36 : vector<8x768xf32>
    %c0_21 = arith.constant 0 : index
    %c0_22 = arith.constant 0 : index
    %38 = vector.load %arg3[%c0_21, %c0_22] : memref<8x1xf32, #tpu.memory_space<vmem>>, vector<8x1xf32>
    %39 = vector.broadcast %38 : vector<8x1xf32> to vector<8x768xf32>
    %40 = arith.addf %37, %39 : vector<8x768xf32>
    %cst_23 = arith.constant 0.000000e+00 : f32
    %41 = vector.broadcast %cst_23 : f32 to vector<8x768xf32>
    %42 = arith.maximumf %40, %41 : vector<8x768xf32>
    %43 = arith.mulf %42, %2 : vector<8x768xf32>
    %c19_i32_24 = arith.constant 19 : i32
    %44 = tpu.dynamic_rotate %43 by %c19_i32_24 dim 1 : vector<8x768xf32>, i32 -> vector<8x768xf32>
    %c0_25 = arith.constant 0 : index
    %c0_26 = arith.constant 0 : index
    %45 = vector.load %arg4[%c0_25, %c0_26] : memref<8x72xf32, #tpu.memory_space<vmem>>, vector<8x8xf32>
    %cst_27 = arith.constant dense<0.000000e+00> : vector<8x768xf32>
    %46 = tpu.matmul %45, %44, %cst_27 {dimension_numbers = #tpu.dot_dimension_numbers<[1], [0], [0], [1], [0, 0, 1, 1], [], []>} : vector<8x8xf32>, vector<8x768xf32>, vector<8x768xf32> -> vector<8x768xf32>
    %c18_i32_28 = arith.constant 18 : i32
    %47 = tpu.dynamic_rotate %43 by %c18_i32_28 dim 1 : vector<8x768xf32>, i32 -> vector<8x768xf32>
    %c0_29 = arith.constant 0 : index
    %c8_30 = arith.constant 8 : index
    %48 = vector.load %arg4[%c0_29, %c8_30] : memref<8x72xf32, #tpu.memory_space<vmem>>, vector<8x8xf32>
    %cst_31 = arith.constant dense<0.000000e+00> : vector<8x768xf32>
    %49 = tpu.matmul %48, %47, %cst_31 {dimension_numbers = #tpu.dot_dimension_numbers<[1], [0], [0], [1], [0, 0, 1, 1], [], []>} : vector<8x8xf32>, vector<8x768xf32>, vector<8x768xf32> -> vector<8x768xf32>
    %50 = arith.addf %46, %49 : vector<8x768xf32>
    %c17_i32_32 = arith.constant 17 : i32
    %51 = tpu.dynamic_rotate %43 by %c17_i32_32 dim 1 : vector<8x768xf32>, i32 -> vector<8x768xf32>
    %c0_33 = arith.constant 0 : index
    %c16_34 = arith.constant 16 : index
    %52 = vector.load %arg4[%c0_33, %c16_34] : memref<8x72xf32, #tpu.memory_space<vmem>>, vector<8x8xf32>
    %cst_35 = arith.constant dense<0.000000e+00> : vector<8x768xf32>
    %53 = tpu.matmul %52, %51, %cst_35 {dimension_numbers = #tpu.dot_dimension_numbers<[1], [0], [0], [1], [0, 0, 1, 1], [], []>} : vector<8x8xf32>, vector<8x768xf32>, vector<8x768xf32> -> vector<8x768xf32>
    %54 = arith.addf %50, %53 : vector<8x768xf32>
    %c1_i32_36 = arith.constant 1 : i32
    %55 = tpu.dynamic_rotate %43 by %c1_i32_36 dim 1 : vector<8x768xf32>, i32 -> vector<8x768xf32>
    %c0_37 = arith.constant 0 : index
    %c24_38 = arith.constant 24 : index
    %56 = vector.load %arg4[%c0_37, %c24_38] : memref<8x72xf32, #tpu.memory_space<vmem>>, vector<8x8xf32>
    %cst_39 = arith.constant dense<0.000000e+00> : vector<8x768xf32>
    %57 = tpu.matmul %56, %55, %cst_39 {dimension_numbers = #tpu.dot_dimension_numbers<[1], [0], [0], [1], [0, 0, 1, 1], [], []>} : vector<8x8xf32>, vector<8x768xf32>, vector<8x768xf32> -> vector<8x768xf32>
    %58 = arith.addf %54, %57 : vector<8x768xf32>
    %c0_40 = arith.constant 0 : index
    %c32_41 = arith.constant 32 : index
    %59 = vector.load %arg4[%c0_40, %c32_41] : memref<8x72xf32, #tpu.memory_space<vmem>>, vector<8x8xf32>
    %cst_42 = arith.constant dense<0.000000e+00> : vector<8x768xf32>
    %60 = tpu.matmul %59, %43, %cst_42 {dimension_numbers = #tpu.dot_dimension_numbers<[1], [0], [0], [1], [0, 0, 1, 1], [], []>} : vector<8x8xf32>, vector<8x768xf32>, vector<8x768xf32> -> vector<8x768xf32>
    %61 = arith.addf %58, %60 : vector<8x768xf32>
    %c767_i32_43 = arith.constant 767 : i32
    %62 = tpu.dynamic_rotate %43 by %c767_i32_43 dim 1 : vector<8x768xf32>, i32 -> vector<8x768xf32>
    %c0_44 = arith.constant 0 : index
    %c40_45 = arith.constant 40 : index
    %63 = vector.load %arg4[%c0_44, %c40_45] : memref<8x72xf32, #tpu.memory_space<vmem>>, vector<8x8xf32>
    %cst_46 = arith.constant dense<0.000000e+00> : vector<8x768xf32>
    %64 = tpu.matmul %63, %62, %cst_46 {dimension_numbers = #tpu.dot_dimension_numbers<[1], [0], [0], [1], [0, 0, 1, 1], [], []>} : vector<8x8xf32>, vector<8x768xf32>, vector<8x768xf32> -> vector<8x768xf32>
    %65 = arith.addf %61, %64 : vector<8x768xf32>
    %c751_i32_47 = arith.constant 751 : i32
    %66 = tpu.dynamic_rotate %43 by %c751_i32_47 dim 1 : vector<8x768xf32>, i32 -> vector<8x768xf32>
    %c0_48 = arith.constant 0 : index
    %c48_49 = arith.constant 48 : index
    %67 = vector.load %arg4[%c0_48, %c48_49] : memref<8x72xf32, #tpu.memory_space<vmem>>, vector<8x8xf32>
    %cst_50 = arith.constant dense<0.000000e+00> : vector<8x768xf32>
    %68 = tpu.matmul %67, %66, %cst_50 {dimension_numbers = #tpu.dot_dimension_numbers<[1], [0], [0], [1], [0, 0, 1, 1], [], []>} : vector<8x8xf32>, vector<8x768xf32>, vector<8x768xf32> -> vector<8x768xf32>
    %69 = arith.addf %65, %68 : vector<8x768xf32>
    %c750_i32_51 = arith.constant 750 : i32
    %70 = tpu.dynamic_rotate %43 by %c750_i32_51 dim 1 : vector<8x768xf32>, i32 -> vector<8x768xf32>
    %c0_52 = arith.constant 0 : index
    %c56_53 = arith.constant 56 : index
    %71 = vector.load %arg4[%c0_52, %c56_53] : memref<8x72xf32, #tpu.memory_space<vmem>>, vector<8x8xf32>
    %cst_54 = arith.constant dense<0.000000e+00> : vector<8x768xf32>
    %72 = tpu.matmul %71, %70, %cst_54 {dimension_numbers = #tpu.dot_dimension_numbers<[1], [0], [0], [1], [0, 0, 1, 1], [], []>} : vector<8x8xf32>, vector<8x768xf32>, vector<8x768xf32> -> vector<8x768xf32>
    %73 = arith.addf %69, %72 : vector<8x768xf32>
    %c749_i32_55 = arith.constant 749 : i32
    %74 = tpu.dynamic_rotate %43 by %c749_i32_55 dim 1 : vector<8x768xf32>, i32 -> vector<8x768xf32>
    %c0_56 = arith.constant 0 : index
    %c64_57 = arith.constant 64 : index
    %75 = vector.load %arg4[%c0_56, %c64_57] : memref<8x72xf32, #tpu.memory_space<vmem>>, vector<8x8xf32>
    %cst_58 = arith.constant dense<0.000000e+00> : vector<8x768xf32>
    %76 = tpu.matmul %75, %74, %cst_58 {dimension_numbers = #tpu.dot_dimension_numbers<[1], [0], [0], [1], [0, 0, 1, 1], [], []>} : vector<8x8xf32>, vector<8x768xf32>, vector<8x768xf32> -> vector<8x768xf32>
    %77 = arith.addf %73, %76 : vector<8x768xf32>
    %c0_59 = arith.constant 0 : index
    %c0_60 = arith.constant 0 : index
    %78 = vector.load %arg5[%c0_59, %c0_60] : memref<8x1xf32, #tpu.memory_space<vmem>>, vector<8x1xf32>
    %79 = vector.broadcast %78 : vector<8x1xf32> to vector<8x768xf32>
    %80 = arith.addf %77, %79 : vector<8x768xf32>
    %cst_61 = arith.constant 0.000000e+00 : f32
    %81 = vector.broadcast %cst_61 : f32 to vector<8x768xf32>
    %82 = arith.maximumf %80, %81 : vector<8x768xf32>
    %83 = arith.mulf %82, %2 : vector<8x768xf32>
    %c19_i32_62 = arith.constant 19 : i32
    %84 = tpu.dynamic_rotate %83 by %c19_i32_62 dim 1 : vector<8x768xf32>, i32 -> vector<8x768xf32>
    %c0_63 = arith.constant 0 : index
    %c0_64 = arith.constant 0 : index
    %85 = vector.load %arg6[%c0_63, %c0_64] : memref<8x72xf32, #tpu.memory_space<vmem>>, vector<8x8xf32>
    %cst_65 = arith.constant dense<0.000000e+00> : vector<8x768xf32>
    %86 = tpu.matmul %85, %84, %cst_65 {dimension_numbers = #tpu.dot_dimension_numbers<[1], [0], [0], [1], [0, 0, 1, 1], [], []>} : vector<8x8xf32>, vector<8x768xf32>, vector<8x768xf32> -> vector<8x768xf32>
    %c18_i32_66 = arith.constant 18 : i32
    %87 = tpu.dynamic_rotate %83 by %c18_i32_66 dim 1 : vector<8x768xf32>, i32 -> vector<8x768xf32>
    %c0_67 = arith.constant 0 : index
    %c8_68 = arith.constant 8 : index
    %88 = vector.load %arg6[%c0_67, %c8_68] : memref<8x72xf32, #tpu.memory_space<vmem>>, vector<8x8xf32>
    %cst_69 = arith.constant dense<0.000000e+00> : vector<8x768xf32>
    %89 = tpu.matmul %88, %87, %cst_69 {dimension_numbers = #tpu.dot_dimension_numbers<[1], [0], [0], [1], [0, 0, 1, 1], [], []>} : vector<8x8xf32>, vector<8x768xf32>, vector<8x768xf32> -> vector<8x768xf32>
    %90 = arith.addf %86, %89 : vector<8x768xf32>
    %c17_i32_70 = arith.constant 17 : i32
    %91 = tpu.dynamic_rotate %83 by %c17_i32_70 dim 1 : vector<8x768xf32>, i32 -> vector<8x768xf32>
    %c0_71 = arith.constant 0 : index
    %c16_72 = arith.constant 16 : index
    %92 = vector.load %arg6[%c0_71, %c16_72] : memref<8x72xf32, #tpu.memory_space<vmem>>, vector<8x8xf32>
    %cst_73 = arith.constant dense<0.000000e+00> : vector<8x768xf32>
    %93 = tpu.matmul %92, %91, %cst_73 {dimension_numbers = #tpu.dot_dimension_numbers<[1], [0], [0], [1], [0, 0, 1, 1], [], []>} : vector<8x8xf32>, vector<8x768xf32>, vector<8x768xf32> -> vector<8x768xf32>
    %94 = arith.addf %90, %93 : vector<8x768xf32>
    %c1_i32_74 = arith.constant 1 : i32
    %95 = tpu.dynamic_rotate %83 by %c1_i32_74 dim 1 : vector<8x768xf32>, i32 -> vector<8x768xf32>
    %c0_75 = arith.constant 0 : index
    %c24_76 = arith.constant 24 : index
    %96 = vector.load %arg6[%c0_75, %c24_76] : memref<8x72xf32, #tpu.memory_space<vmem>>, vector<8x8xf32>
    %cst_77 = arith.constant dense<0.000000e+00> : vector<8x768xf32>
    %97 = tpu.matmul %96, %95, %cst_77 {dimension_numbers = #tpu.dot_dimension_numbers<[1], [0], [0], [1], [0, 0, 1, 1], [], []>} : vector<8x8xf32>, vector<8x768xf32>, vector<8x768xf32> -> vector<8x768xf32>
    %98 = arith.addf %94, %97 : vector<8x768xf32>
    %c0_78 = arith.constant 0 : index
    %c32_79 = arith.constant 32 : index
    %99 = vector.load %arg6[%c0_78, %c32_79] : memref<8x72xf32, #tpu.memory_space<vmem>>, vector<8x8xf32>
    %cst_80 = arith.constant dense<0.000000e+00> : vector<8x768xf32>
    %100 = tpu.matmul %99, %83, %cst_80 {dimension_numbers = #tpu.dot_dimension_numbers<[1], [0], [0], [1], [0, 0, 1, 1], [], []>} : vector<8x8xf32>, vector<8x768xf32>, vector<8x768xf32> -> vector<8x768xf32>
    %101 = arith.addf %98, %100 : vector<8x768xf32>
    %c767_i32_81 = arith.constant 767 : i32
    %102 = tpu.dynamic_rotate %83 by %c767_i32_81 dim 1 : vector<8x768xf32>, i32 -> vector<8x768xf32>
    %c0_82 = arith.constant 0 : index
    %c40_83 = arith.constant 40 : index
    %103 = vector.load %arg6[%c0_82, %c40_83] : memref<8x72xf32, #tpu.memory_space<vmem>>, vector<8x8xf32>
    %cst_84 = arith.constant dense<0.000000e+00> : vector<8x768xf32>
    %104 = tpu.matmul %103, %102, %cst_84 {dimension_numbers = #tpu.dot_dimension_numbers<[1], [0], [0], [1], [0, 0, 1, 1], [], []>} : vector<8x8xf32>, vector<8x768xf32>, vector<8x768xf32> -> vector<8x768xf32>
    %105 = arith.addf %101, %104 : vector<8x768xf32>
    %c751_i32_85 = arith.constant 751 : i32
    %106 = tpu.dynamic_rotate %83 by %c751_i32_85 dim 1 : vector<8x768xf32>, i32 -> vector<8x768xf32>
    %c0_86 = arith.constant 0 : index
    %c48_87 = arith.constant 48 : index
    %107 = vector.load %arg6[%c0_86, %c48_87] : memref<8x72xf32, #tpu.memory_space<vmem>>, vector<8x8xf32>
    %cst_88 = arith.constant dense<0.000000e+00> : vector<8x768xf32>
    %108 = tpu.matmul %107, %106, %cst_88 {dimension_numbers = #tpu.dot_dimension_numbers<[1], [0], [0], [1], [0, 0, 1, 1], [], []>} : vector<8x8xf32>, vector<8x768xf32>, vector<8x768xf32> -> vector<8x768xf32>
    %109 = arith.addf %105, %108 : vector<8x768xf32>
    %c750_i32_89 = arith.constant 750 : i32
    %110 = tpu.dynamic_rotate %83 by %c750_i32_89 dim 1 : vector<8x768xf32>, i32 -> vector<8x768xf32>
    %c0_90 = arith.constant 0 : index
    %c56_91 = arith.constant 56 : index
    %111 = vector.load %arg6[%c0_90, %c56_91] : memref<8x72xf32, #tpu.memory_space<vmem>>, vector<8x8xf32>
    %cst_92 = arith.constant dense<0.000000e+00> : vector<8x768xf32>
    %112 = tpu.matmul %111, %110, %cst_92 {dimension_numbers = #tpu.dot_dimension_numbers<[1], [0], [0], [1], [0, 0, 1, 1], [], []>} : vector<8x8xf32>, vector<8x768xf32>, vector<8x768xf32> -> vector<8x768xf32>
    %113 = arith.addf %109, %112 : vector<8x768xf32>
    %c749_i32_93 = arith.constant 749 : i32
    %114 = tpu.dynamic_rotate %83 by %c749_i32_93 dim 1 : vector<8x768xf32>, i32 -> vector<8x768xf32>
    %c0_94 = arith.constant 0 : index
    %c64_95 = arith.constant 64 : index
    %115 = vector.load %arg6[%c0_94, %c64_95] : memref<8x72xf32, #tpu.memory_space<vmem>>, vector<8x8xf32>
    %cst_96 = arith.constant dense<0.000000e+00> : vector<8x768xf32>
    %116 = tpu.matmul %115, %114, %cst_96 {dimension_numbers = #tpu.dot_dimension_numbers<[1], [0], [0], [1], [0, 0, 1, 1], [], []>} : vector<8x8xf32>, vector<8x768xf32>, vector<8x768xf32> -> vector<8x768xf32>
    %117 = arith.addf %113, %116 : vector<8x768xf32>
    %c0_97 = arith.constant 0 : index
    %c0_98 = arith.constant 0 : index
    %118 = vector.load %arg7[%c0_97, %c0_98] : memref<8x1xf32, #tpu.memory_space<vmem>>, vector<8x1xf32>
    %119 = vector.broadcast %118 : vector<8x1xf32> to vector<8x768xf32>
    %120 = arith.addf %117, %119 : vector<8x768xf32>
    %cst_99 = arith.constant 0.000000e+00 : f32
    %121 = vector.broadcast %cst_99 : f32 to vector<8x768xf32>
    %122 = arith.maximumf %120, %121 : vector<8x768xf32>
    %c0_100 = arith.constant 0 : index
    %c0_101 = arith.constant 0 : index
    %123 = vector.load %arg8[%c0_100, %c0_101] : memref<8x768xf32, #tpu.memory_space<vmem>>, vector<8x768xf32>
    tpu.vector_store %arg8[%c0_100, %c0_101], %122 {strides = array<i32>} : memref<8x768xf32, #tpu.memory_space<vmem>>, vector<8x768xf32>,
    return
  }
}

</mosaic_0001>

<llo_original>
// kernel: naive_compressor_forward.1
$region0: #{naive_compressor_forward.1}
  #allocation0 [shape = 'u32[]', space=smem, size = 0x4, offset = 0x4, fixed_abs, tag = 'smem constant byte address 0x4 - core index']
  #allocation1 [shape = 'u32[144,128]{1,0:T(1,128)}', space=vmem, size = 0x12000, scoped, tag = 'internal scratch']
  %s0 = inlined_call_operand.vmem [shape: f32[8,768], index: 0, kind: input, shape index: {}]
  %s1 = inlined_call_operand.vmem [shape: f32[1,768], index: 1, kind: input, shape index: {}]
  %s2 = inlined_call_operand.vmem [shape: f32[8,72], index: 2, kind: input, shape index: {}]
  %s3 = inlined_call_operand.vmem [shape: f32[8,1], index: 3, kind: input, shape index: {}]
  %s4 = inlined_call_operand.vmem [shape: f32[8,72], index: 4, kind: input, shape index: {}]
  %s5 = inlined_call_operand.vmem [shape: f32[8,1], index: 5, kind: input, shape index: {}]
  %s6 = inlined_call_operand.vmem [shape: f32[8,72], index: 6, kind: input, shape index: {}]
  %s7 = inlined_call_operand.vmem [shape: f32[8,1], index: 7, kind: input, shape index: {}]
  %s8 = inlined_call_operand.vmem [shape: f32[8,768], index: 8, kind: output, shape index: {}]
  %s9 = sld [smem:[#allocation0]]
  $region42: #{naive_compressor_forward.1} parent=0
    _
  %s11 = ssub.s32 1, %s9
  %s12 = scalar_select 0, %s11, %s9
  // Predicated region
  $region2: #{naive_compressor_forward.1} parent=0 // pred_check
    _
  $region3: #{naive_compressor_forward.1} parent=0 // pred_check_branch
    %14 = sbr.rel (0) target = $region5
  $region4: #{naive_compressor_forward.1} parent=0 // pred_region
    _
  $region5: #{naive_compressor_forward.1} parent=0 // pred_fallthru
    _
  // Predicated region
  $region6: #{naive_compressor_forward.1} parent=0 // pred_check
    _
  $region7: #{naive_compressor_forward.1} parent=0 // pred_check_branch
    %16 = sbr.rel (0) target = $region9
  $region8: #{naive_compressor_forward.1} parent=0 // pred_region
    _
  $region9: #{naive_compressor_forward.1} parent=0 // pred_fallthru
    _
  // Predicated region
  $region10: #{naive_compressor_forward.1} parent=0 // pred_check
    _
  $region11: #{naive_compressor_forward.1} parent=0 // pred_check_branch
    %18 = sbr.rel (0) target = $region13
  $region12: #{naive_compressor_forward.1} parent=0 // pred_region
    _
  $region13: #{naive_compressor_forward.1} parent=0 // pred_fallthru
    _
  // Predicated region
  $region14: #{naive_compressor_forward.1} parent=0 // pred_check
    _
  $region15: #{naive_compressor_forward.1} parent=0 // pred_check_branch
    %20 = sbr.rel (0) target = $region17
  $region16: #{naive_compressor_forward.1} parent=0 // pred_region
    _
  $region17: #{naive_compressor_forward.1} parent=0 // pred_fallthru
    _
  // Predicated region
  $region18: #{naive_compressor_forward.1} parent=0 // pred_check
    _
  $region19: #{naive_compressor_forward.1} parent=0 // pred_check_branch
    %22 = sbr.rel (0) target = $region21
  $region20: #{naive_compressor_forward.1} parent=0 // pred_region
    _
  $region21: #{naive_compressor_forward.1} parent=0 // pred_fallthru
    _
  // Predicated region
  $region22: #{naive_compressor_forward.1} parent=0 // pred_check
    _
  $region23: #{naive_compressor_forward.1} parent=0 // pred_check_branch
    %24 = sbr.rel (0) target = $region25
  $region24: #{naive_compressor_forward.1} parent=0 // pred_region
    _
  $region25: #{naive_compressor_forward.1} parent=0 // pred_fallthru
    _
  // Predicated region
  $region26: #{naive_compressor_forward.1} parent=0 // pred_check
    _
  $region27: #{naive_compressor_forward.1} parent=0 // pred_check_branch
    %26 = sbr.rel (0) target = $region29
  $region28: #{naive_compressor_forward.1} parent=0 // pred_region
    _
  $region29: #{naive_compressor_forward.1} parent=0 // pred_fallthru
    _
  // Predicated region
  $region30: #{naive_compressor_forward.1} parent=0 // pred_check
    _
  $region31: #{naive_compressor_forward.1} parent=0 // pred_check_branch
    %28 = sbr.rel (0) target = $region33
  $region32: #{naive_compressor_forward.1} parent=0 // pred_region
    _
  $region33: #{naive_compressor_forward.1} parent=0 // pred_fallthru
    _
  %v29 = vld [vmem:[%s1] sm:$0x3f]
  %v31 = vlaneseq
  %v32 = vshrl.u32 %v31, 7
  %v33 = vsub.s32 0, %v32
  %v34 = vrot.slane %v29, %v33
  %v35 = vlaneseq
  %v36 = vshrl.u32 %v35, 7
  %v37 = vsub.s32 1, %v36
  %v38 = vrot.slane %v29, %v37
  %v39 = vlaneseq
  %v40 = vshrl.u32 %v39, 7
  %v41 = vsub.s32 2, %v40
  %v42 = vrot.slane %v29, %v41
  %v43 = vlaneseq
  %v44 = vshrl.u32 %v43, 7
  %v45 = vsub.s32 3, %v44
  %v46 = vrot.slane %v29, %v45
  %v47 = vlaneseq
  %v48 = vshrl.u32 %v47, 7
  %v49 = vsub.s32 4, %v48
  %v50 = vrot.slane %v29, %v49
  %v51 = vlaneseq
  %v52 = vshrl.u32 %v51, 7
  %v53 = vsub.s32 5, %v52
  %v54 = vrot.slane %v29, %v53
  %v61 = vld [vmem:[%s0] sm:$0xff]
  %v62 = vld [vmem:[%s0 + $0x8] sm:$0xff]
  %v63 = vld [vmem:[%s0 + $0x10] sm:$0xff]
  %v64 = vld [vmem:[%s0 + $0x18] sm:$0xff]
  %v65 = vld [vmem:[%s0 + $0x20] sm:$0xff]
  %v66 = vld [vmem:[%s0 + $0x28] sm:$0xff]
  %67 = vrot.lane.b32.xlu0 %v61, 19
  %v68 = vpop.permute.xlu0 %67
  %69 = vrot.lane.b32.xlu0 %v62, 19
  %v70 = vpop.permute.xlu0 %69
  %71 = vrot.lane.b32.xlu0 %v63, 19
  %v72 = vpop.permute.xlu0 %71
  %73 = vrot.lane.b32.xlu0 %v64, 19
  %v74 = vpop.permute.xlu0 %73
  %75 = vrot.lane.b32.xlu0 %v65, 19
  %v76 = vpop.permute.xlu0 %75
  %77 = vrot.lane.b32.xlu0 %v66, 19
  %v78 = vpop.permute.xlu0 %77
  %v79 = vlaneseq
  %v80 = vand.u32 %v79, 127
  %vm81 = vcmp.lt.s32.totalorder %v80, 19
  %v82 = vsel %vm81, %v76, %v78
  %v83 = vsel %vm81, %v74, %v76
  %v84 = vsel %vm81, %v72, %v74
  %v85 = vsel %vm81, %v70, %v72
  %v86 = vsel %vm81, %v68, %v70
  %v87 = vsel %vm81, %v78, %v68
  %v88 = vld [vmem:[%s2] sm:$0xff]
  %89 = vrot.lane.b32.xlu0 %v61, 18
  %v90 = vpop.permute.xlu0 %89
  %91 = vrot.lane.b32.xlu0 %v62, 18
  %v92 = vpop.permute.xlu0 %91
  %93 = vrot.lane.b32.xlu0 %v63, 18
  %v94 = vpop.permute.xlu0 %93
  %95 = vrot.lane.b32.xlu0 %v64, 18
  %v96 = vpop.permute.xlu0 %95
  %97 = vrot.lane.b32.xlu0 %v65, 18
  %v98 = vpop.permute.xlu0 %97
  %99 = vrot.lane.b32.xlu0 %v66, 18
  %v100 = vpop.permute.xlu0 %99
  %vm101 = vcmp.lt.s32.totalorder %v80, 18
  %v102 = vsel %vm101, %v98, %v100
  %v103 = vsel %vm101, %v96, %v98
  %v104 = vsel %vm101, %v94, %v96
  %v105 = vsel %vm101, %v92, %v94
  %v106 = vsel %vm101, %v90, %v92
  %v107 = vsel %vm101, %v100, %v90
  %109 = vrot.lane.b32.xlu0 %v88, 120
  %v110 = vpop.permute.xlu0 %109
  %vm111 = vcmask 64512
  %v112 = vsel %vm111, %v110, 0
  %114 = vmatprep.subr.mxu0 0.0
  %115 = vmatpush1.msra.mxu0 0.0
  %116 = vmatprep.subr.mxu0 0.0
  %117 = vmatpush1.msra.mxu0 0.0
  %118 = vmatprep.subr.mxu0 0.0
  %119 = vmatpush1.msra.mxu0 0.0
  %120 = vmatprep.subr.mxu0 0.0
  %121 = vmatpush1.msra.mxu0 0.0
  %122 = vmatprep.subr.mxu0 0.0
  %123 = vmatpush1.msra.mxu0 0.0
  %124 = vmatprep.subr.mxu0 0.0
  %125 = vmatpush1.msra.mxu0 0.0
  %126 = vmatprep.subr.mxu0 0.0
  %127 = vmatpush1.msra.mxu0 0.0
  %128 = vmatprep.subr.mxu0 0.0
  %129 = vmatpush1.msra.mxu0 0.0
  %130 = vmatprep.subr.mxu0 0.0
  %131 = vmatpush1.msra.mxu0 0.0
  %132 = vmatprep.subr.mxu0 0.0
  %133 = vmatpush1.msra.mxu0 0.0
  %134 = vmatprep.subr.mxu0 0.0
  %135 = vmatpush1.msra.mxu0 0.0
  %136 = vmatprep.subr.mxu0 0.0
  %137 = vmatpush1.msra.mxu0 0.0
  %138 = vmatprep.subr.mxu0 0.0
  %139 = vmatpush1.msra.mxu0 0.0
  %140 = vmatprep.subr.mxu0 0.0
  %141 = vmatpush1.msra.mxu0 0.0
  %142 = vmatprep.subr.mxu0 0.0
  %143 = vmatpush1.msra.mxu0 0.0
  %144 = vmatprep.subr.mxu0 %v106
  %145 = vmatpush1.msra.mxu0 %v107
  %146 = vmatprep.subr.mxu0 0.0
  %147 = vmatpush2.msra.mxu0 0.0
  %148 = vmatprep.subr.mxu0 0.0
  %149 = vmatpush2.msra.mxu0 0.0
  %150 = vmatprep.subr.mxu0 0.0
  %151 = vmatpush2.msra.mxu0 0.0
  %152 = vmatprep.subr.mxu0 0.0
  %153 = vmatpush2.msra.mxu0 0.0
  %154 = vmatprep.subr.mxu0 0.0
  %155 = vmatpush2.msra.mxu0 0.0
  %156 = vmatprep.subr.mxu0 0.0
  %157 = vmatpush2.msra.mxu0 0.0
  %158 = vmatprep.subr.mxu0 0.0
  %159 = vmatpush2.msra.mxu0 0.0
  %160 = vmatprep.subr.mxu0 0.0
  %161 = vmatpush2.msra.mxu0 0.0
  %162 = vmatprep.subr.mxu0 0.0
  %163 = vmatpush2.msra.mxu0 0.0
  %164 = vmatprep.subr.mxu0 0.0
  %165 = vmatpush2.msra.mxu0 0.0
  %166 = vmatprep.subr.mxu0 0.0
  %167 = vmatpush2.msra.mxu0 0.0
  %168 = vmatprep.subr.mxu0 0.0
  %169 = vmatpush2.msra.mxu0 0.0
  %170 = vmatprep.subr.mxu0 0.0
  %171 = vmatpush2.msra.mxu0 0.0
  %172 = vmatprep.subr.mxu0 0.0
  %173 = vmatpush2.msra.mxu0 0.0
  %174 = vmatprep.subr.mxu0 0.0
  %175 = vmatpush2.msra.mxu0 0.0
  %176 = vmatprep.subr.mxu0 0.0
  %177 = vmatpush2.msra.mxu0 0.0
  %178 = vmatprep.mubr.f32.mxu0 0.0
  %179 = vmatmul.mubr.f32.gmra.mxu0 %v112
  %v180 = vpop.f32.mrf.mxu0
  %v181 = vadd.f32 0.0, %v180
  %v182 = vpop.f32.mrf.mxu0
  %v183 = vadd.f32 0.0, %v182
  %184 = vdwg.mxu0
  %185 = vmatprep.subr.mxu0 0.0
  %186 = vmatpush1.msra.mxu0 0.0
  %187 = vmatprep.subr.mxu0 0.0
  %188 = vmatpush1.msra.mxu0 0.0
  %189 = vmatprep.subr.mxu0 0.0
  %190 = vmatpush1.msra.mxu0 0.0
  %191 = vmatprep.subr.mxu0 0.0
  %192 = vmatpush1.msra.mxu0 0.0
  %193 = vmatprep.subr.mxu0 0.0
  %194 = vmatpush1.msra.mxu0 0.0
  %195 = vmatprep.subr.mxu0 0.0
  %196 = vmatpush1.msra.mxu0 0.0
  %197 = vmatprep.subr.mxu0 0.0
  %198 = vmatpush1.msra.mxu0 0.0
  %199 = vmatprep.subr.mxu0 0.0
  %200 = vmatpush1.msra.mxu0 0.0
  %201 = vmatprep.subr.mxu0 0.0
  %202 = vmatpush1.msra.mxu0 0.0
  %203 = vmatprep.subr.mxu0 0.0
  %204 = vmatpush1.msra.mxu0 0.0
  %205 = vmatprep.subr.mxu0 0.0
  %206 = vmatpush1.msra.mxu0 0.0
  %207 = vmatprep.subr.mxu0 0.0
  %208 = vmatpush1.msra.mxu0 0.0
  %209 = vmatprep.subr.mxu0 0.0
  %210 = vmatpush1.msra.mxu0 0.0
  %211 = vmatprep.subr.mxu0 0.0
  %212 = vmatpush1.msra.mxu0 0.0
  %213 = vmatprep.subr.mxu0 0.0
  %214 = vmatpush1.msra.mxu0 0.0
  %215 = vmatprep.subr.mxu0 %v104
  %216 = vmatpush1.msra.mxu0 %v105
  %217 = vmatprep.subr.mxu0 0.0
  %218 = vmatpush2.msra.mxu0 0.0
  %219 = vmatprep.subr.mxu0 0.0
  %220 = vmatpush2.msra.mxu0 0.0
  %221 = vmatprep.subr.mxu0 0.0
  %222 = vmatpush2.msra.mxu0 0.0
  %223 = vmatprep.subr.mxu0 0.0
  %224 = vmatpush2.msra.mxu0 0.0
  %225 = vmatprep.subr.mxu0 0.0
  %226 = vmatpush2.msra.mxu0 0.0
  %227 = vmatprep.subr.mxu0 0.0
  %228 = vmatpush2.msra.mxu0 0.0
  %229 = vmatprep.subr.mxu0 0.0
  %230 = vmatpush2.msra.mxu0 0.0
  %231 = vmatprep.subr.mxu0 0.0
  %232 = vmatpush2.msra.mxu0 0.0
  %233 = vmatprep.subr.mxu0 0.0
  %234 = vmatpush2.msra.mxu0 0.0
  %235 = vmatprep.subr.mxu0 0.0
  %236 = vmatpush2.msra.mxu0 0.0
  %237 = vmatprep.subr.mxu0 0.0
  %238 = vmatpush2.msra.mxu0 0.0
  %239 = vmatprep.subr.mxu0 0.0
  %240 = vmatpush2.msra.mxu0 0.0
  %241 = vmatprep.subr.mxu0 0.0
  %242 = vmatpush2.msra.mxu0 0.0
  %243 = vmatprep.subr.mxu0 0.0
  %244 = vmatpush2.msra.mxu0 0.0
  %245 = vmatprep.subr.mxu0 0.0
  %246 = vmatpush2.msra.mxu0 0.0
  %247 = vmatprep.subr.mxu0 0.0
  %248 = vmatpush2.msra.mxu0 0.0
  %249 = vmatprep.mubr.f32.mxu0 0.0
  %250 = vmatmul.mubr.f32.gmra.mxu0 %v112
  %v251 = vpop.f32.mrf.mxu0
  %v252 = vadd.f32 0.0, %v251
  %v253 = vpop.f32.mrf.mxu0
  %v254 = vadd.f32 0.0, %v253
  %255 = vdwg.mxu0
  %256 = vmatprep.subr.mxu0 0.0
  %257 = vmatpush1.msra.mxu0 0.0
  %258 = vmatprep.subr.mxu0 0.0
  %259 = vmatpush1.msra.mxu0 0.0
  %260 = vmatprep.subr.mxu0 0.0
  %261 = vmatpush1.msra.mxu0 0.0
  %262 = vmatprep.subr.mxu0 0.0
  %263 = vmatpush1.msra.mxu0 0.0
  %264 = vmatprep.subr.mxu0 0.0
  %265 = vmatpush1.msra.mxu0 0.0
  %266 = vmatprep.subr.mxu0 0.0
  %267 = vmatpush1.msra.mxu0 0.0
  %268 = vmatprep.subr.mxu0 0.0
  %269 = vmatpush1.msra.mxu0 0.0
  %270 = vmatprep.subr.mxu0 0.0
  %271 = vmatpush1.msra.mxu0 0.0
  %272 = vmatprep.subr.mxu0 0.0
  %273 = vmatpush1.msra.mxu0 0.0
  %274 = vmatprep.subr.mxu0 0.0
  %275 = vmatpush1.msra.mxu0 0.0
  %276 = vmatprep.subr.mxu0 0.0
  %277 = vmatpush1.msra.mxu0 0.0
  %278 = vmatprep.subr.mxu0 0.0
  %279 = vmatpush1.msra.mxu0 0.0
  %280 = vmatprep.subr.mxu0 0.0
  %281 = vmatpush1.msra.mxu0 0.0
  %282 = vmatprep.subr.mxu0 0.0
  %283 = vmatpush1.msra.mxu0 0.0
  %284 = vmatprep.subr.mxu0 0.0
  %285 = vmatpush1.msra.mxu0 0.0
  %286 = vmatprep.subr.mxu0 %v102
  %287 = vmatpush1.msra.mxu0 %v103
  %288 = vmatprep.subr.mxu0 0.0
  %289 = vmatpush2.msra.mxu0 0.0
  %290 = vmatprep.subr.mxu0 0.0
  %291 = vmatpush2.msra.mxu0 0.0
  %292 = vmatprep.subr.mxu0 0.0
  %293 = vmatpush2.msra.mxu0 0.0
  %294 = vmatprep.subr.mxu0 0.0
  %295 = vmatpush2.msra.mxu0 0.0
  %296 = vmatprep.subr.mxu0 0.0
  %297 = vmatpush2.msra.mxu0 0.0
  %298 = vmatprep.subr.mxu0 0.0
  %299 = vmatpush2.msra.mxu0 0.0
  %300 = vmatprep.subr.mxu0 0.0
  %301 = vmatpush2.msra.mxu0 0.0
  %302 = vmatprep.subr.mxu0 0.0
  %303 = vmatpush2.msra.mxu0 0.0
  %304 = vmatprep.subr.mxu0 0.0
  %305 = vmatpush2.msra.mxu0 0.0
  %306 = vmatprep.subr.mxu0 0.0
  %307 = vmatpush2.msra.mxu0 0.0
  %308 = vmatprep.subr.mxu0 0.0
  %309 = vmatpush2.msra.mxu0 0.0
  %310 = vmatprep.subr.mxu0 0.0
  %311 = vmatpush2.msra.mxu0 0.0
  %312 = vmatprep.subr.mxu0 0.0
  %313 = vmatpush2.msra.mxu0 0.0
  %314 = vmatprep.subr.mxu0 0.0
  %315 = vmatpush2.msra.mxu0 0.0
  %316 = vmatprep.subr.mxu0 0.0
  %317 = vmatpush2.msra.mxu0 0.0
  %318 = vmatprep.subr.mxu0 0.0
  %319 = vmatpush2.msra.mxu0 0.0
  %320 = vmatprep.mubr.f32.mxu0 0.0
  %321 = vmatmul.mubr.f32.gmra.mxu0 %v112
  %v322 = vpop.f32.mrf.mxu0
  %v323 = vadd.f32 0.0, %v322
  %v324 = vpop.f32.mrf.mxu0
  %v325 = vadd.f32 0.0, %v324
  %326 = vdwg.mxu0
  %v327 = vsel %vm111, %v88, 0
  %329 = vmatprep.subr.mxu0 0.0
  %330 = vmatpush1.msra.mxu0 0.0
  %331 = vmatprep.subr.mxu0 0.0
  %332 = vmatpush1.msra.mxu0 0.0
  %333 = vmatprep.subr.mxu0 0.0
  %334 = vmatpush1.msra.mxu0 0.0
  %335 = vmatprep.subr.mxu0 0.0
  %336 = vmatpush1.msra.mxu0 0.0
  %337 = vmatprep.subr.mxu0 0.0
  %338 = vmatpush1.msra.mxu0 0.0
  %339 = vmatprep.subr.mxu0 0.0
  %340 = vmatpush1.msra.mxu0 0.0
  %341 = vmatprep.subr.mxu0 0.0
  %342 = vmatpush1.msra.mxu0 0.0
  %343 = vmatprep.subr.mxu0 0.0
  %344 = vmatpush1.msra.mxu0 0.0
  %345 = vmatprep.subr.mxu0 0.0
  %346 = vmatpush1.msra.mxu0 0.0
  %347 = vmatprep.subr.mxu0 0.0
  %348 = vmatpush1.msra.mxu0 0.0
  %349 = vmatprep.subr.mxu0 0.0
  %350 = vmatpush1.msra.mxu0 0.0
  %351 = vmatprep.subr.mxu0 0.0
  %352 = vmatpush1.msra.mxu0 0.0
  %353 = vmatprep.subr.mxu0 0.0
  %354 = vmatpush1.msra.mxu0 0.0
  %355 = vmatprep.subr.mxu0 0.0
  %356 = vmatpush1.msra.mxu0 0.0
  %357 = vmatprep.subr.mxu0 0.0
  %358 = vmatpush1.msra.mxu0 0.0
  %359 = vmatprep.subr.mxu0 %v86
  %360 = vmatpush1.msra.mxu0 %v87
  %361 = vmatprep.subr.mxu0 0.0
  %362 = vmatpush2.msra.mxu0 0.0
  %363 = vmatprep.subr.mxu0 0.0
  %364 = vmatpush2.msra.mxu0 0.0
  %365 = vmatprep.subr.mxu0 0.0
  %366 = vmatpush2.msra.mxu0 0.0
  %367 = vmatprep.subr.mxu0 0.0
  %368 = vmatpush2.msra.mxu0 0.0
  %369 = vmatprep.subr.mxu0 0.0
  %370 = vmatpush2.msra.mxu0 0.0
  %371 = vmatprep.subr.mxu0 0.0
  %372 = vmatpush2.msra.mxu0 0.0
  %373 = vmatprep.subr.mxu0 0.0
  %374 = vmatpush2.msra.mxu0 0.0
  %375 = vmatprep.subr.mxu0 0.0
  %376 = vmatpush2.msra.mxu0 0.0
  %377 = vmatprep.subr.mxu0 0.0
  %378 = vmatpush2.msra.mxu0 0.0
  %379 = vmatprep.subr.mxu0 0.0
  %380 = vmatpush2.msra.mxu0 0.0
  %381 = vmatprep.subr.mxu0 0.0
  %382 = vmatpush2.msra.mxu0 0.0
  %383 = vmatprep.subr.mxu0 0.0
  %384 = vmatpush2.msra.mxu0 0.0
  %385 = vmatprep.subr.mxu0 0.0
  %386 = vmatpush2.msra.mxu0 0.0
  %387 = vmatprep.subr.mxu0 0.0
  %388 = vmatpush2.msra.mxu0 0.0
  %389 = vmatprep.subr.mxu0 0.0
  %390 = vmatpush2.msra.mxu0 0.0
  %391 = vmatprep.subr.mxu0 0.0
  %392 = vmatpush2.msra.mxu0 0.0
  %393 = vmatprep.mubr.f32.mxu0 0.0
  %394 = vmatmul.mubr.f32.gmra.mxu0 %v327
  %v395 = vpop.f32.mrf.mxu0
  %v396 = vadd.f32 %v181, %v395
  %v397 = vpop.f32.mrf.mxu0
  %v398 = vadd.f32 %v183, %v397
  %399 = vdwg.mxu0
  %400 = vmatprep.subr.mxu0 0.0
  %401 = vmatpush1.msra.mxu0 0.0
  %402 = vmatprep.subr.mxu0 0.0
  %403 = vmatpush1.msra.mxu0 0.0
  %404 = vmatprep.subr.mxu0 0.0
  %405 = vmatpush1.msra.mxu0 0.0
  %406 = vmatprep.subr.mxu0 0.0
  %407 = vmatpush1.msra.mxu0 0.0
  %408 = vmatprep.subr.mxu0 0.0
  %409 = vmatpush1.msra.mxu0 0.0
  %410 = vmatprep.subr.mxu0 0.0
  %411 = vmatpush1.msra.mxu0 0.0
  %412 = vmatprep.subr.mxu0 0.0
  %413 = vmatpush1.msra.mxu0 0.0
  %414 = vmatprep.subr.mxu0 0.0
  %415 = vmatpush1.msra.mxu0 0.0
  %416 = vmatprep.subr.mxu0 0.0
  %417 = vmatpush1.msra.mxu0 0.0
  %418 = vmatprep.subr.mxu0 0.0
  %419 = vmatpush1.msra.mxu0 0.0
  %420 = vmatprep.subr.mxu0 0.0
  %421 = vmatpush1.msra.mxu0 0.0
  %422 = vmatprep.subr.mxu0 0.0
  %423 = vmatpush1.msra.mxu0 0.0
  %424 = vmatprep.subr.mxu0 0.0
  %425 = vmatpush1.msra.mxu0 0.0
  %426 = vmatprep.subr.mxu0 0.0
  %427 = vmatpush1.msra.mxu0 0.0
  %428 = vmatprep.subr.mxu0 0.0
  %429 = vmatpush1.msra.mxu0 0.0
  %430 = vmatprep.subr.mxu0 %v84
  %431 = vmatpush1.msra.mxu0 %v85
  %432 = vmatprep.subr.mxu0 0.0
  %433 = vmatpush2.msra.mxu0 0.0
  %434 = vmatprep.subr.mxu0 0.0
  %435 = vmatpush2.msra.mxu0 0.0
  %436 = vmatprep.subr.mxu0 0.0
  %437 = vmatpush2.msra.mxu0 0.0
  %438 = vmatprep.subr.mxu0 0.0
  %439 = vmatpush2.msra.mxu0 0.0
  %440 = vmatprep.subr.mxu0 0.0
  %441 = vmatpush2.msra.mxu0 0.0
  %442 = vmatprep.subr.mxu0 0.0
  %443 = vmatpush2.msra.mxu0 0.0
  %444 = vmatprep.subr.mxu0 0.0
  %445 = vmatpush2.msra.mxu0 0.0
  %446 = vmatprep.subr.mxu0 0.0
  %447 = vmatpush2.msra.mxu0 0.0
  %448 = vmatprep.subr.mxu0 0.0
  %449 = vmatpush2.msra.mxu0 0.0
  %450 = vmatprep.subr.mxu0 0.0
  %451 = vmatpush2.msra.mxu0 0.0
  %452 = vmatprep.subr.mxu0 0.0
  %453 = vmatpush2.msra.mxu0 0.0
  %454 = vmatprep.subr.mxu0 0.0
  %455 = vmatpush2.msra.mxu0 0.0
  %456 = vmatprep.subr.mxu0 0.0
  %457 = vmatpush2.msra.mxu0 0.0
  %458 = vmatprep.subr.mxu0 0.0
  %459 = vmatpush2.msra.mxu0 0.0
  %460 = vmatprep.subr.mxu0 0.0
  %461 = vmatpush2.msra.mxu0 0.0
  %462 = vmatprep.subr.mxu0 0.0
  %463 = vmatpush2.msra.mxu0 0.0
  %464 = vmatprep.mubr.f32.mxu0 0.0
  %465 = vmatmul.mubr.f32.gmra.mxu0 %v327
  %v466 = vpop.f32.mrf.mxu0
  %v467 = vadd.f32 %v252, %v466
  %v468 = vpop.f32.mrf.mxu0
  %v469 = vadd.f32 %v254, %v468
  %470 = vdwg.mxu0
  %471 = vmatprep.subr.mxu0 0.0
  %472 = vmatpush1.msra.mxu0 0.0
  %473 = vmatprep.subr.mxu0 0.0
  %474 = vmatpush1.msra.mxu0 0.0
  %475 = vmatprep.subr.mxu0 0.0
  %476 = vmatpush1.msra.mxu0 0.0
  %477 = vmatprep.subr.mxu0 0.0
  %478 = vmatpush1.msra.mxu0 0.0
  %479 = vmatprep.subr.mxu0 0.0
  %480 = vmatpush1.msra.mxu0 0.0
  %481 = vmatprep.subr.mxu0 0.0
  %482 = vmatpush1.msra.mxu0 0.0
  %483 = vmatprep.subr.mxu0 0.0
  %484 = vmatpush1.msra.mxu0 0.0
  %485 = vmatprep.subr.mxu0 0.0
  %486 = vmatpush1.msra.mxu0 0.0
  %487 = vmatprep.subr.mxu0 0.0
  %488 = vmatpush1.msra.mxu0 0.0
  %489 = vmatprep.subr.mxu0 0.0
  %490 = vmatpush1.msra.mxu0 0.0
  %491 = vmatprep.subr.mxu0 0.0
  %492 = vmatpush1.msra.mxu0 0.0
  %493 = vmatprep.subr.mxu0 0.0
  %494 = vmatpush1.msra.mxu0 0.0
  %495 = vmatprep.subr.mxu0 0.0
  %496 = vmatpush1.msra.mxu0 0.0
  %497 = vmatprep.subr.mxu0 0.0
  %498 = vmatpush1.msra.mxu0 0.0
  %499 = vmatprep.subr.mxu0 0.0
  %500 = vmatpush1.msra.mxu0 0.0
  %501 = vmatprep.subr.mxu0 %v82
  %502 = vmatpush1.msra.mxu0 %v83
  %503 = vmatprep.subr.mxu0 0.0
  %504 = vmatpush2.msra.mxu0 0.0
  %505 = vmatprep.subr.mxu0 0.0
  %506 = vmatpush2.msra.mxu0 0.0
  %507 = vmatprep.subr.mxu0 0.0
  %508 = vmatpush2.msra.mxu0 0.0
  %509 = vmatprep.subr.mxu0 0.0
  %510 = vmatpush2.msra.mxu0 0.0
  %511 = vmatprep.subr.mxu0 0.0
  %512 = vmatpush2.msra.mxu0 0.0
  %513 = vmatprep.subr.mxu0 0.0
  %514 = vmatpush2.msra.mxu0 0.0
  %515 = vmatprep.subr.mxu0 0.0
  %516 = vmatpush2.msra.mxu0 0.0
  %517 = vmatprep.subr.mxu0 0.0
  %518 = vmatpush2.msra.mxu0 0.0
  %519 = vmatprep.subr.mxu0 0.0
  %520 = vmatpush2.msra.mxu0 0.0
  %521 = vmatprep.subr.mxu0 0.0
  %522 = vmatpush2.msra.mxu0 0.0
  %523 = vmatprep.subr.mxu0 0.0
  %524 = vmatpush2.msra.mxu0 0.0
  %525 = vmatprep.subr.mxu0 0.0
  %526 = vmatpush2.msra.mxu0 0.0
  %527 = vmatprep.subr.mxu0 0.0
  %528 = vmatpush2.msra.mxu0 0.0
  %529 = vmatprep.subr.mxu0 0.0
  %530 = vmatpush2.msra.mxu0 0.0
  %531 = vmatprep.subr.mxu0 0.0
  %532 = vmatpush2.msra.mxu0 0.0
  %533 = vmatprep.subr.mxu0 0.0
  %534 = vmatpush2.msra.mxu0 0.0
  %535 = vmatprep.mubr.f32.mxu0 0.0
  %536 = vmatmul.mubr.f32.gmra.mxu0 %v327
  %v537 = vpop.f32.mrf.mxu0
  %v538 = vadd.f32 %v323, %v537
  %v539 = vpop.f32.mrf.mxu0
  %v540 = vadd.f32 %v325, %v539
  %541 = vdwg.mxu0
  %542 = vrot.lane.b32.xlu0 %v61, 17
  %v543 = vpop.permute.xlu0 %542
  %544 = vrot.lane.b32.xlu0 %v62, 17
  %v545 = vpop.permute.xlu0 %544
  %546 = vrot.lane.b32.xlu0 %v63, 17
  %v547 = vpop.permute.xlu0 %546
  %548 = vrot.lane.b32.xlu0 %v64, 17
  %v549 = vpop.permute.xlu0 %548
  %550 = vrot.lane.b32.xlu0 %v65, 17
  %v551 = vpop.permute.xlu0 %550
  %552 = vrot.lane.b32.xlu0 %v66, 17
  %v553 = vpop.permute.xlu0 %552
  %vm554 = vcmp.lt.s32.totalorder %v80, 17
  %v555 = vsel %vm554, %v551, %v553
  %v556 = vsel %vm554, %v549, %v551
  %v557 = vsel %vm554, %v547, %v549
  %v558 = vsel %vm554, %v545, %v547
  %v559 = vsel %vm554, %v543, %v545
  %v560 = vsel %vm554, %v553, %v543
  %561 = vrot.lane.b32.xlu0 %v88, 112
  %v562 = vpop.permute.xlu0 %561
  %v563 = vsel %vm111, %v562, 0
  %565 = vmatprep.subr.mxu0 0.0
  %566 = vmatpush1.msra.mxu0 0.0
  %567 = vmatprep.subr.mxu0 0.0
  %568 = vmatpush1.msra.mxu0 0.0
  %569 = vmatprep.subr.mxu0 0.0
  %570 = vmatpush1.msra.mxu0 0.0
  %571 = vmatprep.subr.mxu0 0.0
  %572 = vmatpush1.msra.mxu0 0.0
  %573 = vmatprep.subr.mxu0 0.0
  %574 = vmatpush1.msra.mxu0 0.0
  %575 = vmatprep.subr.mxu0 0.0
  %576 = vmatpush1.msra.mxu0 0.0
  %577 = vmatprep.subr.mxu0 0.0
  %578 = vmatpush1.msra.mxu0 0.0
  %579 = vmatprep.subr.mxu0 0.0
  %580 = vmatpush1.msra.mxu0 0.0
  %581 = vmatprep.subr.mxu0 0.0
  %582 = vmatpush1.msra.mxu0 0.0
  %583 = vmatprep.subr.mxu0 0.0
  %584 = vmatpush1.msra.mxu0 0.0
  %585 = vmatprep.subr.mxu0 0.0
  %586 = vmatpush1.msra.mxu0 0.0
  %587 = vmatprep.subr.mxu0 0.0
  %588 = vmatpush1.msra.mxu0 0.0
  %589 = vmatprep.subr.mxu0 0.0
  %590 = vmatpush1.msra.mxu0 0.0
  %591 = vmatprep.subr.mxu0 0.0
  %592 = vmatpush1.msra.mxu0 0.0
  %593 = vmatprep.subr.mxu0 0.0
  %594 = vmatpush1.msra.mxu0 0.0
  %595 = vmatprep.subr.mxu0 %v559
  %596 = vmatpush1.msra.mxu0 %v560
  %597 = vmatprep.subr.mxu0 0.0
  %598 = vmatpush2.msra.mxu0 0.0
  %599 = vmatprep.subr.mxu0 0.0
  %600 = vmatpush2.msra.mxu0 0.0
  %601 = vmatprep.subr.mxu0 0.0
  %602 = vmatpush2.msra.mxu0 0.0
  %603 = vmatprep.subr.mxu0 0.0
  %604 = vmatpush2.msra.mxu0 0.0
  %605 = vmatprep.subr.mxu0 0.0
  %606 = vmatpush2.msra.mxu0 0.0
  %607 = vmatprep.subr.mxu0 0.0
  %608 = vmatpush2.msra.mxu0 0.0
  %609 = vmatprep.subr.mxu0 0.0
  %610 = vmatpush2.msra.mxu0 0.0
  %611 = vmatprep.subr.mxu0 0.0
  %612 = vmatpush2.msra.mxu0 0.0
  %613 = vmatprep.subr.mxu0 0.0
  %614 = vmatpush2.msra.mxu0 0.0
  %615 = vmatprep.subr.mxu0 0.0
  %616 = vmatpush2.msra.mxu0 0.0
  %617 = vmatprep.subr.mxu0 0.0
  %618 = vmatpush2.msra.mxu0 0.0
  %619 = vmatprep.subr.mxu0 0.0
  %620 = vmatpush2.msra.mxu0 0.0
  %621 = vmatprep.subr.mxu0 0.0
  %622 = vmatpush2.msra.mxu0 0.0
  %623 = vmatprep.subr.mxu0 0.0
  %624 = vmatpush2.msra.mxu0 0.0
  %625 = vmatprep.subr.mxu0 0.0
  %626 = vmatpush2.msra.mxu0 0.0
  %627 = vmatprep.subr.mxu0 0.0
  %628 = vmatpush2.msra.mxu0 0.0
  %629 = vmatprep.mubr.f32.mxu0 0.0
  %630 = vmatmul.mubr.f32.gmra.mxu0 %v563
  %v631 = vpop.f32.mrf.mxu0
  %v632 = vadd.f32 0.0, %v631
  %v633 = vpop.f32.mrf.mxu0
  %v634 = vadd.f32 0.0, %v633
  %635 = vdwg.mxu0
  %636 = vmatprep.subr.mxu0 0.0
  %637 = vmatpush1.msra.mxu0 0.0
  %638 = vmatprep.subr.mxu0 0.0
  %639 = vmatpush1.msra.mxu0 0.0
  %640 = vmatprep.subr.mxu0 0.0
  %641 = vmatpush1.msra.mxu0 0.0
  %642 = vmatprep.subr.mxu0 0.0
  %643 = vmatpush1.msra.mxu0 0.0
  %644 = vmatprep.subr.mxu0 0.0
  %645 = vmatpush1.msra.mxu0 0.0
  %646 = vmatprep.subr.mxu0 0.0
  %647 = vmatpush1.msra.mxu0 0.0
  %648 = vmatprep.subr.mxu0 0.0
  %649 = vmatpush1.msra.mxu0 0.0
  %650 = vmatprep.subr.mxu0 0.0
  %651 = vmatpush1.msra.mxu0 0.0
  %652 = vmatprep.subr.mxu0 0.0
  %653 = vmatpush1.msra.mxu0 0.0
  %654 = vmatprep.subr.mxu0 0.0
  %655 = vmatpush1.msra.mxu0 0.0
  %656 = vmatprep.subr.mxu0 0.0
  %657 = vmatpush1.msra.mxu0 0.0
  %658 = vmatprep.subr.mxu0 0.0
  %659 = vmatpush1.msra.mxu0 0.0
  %660 = vmatprep.subr.mxu0 0.0
  %661 = vmatpush1.msra.mxu0 0.0
  %662 = vmatprep.subr.mxu0 0.0
  %663 = vmatpush1.msra.mxu0 0.0
  %664 = vmatprep.subr.mxu0 0.0
  %665 = vmatpush1.msra.mxu0 0.0
  %666 = vmatprep.subr.mxu0 %v557
  %667 = vmatpush1.msra.mxu0 %v558
  %668 = vmatprep.subr.mxu0 0.0
  %669 = vmatpush2.msra.mxu0 0.0
  %670 = vmatprep.subr.mxu0 0.0
  %671 = vmatpush2.msra.mxu0 0.0
  %672 = vmatprep.subr.mxu0 0.0
  %673 = vmatpush2.msra.mxu0 0.0
  %674 = vmatprep.subr.mxu0 0.0
  %675 = vmatpush2.msra.mxu0 0.0
  %676 = vmatprep.subr.mxu0 0.0
  %677 = vmatpush2.msra.mxu0 0.0
  %678 = vmatprep.subr.mxu0 0.0
  %679 = vmatpush2.msra.mxu0 0.0
  %680 = vmatprep.subr.mxu0 0.0
  %681 = vmatpush2.msra.mxu0 0.0
  %682 = vmatprep.subr.mxu0 0.0
  %683 = vmatpush2.msra.mxu0 0.0
  %684 = vmatprep.subr.mxu0 0.0
  %685 = vmatpush2.msra.mxu0 0.0
  %686 = vmatprep.subr.mxu0 0.0
  %687 = vmatpush2.msra.mxu0 0.0
  %688 = vmatprep.subr.mxu0 0.0
  %689 = vmatpush2.msra.mxu0 0.0
  %690 = vmatprep.subr.mxu0 0.0
  %691 = vmatpush2.msra.mxu0 0.0
  %692 = vmatprep.subr.mxu0 0.0
  %693 = vmatpush2.msra.mxu0 0.0
  %694 = vmatprep.subr.mxu0 0.0
  %695 = vmatpush2.msra.mxu0 0.0
  %696 = vmatprep.subr.mxu0 0.0
  %697 = vmatpush2.msra.mxu0 0.0
  %698 = vmatprep.subr.mxu0 0.0
  %699 = vmatpush2.msra.mxu0 0.0
  %700 = vmatprep.mubr.f32.mxu0 0.0
  %701 = vmatmul.mubr.f32.gmra.mxu0 %v563
  %v702 = vpop.f32.mrf.mxu0
  %v703 = vadd.f32 0.0, %v702
  %v704 = vpop.f32.mrf.mxu0
  %v705 = vadd.f32 0.0, %v704
  %706 = vdwg.mxu0
  %707 = vmatprep.subr.mxu0 0.0
  %708 = vmatpush1.msra.mxu0 0.0
  %709 = vmatprep.subr.mxu0 0.0
  %710 = vmatpush1.msra.mxu0 0.0
  %711 = vmatprep.subr.mxu0 0.0
  %712 = vmatpush1.msra.mxu0 0.0
  %713 = vmatprep.subr.mxu0 0.0
  %714 = vmatpush1.msra.mxu0 0.0
  %715 = vmatprep.subr.mxu0 0.0
  %716 = vmatpush1.msra.mxu0 0.0
  %717 = vmatprep.subr.mxu0 0.0
  %718 = vmatpush1.msra.mxu0 0.0
  %719 = vmatprep.subr.mxu0 0.0
  %720 = vmatpush1.msra.mxu0 0.0
  %721 = vmatprep.subr.mxu0 0.0
  %722 = vmatpush1.msra.mxu0 0.0
  %723 = vmatprep.subr.mxu0 0.0
  %724 = vmatpush1.msra.mxu0 0.0
  %725 = vmatprep.subr.mxu0 0.0
  %726 = vmatpush1.msra.mxu0 0.0
  %727 = vmatprep.subr.mxu0 0.0
  %728 = vmatpush1.msra.mxu0 0.0
  %729 = vmatprep.subr.mxu0 0.0
  %730 = vmatpush1.msra.mxu0 0.0
  %731 = vmatprep.subr.mxu0 0.0
  %732 = vmatpush1.msra.mxu0 0.0
  %733 = vmatprep.subr.mxu0 0.0
  %734 = vmatpush1.msra.mxu0 0.0
  %735 = vmatprep.subr.mxu0 0.0
  %736 = vmatpush1.msra.mxu0 0.0
  %737 = vmatprep.subr.mxu0 %v555
  %738 = vmatpush1.msra.mxu0 %v556
  %739 = vmatprep.subr.mxu0 0.0
  %740 = vmatpush2.msra.mxu0 0.0
  %741 = vmatprep.subr.mxu0 0.0
  %742 = vmatpush2.msra.mxu0 0.0
  %743 = vmatprep.subr.mxu0 0.0
  %744 = vmatpush2.msra.mxu0 0.0
  %745 = vmatprep.subr.mxu0 0.0
  %746 = vmatpush2.msra.mxu0 0.0
  %747 = vmatprep.subr.mxu0 0.0
  %748 = vmatpush2.msra.mxu0 0.0
  %749 = vmatprep.subr.mxu0 0.0
  %750 = vmatpush2.msra.mxu0 0.0
  %751 = vmatprep.subr.mxu0 0.0
  %752 = vmatpush2.msra.mxu0 0.0
  %753 = vmatprep.subr.mxu0 0.0
  %754 = vmatpush2.msra.mxu0 0.0
  %755 = vmatprep.subr.mxu0 0.0
  %756 = vmatpush2.msra.mxu0 0.0
  %757 = vmatprep.subr.mxu0 0.0
  %758 = vmatpush2.msra.mxu0 0.0
  %759 = vmatprep.subr.mxu0 0.0
  %760 = vmatpush2.msra.mxu0 0.0
  %761 = vmatprep.subr.mxu0 0.0
  %762 = vmatpush2.msra.mxu0 0.0
  %763 = vmatprep.subr.mxu0 0.0
  %764 = vmatpush2.msra.mxu0 0.0
  %765 = vmatprep.subr.mxu0 0.0
  %766 = vmatpush2.msra.mxu0 0.0
  %767 = vmatprep.subr.mxu0 0.0
  %768 = vmatpush2.msra.mxu0 0.0
  %769 = vmatprep.subr.mxu0 0.0
  %770 = vmatpush2.msra.mxu0 0.0
  %771 = vmatprep.mubr.f32.mxu0 0.0
  %772 = vmatmul.mubr.f32.gmra.mxu0 %v563
  %v773 = vpop.f32.mrf.mxu0
  %v774 = vadd.f32 0.0, %v773
  %v775 = vpop.f32.mrf.mxu0
  %v776 = vadd.f32 0.0, %v775
  %777 = vdwg.mxu0
  %v778 = vadd.f32 %v396, %v632
  %v779 = vadd.f32 %v398, %v634
  %v780 = vadd.f32 %v467, %v703
  %v781 = vadd.f32 %v469, %v705
  %v782 = vadd.f32 %v538, %v774
  %v783 = vadd.f32 %v540, %v776
  %784 = vrot.lane.b32.xlu0 %v61, 1
  %v785 = vpop.permute.xlu0 %784
  %786 = vrot.lane.b32.xlu0 %v62, 1
  %v787 = vpop.permute.xlu0 %786
  %788 = vrot.lane.b32.xlu0 %v63, 1
  %v789 = vpop.permute.xlu0 %788
  %790 = vrot.lane.b32.xlu0 %v64, 1
  %v791 = vpop.permute.xlu0 %790
  %792 = vrot.lane.b32.xlu0 %v65, 1
  %v793 = vpop.permute.xlu0 %792
  %794 = vrot.lane.b32.xlu0 %v66, 1
  %v795 = vpop.permute.xlu0 %794
  %vm796 = vcmp.lt.s32.totalorder %v80, 1
  %v797 = vsel %vm796, %v793, %v795
  %v798 = vsel %vm796, %v791, %v793
  %v799 = vsel %vm796, %v789, %v791
  %v800 = vsel %vm796, %v787, %v789
  %v801 = vsel %vm796, %v785, %v787
  %v802 = vsel %vm796, %v795, %v785
  %803 = vrot.lane.b32.xlu0 %v88, 104
  %v804 = vpop.permute.xlu0 %803
  %v805 = vsel %vm111, %v804, 0
  %807 = vmatprep.subr.mxu0 0.0
  %808 = vmatpush1.msra.mxu0 0.0
  %809 = vmatprep.subr.mxu0 0.0
  %810 = vmatpush1.msra.mxu0 0.0
  %811 = vmatprep.subr.mxu0 0.0
  %812 = vmatpush1.msra.mxu0 0.0
  %813 = vmatprep.subr.mxu0 0.0
  %814 = vmatpush1.msra.mxu0 0.0
  %815 = vmatprep.subr.mxu0 0.0
  %816 = vmatpush1.msra.mxu0 0.0
  %817 = vmatprep.subr.mxu0 0.0
  %818 = vmatpush1.msra.mxu0 0.0
  %819 = vmatprep.subr.mxu0 0.0
  %820 = vmatpush1.msra.mxu0 0.0
  %821 = vmatprep.subr.mxu0 0.0
  %822 = vmatpush1.msra.mxu0 0.0
  %823 = vmatprep.subr.mxu0 0.0
  %824 = vmatpush1.msra.mxu0 0.0
  %825 = vmatprep.subr.mxu0 0.0
  %826 = vmatpush1.msra.mxu0 0.0
  %827 = vmatprep.subr.mxu0 0.0
  %828 = vmatpush1.msra.mxu0 0.0
  %829 = vmatprep.subr.mxu0 0.0
  %830 = vmatpush1.msra.mxu0 0.0
  %831 = vmatprep.subr.mxu0 0.0
  %832 = vmatpush1.msra.mxu0 0.0
  %833 = vmatprep.subr.mxu0 0.0
  %834 = vmatpush1.msra.mxu0 0.0
  %835 = vmatprep.subr.mxu0 0.0
  %836 = vmatpush1.msra.mxu0 0.0
  %837 = vmatprep.subr.mxu0 %v801
  %838 = vmatpush1.msra.mxu0 %v802
  %839 = vmatprep.subr.mxu0 0.0
  %840 = vmatpush2.msra.mxu0 0.0
  %841 = vmatprep.subr.mxu0 0.0
  %842 = vmatpush2.msra.mxu0 0.0
  %843 = vmatprep.subr.mxu0 0.0
  %844 = vmatpush2.msra.mxu0 0.0
  %845 = vmatprep.subr.mxu0 0.0
  %846 = vmatpush2.msra.mxu0 0.0
  %847 = vmatprep.subr.mxu0 0.0
  %848 = vmatpush2.msra.mxu0 0.0
  %849 = vmatprep.subr.mxu0 0.0
  %850 = vmatpush2.msra.mxu0 0.0
  %851 = vmatprep.subr.mxu0 0.0
  %852 = vmatpush2.msra.mxu0 0.0
  %853 = vmatprep.subr.mxu0 0.0
  %854 = vmatpush2.msra.mxu0 0.0
  %855 = vmatprep.subr.mxu0 0.0
  %856 = vmatpush2.msra.mxu0 0.0
  %857 = vmatprep.subr.mxu0 0.0
  %858 = vmatpush2.msra.mxu0 0.0
  %859 = vmatprep.subr.mxu0 0.0
  %860 = vmatpush2.msra.mxu0 0.0
  %861 = vmatprep.subr.mxu0 0.0
  %862 = vmatpush2.msra.mxu0 0.0
  %863 = vmatprep.subr.mxu0 0.0
  %864 = vmatpush2.msra.mxu0 0.0
  %865 = vmatprep.subr.mxu0 0.0
  %866 = vmatpush2.msra.mxu0 0.0
  %867 = vmatprep.subr.mxu0 0.0
  %868 = vmatpush2.msra.mxu0 0.0
  %869 = vmatprep.subr.mxu0 0.0
  %870 = vmatpush2.msra.mxu0 0.0
  %871 = vmatprep.mubr.f32.mxu0 0.0
  %872 = vmatmul.mubr.f32.gmra.mxu0 %v805
  %v873 = vpop.f32.mrf.mxu0
  %v874 = vadd.f32 0.0, %v873
  %v875 = vpop.f32.mrf.mxu0
  %v876 = vadd.f32 0.0, %v875
  %877 = vdwg.mxu0
  %878 = vmatprep.subr.mxu0 0.0
  %879 = vmatpush1.msra.mxu0 0.0
  %880 = vmatprep.subr.mxu0 0.0
  %881 = vmatpush1.msra.mxu0 0.0
  %882 = vmatprep.subr.mxu0 0.0
  %883 = vmatpush1.msra.mxu0 0.0
  %884 = vmatprep.subr.mxu0 0.0
  %885 = vmatpush1.msra.mxu0 0.0
  %886 = vmatprep.subr.mxu0 0.0
  %887 = vmatpush1.msra.mxu0 0.0
  %888 = vmatprep.subr.mxu0 0.0
  %889 = vmatpush1.msra.mxu0 0.0
  %890 = vmatprep.subr.mxu0 0.0
  %891 = vmatpush1.msra.mxu0 0.0
  %892 = vmatprep.subr.mxu0 0.0
  %893 = vmatpush1.msra.mxu0 0.0
  %894 = vmatprep.subr.mxu0 0.0
  %895 = vmatpush1.msra.mxu0 0.0
  %896 = vmatprep.subr.mxu0 0.0
  %897 = vmatpush1.msra.mxu0 0.0
  %898 = vmatprep.subr.mxu0 0.0
  %899 = vmatpush1.msra.mxu0 0.0
  %900 = vmatprep.subr.mxu0 0.0
  %901 = vmatpush1.msra.mxu0 0.0
  %902 = vmatprep.subr.mxu0 0.0
  %903 = vmatpush1.msra.mxu0 0.0
  %904 = vmatprep.subr.mxu0 0.0
  %905 = vmatpush1.msra.mxu0 0.0
  %906 = vmatprep.subr.mxu0 0.0
  %907 = vmatpush1.msra.mxu0 0.0
  %908 = vmatprep.subr.mxu0 %v799
  %909 = vmatpush1.msra.mxu0 %v800
  %910 = vmatprep.subr.mxu0 0.0
  %911 = vmatpush2.msra.mxu0 0.0
  %912 = vmatprep.subr.mxu0 0.0
  %913 = vmatpush2.msra.mxu0 0.0
  %914 = vmatprep.subr.mxu0 0.0
  %915 = vmatpush2.msra.mxu0 0.0
  %916 = vmatprep.subr.mxu0 0.0
  %917 = vmatpush2.msra.mxu0 0.0
  %918 = vmatprep.subr.mxu0 0.0
  %919 = vmatpush2.msra.mxu0 0.0
  %920 = vmatprep.subr.mxu0 0.0
  %921 = vmatpush2.msra.mxu0 0.0
  %922 = vmatprep.subr.mxu0 0.0
  %923 = vmatpush2.msra.mxu0 0.0
  %924 = vmatprep.subr.mxu0 0.0
  %925 = vmatpush2.msra.mxu0 0.0
  %926 = vmatprep.subr.mxu0 0.0
  %927 = vmatpush2.msra.mxu0 0.0
  %928 = vmatprep.subr.mxu0 0.0
  %929 = vmatpush2.msra.mxu0 0.0
  %930 = vmatprep.subr.mxu0 0.0
  %931 = vmatpush2.msra.mxu0 0.0
  %932 = vmatprep.subr.mxu0 0.0
  %933 = vmatpush2.msra.mxu0 0.0
  %934 = vmatprep.subr.mxu0 0.0
  %935 = vmatpush2.msra.mxu0 0.0
  %936 = vmatprep.subr.mxu0 0.0
  %937 = vmatpush2.msra.mxu0 0.0
  %938 = vmatprep.subr.mxu0 0.0
  %939 = vmatpush2.msra.mxu0 0.0
  %940 = vmatprep.subr.mxu0 0.0
  %941 = vmatpush2.msra.mxu0 0.0
  %942 = vmatprep.mubr.f32.mxu0 0.0
  %943 = vmatmul.mubr.f32.gmra.mxu0 %v805
  %v944 = vpop.f32.mrf.mxu0
  %v945 = vadd.f32 0.0, %v944
  %v946 = vpop.f32.mrf.mxu0
  %v947 = vadd.f32 0.0, %v946
  %948 = vdwg.mxu0
  %949 = vmatprep.subr.mxu0 0.0
  %950 = vmatpush1.msra.mxu0 0.0
  %951 = vmatprep.subr.mxu0 0.0
  %952 = vmatpush1.msra.mxu0 0.0
  %953 = vmatprep.subr.mxu0 0.0
  %954 = vmatpush1.msra.mxu0 0.0
  %955 = vmatprep.subr.mxu0 0.0
  %956 = vmatpush1.msra.mxu0 0.0
  %957 = vmatprep.subr.mxu0 0.0
  %958 = vmatpush1.msra.mxu0 0.0
  %959 = vmatprep.subr.mxu0 0.0
  %960 = vmatpush1.msra.mxu0 0.0
  %961 = vmatprep.subr.mxu0 0.0
  %962 = vmatpush1.msra.mxu0 0.0
  %963 = vmatprep.subr.mxu0 0.0
  %964 = vmatpush1.msra.mxu0 0.0
  %965 = vmatprep.subr.mxu0 0.0
  %966 = vmatpush1.msra.mxu0 0.0
  %967 = vmatprep.subr.mxu0 0.0
  %968 = vmatpush1.msra.mxu0 0.0
  %969 = vmatprep.subr.mxu0 0.0
  %970 = vmatpush1.msra.mxu0 0.0
  %971 = vmatprep.subr.mxu0 0.0
  %972 = vmatpush1.msra.mxu0 0.0
  %973 = vmatprep.subr.mxu0 0.0
  %974 = vmatpush1.msra.mxu0 0.0
  %975 = vmatprep.subr.mxu0 0.0
  %976 = vmatpush1.msra.mxu0 0.0
  %977 = vmatprep.subr.mxu0 0.0
  %978 = vmatpush1.msra.mxu0 0.0
  %979 = vmatprep.subr.mxu0 %v797
  %980 = vmatpush1.msra.mxu0 %v798
  %981 = vmatprep.subr.mxu0 0.0
  %982 = vmatpush2.msra.mxu0 0.0
  %983 = vmatprep.subr.mxu0 0.0
  %984 = vmatpush2.msra.mxu0 0.0
  %985 = vmatprep.subr.mxu0 0.0
  %986 = vmatpush2.msra.mxu0 0.0
  %987 = vmatprep.subr.mxu0 0.0
  %988 = vmatpush2.msra.mxu0 0.0
  %989 = vmatprep.subr.mxu0 0.0
  %990 = vmatpush2.msra.mxu0 0.0
  %991 = vmatprep.subr.mxu0 0.0
  %992 = vmatpush2.msra.mxu0 0.0
  %993 = vmatprep.subr.mxu0 0.0
  %994 = vmatpush2.msra.mxu0 0.0
  %995 = vmatprep.subr.mxu0 0.0
  %996 = vmatpush2.msra.mxu0 0.0
  %997 = vmatprep.subr.mxu0 0.0
  %998 = vmatpush2.msra.mxu0 0.0
  %999 = vmatprep.subr.mxu0 0.0
  %1000 = vmatpush2.msra.mxu0 0.0
  %1001 = vmatprep.subr.mxu0 0.0
  %1002 = vmatpush2.msra.mxu0 0.0
  %1003 = vmatprep.subr.mxu0 0.0
  %1004 = vmatpush2.msra.mxu0 0.0
  %1005 = vmatprep.subr.mxu0 0.0
  %1006 = vmatpush2.msra.mxu0 0.0
  %1007 = vmatprep.subr.mxu0 0.0
  %1008 = vmatpush2.msra.mxu0 0.0
  %1009 = vmatprep.subr.mxu0 0.0
  %1010 = vmatpush2.msra.mxu0 0.0
  %1011 = vmatprep.subr.mxu0 0.0
  %1012 = vmatpush2.msra.mxu0 0.0
  %1013 = vmatprep.mubr.f32.mxu0 0.0
  %1014 = vmatmul.mubr.f32.gmra.mxu0 %v805
  %v1015 = vpop.f32.mrf.mxu0
  %v1016 = vadd.f32 0.0, %v1015
  %v1017 = vpop.f32.mrf.mxu0
  %v1018 = vadd.f32 0.0, %v1017
  %1019 = vdwg.mxu0
  %v1020 = vadd.f32 %v778, %v874
  %v1021 = vadd.f32 %v779, %v876
  %v1022 = vadd.f32 %v780, %v945
  %v1023 = vadd.f32 %v781, %v947
  %v1024 = vadd.f32 %v782, %v1016
  %v1025 = vadd.f32 %v783, %v1018
  %1026 = vrot.lane.b32.xlu0 %v88, 96
  %v1027 = vpop.permute.xlu0 %1026
  %v1028 = vsel %vm111, %v1027, 0
  %1030 = vmatprep.subr.mxu0 0.0
  %1031 = vmatpush1.msra.mxu0 0.0
  %1032 = vmatprep.subr.mxu0 0.0
  %1033 = vmatpush1.msra.mxu0 0.0
  %1034 = vmatprep.subr.mxu0 0.0
  %1035 = vmatpush1.msra.mxu0 0.0
  %1036 = vmatprep.subr.mxu0 0.0
  %1037 = vmatpush1.msra.mxu0 0.0
  %1038 = vmatprep.subr.mxu0 0.0
  %1039 = vmatpush1.msra.mxu0 0.0
  %1040 = vmatprep.subr.mxu0 0.0
  %1041 = vmatpush1.msra.mxu0 0.0
  %1042 = vmatprep.subr.mxu0 0.0
  %1043 = vmatpush1.msra.mxu0 0.0
  %1044 = vmatprep.subr.mxu0 0.0
  %1045 = vmatpush1.msra.mxu0 0.0
  %1046 = vmatprep.subr.mxu0 0.0
  %1047 = vmatpush1.msra.mxu0 0.0
  %1048 = vmatprep.subr.mxu0 0.0
  %1049 = vmatpush1.msra.mxu0 0.0
  %1050 = vmatprep.subr.mxu0 0.0
  %1051 = vmatpush1.msra.mxu0 0.0
  %1052 = vmatprep.subr.mxu0 0.0
  %1053 = vmatpush1.msra.mxu0 0.0
  %1054 = vmatprep.subr.mxu0 0.0
  %1055 = vmatpush1.msra.mxu0 0.0
  %1056 = vmatprep.subr.mxu0 0.0
  %1057 = vmatpush1.msra.mxu0 0.0
  %1058 = vmatprep.subr.mxu0 0.0
  %1059 = vmatpush1.msra.mxu0 0.0
  %1060 = vmatprep.subr.mxu0 %v62
  %1061 = vmatpush1.msra.mxu0 %v61
  %1062 = vmatprep.subr.mxu0 0.0
  %1063 = vmatpush2.msra.mxu0 0.0
  %1064 = vmatprep.subr.mxu0 0.0
  %1065 = vmatpush2.msra.mxu0 0.0
  %1066 = vmatprep.subr.mxu0 0.0
  %1067 = vmatpush2.msra.mxu0 0.0
  %1068 = vmatprep.subr.mxu0 0.0
  %1069 = vmatpush2.msra.mxu0 0.0
  %1070 = vmatprep.subr.mxu0 0.0
  %1071 = vmatpush2.msra.mxu0 0.0
  %1072 = vmatprep.subr.mxu0 0.0
  %1073 = vmatpush2.msra.mxu0 0.0
  %1074 = vmatprep.subr.mxu0 0.0
  %1075 = vmatpush2.msra.mxu0 0.0
  %1076 = vmatprep.subr.mxu0 0.0
  %1077 = vmatpush2.msra.mxu0 0.0
  %1078 = vmatprep.subr.mxu0 0.0
  %1079 = vmatpush2.msra.mxu0 0.0
  %1080 = vmatprep.subr.mxu0 0.0
  %1081 = vmatpush2.msra.mxu0 0.0
  %1082 = vmatprep.subr.mxu0 0.0
  %1083 = vmatpush2.msra.mxu0 0.0
  %1084 = vmatprep.subr.mxu0 0.0
  %1085 = vmatpush2.msra.mxu0 0.0
  %1086 = vmatprep.subr.mxu0 0.0
  %1087 = vmatpush2.msra.mxu0 0.0
  %1088 = vmatprep.subr.mxu0 0.0
  %1089 = vmatpush2.msra.mxu0 0.0
  %1090 = vmatprep.subr.mxu0 0.0
  %1091 = vmatpush2.msra.mxu0 0.0
  %1092 = vmatprep.subr.mxu0 0.0
  %1093 = vmatpush2.msra.mxu0 0.0
  %1094 = vmatprep.mubr.f32.mxu0 0.0
  %1095 = vmatmul.mubr.f32.gmra.mxu0 %v1028
  %v1096 = vpop.f32.mrf.mxu0
  %v1097 = vadd.f32 0.0, %v1096
  %v1098 = vpop.f32.mrf.mxu0
  %v1099 = vadd.f32 0.0, %v1098
  %1100 = vdwg.mxu0
  %1101 = vmatprep.subr.mxu0 0.0
  %1102 = vmatpush1.msra.mxu0 0.0
  %1103 = vmatprep.subr.mxu0 0.0
  %1104 = vmatpush1.msra.mxu0 0.0
  %1105 = vmatprep.subr.mxu0 0.0
  %1106 = vmatpush1.msra.mxu0 0.0
  %1107 = vmatprep.subr.mxu0 0.0
  %1108 = vmatpush1.msra.mxu0 0.0
  %1109 = vmatprep.subr.mxu0 0.0
  %1110 = vmatpush1.msra.mxu0 0.0
  %1111 = vmatprep.subr.mxu0 0.0
  %1112 = vmatpush1.msra.mxu0 0.0
  %1113 = vmatprep.subr.mxu0 0.0
  %1114 = vmatpush1.msra.mxu0 0.0
  %1115 = vmatprep.subr.mxu0 0.0
  %1116 = vmatpush1.msra.mxu0 0.0
  %1117 = vmatprep.subr.mxu0 0.0
  %1118 = vmatpush1.msra.mxu0 0.0
  %1119 = vmatprep.subr.mxu0 0.0
  %1120 = vmatpush1.msra.mxu0 0.0
  %1121 = vmatprep.subr.mxu0 0.0
  %1122 = vmatpush1.msra.mxu0 0.0
  %1123 = vmatprep.subr.mxu0 0.0
  %1124 = vmatpush1.msra.mxu0 0.0
  %1125 = vmatprep.subr.mxu0 0.0
  %1126 = vmatpush1.msra.mxu0 0.0
  %1127 = vmatprep.subr.mxu0 0.0
  %1128 = vmatpush1.msra.mxu0 0.0
  %1129 = vmatprep.subr.mxu0 0.0
  %1130 = vmatpush1.msra.mxu0 0.0
  %1131 = vmatprep.subr.mxu0 %v64
  %1132 = vmatpush1.msra.mxu0 %v63
  %1133 = vmatprep.subr.mxu0 0.0
  %1134 = vmatpush2.msra.mxu0 0.0
  %1135 = vmatprep.subr.mxu0 0.0
  %1136 = vmatpush2.msra.mxu0 0.0
  %1137 = vmatprep.subr.mxu0 0.0
  %1138 = vmatpush2.msra.mxu0 0.0
  %1139 = vmatprep.subr.mxu0 0.0
  %1140 = vmatpush2.msra.mxu0 0.0
  %1141 = vmatprep.subr.mxu0 0.0
  %1142 = vmatpush2.msra.mxu0 0.0
  %1143 = vmatprep.subr.mxu0 0.0
  %1144 = vmatpush2.msra.mxu0 0.0
  %1145 = vmatprep.subr.mxu0 0.0
  %1146 = vmatpush2.msra.mxu0 0.0
  %1147 = vmatprep.subr.mxu0 0.0
  %1148 = vmatpush2.msra.mxu0 0.0
  %1149 = vmatprep.subr.mxu0 0.0
  %1150 = vmatpush2.msra.mxu0 0.0
  %1151 = vmatprep.subr.mxu0 0.0
  %1152 = vmatpush2.msra.mxu0 0.0
  %1153 = vmatprep.subr.mxu0 0.0
  %1154 = vmatpush2.msra.mxu0 0.0
  %1155 = vmatprep.subr.mxu0 0.0
  %1156 = vmatpush2.msra.mxu0 0.0
  %1157 = vmatprep.subr.mxu0 0.0
  %1158 = vmatpush2.msra.mxu0 0.0
  %1159 = vmatprep.subr.mxu0 0.0
  %1160 = vmatpush2.msra.mxu0 0.0
  %1161 = vmatprep.subr.mxu0 0.0
  %1162 = vmatpush2.msra.mxu0 0.0
  %1163 = vmatprep.subr.mxu0 0.0
  %1164 = vmatpush2.msra.mxu0 0.0
  %1165 = vmatprep.mubr.f32.mxu0 0.0
  %1166 = vmatmul.mubr.f32.gmra.mxu0 %v1028
  %v1167 = vpop.f32.mrf.mxu0
  %v1168 = vadd.f32 0.0, %v1167
  %v1169 = vpop.f32.mrf.mxu0
  %v1170 = vadd.f32 0.0, %v1169
  %1171 = vdwg.mxu0
  %1172 = vmatprep.subr.mxu0 0.0
  %1173 = vmatpush1.msra.mxu0 0.0
  %1174 = vmatprep.subr.mxu0 0.0
  %1175 = vmatpush1.msra.mxu0 0.0
  %1176 = vmatprep.subr.mxu0 0.0
  %1177 = vmatpush1.msra.mxu0 0.0
  %1178 = vmatprep.subr.mxu0 0.0
  %1179 = vmatpush1.msra.mxu0 0.0
  %1180 = vmatprep.subr.mxu0 0.0
  %1181 = vmatpush1.msra.mxu0 0.0
  %1182 = vmatprep.subr.mxu0 0.0
  %1183 = vmatpush1.msra.mxu0 0.0
  %1184 = vmatprep.subr.mxu0 0.0
  %1185 = vmatpush1.msra.mxu0 0.0
  %1186 = vmatprep.subr.mxu0 0.0
  %1187 = vmatpush1.msra.mxu0 0.0
  %1188 = vmatprep.subr.mxu0 0.0
  %1189 = vmatpush1.msra.mxu0 0.0
  %1190 = vmatprep.subr.mxu0 0.0
  %1191 = vmatpush1.msra.mxu0 0.0
  %1192 = vmatprep.subr.mxu0 0.0
  %1193 = vmatpush1.msra.mxu0 0.0
  %1194 = vmatprep.subr.mxu0 0.0
  %1195 = vmatpush1.msra.mxu0 0.0
  %1196 = vmatprep.subr.mxu0 0.0
  %1197 = vmatpush1.msra.mxu0 0.0
  %1198 = vmatprep.subr.mxu0 0.0
  %1199 = vmatpush1.msra.mxu0 0.0
  %1200 = vmatprep.subr.mxu0 0.0
  %1201 = vmatpush1.msra.mxu0 0.0
  %1202 = vmatprep.subr.mxu0 %v66
  %1203 = vmatpush1.msra.mxu0 %v65
  %1204 = vmatprep.subr.mxu0 0.0
  %1205 = vmatpush2.msra.mxu0 0.0
  %1206 = vmatprep.subr.mxu0 0.0
  %1207 = vmatpush2.msra.mxu0 0.0
  %1208 = vmatprep.subr.mxu0 0.0
  %1209 = vmatpush2.msra.mxu0 0.0
  %1210 = vmatprep.subr.mxu0 0.0
  %1211 = vmatpush2.msra.mxu0 0.0
  %1212 = vmatprep.subr.mxu0 0.0
  %1213 = vmatpush2.msra.mxu0 0.0
  %1214 = vmatprep.subr.mxu0 0.0
  %1215 = vmatpush2.msra.mxu0 0.0
  %1216 = vmatprep.subr.mxu0 0.0
  %1217 = vmatpush2.msra.mxu0 0.0
  %1218 = vmatprep.subr.mxu0 0.0
  %1219 = vmatpush2.msra.mxu0 0.0
  %1220 = vmatprep.subr.mxu0 0.0
  %1221 = vmatpush2.msra.mxu0 0.0
  %1222 = vmatprep.subr.mxu0 0.0
  %1223 = vmatpush2.msra.mxu0 0.0
  %1224 = vmatprep.subr.mxu0 0.0
  %1225 = vmatpush2.msra.mxu0 0.0
  %1226 = vmatprep.subr.mxu0 0.0
  %1227 = vmatpush2.msra.mxu0 0.0
  %1228 = vmatprep.subr.mxu0 0.0
  %1229 = vmatpush2.msra.mxu0 0.0
  %1230 = vmatprep.subr.mxu0 0.0
  %1231 = vmatpush2.msra.mxu0 0.0
  %1232 = vmatprep.subr.mxu0 0.0
  %1233 = vmatpush2.msra.mxu0 0.0
  %1234 = vmatprep.subr.mxu0 0.0
  %1235 = vmatpush2.msra.mxu0 0.0
  %1236 = vmatprep.mubr.f32.mxu0 0.0
  %1237 = vmatmul.mubr.f32.gmra.mxu0 %v1028
  %v1238 = vpop.f32.mrf.mxu0
  %v1239 = vadd.f32 0.0, %v1238
  %v1240 = vpop.f32.mrf.mxu0
  %v1241 = vadd.f32 0.0, %v1240
  %1242 = vdwg.mxu0
  %v1243 = vadd.f32 %v1020, %v1097
  %v1244 = vadd.f32 %v1021, %v1099
  %v1245 = vadd.f32 %v1022, %v1168
  %v1246 = vadd.f32 %v1023, %v1170
  %v1247 = vadd.f32 %v1024, %v1239
  %v1248 = vadd.f32 %v1025, %v1241
  %1249 = vrot.lane.b32.xlu0 %v61, 127
  %v1250 = vpop.permute.xlu0 %1249
  %1251 = vrot.lane.b32.xlu0 %v62, 127
  %v1252 = vpop.permute.xlu0 %1251
  %1253 = vrot.lane.b32.xlu0 %v63, 127
  %v1254 = vpop.permute.xlu0 %1253
  %1255 = vrot.lane.b32.xlu0 %v64, 127
  %v1256 = vpop.permute.xlu0 %1255
  %1257 = vrot.lane.b32.xlu0 %v65, 127
  %v1258 = vpop.permute.xlu0 %1257
  %1259 = vrot.lane.b32.xlu0 %v66, 127
  %v1260 = vpop.permute.xlu0 %1259
  %vm1261 = vcmp.lt.s32.totalorder %v80, 127
  %v1262 = vsel %vm1261, %v1258, %v1260
  %v1263 = vsel %vm1261, %v1256, %v1258
  %v1264 = vsel %vm1261, %v1254, %v1256
  %v1265 = vsel %vm1261, %v1252, %v1254
  %v1266 = vsel %vm1261, %v1250, %v1252
  %v1267 = vsel %vm1261, %v1260, %v1250
  %1268 = vrot.lane.b32.xlu0 %v88, 88
  %v1269 = vpop.permute.xlu0 %1268
  %v1270 = vsel %vm111, %v1269, 0
  %1272 = vmatprep.subr.mxu0 0.0
  %1273 = vmatpush1.msra.mxu0 0.0
  %1274 = vmatprep.subr.mxu0 0.0
  %1275 = vmatpush1.msra.mxu0 0.0
  %1276 = vmatprep.subr.mxu0 0.0
  %1277 = vmatpush1.msra.mxu0 0.0
  %1278 = vmatprep.subr.mxu0 0.0
  %1279 = vmatpush1.msra.mxu0 0.0
  %1280 = vmatprep.subr.mxu0 0.0
  %1281 = vmatpush1.msra.mxu0 0.0
  %1282 = vmatprep.subr.mxu0 0.0
  %1283 = vmatpush1.msra.mxu0 0.0
  %1284 = vmatprep.subr.mxu0 0.0
  %1285 = vmatpush1.msra.mxu0 0.0
  %1286 = vmatprep.subr.mxu0 0.0
  %1287 = vmatpush1.msra.mxu0 0.0
  %1288 = vmatprep.subr.mxu0 0.0
  %1289 = vmatpush1.msra.mxu0 0.0
  %1290 = vmatprep.subr.mxu0 0.0
  %1291 = vmatpush1.msra.mxu0 0.0
  %1292 = vmatprep.subr.mxu0 0.0
  %1293 = vmatpush1.msra.mxu0 0.0
  %1294 = vmatprep.subr.mxu0 0.0
  %1295 = vmatpush1.msra.mxu0 0.0
  %1296 = vmatprep.subr.mxu0 0.0
  %1297 = vmatpush1.msra.mxu0 0.0
  %1298 = vmatprep.subr.mxu0 0.0
  %1299 = vmatpush1.msra.mxu0 0.0
  %1300 = vmatprep.subr.mxu0 0.0
  %1301 = vmatpush1.msra.mxu0 0.0
  %1302 = vmatprep.subr.mxu0 %v1265
  %1303 = vmatpush1.msra.mxu0 %v1266
  %1304 = vmatprep.subr.mxu0 0.0
  %1305 = vmatpush2.msra.mxu0 0.0
  %1306 = vmatprep.subr.mxu0 0.0
  %1307 = vmatpush2.msra.mxu0 0.0
  %1308 = vmatprep.subr.mxu0 0.0
  %1309 = vmatpush2.msra.mxu0 0.0
  %1310 = vmatprep.subr.mxu0 0.0
  %1311 = vmatpush2.msra.mxu0 0.0
  %1312 = vmatprep.subr.mxu0 0.0
  %1313 = vmatpush2.msra.mxu0 0.0
  %1314 = vmatprep.subr.mxu0 0.0
  %1315 = vmatpush2.msra.mxu0 0.0
  %1316 = vmatprep.subr.mxu0 0.0
  %1317 = vmatpush2.msra.mxu0 0.0
  %1318 = vmatprep.subr.mxu0 0.0
  %1319 = vmatpush2.msra.mxu0 0.0
  %1320 = vmatprep.subr.mxu0 0.0
  %1321 = vmatpush2.msra.mxu0 0.0
  %1322 = vmatprep.subr.mxu0 0.0
  %1323 = vmatpush2.msra.mxu0 0.0
  %1324 = vmatprep.subr.mxu0 0.0
  %1325 = vmatpush2.msra.mxu0 0.0
  %1326 = vmatprep.subr.mxu0 0.0
  %1327 = vmatpush2.msra.mxu0 0.0
  %1328 = vmatprep.subr.mxu0 0.0
  %1329 = vmatpush2.msra.mxu0 0.0
  %1330 = vmatprep.subr.mxu0 0.0
  %1331 = vmatpush2.msra.mxu0 0.0
  %1332 = vmatprep.subr.mxu0 0.0
  %1333 = vmatpush2.msra.mxu0 0.0
  %1334 = vmatprep.subr.mxu0 0.0
  %1335 = vmatpush2.msra.mxu0 0.0
  %1336 = vmatprep.mubr.f32.mxu0 0.0
  %1337 = vmatmul.mubr.f32.gmra.mxu0 %v1270
  %v1338 = vpop.f32.mrf.mxu0
  %v1339 = vadd.f32 0.0, %v1338
  %v1340 = vpop.f32.mrf.mxu0
  %v1341 = vadd.f32 0.0, %v1340
  %1342 = vdwg.mxu0
  %1343 = vmatprep.subr.mxu0 0.0
  %1344 = vmatpush1.msra.mxu0 0.0
  %1345 = vmatprep.subr.mxu0 0.0
  %1346 = vmatpush1.msra.mxu0 0.0
  %1347 = vmatprep.subr.mxu0 0.0
  %1348 = vmatpush1.msra.mxu0 0.0
  %1349 = vmatprep.subr.mxu0 0.0
  %1350 = vmatpush1.msra.mxu0 0.0
  %1351 = vmatprep.subr.mxu0 0.0
  %1352 = vmatpush1.msra.mxu0 0.0
  %1353 = vmatprep.subr.mxu0 0.0
  %1354 = vmatpush1.msra.mxu0 0.0
  %1355 = vmatprep.subr.mxu0 0.0
  %1356 = vmatpush1.msra.mxu0 0.0
  %1357 = vmatprep.subr.mxu0 0.0
  %1358 = vmatpush1.msra.mxu0 0.0
  %1359 = vmatprep.subr.mxu0 0.0
  %1360 = vmatpush1.msra.mxu0 0.0
  %1361 = vmatprep.subr.mxu0 0.0
  %1362 = vmatpush1.msra.mxu0 0.0
  %1363 = vmatprep.subr.mxu0 0.0
  %1364 = vmatpush1.msra.mxu0 0.0
  %1365 = vmatprep.subr.mxu0 0.0
  %1366 = vmatpush1.msra.mxu0 0.0
  %1367 = vmatprep.subr.mxu0 0.0
  %1368 = vmatpush1.msra.mxu0 0.0
  %1369 = vmatprep.subr.mxu0 0.0
  %1370 = vmatpush1.msra.mxu0 0.0
  %1371 = vmatprep.subr.mxu0 0.0
  %1372 = vmatpush1.msra.mxu0 0.0
  %1373 = vmatprep.subr.mxu0 %v1263
  %1374 = vmatpush1.msra.mxu0 %v1264
  %1375 = vmatprep.subr.mxu0 0.0
  %1376 = vmatpush2.msra.mxu0 0.0
  %1377 = vmatprep.subr.mxu0 0.0
  %1378 = vmatpush2.msra.mxu0 0.0
  %1379 = vmatprep.subr.mxu0 0.0
  %1380 = vmatpush2.msra.mxu0 0.0
  %1381 = vmatprep.subr.mxu0 0.0
  %1382 = vmatpush2.msra.mxu0 0.0
  %1383 = vmatprep.subr.mxu0 0.0
  %1384 = vmatpush2.msra.mxu0 0.0
  %1385 = vmatprep.subr.mxu0 0.0
  %1386 = vmatpush2.msra.mxu0 0.0
  %1387 = vmatprep.subr.mxu0 0.0
  %1388 = vmatpush2.msra.mxu0 0.0
  %1389 = vmatprep.subr.mxu0 0.0
  %1390 = vmatpush2.msra.mxu0 0.0
  %1391 = vmatprep.subr.mxu0 0.0
  %1392 = vmatpush2.msra.mxu0 0.0
  %1393 = vmatprep.subr.mxu0 0.0
  %1394 = vmatpush2.msra.mxu0 0.0
  %1395 = vmatprep.subr.mxu0 0.0
  %1396 = vmatpush2.msra.mxu0 0.0
  %1397 = vmatprep.subr.mxu0 0.0
  %1398 = vmatpush2.msra.mxu0 0.0
  %1399 = vmatprep.subr.mxu0 0.0
  %1400 = vmatpush2.msra.mxu0 0.0
  %1401 = vmatprep.subr.mxu0 0.0
  %1402 = vmatpush2.msra.mxu0 0.0
  %1403 = vmatprep.subr.mxu0 0.0
  %1404 = vmatpush2.msra.mxu0 0.0
  %1405 = vmatprep.subr.mxu0 0.0
  %1406 = vmatpush2.msra.mxu0 0.0
  %1407 = vmatprep.mubr.f32.mxu0 0.0
  %1408 = vmatmul.mubr.f32.gmra.mxu0 %v1270
  %v1409 = vpop.f32.mrf.mxu0
  %v1410 = vadd.f32 0.0, %v1409
  %v1411 = vpop.f32.mrf.mxu0
  %v1412 = vadd.f32 0.0, %v1411
  %1413 = vdwg.mxu0
  %1414 = vmatprep.subr.mxu0 0.0
  %1415 = vmatpush1.msra.mxu0 0.0
  %1416 = vmatprep.subr.mxu0 0.0
  %1417 = vmatpush1.msra.mxu0 0.0
  %1418 = vmatprep.subr.mxu0 0.0
  %1419 = vmatpush1.msra.mxu0 0.0
  %1420 = vmatprep.subr.mxu0 0.0
  %1421 = vmatpush1.msra.mxu0 0.0
  %1422 = vmatprep.subr.mxu0 0.0
  %1423 = vmatpush1.msra.mxu0 0.0
  %1424 = vmatprep.subr.mxu0 0.0
  %1425 = vmatpush1.msra.mxu0 0.0
  %1426 = vmatprep.subr.mxu0 0.0
  %1427 = vmatpush1.msra.mxu0 0.0
  %1428 = vmatprep.subr.mxu0 0.0
  %1429 = vmatpush1.msra.mxu0 0.0
  %1430 = vmatprep.subr.mxu0 0.0
  %1431 = vmatpush1.msra.mxu0 0.0
  %1432 = vmatprep.subr.mxu0 0.0
  %1433 = vmatpush1.msra.mxu0 0.0
  %1434 = vmatprep.subr.mxu0 0.0
  %1435 = vmatpush1.msra.mxu0 0.0
  %1436 = vmatprep.subr.mxu0 0.0
  %1437 = vmatpush1.msra.mxu0 0.0
  %1438 = vmatprep.subr.mxu0 0.0
  %1439 = vmatpush1.msra.mxu0 0.0
  %1440 = vmatprep.subr.mxu0 0.0
  %1441 = vmatpush1.msra.mxu0 0.0
  %1442 = vmatprep.subr.mxu0 0.0
  %1443 = vmatpush1.msra.mxu0 0.0
  %1444 = vmatprep.subr.mxu0 %v1267
  %1445 = vmatpush1.msra.mxu0 %v1262
  %1446 = vmatprep.subr.mxu0 0.0
  %1447 = vmatpush2.msra.mxu0 0.0
  %1448 = vmatprep.subr.mxu0 0.0
  %1449 = vmatpush2.msra.mxu0 0.0
  %1450 = vmatprep.subr.mxu0 0.0
  %1451 = vmatpush2.msra.mxu0 0.0
  %1452 = vmatprep.subr.mxu0 0.0
  %1453 = vmatpush2.msra.mxu0 0.0
  %1454 = vmatprep.subr.mxu0 0.0
  %1455 = vmatpush2.msra.mxu0 0.0
  %1456 = vmatprep.subr.mxu0 0.0
  %1457 = vmatpush2.msra.mxu0 0.0
  %1458 = vmatprep.subr.mxu0 0.0
  %1459 = vmatpush2.msra.mxu0 0.0
  %1460 = vmatprep.subr.mxu0 0.0
  %1461 = vmatpush2.msra.mxu0 0.0
  %1462 = vmatprep.subr.mxu0 0.0
  %1463 = vmatpush2.msra.mxu0 0.0
  %1464 = vmatprep.subr.mxu0 0.0
  %1465 = vmatpush2.msra.mxu0 0.0
  %1466 = vmatprep.subr.mxu0 0.0
  %1467 = vmatpush2.msra.mxu0 0.0
  %1468 = vmatprep.subr.mxu0 0.0
  %1469 = vmatpush2.msra.mxu0 0.0
  %1470 = vmatprep.subr.mxu0 0.0
  %1471 = vmatpush2.msra.mxu0 0.0
  %1472 = vmatprep.subr.mxu0 0.0
  %1473 = vmatpush2.msra.mxu0 0.0
  %1474 = vmatprep.subr.mxu0 0.0
  %1475 = vmatpush2.msra.mxu0 0.0
  %1476 = vmatprep.subr.mxu0 0.0
  %1477 = vmatpush2.msra.mxu0 0.0
  %1478 = vmatprep.mubr.f32.mxu0 0.0
  %1479 = vmatmul.mubr.f32.gmra.mxu0 %v1270
  %v1480 = vpop.f32.mrf.mxu0
  %v1481 = vadd.f32 0.0, %v1480
  %v1482 = vpop.f32.mrf.mxu0
  %v1483 = vadd.f32 0.0, %v1482
  %1484 = vdwg.mxu0
  %v1485 = vadd.f32 %v1243, %v1339
  %v1486 = vadd.f32 %v1244, %v1341
  %v1487 = vadd.f32 %v1245, %v1410
  %v1488 = vadd.f32 %v1246, %v1412
  %v1489 = vadd.f32 %v1247, %v1481
  %v1490 = vadd.f32 %v1248, %v1483
  %1491 = vrot.lane.b32.xlu0 %v61, 111
  %v1492 = vpop.permute.xlu0 %1491
  %1493 = vrot.lane.b32.xlu0 %v62, 111
  %v1494 = vpop.permute.xlu0 %1493
  %1495 = vrot.lane.b32.xlu0 %v63, 111
  %v1496 = vpop.permute.xlu0 %1495
  %1497 = vrot.lane.b32.xlu0 %v64, 111
  %v1498 = vpop.permute.xlu0 %1497
  %1499 = vrot.lane.b32.xlu0 %v65, 111
  %v1500 = vpop.permute.xlu0 %1499
  %1501 = vrot.lane.b32.xlu0 %v66, 111
  %v1502 = vpop.permute.xlu0 %1501
  %vm1503 = vcmp.lt.s32.totalorder %v80, 111
  %v1504 = vsel %vm1503, %v1500, %v1502
  %v1505 = vsel %vm1503, %v1498, %v1500
  %v1506 = vsel %vm1503, %v1496, %v1498
  %v1507 = vsel %vm1503, %v1494, %v1496
  %v1508 = vsel %vm1503, %v1492, %v1494
  %v1509 = vsel %vm1503, %v1502, %v1492
  %1510 = vrot.lane.b32.xlu0 %v88, 80
  %v1511 = vpop.permute.xlu0 %1510
  %v1512 = vsel %vm111, %v1511, 0
  %1514 = vmatprep.subr.mxu0 0.0
  %1515 = vmatpush1.msra.mxu0 0.0
  %1516 = vmatprep.subr.mxu0 0.0
  %1517 = vmatpush1.msra.mxu0 0.0
  %1518 = vmatprep.subr.mxu0 0.0
  %1519 = vmatpush1.msra.mxu0 0.0
  %1520 = vmatprep.subr.mxu0 0.0
  %1521 = vmatpush1.msra.mxu0 0.0
  %1522 = vmatprep.subr.mxu0 0.0
  %1523 = vmatpush1.msra.mxu0 0.0
  %1524 = vmatprep.subr.mxu0 0.0
  %1525 = vmatpush1.msra.mxu0 0.0
  %1526 = vmatprep.subr.mxu0 0.0
  %1527 = vmatpush1.msra.mxu0 0.0
  %1528 = vmatprep.subr.mxu0 0.0
  %1529 = vmatpush1.msra.mxu0 0.0
  %1530 = vmatprep.subr.mxu0 0.0
  %1531 = vmatpush1.msra.mxu0 0.0
  %1532 = vmatprep.subr.mxu0 0.0
  %1533 = vmatpush1.msra.mxu0 0.0
  %1534 = vmatprep.subr.mxu0 0.0
  %1535 = vmatpush1.msra.mxu0 0.0
  %1536 = vmatprep.subr.mxu0 0.0
  %1537 = vmatpush1.msra.mxu0 0.0
  %1538 = vmatprep.subr.mxu0 0.0
  %1539 = vmatpush1.msra.mxu0 0.0
  %1540 = vmatprep.subr.mxu0 0.0
  %1541 = vmatpush1.msra.mxu0 0.0
  %1542 = vmatprep.subr.mxu0 0.0
  %1543 = vmatpush1.msra.mxu0 0.0
  %1544 = vmatprep.subr.mxu0 %v1507
  %1545 = vmatpush1.msra.mxu0 %v1508
  %1546 = vmatprep.subr.mxu0 0.0
  %1547 = vmatpush2.msra.mxu0 0.0
  %1548 = vmatprep.subr.mxu0 0.0
  %1549 = vmatpush2.msra.mxu0 0.0
  %1550 = vmatprep.subr.mxu0 0.0
  %1551 = vmatpush2.msra.mxu0 0.0
  %1552 = vmatprep.subr.mxu0 0.0
  %1553 = vmatpush2.msra.mxu0 0.0
  %1554 = vmatprep.subr.mxu0 0.0
  %1555 = vmatpush2.msra.mxu0 0.0
  %1556 = vmatprep.subr.mxu0 0.0
  %1557 = vmatpush2.msra.mxu0 0.0
  %1558 = vmatprep.subr.mxu0 0.0
  %1559 = vmatpush2.msra.mxu0 0.0
  %1560 = vmatprep.subr.mxu0 0.0
  %1561 = vmatpush2.msra.mxu0 0.0
  %1562 = vmatprep.subr.mxu0 0.0
  %1563 = vmatpush2.msra.mxu0 0.0
  %1564 = vmatprep.subr.mxu0 0.0
  %1565 = vmatpush2.msra.mxu0 0.0
  %1566 = vmatprep.subr.mxu0 0.0
  %1567 = vmatpush2.msra.mxu0 0.0
  %1568 = vmatprep.subr.mxu0 0.0
  %1569 = vmatpush2.msra.mxu0 0.0
  %1570 = vmatprep.subr.mxu0 0.0
  %1571 = vmatpush2.msra.mxu0 0.0
  %1572 = vmatprep.subr.mxu0 0.0
  %1573 = vmatpush2.msra.mxu0 0.0
  %1574 = vmatprep.subr.mxu0 0.0
  %1575 = vmatpush2.msra.mxu0 0.0
  %1576 = vmatprep.subr.mxu0 0.0
  %1577 = vmatpush2.msra.mxu0 0.0
  %1578 = vmatprep.mubr.f32.mxu0 0.0
  %1579 = vmatmul.mubr.f32.gmra.mxu0 %v1512
  %v1580 = vpop.f32.mrf.mxu0
  %v1581 = vadd.f32 0.0, %v1580
  %v1582 = vpop.f32.mrf.mxu0
  %v1583 = vadd.f32 0.0, %v1582
  %1584 = vdwg.mxu0
  %1585 = vmatprep.subr.mxu0 0.0
  %1586 = vmatpush1.msra.mxu0 0.0
  %1587 = vmatprep.subr.mxu0 0.0
  %1588 = vmatpush1.msra.mxu0 0.0
  %1589 = vmatprep.subr.mxu0 0.0
  %1590 = vmatpush1.msra.mxu0 0.0
  %1591 = vmatprep.subr.mxu0 0.0
  %1592 = vmatpush1.msra.mxu0 0.0
  %1593 = vmatprep.subr.mxu0 0.0
  %1594 = vmatpush1.msra.mxu0 0.0
  %1595 = vmatprep.subr.mxu0 0.0
  %1596 = vmatpush1.msra.mxu0 0.0
  %1597 = vmatprep.subr.mxu0 0.0
  %1598 = vmatpush1.msra.mxu0 0.0
  %1599 = vmatprep.subr.mxu0 0.0
  %1600 = vmatpush1.msra.mxu0 0.0
  %1601 = vmatprep.subr.mxu0 0.0
  %1602 = vmatpush1.msra.mxu0 0.0
  %1603 = vmatprep.subr.mxu0 0.0
  %1604 = vmatpush1.msra.mxu0 0.0
  %1605 = vmatprep.subr.mxu0 0.0
  %1606 = vmatpush1.msra.mxu0 0.0
  %1607 = vmatprep.subr.mxu0 0.0
  %1608 = vmatpush1.msra.mxu0 0.0
  %1609 = vmatprep.subr.mxu0 0.0
  %1610 = vmatpush1.msra.mxu0 0.0
  %1611 = vmatprep.subr.mxu0 0.0
  %1612 = vmatpush1.msra.mxu0 0.0
  %1613 = vmatprep.subr.mxu0 0.0
  %1614 = vmatpush1.msra.mxu0 0.0
  %1615 = vmatprep.subr.mxu0 %v1505
  %1616 = vmatpush1.msra.mxu0 %v1506
  %1617 = vmatprep.subr.mxu0 0.0
  %1618 = vmatpush2.msra.mxu0 0.0
  %1619 = vmatprep.subr.mxu0 0.0
  %1620 = vmatpush2.msra.mxu0 0.0
  %1621 = vmatprep.subr.mxu0 0.0
  %1622 = vmatpush2.msra.mxu0 0.0
  %1623 = vmatprep.subr.mxu0 0.0
  %1624 = vmatpush2.msra.mxu0 0.0
  %1625 = vmatprep.subr.mxu0 0.0
  %1626 = vmatpush2.msra.mxu0 0.0
  %1627 = vmatprep.subr.mxu0 0.0
  %1628 = vmatpush2.msra.mxu0 0.0
  %1629 = vmatprep.subr.mxu0 0.0
  %1630 = vmatpush2.msra.mxu0 0.0
  %1631 = vmatprep.subr.mxu0 0.0
  %1632 = vmatpush2.msra.mxu0 0.0
  %1633 = vmatprep.subr.mxu0 0.0
  %1634 = vmatpush2.msra.mxu0 0.0
  %1635 = vmatprep.subr.mxu0 0.0
  %1636 = vmatpush2.msra.mxu0 0.0
  %1637 = vmatprep.subr.mxu0 0.0
  %1638 = vmatpush2.msra.mxu0 0.0
  %1639 = vmatprep.subr.mxu0 0.0
  %1640 = vmatpush2.msra.mxu0 0.0
  %1641 = vmatprep.subr.mxu0 0.0
  %1642 = vmatpush2.msra.mxu0 0.0
  %1643 = vmatprep.subr.mxu0 0.0
  %1644 = vmatpush2.msra.mxu0 0.0
  %1645 = vmatprep.subr.mxu0 0.0
  %1646 = vmatpush2.msra.mxu0 0.0
  %1647 = vmatprep.subr.mxu0 0.0
  %1648 = vmatpush2.msra.mxu0 0.0
  %1649 = vmatprep.mubr.f32.mxu0 0.0
  %1650 = vmatmul.mubr.f32.gmra.mxu0 %v1512
  %v1651 = vpop.f32.mrf.mxu0
  %v1652 = vadd.f32 0.0, %v1651
  %v1653 = vpop.f32.mrf.mxu0
  %v1654 = vadd.f32 0.0, %v1653
  %1655 = vdwg.mxu0
  %1656 = vmatprep.subr.mxu0 0.0
  %1657 = vmatpush1.msra.mxu0 0.0
  %1658 = vmatprep.subr.mxu0 0.0
  %1659 = vmatpush1.msra.mxu0 0.0
  %1660 = vmatprep.subr.mxu0 0.0
  %1661 = vmatpush1.msra.mxu0 0.0
  %1662 = vmatprep.subr.mxu0 0.0
  %1663 = vmatpush1.msra.mxu0 0.0
  %1664 = vmatprep.subr.mxu0 0.0
  %1665 = vmatpush1.msra.mxu0 0.0
  %1666 = vmatprep.subr.mxu0 0.0
  %1667 = vmatpush1.msra.mxu0 0.0
  %1668 = vmatprep.subr.mxu0 0.0
  %1669 = vmatpush1.msra.mxu0 0.0
  %1670 = vmatprep.subr.mxu0 0.0
  %1671 = vmatpush1.msra.mxu0 0.0
  %1672 = vmatprep.subr.mxu0 0.0
  %1673 = vmatpush1.msra.mxu0 0.0
  %1674 = vmatprep.subr.mxu0 0.0
  %1675 = vmatpush1.msra.mxu0 0.0
  %1676 = vmatprep.subr.mxu0 0.0
  %1677 = vmatpush1.msra.mxu0 0.0
  %1678 = vmatprep.subr.mxu0 0.0
  %1679 = vmatpush1.msra.mxu0 0.0
  %1680 = vmatprep.subr.mxu0 0.0
  %1681 = vmatpush1.msra.mxu0 0.0
  %1682 = vmatprep.subr.mxu0 0.0
  %1683 = vmatpush1.msra.mxu0 0.0
  %1684 = vmatprep.subr.mxu0 0.0
  %1685 = vmatpush1.msra.mxu0 0.0
  %1686 = vmatprep.subr.mxu0 %v1509
  %1687 = vmatpush1.msra.mxu0 %v1504
  %1688 = vmatprep.subr.mxu0 0.0
  %1689 = vmatpush2.msra.mxu0 0.0
  %1690 = vmatprep.subr.mxu0 0.0
  %1691 = vmatpush2.msra.mxu0 0.0
  %1692 = vmatprep.subr.mxu0 0.0
  %1693 = vmatpush2.msra.mxu0 0.0
  %1694 = vmatprep.subr.mxu0 0.0
  %1695 = vmatpush2.msra.mxu0 0.0
  %1696 = vmatprep.subr.mxu0 0.0
  %1697 = vmatpush2.msra.mxu0 0.0
  %1698 = vmatprep.subr.mxu0 0.0
  %1699 = vmatpush2.msra.mxu0 0.0
  %1700 = vmatprep.subr.mxu0 0.0
  %1701 = vmatpush2.msra.mxu0 0.0
  %1702 = vmatprep.subr.mxu0 0.0
  %1703 = vmatpush2.msra.mxu0 0.0
  %1704 = vmatprep.subr.mxu0 0.0
  %1705 = vmatpush2.msra.mxu0 0.0
  %1706 = vmatprep.subr.mxu0 0.0
  %1707 = vmatpush2.msra.mxu0 0.0
  %1708 = vmatprep.subr.mxu0 0.0
  %1709 = vmatpush2.msra.mxu0 0.0
  %1710 = vmatprep.subr.mxu0 0.0
  %1711 = vmatpush2.msra.mxu0 0.0
  %1712 = vmatprep.subr.mxu0 0.0
  %1713 = vmatpush2.msra.mxu0 0.0
  %1714 = vmatprep.subr.mxu0 0.0
  %1715 = vmatpush2.msra.mxu0 0.0
  %1716 = vmatprep.subr.mxu0 0.0
  %1717 = vmatpush2.msra.mxu0 0.0
  %1718 = vmatprep.subr.mxu0 0.0
  %1719 = vmatpush2.msra.mxu0 0.0
  %1720 = vmatprep.mubr.f32.mxu0 0.0
  %1721 = vmatmul.mubr.f32.gmra.mxu0 %v1512
  %v1722 = vpop.f32.mrf.mxu0
  %v1723 = vadd.f32 0.0, %v1722
  %v1724 = vpop.f32.mrf.mxu0
  %v1725 = vadd.f32 0.0, %v1724
  %1726 = vdwg.mxu0
  %v1727 = vadd.f32 %v1485, %v1581
  %v1728 = vadd.f32 %v1486, %v1583
  %v1729 = vadd.f32 %v1487, %v1652
  %v1730 = vadd.f32 %v1488, %v1654
  %v1731 = vadd.f32 %v1489, %v1723
  %v1732 = vadd.f32 %v1490, %v1725
  %1733 = vrot.lane.b32.xlu0 %v61, 110
  %v1734 = vpop.permute.xlu0 %1733
  %1735 = vrot.lane.b32.xlu0 %v62, 110
  %v1736 = vpop.permute.xlu0 %1735
  %1737 = vrot.lane.b32.xlu0 %v63, 110
  %v1738 = vpop.permute.xlu0 %1737
  %1739 = vrot.lane.b32.xlu0 %v64, 110
  %v1740 = vpop.permute.xlu0 %1739
  %1741 = vrot.lane.b32.xlu0 %v65, 110
  %v1742 = vpop.permute.xlu0 %1741
  %1743 = vrot.lane.b32.xlu0 %v66, 110
  %v1744 = vpop.permute.xlu0 %1743
  %vm1745 = vcmp.lt.s32.totalorder %v80, 110
  %v1746 = vsel %vm1745, %v1742, %v1744
  %v1747 = vsel %vm1745, %v1740, %v1742
  %v1748 = vsel %vm1745, %v1738, %v1740
  %v1749 = vsel %vm1745, %v1736, %v1738
  %v1750 = vsel %vm1745, %v1734, %v1736
  %v1751 = vsel %vm1745, %v1744, %v1734
  %1752 = vrot.lane.b32.xlu0 %v88, 72
  %v1753 = vpop.permute.xlu0 %1752
  %v1754 = vsel %vm111, %v1753, 0
  %1756 = vmatprep.subr.mxu0 0.0
  %1757 = vmatpush1.msra.mxu0 0.0
  %1758 = vmatprep.subr.mxu0 0.0
  %1759 = vmatpush1.msra.mxu0 0.0
  %1760 = vmatprep.subr.mxu0 0.0
  %1761 = vmatpush1.msra.mxu0 0.0
  %1762 = vmatprep.subr.mxu0 0.0
  %1763 = vmatpush1.msra.mxu0 0.0
  %1764 = vmatprep.subr.mxu0 0.0
  %1765 = vmatpush1.msra.mxu0 0.0
  %1766 = vmatprep.subr.mxu0 0.0
  %1767 = vmatpush1.msra.mxu0 0.0
  %1768 = vmatprep.subr.mxu0 0.0
  %1769 = vmatpush1.msra.mxu0 0.0
  %1770 = vmatprep.subr.mxu0 0.0
  %1771 = vmatpush1.msra.mxu0 0.0
  %1772 = vmatprep.subr.mxu0 0.0
  %1773 = vmatpush1.msra.mxu0 0.0
  %1774 = vmatprep.subr.mxu0 0.0
  %1775 = vmatpush1.msra.mxu0 0.0
  %1776 = vmatprep.subr.mxu0 0.0
  %1777 = vmatpush1.msra.mxu0 0.0
  %1778 = vmatprep.subr.mxu0 0.0
  %1779 = vmatpush1.msra.mxu0 0.0
  %1780 = vmatprep.subr.mxu0 0.0
  %1781 = vmatpush1.msra.mxu0 0.0
  %1782 = vmatprep.subr.mxu0 0.0
  %1783 = vmatpush1.msra.mxu0 0.0
  %1784 = vmatprep.subr.mxu0 0.0
  %1785 = vmatpush1.msra.mxu0 0.0
  %1786 = vmatprep.subr.mxu0 %v1749
  %1787 = vmatpush1.msra.mxu0 %v1750
  %1788 = vmatprep.subr.mxu0 0.0
  %1789 = vmatpush2.msra.mxu0 0.0
  %1790 = vmatprep.subr.mxu0 0.0
  %1791 = vmatpush2.msra.mxu0 0.0
  %1792 = vmatprep.subr.mxu0 0.0
  %1793 = vmatpush2.msra.mxu0 0.0
  %1794 = vmatprep.subr.mxu0 0.0
  %1795 = vmatpush2.msra.mxu0 0.0
  %1796 = vmatprep.subr.mxu0 0.0
  %1797 = vmatpush2.msra.mxu0 0.0
  %1798 = vmatprep.subr.mxu0 0.0
  %1799 = vmatpush2.msra.mxu0 0.0
  %1800 = vmatprep.subr.mxu0 0.0
  %1801 = vmatpush2.msra.mxu0 0.0
  %1802 = vmatprep.subr.mxu0 0.0
  %1803 = vmatpush2.msra.mxu0 0.0
  %1804 = vmatprep.subr.mxu0 0.0
  %1805 = vmatpush2.msra.mxu0 0.0
  %1806 = vmatprep.subr.mxu0 0.0
  %1807 = vmatpush2.msra.mxu0 0.0
  %1808 = vmatprep.subr.mxu0 0.0
  %1809 = vmatpush2.msra.mxu0 0.0
  %1810 = vmatprep.subr.mxu0 0.0
  %1811 = vmatpush2.msra.mxu0 0.0
  %1812 = vmatprep.subr.mxu0 0.0
  %1813 = vmatpush2.msra.mxu0 0.0
  %1814 = vmatprep.subr.mxu0 0.0
  %1815 = vmatpush2.msra.mxu0 0.0
  %1816 = vmatprep.subr.mxu0 0.0
  %1817 = vmatpush2.msra.mxu0 0.0
  %1818 = vmatprep.subr.mxu0 0.0
  %1819 = vmatpush2.msra.mxu0 0.0
  %1820 = vmatprep.mubr.f32.mxu0 0.0
  %1821 = vmatmul.mubr.f32.gmra.mxu0 %v1754
  %v1822 = vpop.f32.mrf.mxu0
  %v1823 = vadd.f32 0.0, %v1822
  %v1824 = vpop.f32.mrf.mxu0
  %v1825 = vadd.f32 0.0, %v1824
  %1826 = vdwg.mxu0
  %1827 = vmatprep.subr.mxu0 0.0
  %1828 = vmatpush1.msra.mxu0 0.0
  %1829 = vmatprep.subr.mxu0 0.0
  %1830 = vmatpush1.msra.mxu0 0.0
  %1831 = vmatprep.subr.mxu0 0.0
  %1832 = vmatpush1.msra.mxu0 0.0
  %1833 = vmatprep.subr.mxu0 0.0
  %1834 = vmatpush1.msra.mxu0 0.0
  %1835 = vmatprep.subr.mxu0 0.0
  %1836 = vmatpush1.msra.mxu0 0.0
  %1837 = vmatprep.subr.mxu0 0.0
  %1838 = vmatpush1.msra.mxu0 0.0
  %1839 = vmatprep.subr.mxu0 0.0
  %1840 = vmatpush1.msra.mxu0 0.0
  %1841 = vmatprep.subr.mxu0 0.0
  %1842 = vmatpush1.msra.mxu0 0.0
  %1843 = vmatprep.subr.mxu0 0.0
  %1844 = vmatpush1.msra.mxu0 0.0
  %1845 = vmatprep.subr.mxu0 0.0
  %1846 = vmatpush1.msra.mxu0 0.0
  %1847 = vmatprep.subr.mxu0 0.0
  %1848 = vmatpush1.msra.mxu0 0.0
  %1849 = vmatprep.subr.mxu0 0.0
  %1850 = vmatpush1.msra.mxu0 0.0
  %1851 = vmatprep.subr.mxu0 0.0
  %1852 = vmatpush1.msra.mxu0 0.0
  %1853 = vmatprep.subr.mxu0 0.0
  %1854 = vmatpush1.msra.mxu0 0.0
  %1855 = vmatprep.subr.mxu0 0.0
  %1856 = vmatpush1.msra.mxu0 0.0
  %1857 = vmatprep.subr.mxu0 %v1747
  %1858 = vmatpush1.msra.mxu0 %v1748
  %1859 = vmatprep.subr.mxu0 0.0
  %1860 = vmatpush2.msra.mxu0 0.0
  %1861 = vmatprep.subr.mxu0 0.0
  %1862 = vmatpush2.msra.mxu0 0.0
  %1863 = vmatprep.subr.mxu0 0.0
  %1864 = vmatpush2.msra.mxu0 0.0
  %1865 = vmatprep.subr.mxu0 0.0
  %1866 = vmatpush2.msra.mxu0 0.0
  %1867 = vmatprep.subr.mxu0 0.0
  %1868 = vmatpush2.msra.mxu0 0.0
  %1869 = vmatprep.subr.mxu0 0.0
  %1870 = vmatpush2.msra.mxu0 0.0
  %1871 = vmatprep.subr.mxu0 0.0
  %1872 = vmatpush2.msra.mxu0 0.0
  %1873 = vmatprep.subr.mxu0 0.0
  %1874 = vmatpush2.msra.mxu0 0.0
  %1875 = vmatprep.subr.mxu0 0.0
  %1876 = vmatpush2.msra.mxu0 0.0
  %1877 = vmatprep.subr.mxu0 0.0
  %1878 = vmatpush2.msra.mxu0 0.0
  %1879 = vmatprep.subr.mxu0 0.0
  %1880 = vmatpush2.msra.mxu0 0.0
  %1881 = vmatprep.subr.mxu0 0.0
  %1882 = vmatpush2.msra.mxu0 0.0
  %1883 = vmatprep.subr.mxu0 0.0
  %1884 = vmatpush2.msra.mxu0 0.0
  %1885 = vmatprep.subr.mxu0 0.0
  %1886 = vmatpush2.msra.mxu0 0.0
  %1887 = vmatprep.subr.mxu0 0.0
  %1888 = vmatpush2.msra.mxu0 0.0
  %1889 = vmatprep.subr.mxu0 0.0
  %1890 = vmatpush2.msra.mxu0 0.0
  %1891 = vmatprep.mubr.f32.mxu0 0.0
  %1892 = vmatmul.mubr.f32.gmra.mxu0 %v1754
  %v1893 = vpop.f32.mrf.mxu0
  %v1894 = vadd.f32 0.0, %v1893
  %v1895 = vpop.f32.mrf.mxu0
  %v1896 = vadd.f32 0.0, %v1895
  %1897 = vdwg.mxu0
  %1898 = vmatprep.subr.mxu0 0.0
  %1899 = vmatpush1.msra.mxu0 0.0
  %1900 = vmatprep.subr.mxu0 0.0
  %1901 = vmatpush1.msra.mxu0 0.0
  %1902 = vmatprep.subr.mxu0 0.0
  %1903 = vmatpush1.msra.mxu0 0.0
  %1904 = vmatprep.subr.mxu0 0.0
  %1905 = vmatpush1.msra.mxu0 0.0
  %1906 = vmatprep.subr.mxu0 0.0
  %1907 = vmatpush1.msra.mxu0 0.0
  %1908 = vmatprep.subr.mxu0 0.0
  %1909 = vmatpush1.msra.mxu0 0.0
  %1910 = vmatprep.subr.mxu0 0.0
  %1911 = vmatpush1.msra.mxu0 0.0
  %1912 = vmatprep.subr.mxu0 0.0
  %1913 = vmatpush1.msra.mxu0 0.0
  %1914 = vmatprep.subr.mxu0 0.0
  %1915 = vmatpush1.msra.mxu0 0.0
  %1916 = vmatprep.subr.mxu0 0.0
  %1917 = vmatpush1.msra.mxu0 0.0
  %1918 = vmatprep.subr.mxu0 0.0
  %1919 = vmatpush1.msra.mxu0 0.0
  %1920 = vmatprep.subr.mxu0 0.0
  %1921 = vmatpush1.msra.mxu0 0.0
  %1922 = vmatprep.subr.mxu0 0.0
  %1923 = vmatpush1.msra.mxu0 0.0
  %1924 = vmatprep.subr.mxu0 0.0
  %1925 = vmatpush1.msra.mxu0 0.0
  %1926 = vmatprep.subr.mxu0 0.0
  %1927 = vmatpush1.msra.mxu0 0.0
  %1928 = vmatprep.subr.mxu0 %v1751
  %1929 = vmatpush1.msra.mxu0 %v1746
  %1930 = vmatprep.subr.mxu0 0.0
  %1931 = vmatpush2.msra.mxu0 0.0
  %1932 = vmatprep.subr.mxu0 0.0
  %1933 = vmatpush2.msra.mxu0 0.0
  %1934 = vmatprep.subr.mxu0 0.0
  %1935 = vmatpush2.msra.mxu0 0.0
  %1936 = vmatprep.subr.mxu0 0.0
  %1937 = vmatpush2.msra.mxu0 0.0
  %1938 = vmatprep.subr.mxu0 0.0
  %1939 = vmatpush2.msra.mxu0 0.0
  %1940 = vmatprep.subr.mxu0 0.0
  %1941 = vmatpush2.msra.mxu0 0.0
  %1942 = vmatprep.subr.mxu0 0.0
  %1943 = vmatpush2.msra.mxu0 0.0
  %1944 = vmatprep.subr.mxu0 0.0
  %1945 = vmatpush2.msra.mxu0 0.0
  %1946 = vmatprep.subr.mxu0 0.0
  %1947 = vmatpush2.msra.mxu0 0.0
  %1948 = vmatprep.subr.mxu0 0.0
  %1949 = vmatpush2.msra.mxu0 0.0
  %1950 = vmatprep.subr.mxu0 0.0
  %1951 = vmatpush2.msra.mxu0 0.0
  %1952 = vmatprep.subr.mxu0 0.0
  %1953 = vmatpush2.msra.mxu0 0.0
  %1954 = vmatprep.subr.mxu0 0.0
  %1955 = vmatpush2.msra.mxu0 0.0
  %1956 = vmatprep.subr.mxu0 0.0
  %1957 = vmatpush2.msra.mxu0 0.0
  %1958 = vmatprep.subr.mxu0 0.0
  %1959 = vmatpush2.msra.mxu0 0.0
  %1960 = vmatprep.subr.mxu0 0.0
  %1961 = vmatpush2.msra.mxu0 0.0
  %1962 = vmatprep.mubr.f32.mxu0 0.0
  %1963 = vmatmul.mubr.f32.gmra.mxu0 %v1754
  %v1964 = vpop.f32.mrf.mxu0
  %v1965 = vadd.f32 0.0, %v1964
  %v1966 = vpop.f32.mrf.mxu0
  %v1967 = vadd.f32 0.0, %v1966
  %1968 = vdwg.mxu0
  %v1969 = vadd.f32 %v1727, %v1823
  %v1970 = vadd.f32 %v1728, %v1825
  %v1971 = vadd.f32 %v1729, %v1894
  %v1972 = vadd.f32 %v1730, %v1896
  %v1973 = vadd.f32 %v1731, %v1965
  %v1974 = vadd.f32 %v1732, %v1967
  %1975 = vrot.lane.b32.xlu0 %v61, 109
  %v1976 = vpop.permute.xlu0 %1975
  %1977 = vrot.lane.b32.xlu0 %v62, 109
  %v1978 = vpop.permute.xlu0 %1977
  %1979 = vrot.lane.b32.xlu0 %v63, 109
  %v1980 = vpop.permute.xlu0 %1979
  %1981 = vrot.lane.b32.xlu0 %v64, 109
  %v1982 = vpop.permute.xlu0 %1981
  %1983 = vrot.lane.b32.xlu0 %v65, 109
  %v1984 = vpop.permute.xlu0 %1983
  %1985 = vrot.lane.b32.xlu0 %v66, 109
  %v1986 = vpop.permute.xlu0 %1985
  %vm1987 = vcmp.lt.s32.totalorder %v80, 109
  %v1988 = vsel %vm1987, %v1984, %v1986
  %v1989 = vsel %vm1987, %v1982, %v1984
  %v1990 = vsel %vm1987, %v1980, %v1982
  %v1991 = vsel %vm1987, %v1978, %v1980
  %v1992 = vsel %vm1987, %v1976, %v1978
  %v1993 = vsel %vm1987, %v1986, %v1976
  %1994 = vrot.lane.b32.xlu0 %v88, 64
  %v1995 = vpop.permute.xlu0 %1994
  %v1996 = vsel %vm111, %v1995, 0
  %1998 = vmatprep.subr.mxu0 0.0
  %1999 = vmatpush1.msra.mxu0 0.0
  %2000 = vmatprep.subr.mxu0 0.0
  %2001 = vmatpush1.msra.mxu0 0.0
  %2002 = vmatprep.subr.mxu0 0.0
  %2003 = vmatpush1.msra.mxu0 0.0
  %2004 = vmatprep.subr.mxu0 0.0
  %2005 = vmatpush1.msra.mxu0 0.0
  %2006 = vmatprep.subr.mxu0 0.0
  %2007 = vmatpush1.msra.mxu0 0.0
  %2008 = vmatprep.subr.mxu0 0.0
  %2009 = vmatpush1.msra.mxu0 0.0
  %2010 = vmatprep.subr.mxu0 0.0
  %2011 = vmatpush1.msra.mxu0 0.0
  %2012 = vmatprep.subr.mxu0 0.0
  %2013 = vmatpush1.msra.mxu0 0.0
  %2014 = vmatprep.subr.mxu0 0.0
  %2015 = vmatpush1.msra.mxu0 0.0
  %2016 = vmatprep.subr.mxu0 0.0
  %2017 = vmatpush1.msra.mxu0 0.0
  %2018 = vmatprep.subr.mxu0 0.0
  %2019 = vmatpush1.msra.mxu0 0.0
  %2020 = vmatprep.subr.mxu0 0.0
  %2021 = vmatpush1.msra.mxu0 0.0
  %2022 = vmatprep.subr.mxu0 0.0
  %2023 = vmatpush1.msra.mxu0 0.0
  %2024 = vmatprep.subr.mxu0 0.0
  %2025 = vmatpush1.msra.mxu0 0.0
  %2026 = vmatprep.subr.mxu0 0.0
  %2027 = vmatpush1.msra.mxu0 0.0
  %2028 = vmatprep.subr.mxu0 %v1991
  %2029 = vmatpush1.msra.mxu0 %v1992
  %2030 = vmatprep.subr.mxu0 0.0
  %2031 = vmatpush2.msra.mxu0 0.0
  %2032 = vmatprep.subr.mxu0 0.0
  %2033 = vmatpush2.msra.mxu0 0.0
  %2034 = vmatprep.subr.mxu0 0.0
  %2035 = vmatpush2.msra.mxu0 0.0
  %2036 = vmatprep.subr.mxu0 0.0
  %2037 = vmatpush2.msra.mxu0 0.0
  %2038 = vmatprep.subr.mxu0 0.0
  %2039 = vmatpush2.msra.mxu0 0.0
  %2040 = vmatprep.subr.mxu0 0.0
  %2041 = vmatpush2.msra.mxu0 0.0
  %2042 = vmatprep.subr.mxu0 0.0
  %2043 = vmatpush2.msra.mxu0 0.0
  %2044 = vmatprep.subr.mxu0 0.0
  %2045 = vmatpush2.msra.mxu0 0.0
  %2046 = vmatprep.subr.mxu0 0.0
  %2047 = vmatpush2.msra.mxu0 0.0
  %2048 = vmatprep.subr.mxu0 0.0
  %2049 = vmatpush2.msra.mxu0 0.0
  %2050 = vmatprep.subr.mxu0 0.0
  %2051 = vmatpush2.msra.mxu0 0.0
  %2052 = vmatprep.subr.mxu0 0.0
  %2053 = vmatpush2.msra.mxu0 0.0
  %2054 = vmatprep.subr.mxu0 0.0
  %2055 = vmatpush2.msra.mxu0 0.0
  %2056 = vmatprep.subr.mxu0 0.0
  %2057 = vmatpush2.msra.mxu0 0.0
  %2058 = vmatprep.subr.mxu0 0.0
  %2059 = vmatpush2.msra.mxu0 0.0
  %2060 = vmatprep.subr.mxu0 0.0
  %2061 = vmatpush2.msra.mxu0 0.0
  %2062 = vmatprep.mubr.f32.mxu0 0.0
  %2063 = vmatmul.mubr.f32.gmra.mxu0 %v1996
  %v2064 = vpop.f32.mrf.mxu0
  %v2065 = vadd.f32 0.0, %v2064
  %v2066 = vpop.f32.mrf.mxu0
  %v2067 = vadd.f32 0.0, %v2066
  %2068 = vdwg.mxu0
  %2069 = vmatprep.subr.mxu0 0.0
  %2070 = vmatpush1.msra.mxu0 0.0
  %2071 = vmatprep.subr.mxu0 0.0
  %2072 = vmatpush1.msra.mxu0 0.0
  %2073 = vmatprep.subr.mxu0 0.0
  %2074 = vmatpush1.msra.mxu0 0.0
  %2075 = vmatprep.subr.mxu0 0.0
  %2076 = vmatpush1.msra.mxu0 0.0
  %2077 = vmatprep.subr.mxu0 0.0
  %2078 = vmatpush1.msra.mxu0 0.0
  %2079 = vmatprep.subr.mxu0 0.0
  %2080 = vmatpush1.msra.mxu0 0.0
  %2081 = vmatprep.subr.mxu0 0.0
  %2082 = vmatpush1.msra.mxu0 0.0
  %2083 = vmatprep.subr.mxu0 0.0
  %2084 = vmatpush1.msra.mxu0 0.0
  %2085 = vmatprep.subr.mxu0 0.0
  %2086 = vmatpush1.msra.mxu0 0.0
  %2087 = vmatprep.subr.mxu0 0.0
  %2088 = vmatpush1.msra.mxu0 0.0
  %2089 = vmatprep.subr.mxu0 0.0
  %2090 = vmatpush1.msra.mxu0 0.0
  %2091 = vmatprep.subr.mxu0 0.0
  %2092 = vmatpush1.msra.mxu0 0.0
  %2093 = vmatprep.subr.mxu0 0.0
  %2094 = vmatpush1.msra.mxu0 0.0
  %2095 = vmatprep.subr.mxu0 0.0
  %2096 = vmatpush1.msra.mxu0 0.0
  %2097 = vmatprep.subr.mxu0 0.0
  %2098 = vmatpush1.msra.mxu0 0.0
  %2099 = vmatprep.subr.mxu0 %v1989
  %2100 = vmatpush1.msra.mxu0 %v1990
  %2101 = vmatprep.subr.mxu0 0.0
  %2102 = vmatpush2.msra.mxu0 0.0
  %2103 = vmatprep.subr.mxu0 0.0
  %2104 = vmatpush2.msra.mxu0 0.0
  %2105 = vmatprep.subr.mxu0 0.0
  %2106 = vmatpush2.msra.mxu0 0.0
  %2107 = vmatprep.subr.mxu0 0.0
  %2108 = vmatpush2.msra.mxu0 0.0
  %2109 = vmatprep.subr.mxu0 0.0
  %2110 = vmatpush2.msra.mxu0 0.0
  %2111 = vmatprep.subr.mxu0 0.0
  %2112 = vmatpush2.msra.mxu0 0.0
  %2113 = vmatprep.subr.mxu0 0.0
  %2114 = vmatpush2.msra.mxu0 0.0
  %2115 = vmatprep.subr.mxu0 0.0
  %2116 = vmatpush2.msra.mxu0 0.0
  %2117 = vmatprep.subr.mxu0 0.0
  %2118 = vmatpush2.msra.mxu0 0.0
  %2119 = vmatprep.subr.mxu0 0.0
  %2120 = vmatpush2.msra.mxu0 0.0
  %2121 = vmatprep.subr.mxu0 0.0
  %2122 = vmatpush2.msra.mxu0 0.0
  %2123 = vmatprep.subr.mxu0 0.0
  %2124 = vmatpush2.msra.mxu0 0.0
  %2125 = vmatprep.subr.mxu0 0.0
  %2126 = vmatpush2.msra.mxu0 0.0
  %2127 = vmatprep.subr.mxu0 0.0
  %2128 = vmatpush2.msra.mxu0 0.0
  %2129 = vmatprep.subr.mxu0 0.0
  %2130 = vmatpush2.msra.mxu0 0.0
  %2131 = vmatprep.subr.mxu0 0.0
  %2132 = vmatpush2.msra.mxu0 0.0
  %2133 = vmatprep.mubr.f32.mxu0 0.0
  %2134 = vmatmul.mubr.f32.gmra.mxu0 %v1996
  %v2135 = vpop.f32.mrf.mxu0
  %v2136 = vadd.f32 0.0, %v2135
  %v2137 = vpop.f32.mrf.mxu0
  %v2138 = vadd.f32 0.0, %v2137
  %2139 = vdwg.mxu0
  %2140 = vmatprep.subr.mxu0 0.0
  %2141 = vmatpush1.msra.mxu0 0.0
  %2142 = vmatprep.subr.mxu0 0.0
  %2143 = vmatpush1.msra.mxu0 0.0
  %2144 = vmatprep.subr.mxu0 0.0
  %2145 = vmatpush1.msra.mxu0 0.0
  %2146 = vmatprep.subr.mxu0 0.0
  %2147 = vmatpush1.msra.mxu0 0.0
  %2148 = vmatprep.subr.mxu0 0.0
  %2149 = vmatpush1.msra.mxu0 0.0
  %2150 = vmatprep.subr.mxu0 0.0
  %2151 = vmatpush1.msra.mxu0 0.0
  %2152 = vmatprep.subr.mxu0 0.0
  %2153 = vmatpush1.msra.mxu0 0.0
  %2154 = vmatprep.subr.mxu0 0.0
  %2155 = vmatpush1.msra.mxu0 0.0
  %2156 = vmatprep.subr.mxu0 0.0
  %2157 = vmatpush1.msra.mxu0 0.0
  %2158 = vmatprep.subr.mxu0 0.0
  %2159 = vmatpush1.msra.mxu0 0.0
  %2160 = vmatprep.subr.mxu0 0.0
  %2161 = vmatpush1.msra.mxu0 0.0
  %2162 = vmatprep.subr.mxu0 0.0
  %2163 = vmatpush1.msra.mxu0 0.0
  %2164 = vmatprep.subr.mxu0 0.0
  %2165 = vmatpush1.msra.mxu0 0.0
  %2166 = vmatprep.subr.mxu0 0.0
  %2167 = vmatpush1.msra.mxu0 0.0
  %2168 = vmatprep.subr.mxu0 0.0
  %2169 = vmatpush1.msra.mxu0 0.0
  %2170 = vmatprep.subr.mxu0 %v1993
  %2171 = vmatpush1.msra.mxu0 %v1988
  %2172 = vmatprep.subr.mxu0 0.0
  %2173 = vmatpush2.msra.mxu0 0.0
  %2174 = vmatprep.subr.mxu0 0.0
  %2175 = vmatpush2.msra.mxu0 0.0
  %2176 = vmatprep.subr.mxu0 0.0
  %2177 = vmatpush2.msra.mxu0 0.0
  %2178 = vmatprep.subr.mxu0 0.0
  %2179 = vmatpush2.msra.mxu0 0.0
  %2180 = vmatprep.subr.mxu0 0.0
  %2181 = vmatpush2.msra.mxu0 0.0
  %2182 = vmatprep.subr.mxu0 0.0
  %2183 = vmatpush2.msra.mxu0 0.0
  %2184 = vmatprep.subr.mxu0 0.0
  %2185 = vmatpush2.msra.mxu0 0.0
  %2186 = vmatprep.subr.mxu0 0.0
  %2187 = vmatpush2.msra.mxu0 0.0
  %2188 = vmatprep.subr.mxu0 0.0
  %2189 = vmatpush2.msra.mxu0 0.0
  %2190 = vmatprep.subr.mxu0 0.0
  %2191 = vmatpush2.msra.mxu0 0.0
  %2192 = vmatprep.subr.mxu0 0.0
  %2193 = vmatpush2.msra.mxu0 0.0
  %2194 = vmatprep.subr.mxu0 0.0
  %2195 = vmatpush2.msra.mxu0 0.0
  %2196 = vmatprep.subr.mxu0 0.0
  %2197 = vmatpush2.msra.mxu0 0.0
  %2198 = vmatprep.subr.mxu0 0.0
  %2199 = vmatpush2.msra.mxu0 0.0
  %2200 = vmatprep.subr.mxu0 0.0
  %2201 = vmatpush2.msra.mxu0 0.0
  %2202 = vmatprep.subr.mxu0 0.0
  %2203 = vmatpush2.msra.mxu0 0.0
  %2204 = vmatprep.mubr.f32.mxu0 0.0
  %2205 = vmatmul.mubr.f32.gmra.mxu0 %v1996
  %v2206 = vpop.f32.mrf.mxu0
  %v2207 = vadd.f32 0.0, %v2206
  %v2208 = vpop.f32.mrf.mxu0
  %v2209 = vadd.f32 0.0, %v2208
  %2210 = vdwg.mxu0
  %v2211 = vadd.f32 %v1969, %v2065
  %v2212 = vadd.f32 %v1970, %v2067
  %v2213 = vadd.f32 %v1971, %v2136
  %v2214 = vadd.f32 %v1972, %v2138
  %v2215 = vadd.f32 %v1973, %v2207
  %v2216 = vadd.f32 %v1974, %v2209
  %v2217 = vld [vmem:[%s3] sm:$0xff]
  %2219 = vset.pattern.permute.xlu0 0
  %2220 = vperm.xlu0 %2219, %v2217
  %v2221 = vpop.permute.xlu0 %2220
  %v2223 = vadd.f32 %v2211, %v2221
  %v2224 = vadd.f32 %v2212, %v2221
  %v2225 = vadd.f32 %v2213, %v2221
  %v2226 = vadd.f32 %v2214, %v2221
  %v2227 = vadd.f32 %v2215, %v2221
  %v2228 = vadd.f32 %v2216, %v2221
  %v2229 = vmax.f32 %v2223, 0.0
  %v2230 = vmax.f32 %v2224, 0.0
  %v2231 = vmax.f32 %v2225, 0.0
  %v2232 = vmax.f32 %v2226, 0.0
  %v2233 = vmax.f32 %v2227, 0.0
  %v2234 = vmax.f32 %v2228, 0.0
  %v2235 = vmul.f32 %v2229, %v34
  %v2236 = vmul.f32 %v2230, %v38
  %v2237 = vmul.f32 %v2231, %v42
  %v2238 = vmul.f32 %v2232, %v46
  %v2239 = vmul.f32 %v2233, %v50
  %v2240 = vmul.f32 %v2234, %v54
  %2241 = vrot.lane.b32.xlu0 %v2235, 19
  %v2242 = vpop.permute.xlu0 %2241
  %2243 = vrot.lane.b32.xlu0 %v2236, 19
  %v2244 = vpop.permute.xlu0 %2243
  %2245 = vrot.lane.b32.xlu0 %v2237, 19
  %v2246 = vpop.permute.xlu0 %2245
  %2247 = vrot.lane.b32.xlu0 %v2238, 19
  %v2248 = vpop.permute.xlu0 %2247
  %2249 = vrot.lane.b32.xlu0 %v2239, 19
  %v2250 = vpop.permute.xlu0 %2249
  %2251 = vrot.lane.b32.xlu0 %v2240, 19
  %v2252 = vpop.permute.xlu0 %2251
  %v2253 = vsel %vm81, %v2250, %v2252
  %v2254 = vsel %vm81, %v2248, %v2250
  %v2255 = vsel %vm81, %v2246, %v2248
  %v2256 = vsel %vm81, %v2244, %v2246
  %v2257 = vsel %vm81, %v2242, %v2244
  %v2258 = vsel %vm81, %v2252, %v2242
  %v2259 = vld [vmem:[%s4] sm:$0xff]
  %2260 = vrot.lane.b32.xlu0 %v2235, 18
  %v2261 = vpop.permute.xlu0 %2260
  %2262 = vrot.lane.b32.xlu0 %v2236, 18
  %v2263 = vpop.permute.xlu0 %2262
  %2264 = vrot.lane.b32.xlu0 %v2237, 18
  %v2265 = vpop.permute.xlu0 %2264
  %2266 = vrot.lane.b32.xlu0 %v2238, 18
  %v2267 = vpop.permute.xlu0 %2266
  %2268 = vrot.lane.b32.xlu0 %v2239, 18
  %v2269 = vpop.permute.xlu0 %2268
  %2270 = vrot.lane.b32.xlu0 %v2240, 18
  %v2271 = vpop.permute.xlu0 %2270
  %v2272 = vsel %vm101, %v2269, %v2271
  %v2273 = vsel %vm101, %v2267, %v2269
  %v2274 = vsel %vm101, %v2265, %v2267
  %v2275 = vsel %vm101, %v2263, %v2265
  %v2276 = vsel %vm101, %v2261, %v2263
  %v2277 = vsel %vm101, %v2271, %v2261
  %2279 = vrot.lane.b32.xlu0 %v2259, 120
  %v2280 = vpop.permute.xlu0 %2279
  %v2281 = vsel %vm111, %v2280, 0
  %2283 = vmatprep.subr.mxu0 0.0
  %2284 = vmatpush1.msra.mxu0 0.0
  %2285 = vmatprep.subr.mxu0 0.0
  %2286 = vmatpush1.msra.mxu0 0.0
  %2287 = vmatprep.subr.mxu0 0.0
  %2288 = vmatpush1.msra.mxu0 0.0
  %2289 = vmatprep.subr.mxu0 0.0
  %2290 = vmatpush1.msra.mxu0 0.0
  %2291 = vmatprep.subr.mxu0 0.0
  %2292 = vmatpush1.msra.mxu0 0.0
  %2293 = vmatprep.subr.mxu0 0.0
  %2294 = vmatpush1.msra.mxu0 0.0
  %2295 = vmatprep.subr.mxu0 0.0
  %2296 = vmatpush1.msra.mxu0 0.0
  %2297 = vmatprep.subr.mxu0 0.0
  %2298 = vmatpush1.msra.mxu0 0.0
  %2299 = vmatprep.subr.mxu0 0.0
  %2300 = vmatpush1.msra.mxu0 0.0
  %2301 = vmatprep.subr.mxu0 0.0
  %2302 = vmatpush1.msra.mxu0 0.0
  %2303 = vmatprep.subr.mxu0 0.0
  %2304 = vmatpush1.msra.mxu0 0.0
  %2305 = vmatprep.subr.mxu0 0.0
  %2306 = vmatpush1.msra.mxu0 0.0
  %2307 = vmatprep.subr.mxu0 0.0
  %2308 = vmatpush1.msra.mxu0 0.0
  %2309 = vmatprep.subr.mxu0 0.0
  %2310 = vmatpush1.msra.mxu0 0.0
  %2311 = vmatprep.subr.mxu0 0.0
  %2312 = vmatpush1.msra.mxu0 0.0
  %2313 = vmatprep.subr.mxu0 %v2276
  %2314 = vmatpush1.msra.mxu0 %v2277
  %2315 = vmatprep.subr.mxu0 0.0
  %2316 = vmatpush2.msra.mxu0 0.0
  %2317 = vmatprep.subr.mxu0 0.0
  %2318 = vmatpush2.msra.mxu0 0.0
  %2319 = vmatprep.subr.mxu0 0.0
  %2320 = vmatpush2.msra.mxu0 0.0
  %2321 = vmatprep.subr.mxu0 0.0
  %2322 = vmatpush2.msra.mxu0 0.0
  %2323 = vmatprep.subr.mxu0 0.0
  %2324 = vmatpush2.msra.mxu0 0.0
  %2325 = vmatprep.subr.mxu0 0.0
  %2326 = vmatpush2.msra.mxu0 0.0
  %2327 = vmatprep.subr.mxu0 0.0
  %2328 = vmatpush2.msra.mxu0 0.0
  %2329 = vmatprep.subr.mxu0 0.0
  %2330 = vmatpush2.msra.mxu0 0.0
  %2331 = vmatprep.subr.mxu0 0.0
  %2332 = vmatpush2.msra.mxu0 0.0
  %2333 = vmatprep.subr.mxu0 0.0
  %2334 = vmatpush2.msra.mxu0 0.0
  %2335 = vmatprep.subr.mxu0 0.0
  %2336 = vmatpush2.msra.mxu0 0.0
  %2337 = vmatprep.subr.mxu0 0.0
  %2338 = vmatpush2.msra.mxu0 0.0
  %2339 = vmatprep.subr.mxu0 0.0
  %2340 = vmatpush2.msra.mxu0 0.0
  %2341 = vmatprep.subr.mxu0 0.0
  %2342 = vmatpush2.msra.mxu0 0.0
  %2343 = vmatprep.subr.mxu0 0.0
  %2344 = vmatpush2.msra.mxu0 0.0
  %2345 = vmatprep.subr.mxu0 0.0
  %2346 = vmatpush2.msra.mxu0 0.0
  %2347 = vmatprep.mubr.f32.mxu0 0.0
  %2348 = vmatmul.mubr.f32.gmra.mxu0 %v2281
  %v2349 = vpop.f32.mrf.mxu0
  %v2350 = vadd.f32 0.0, %v2349
  %v2351 = vpop.f32.mrf.mxu0
  %v2352 = vadd.f32 0.0, %v2351
  %2353 = vdwg.mxu0
  %2354 = vmatprep.subr.mxu0 0.0
  %2355 = vmatpush1.msra.mxu0 0.0
  %2356 = vmatprep.subr.mxu0 0.0
  %2357 = vmatpush1.msra.mxu0 0.0
  %2358 = vmatprep.subr.mxu0 0.0
  %2359 = vmatpush1.msra.mxu0 0.0
  %2360 = vmatprep.subr.mxu0 0.0
  %2361 = vmatpush1.msra.mxu0 0.0
  %2362 = vmatprep.subr.mxu0 0.0
  %2363 = vmatpush1.msra.mxu0 0.0
  %2364 = vmatprep.subr.mxu0 0.0
  %2365 = vmatpush1.msra.mxu0 0.0
  %2366 = vmatprep.subr.mxu0 0.0
  %2367 = vmatpush1.msra.mxu0 0.0
  %2368 = vmatprep.subr.mxu0 0.0
  %2369 = vmatpush1.msra.mxu0 0.0
  %2370 = vmatprep.subr.mxu0 0.0
  %2371 = vmatpush1.msra.mxu0 0.0
  %2372 = vmatprep.subr.mxu0 0.0
  %2373 = vmatpush1.msra.mxu0 0.0
  %2374 = vmatprep.subr.mxu0 0.0
  %2375 = vmatpush1.msra.mxu0 0.0
  %2376 = vmatprep.subr.mxu0 0.0
  %2377 = vmatpush1.msra.mxu0 0.0
  %2378 = vmatprep.subr.mxu0 0.0
  %2379 = vmatpush1.msra.mxu0 0.0
  %2380 = vmatprep.subr.mxu0 0.0
  %2381 = vmatpush1.msra.mxu0 0.0
  %2382 = vmatprep.subr.mxu0 0.0
  %2383 = vmatpush1.msra.mxu0 0.0
  %2384 = vmatprep.subr.mxu0 %v2274
  %2385 = vmatpush1.msra.mxu0 %v2275
  %2386 = vmatprep.subr.mxu0 0.0
  %2387 = vmatpush2.msra.mxu0 0.0
  %2388 = vmatprep.subr.mxu0 0.0
  %2389 = vmatpush2.msra.mxu0 0.0
  %2390 = vmatprep.subr.mxu0 0.0
  %2391 = vmatpush2.msra.mxu0 0.0
  %2392 = vmatprep.subr.mxu0 0.0
  %2393 = vmatpush2.msra.mxu0 0.0
  %2394 = vmatprep.subr.mxu0 0.0
  %2395 = vmatpush2.msra.mxu0 0.0
  %2396 = vmatprep.subr.mxu0 0.0
  %2397 = vmatpush2.msra.mxu0 0.0
  %2398 = vmatprep.subr.mxu0 0.0
  %2399 = vmatpush2.msra.mxu0 0.0
  %2400 = vmatprep.subr.mxu0 0.0
  %2401 = vmatpush2.msra.mxu0 0.0
  %2402 = vmatprep.subr.mxu0 0.0
  %2403 = vmatpush2.msra.mxu0 0.0
  %2404 = vmatprep.subr.mxu0 0.0
  %2405 = vmatpush2.msra.mxu0 0.0
  %2406 = vmatprep.subr.mxu0 0.0
  %2407 = vmatpush2.msra.mxu0 0.0
  %2408 = vmatprep.subr.mxu0 0.0
  %2409 = vmatpush2.msra.mxu0 0.0
  %2410 = vmatprep.subr.mxu0 0.0
  %2411 = vmatpush2.msra.mxu0 0.0
  %2412 = vmatprep.subr.mxu0 0.0
  %2413 = vmatpush2.msra.mxu0 0.0
  %2414 = vmatprep.subr.mxu0 0.0
  %2415 = vmatpush2.msra.mxu0 0.0
  %2416 = vmatprep.subr.mxu0 0.0
  %2417 = vmatpush2.msra.mxu0 0.0
  %2418 = vmatprep.mubr.f32.mxu0 0.0
  %2419 = vmatmul.mubr.f32.gmra.mxu0 %v2281
  %v2420 = vpop.f32.mrf.mxu0
  %v2421 = vadd.f32 0.0, %v2420
  %v2422 = vpop.f32.mrf.mxu0
  %v2423 = vadd.f32 0.0, %v2422
  %2424 = vdwg.mxu0
  %2425 = vmatprep.subr.mxu0 0.0
  %2426 = vmatpush1.msra.mxu0 0.0
  %2427 = vmatprep.subr.mxu0 0.0
  %2428 = vmatpush1.msra.mxu0 0.0
  %2429 = vmatprep.subr.mxu0 0.0
  %2430 = vmatpush1.msra.mxu0 0.0
  %2431 = vmatprep.subr.mxu0 0.0
  %2432 = vmatpush1.msra.mxu0 0.0
  %2433 = vmatprep.subr.mxu0 0.0
  %2434 = vmatpush1.msra.mxu0 0.0
  %2435 = vmatprep.subr.mxu0 0.0
  %2436 = vmatpush1.msra.mxu0 0.0
  %2437 = vmatprep.subr.mxu0 0.0
  %2438 = vmatpush1.msra.mxu0 0.0
  %2439 = vmatprep.subr.mxu0 0.0
  %2440 = vmatpush1.msra.mxu0 0.0
  %2441 = vmatprep.subr.mxu0 0.0
  %2442 = vmatpush1.msra.mxu0 0.0
  %2443 = vmatprep.subr.mxu0 0.0
  %2444 = vmatpush1.msra.mxu0 0.0
  %2445 = vmatprep.subr.mxu0 0.0
  %2446 = vmatpush1.msra.mxu0 0.0
  %2447 = vmatprep.subr.mxu0 0.0
  %2448 = vmatpush1.msra.mxu0 0.0
  %2449 = vmatprep.subr.mxu0 0.0
  %2450 = vmatpush1.msra.mxu0 0.0
  %2451 = vmatprep.subr.mxu0 0.0
  %2452 = vmatpush1.msra.mxu0 0.0
  %2453 = vmatprep.subr.mxu0 0.0
  %2454 = vmatpush1.msra.mxu0 0.0
  %2455 = vmatprep.subr.mxu0 %v2272
  %2456 = vmatpush1.msra.mxu0 %v2273
  %2457 = vmatprep.subr.mxu0 0.0
  %2458 = vmatpush2.msra.mxu0 0.0
  %2459 = vmatprep.subr.mxu0 0.0
  %2460 = vmatpush2.msra.mxu0 0.0
  %2461 = vmatprep.subr.mxu0 0.0
  %2462 = vmatpush2.msra.mxu0 0.0
  %2463 = vmatprep.subr.mxu0 0.0
  %2464 = vmatpush2.msra.mxu0 0.0
  %2465 = vmatprep.subr.mxu0 0.0
  %2466 = vmatpush2.msra.mxu0 0.0
  %2467 = vmatprep.subr.mxu0 0.0
  %2468 = vmatpush2.msra.mxu0 0.0
  %2469 = vmatprep.subr.mxu0 0.0
  %2470 = vmatpush2.msra.mxu0 0.0
  %2471 = vmatprep.subr.mxu0 0.0
  %2472 = vmatpush2.msra.mxu0 0.0
  %2473 = vmatprep.subr.mxu0 0.0
  %2474 = vmatpush2.msra.mxu0 0.0
  %2475 = vmatprep.subr.mxu0 0.0
  %2476 = vmatpush2.msra.mxu0 0.0
  %2477 = vmatprep.subr.mxu0 0.0
  %2478 = vmatpush2.msra.mxu0 0.0
  %2479 = vmatprep.subr.mxu0 0.0
  %2480 = vmatpush2.msra.mxu0 0.0
  %2481 = vmatprep.subr.mxu0 0.0
  %2482 = vmatpush2.msra.mxu0 0.0
  %2483 = vmatprep.subr.mxu0 0.0
  %2484 = vmatpush2.msra.mxu0 0.0
  %2485 = vmatprep.subr.mxu0 0.0
  %2486 = vmatpush2.msra.mxu0 0.0
  %2487 = vmatprep.subr.mxu0 0.0
  %2488 = vmatpush2.msra.mxu0 0.0
  %2489 = vmatprep.mubr.f32.mxu0 0.0
  %2490 = vmatmul.mubr.f32.gmra.mxu0 %v2281
  %v2491 = vpop.f32.mrf.mxu0
  %v2492 = vadd.f32 0.0, %v2491
  %v2493 = vpop.f32.mrf.mxu0
  %v2494 = vadd.f32 0.0, %v2493
  %2495 = vdwg.mxu0
  %v2496 = vsel %vm111, %v2259, 0
  %2498 = vmatprep.subr.mxu0 0.0
  %2499 = vmatpush1.msra.mxu0 0.0
  %2500 = vmatprep.subr.mxu0 0.0
  %2501 = vmatpush1.msra.mxu0 0.0
  %2502 = vmatprep.subr.mxu0 0.0
  %2503 = vmatpush1.msra.mxu0 0.0
  %2504 = vmatprep.subr.mxu0 0.0
  %2505 = vmatpush1.msra.mxu0 0.0
  %2506 = vmatprep.subr.mxu0 0.0
  %2507 = vmatpush1.msra.mxu0 0.0
  %2508 = vmatprep.subr.mxu0 0.0
  %2509 = vmatpush1.msra.mxu0 0.0
  %2510 = vmatprep.subr.mxu0 0.0
  %2511 = vmatpush1.msra.mxu0 0.0
  %2512 = vmatprep.subr.mxu0 0.0
  %2513 = vmatpush1.msra.mxu0 0.0
  %2514 = vmatprep.subr.mxu0 0.0
  %2515 = vmatpush1.msra.mxu0 0.0
  %2516 = vmatprep.subr.mxu0 0.0
  %2517 = vmatpush1.msra.mxu0 0.0
  %2518 = vmatprep.subr.mxu0 0.0
  %2519 = vmatpush1.msra.mxu0 0.0
  %2520 = vmatprep.subr.mxu0 0.0
  %2521 = vmatpush1.msra.mxu0 0.0
  %2522 = vmatprep.subr.mxu0 0.0
  %2523 = vmatpush1.msra.mxu0 0.0
  %2524 = vmatprep.subr.mxu0 0.0
  %2525 = vmatpush1.msra.mxu0 0.0
  %2526 = vmatprep.subr.mxu0 0.0
  %2527 = vmatpush1.msra.mxu0 0.0
  %2528 = vmatprep.subr.mxu0 %v2257
  %2529 = vmatpush1.msra.mxu0 %v2258
  %2530 = vmatprep.subr.mxu0 0.0
  %2531 = vmatpush2.msra.mxu0 0.0
  %2532 = vmatprep.subr.mxu0 0.0
  %2533 = vmatpush2.msra.mxu0 0.0
  %2534 = vmatprep.subr.mxu0 0.0
  %2535 = vmatpush2.msra.mxu0 0.0
  %2536 = vmatprep.subr.mxu0 0.0
  %2537 = vmatpush2.msra.mxu0 0.0
  %2538 = vmatprep.subr.mxu0 0.0
  %2539 = vmatpush2.msra.mxu0 0.0
  %2540 = vmatprep.subr.mxu0 0.0
  %2541 = vmatpush2.msra.mxu0 0.0
  %2542 = vmatprep.subr.mxu0 0.0
  %2543 = vmatpush2.msra.mxu0 0.0
  %2544 = vmatprep.subr.mxu0 0.0
  %2545 = vmatpush2.msra.mxu0 0.0
  %2546 = vmatprep.subr.mxu0 0.0
  %2547 = vmatpush2.msra.mxu0 0.0
  %2548 = vmatprep.subr.mxu0 0.0
  %2549 = vmatpush2.msra.mxu0 0.0
  %2550 = vmatprep.subr.mxu0 0.0
  %2551 = vmatpush2.msra.mxu0 0.0
  %2552 = vmatprep.subr.mxu0 0.0
  %2553 = vmatpush2.msra.mxu0 0.0
  %2554 = vmatprep.subr.mxu0 0.0
  %2555 = vmatpush2.msra.mxu0 0.0
  %2556 = vmatprep.subr.mxu0 0.0
  %2557 = vmatpush2.msra.mxu0 0.0
  %2558 = vmatprep.subr.mxu0 0.0
  %2559 = vmatpush2.msra.mxu0 0.0
  %2560 = vmatprep.subr.mxu0 0.0
  %2561 = vmatpush2.msra.mxu0 0.0
  %2562 = vmatprep.mubr.f32.mxu0 0.0
  %2563 = vmatmul.mubr.f32.gmra.mxu0 %v2496
  %v2564 = vpop.f32.mrf.mxu0
  %v2565 = vadd.f32 %v2350, %v2564
  %v2566 = vpop.f32.mrf.mxu0
  %v2567 = vadd.f32 %v2352, %v2566
  %2568 = vdwg.mxu0
  %2569 = vmatprep.subr.mxu0 0.0
  %2570 = vmatpush1.msra.mxu0 0.0
  %2571 = vmatprep.subr.mxu0 0.0
  %2572 = vmatpush1.msra.mxu0 0.0
  %2573 = vmatprep.subr.mxu0 0.0
  %2574 = vmatpush1.msra.mxu0 0.0
  %2575 = vmatprep.subr.mxu0 0.0
  %2576 = vmatpush1.msra.mxu0 0.0
  %2577 = vmatprep.subr.mxu0 0.0
  %2578 = vmatpush1.msra.mxu0 0.0
  %2579 = vmatprep.subr.mxu0 0.0
  %2580 = vmatpush1.msra.mxu0 0.0
  %2581 = vmatprep.subr.mxu0 0.0
  %2582 = vmatpush1.msra.mxu0 0.0
  %2583 = vmatprep.subr.mxu0 0.0
  %2584 = vmatpush1.msra.mxu0 0.0
  %2585 = vmatprep.subr.mxu0 0.0
  %2586 = vmatpush1.msra.mxu0 0.0
  %2587 = vmatprep.subr.mxu0 0.0
  %2588 = vmatpush1.msra.mxu0 0.0
  %2589 = vmatprep.subr.mxu0 0.0
  %2590 = vmatpush1.msra.mxu0 0.0
  %2591 = vmatprep.subr.mxu0 0.0
  %2592 = vmatpush1.msra.mxu0 0.0
  %2593 = vmatprep.subr.mxu0 0.0
  %2594 = vmatpush1.msra.mxu0 0.0
  %2595 = vmatprep.subr.mxu0 0.0
  %2596 = vmatpush1.msra.mxu0 0.0
  %2597 = vmatprep.subr.mxu0 0.0
  %2598 = vmatpush1.msra.mxu0 0.0
  %2599 = vmatprep.subr.mxu0 %v2255
  %2600 = vmatpush1.msra.mxu0 %v2256
  %2601 = vmatprep.subr.mxu0 0.0
  %2602 = vmatpush2.msra.mxu0 0.0
  %2603 = vmatprep.subr.mxu0 0.0
  %2604 = vmatpush2.msra.mxu0 0.0
  %2605 = vmatprep.subr.mxu0 0.0
  %2606 = vmatpush2.msra.mxu0 0.0
  %2607 = vmatprep.subr.mxu0 0.0
  %2608 = vmatpush2.msra.mxu0 0.0
  %2609 = vmatprep.subr.mxu0 0.0
  %2610 = vmatpush2.msra.mxu0 0.0
  %2611 = vmatprep.subr.mxu0 0.0
  %2612 = vmatpush2.msra.mxu0 0.0
  %2613 = vmatprep.subr.mxu0 0.0
  %2614 = vmatpush2.msra.mxu0 0.0
  %2615 = vmatprep.subr.mxu0 0.0
  %2616 = vmatpush2.msra.mxu0 0.0
  %2617 = vmatprep.subr.mxu0 0.0
  %2618 = vmatpush2.msra.mxu0 0.0
  %2619 = vmatprep.subr.mxu0 0.0
  %2620 = vmatpush2.msra.mxu0 0.0
  %2621 = vmatprep.subr.mxu0 0.0
  %2622 = vmatpush2.msra.mxu0 0.0
  %2623 = vmatprep.subr.mxu0 0.0
  %2624 = vmatpush2.msra.mxu0 0.0
  %2625 = vmatprep.subr.mxu0 0.0
  %2626 = vmatpush2.msra.mxu0 0.0
  %2627 = vmatprep.subr.mxu0 0.0
  %2628 = vmatpush2.msra.mxu0 0.0
  %2629 = vmatprep.subr.mxu0 0.0
  %2630 = vmatpush2.msra.mxu0 0.0
  %2631 = vmatprep.subr.mxu0 0.0
  %2632 = vmatpush2.msra.mxu0 0.0
  %2633 = vmatprep.mubr.f32.mxu0 0.0
  %2634 = vmatmul.mubr.f32.gmra.mxu0 %v2496
  %v2635 = vpop.f32.mrf.mxu0
  %v2636 = vadd.f32 %v2421, %v2635
  %v2637 = vpop.f32.mrf.mxu0
  %v2638 = vadd.f32 %v2423, %v2637
  %2639 = vdwg.mxu0
  %2640 = vmatprep.subr.mxu0 0.0
  %2641 = vmatpush1.msra.mxu0 0.0
  %2642 = vmatprep.subr.mxu0 0.0
  %2643 = vmatpush1.msra.mxu0 0.0
  %2644 = vmatprep.subr.mxu0 0.0
  %2645 = vmatpush1.msra.mxu0 0.0
  %2646 = vmatprep.subr.mxu0 0.0
  %2647 = vmatpush1.msra.mxu0 0.0
  %2648 = vmatprep.subr.mxu0 0.0
  %2649 = vmatpush1.msra.mxu0 0.0
  %2650 = vmatprep.subr.mxu0 0.0
  %2651 = vmatpush1.msra.mxu0 0.0
  %2652 = vmatprep.subr.mxu0 0.0
  %2653 = vmatpush1.msra.mxu0 0.0
  %2654 = vmatprep.subr.mxu0 0.0
  %2655 = vmatpush1.msra.mxu0 0.0
  %2656 = vmatprep.subr.mxu0 0.0
  %2657 = vmatpush1.msra.mxu0 0.0
  %2658 = vmatprep.subr.mxu0 0.0
  %2659 = vmatpush1.msra.mxu0 0.0
  %2660 = vmatprep.subr.mxu0 0.0
  %2661 = vmatpush1.msra.mxu0 0.0
  %2662 = vmatprep.subr.mxu0 0.0
  %2663 = vmatpush1.msra.mxu0 0.0
  %2664 = vmatprep.subr.mxu0 0.0
  %2665 = vmatpush1.msra.mxu0 0.0
  %2666 = vmatprep.subr.mxu0 0.0
  %2667 = vmatpush1.msra.mxu0 0.0
  %2668 = vmatprep.subr.mxu0 0.0
  %2669 = vmatpush1.msra.mxu0 0.0
  %2670 = vmatprep.subr.mxu0 %v2253
  %2671 = vmatpush1.msra.mxu0 %v2254
  %2672 = vmatprep.subr.mxu0 0.0
  %2673 = vmatpush2.msra.mxu0 0.0
  %2674 = vmatprep.subr.mxu0 0.0
  %2675 = vmatpush2.msra.mxu0 0.0
  %2676 = vmatprep.subr.mxu0 0.0
  %2677 = vmatpush2.msra.mxu0 0.0
  %2678 = vmatprep.subr.mxu0 0.0
  %2679 = vmatpush2.msra.mxu0 0.0
  %2680 = vmatprep.subr.mxu0 0.0
  %2681 = vmatpush2.msra.mxu0 0.0
  %2682 = vmatprep.subr.mxu0 0.0
  %2683 = vmatpush2.msra.mxu0 0.0
  %2684 = vmatprep.subr.mxu0 0.0
  %2685 = vmatpush2.msra.mxu0 0.0
  %2686 = vmatprep.subr.mxu0 0.0
  %2687 = vmatpush2.msra.mxu0 0.0
  %2688 = vmatprep.subr.mxu0 0.0
  %2689 = vmatpush2.msra.mxu0 0.0
  %2690 = vmatprep.subr.mxu0 0.0
  %2691 = vmatpush2.msra.mxu0 0.0
  %2692 = vmatprep.subr.mxu0 0.0
  %2693 = vmatpush2.msra.mxu0 0.0
  %2694 = vmatprep.subr.mxu0 0.0
  %2695 = vmatpush2.msra.mxu0 0.0
  %2696 = vmatprep.subr.mxu0 0.0
  %2697 = vmatpush2.msra.mxu0 0.0
  %2698 = vmatprep.subr.mxu0 0.0
  %2699 = vmatpush2.msra.mxu0 0.0
  %2700 = vmatprep.subr.mxu0 0.0
  %2701 = vmatpush2.msra.mxu0 0.0
  %2702 = vmatprep.subr.mxu0 0.0
  %2703 = vmatpush2.msra.mxu0 0.0
  %2704 = vmatprep.mubr.f32.mxu0 0.0
  %2705 = vmatmul.mubr.f32.gmra.mxu0 %v2496
  %v2706 = vpop.f32.mrf.mxu0
  %v2707 = vadd.f32 %v2492, %v2706
  %v2708 = vpop.f32.mrf.mxu0
  %v2709 = vadd.f32 %v2494, %v2708
  %2710 = vdwg.mxu0
  %2711 = vrot.lane.b32.xlu0 %v2235, 17
  %v2712 = vpop.permute.xlu0 %2711
  %2713 = vrot.lane.b32.xlu0 %v2236, 17
  %v2714 = vpop.permute.xlu0 %2713
  %2715 = vrot.lane.b32.xlu0 %v2237, 17
  %v2716 = vpop.permute.xlu0 %2715
  %2717 = vrot.lane.b32.xlu0 %v2238, 17
  %v2718 = vpop.permute.xlu0 %2717
  %2719 = vrot.lane.b32.xlu0 %v2239, 17
  %v2720 = vpop.permute.xlu0 %2719
  %2721 = vrot.lane.b32.xlu0 %v2240, 17
  %v2722 = vpop.permute.xlu0 %2721
  %v2723 = vsel %vm554, %v2720, %v2722
  %v2724 = vsel %vm554, %v2718, %v2720
  %v2725 = vsel %vm554, %v2716, %v2718
  %v2726 = vsel %vm554, %v2714, %v2716
  %v2727 = vsel %vm554, %v2712, %v2714
  %v2728 = vsel %vm554, %v2722, %v2712
  %2729 = vrot.lane.b32.xlu0 %v2259, 112
  %v2730 = vpop.permute.xlu0 %2729
  %v2731 = vsel %vm111, %v2730, 0
  %2733 = vmatprep.subr.mxu0 0.0
  %2734 = vmatpush1.msra.mxu0 0.0
  %2735 = vmatprep.subr.mxu0 0.0
  %2736 = vmatpush1.msra.mxu0 0.0
  %2737 = vmatprep.subr.mxu0 0.0
  %2738 = vmatpush1.msra.mxu0 0.0
  %2739 = vmatprep.subr.mxu0 0.0
  %2740 = vmatpush1.msra.mxu0 0.0
  %2741 = vmatprep.subr.mxu0 0.0
  %2742 = vmatpush1.msra.mxu0 0.0
  %2743 = vmatprep.subr.mxu0 0.0
  %2744 = vmatpush1.msra.mxu0 0.0
  %2745 = vmatprep.subr.mxu0 0.0
  %2746 = vmatpush1.msra.mxu0 0.0
  %2747 = vmatprep.subr.mxu0 0.0
  %2748 = vmatpush1.msra.mxu0 0.0
  %2749 = vmatprep.subr.mxu0 0.0
  %2750 = vmatpush1.msra.mxu0 0.0
  %2751 = vmatprep.subr.mxu0 0.0
  %2752 = vmatpush1.msra.mxu0 0.0
  %2753 = vmatprep.subr.mxu0 0.0
  %2754 = vmatpush1.msra.mxu0 0.0
  %2755 = vmatprep.subr.mxu0 0.0
  %2756 = vmatpush1.msra.mxu0 0.0
  %2757 = vmatprep.subr.mxu0 0.0
  %2758 = vmatpush1.msra.mxu0 0.0
  %2759 = vmatprep.subr.mxu0 0.0
  %2760 = vmatpush1.msra.mxu0 0.0
  %2761 = vmatprep.subr.mxu0 0.0
  %2762 = vmatpush1.msra.mxu0 0.0
  %2763 = vmatprep.subr.mxu0 %v2727
  %2764 = vmatpush1.msra.mxu0 %v2728
  %2765 = vmatprep.subr.mxu0 0.0
  %2766 = vmatpush2.msra.mxu0 0.0
  %2767 = vmatprep.subr.mxu0 0.0
  %2768 = vmatpush2.msra.mxu0 0.0
  %2769 = vmatprep.subr.mxu0 0.0
  %2770 = vmatpush2.msra.mxu0 0.0
  %2771 = vmatprep.subr.mxu0 0.0
  %2772 = vmatpush2.msra.mxu0 0.0
  %2773 = vmatprep.subr.mxu0 0.0
  %2774 = vmatpush2.msra.mxu0 0.0
  %2775 = vmatprep.subr.mxu0 0.0
  %2776 = vmatpush2.msra.mxu0 0.0
  %2777 = vmatprep.subr.mxu0 0.0
  %2778 = vmatpush2.msra.mxu0 0.0
  %2779 = vmatprep.subr.mxu0 0.0
  %2780 = vmatpush2.msra.mxu0 0.0
  %2781 = vmatprep.subr.mxu0 0.0
  %2782 = vmatpush2.msra.mxu0 0.0
  %2783 = vmatprep.subr.mxu0 0.0
  %2784 = vmatpush2.msra.mxu0 0.0
  %2785 = vmatprep.subr.mxu0 0.0
  %2786 = vmatpush2.msra.mxu0 0.0
  %2787 = vmatprep.subr.mxu0 0.0
  %2788 = vmatpush2.msra.mxu0 0.0
  %2789 = vmatprep.subr.mxu0 0.0
  %2790 = vmatpush2.msra.mxu0 0.0
  %2791 = vmatprep.subr.mxu0 0.0
  %2792 = vmatpush2.msra.mxu0 0.0
  %2793 = vmatprep.subr.mxu0 0.0
  %2794 = vmatpush2.msra.mxu0 0.0
  %2795 = vmatprep.subr.mxu0 0.0
  %2796 = vmatpush2.msra.mxu0 0.0
  %2797 = vmatprep.mubr.f32.mxu0 0.0
  %2798 = vmatmul.mubr.f32.gmra.mxu0 %v2731
  %v2799 = vpop.f32.mrf.mxu0
  %v2800 = vadd.f32 0.0, %v2799
  %v2801 = vpop.f32.mrf.mxu0
  %v2802 = vadd.f32 0.0, %v2801
  %2803 = vdwg.mxu0
  %2804 = vmatprep.subr.mxu0 0.0
  %2805 = vmatpush1.msra.mxu0 0.0
  %2806 = vmatprep.subr.mxu0 0.0
  %2807 = vmatpush1.msra.mxu0 0.0
  %2808 = vmatprep.subr.mxu0 0.0
  %2809 = vmatpush1.msra.mxu0 0.0
  %2810 = vmatprep.subr.mxu0 0.0
  %2811 = vmatpush1.msra.mxu0 0.0
  %2812 = vmatprep.subr.mxu0 0.0
  %2813 = vmatpush1.msra.mxu0 0.0
  %2814 = vmatprep.subr.mxu0 0.0
  %2815 = vmatpush1.msra.mxu0 0.0
  %2816 = vmatprep.subr.mxu0 0.0
  %2817 = vmatpush1.msra.mxu0 0.0
  %2818 = vmatprep.subr.mxu0 0.0
  %2819 = vmatpush1.msra.mxu0 0.0
  %2820 = vmatprep.subr.mxu0 0.0
  %2821 = vmatpush1.msra.mxu0 0.0
  %2822 = vmatprep.subr.mxu0 0.0
  %2823 = vmatpush1.msra.mxu0 0.0
  %2824 = vmatprep.subr.mxu0 0.0
  %2825 = vmatpush1.msra.mxu0 0.0
  %2826 = vmatprep.subr.mxu0 0.0
  %2827 = vmatpush1.msra.mxu0 0.0
  %2828 = vmatprep.subr.mxu0 0.0
  %2829 = vmatpush1.msra.mxu0 0.0
  %2830 = vmatprep.subr.mxu0 0.0
  %2831 = vmatpush1.msra.mxu0 0.0
  %2832 = vmatprep.subr.mxu0 0.0
  %2833 = vmatpush1.msra.mxu0 0.0
  %2834 = vmatprep.subr.mxu0 %v2725
  %2835 = vmatpush1.msra.mxu0 %v2726
  %2836 = vmatprep.subr.mxu0 0.0
  %2837 = vmatpush2.msra.mxu0 0.0
  %2838 = vmatprep.subr.mxu0 0.0
  %2839 = vmatpush2.msra.mxu0 0.0
  %2840 = vmatprep.subr.mxu0 0.0
  %2841 = vmatpush2.msra.mxu0 0.0
  %2842 = vmatprep.subr.mxu0 0.0
  %2843 = vmatpush2.msra.mxu0 0.0
  %2844 = vmatprep.subr.mxu0 0.0
  %2845 = vmatpush2.msra.mxu0 0.0
  %2846 = vmatprep.subr.mxu0 0.0
  %2847 = vmatpush2.msra.mxu0 0.0
  %2848 = vmatprep.subr.mxu0 0.0
  %2849 = vmatpush2.msra.mxu0 0.0
  %2850 = vmatprep.subr.mxu0 0.0
  %2851 = vmatpush2.msra.mxu0 0.0
  %2852 = vmatprep.subr.mxu0 0.0
  %2853 = vmatpush2.msra.mxu0 0.0
  %2854 = vmatprep.subr.mxu0 0.0
  %2855 = vmatpush2.msra.mxu0 0.0
  %2856 = vmatprep.subr.mxu0 0.0
  %2857 = vmatpush2.msra.mxu0 0.0
  %2858 = vmatprep.subr.mxu0 0.0
  %2859 = vmatpush2.msra.mxu0 0.0
  %2860 = vmatprep.subr.mxu0 0.0
  %2861 = vmatpush2.msra.mxu0 0.0
  %2862 = vmatprep.subr.mxu0 0.0
  %2863 = vmatpush2.msra.mxu0 0.0
  %2864 = vmatprep.subr.mxu0 0.0
  %2865 = vmatpush2.msra.mxu0 0.0
  %2866 = vmatprep.subr.mxu0 0.0
  %2867 = vmatpush2.msra.mxu0 0.0
  %2868 = vmatprep.mubr.f32.mxu0 0.0
  %2869 = vmatmul.mubr.f32.gmra.mxu0 %v2731
  %v2870 = vpop.f32.mrf.mxu0
  %v2871 = vadd.f32 0.0, %v2870
  %v2872 = vpop.f32.mrf.mxu0
  %v2873 = vadd.f32 0.0, %v2872
  %2874 = vdwg.mxu0
  %2875 = vmatprep.subr.mxu0 0.0
  %2876 = vmatpush1.msra.mxu0 0.0
  %2877 = vmatprep.subr.mxu0 0.0
  %2878 = vmatpush1.msra.mxu0 0.0
  %2879 = vmatprep.subr.mxu0 0.0
  %2880 = vmatpush1.msra.mxu0 0.0
  %2881 = vmatprep.subr.mxu0 0.0
  %2882 = vmatpush1.msra.mxu0 0.0
  %2883 = vmatprep.subr.mxu0 0.0
  %2884 = vmatpush1.msra.mxu0 0.0
  %2885 = vmatprep.subr.mxu0 0.0
  %2886 = vmatpush1.msra.mxu0 0.0
  %2887 = vmatprep.subr.mxu0 0.0
  %2888 = vmatpush1.msra.mxu0 0.0
  %2889 = vmatprep.subr.mxu0 0.0
  %2890 = vmatpush1.msra.mxu0 0.0
  %2891 = vmatprep.subr.mxu0 0.0
  %2892 = vmatpush1.msra.mxu0 0.0
  %2893 = vmatprep.subr.mxu0 0.0
  %2894 = vmatpush1.msra.mxu0 0.0
  %2895 = vmatprep.subr.mxu0 0.0
  %2896 = vmatpush1.msra.mxu0 0.0
  %2897 = vmatprep.subr.mxu0 0.0
  %2898 = vmatpush1.msra.mxu0 0.0
  %2899 = vmatprep.subr.mxu0 0.0
  %2900 = vmatpush1.msra.mxu0 0.0
  %2901 = vmatprep.subr.mxu0 0.0
  %2902 = vmatpush1.msra.mxu0 0.0
  %2903 = vmatprep.subr.mxu0 0.0
  %2904 = vmatpush1.msra.mxu0 0.0
  %2905 = vmatprep.subr.mxu0 %v2723
  %2906 = vmatpush1.msra.mxu0 %v2724
  %2907 = vmatprep.subr.mxu0 0.0
  %2908 = vmatpush2.msra.mxu0 0.0
  %2909 = vmatprep.subr.mxu0 0.0
  %2910 = vmatpush2.msra.mxu0 0.0
  %2911 = vmatprep.subr.mxu0 0.0
  %2912 = vmatpush2.msra.mxu0 0.0
  %2913 = vmatprep.subr.mxu0 0.0
  %2914 = vmatpush2.msra.mxu0 0.0
  %2915 = vmatprep.subr.mxu0 0.0
  %2916 = vmatpush2.msra.mxu0 0.0
  %2917 = vmatprep.subr.mxu0 0.0
  %2918 = vmatpush2.msra.mxu0 0.0
  %2919 = vmatprep.subr.mxu0 0.0
  %2920 = vmatpush2.msra.mxu0 0.0
  %2921 = vmatprep.subr.mxu0 0.0
  %2922 = vmatpush2.msra.mxu0 0.0
  %2923 = vmatprep.subr.mxu0 0.0
  %2924 = vmatpush2.msra.mxu0 0.0
  %2925 = vmatprep.subr.mxu0 0.0
  %2926 = vmatpush2.msra.mxu0 0.0
  %2927 = vmatprep.subr.mxu0 0.0
  %2928 = vmatpush2.msra.mxu0 0.0
  %2929 = vmatprep.subr.mxu0 0.0
  %2930 = vmatpush2.msra.mxu0 0.0
  %2931 = vmatprep.subr.mxu0 0.0
  %2932 = vmatpush2.msra.mxu0 0.0
  %2933 = vmatprep.subr.mxu0 0.0
  %2934 = vmatpush2.msra.mxu0 0.0
  %2935 = vmatprep.subr.mxu0 0.0
  %2936 = vmatpush2.msra.mxu0 0.0
  %2937 = vmatprep.subr.mxu0 0.0
  %2938 = vmatpush2.msra.mxu0 0.0
  %2939 = vmatprep.mubr.f32.mxu0 0.0
  %2940 = vmatmul.mubr.f32.gmra.mxu0 %v2731
  %v2941 = vpop.f32.mrf.mxu0
  %v2942 = vadd.f32 0.0, %v2941
  %v2943 = vpop.f32.mrf.mxu0
  %v2944 = vadd.f32 0.0, %v2943
  %2945 = vdwg.mxu0
  %v2946 = vadd.f32 %v2565, %v2800
  %v2947 = vadd.f32 %v2567, %v2802
  %v2948 = vadd.f32 %v2636, %v2871
  %v2949 = vadd.f32 %v2638, %v2873
  %v2950 = vadd.f32 %v2707, %v2942
  %v2951 = vadd.f32 %v2709, %v2944
  %2952 = vrot.lane.b32.xlu0 %v2235, 1
  %v2953 = vpop.permute.xlu0 %2952
  %2954 = vrot.lane.b32.xlu0 %v2236, 1
  %v2955 = vpop.permute.xlu0 %2954
  %2956 = vrot.lane.b32.xlu0 %v2237, 1
  %v2957 = vpop.permute.xlu0 %2956
  %2958 = vrot.lane.b32.xlu0 %v2238, 1
  %v2959 = vpop.permute.xlu0 %2958
  %2960 = vrot.lane.b32.xlu0 %v2239, 1
  %v2961 = vpop.permute.xlu0 %2960
  %2962 = vrot.lane.b32.xlu0 %v2240, 1
  %v2963 = vpop.permute.xlu0 %2962
  %v2964 = vsel %vm796, %v2961, %v2963
  %v2965 = vsel %vm796, %v2959, %v2961
  %v2966 = vsel %vm796, %v2957, %v2959
  %v2967 = vsel %vm796, %v2955, %v2957
  %v2968 = vsel %vm796, %v2953, %v2955
  %v2969 = vsel %vm796, %v2963, %v2953
  %2970 = vrot.lane.b32.xlu0 %v2259, 104
  %v2971 = vpop.permute.xlu0 %2970
  %v2972 = vsel %vm111, %v2971, 0
  %2974 = vmatprep.subr.mxu0 0.0
  %2975 = vmatpush1.msra.mxu0 0.0
  %2976 = vmatprep.subr.mxu0 0.0
  %2977 = vmatpush1.msra.mxu0 0.0
  %2978 = vmatprep.subr.mxu0 0.0
  %2979 = vmatpush1.msra.mxu0 0.0
  %2980 = vmatprep.subr.mxu0 0.0
  %2981 = vmatpush1.msra.mxu0 0.0
  %2982 = vmatprep.subr.mxu0 0.0
  %2983 = vmatpush1.msra.mxu0 0.0
  %2984 = vmatprep.subr.mxu0 0.0
  %2985 = vmatpush1.msra.mxu0 0.0
  %2986 = vmatprep.subr.mxu0 0.0
  %2987 = vmatpush1.msra.mxu0 0.0
  %2988 = vmatprep.subr.mxu0 0.0
  %2989 = vmatpush1.msra.mxu0 0.0
  %2990 = vmatprep.subr.mxu0 0.0
  %2991 = vmatpush1.msra.mxu0 0.0
  %2992 = vmatprep.subr.mxu0 0.0
  %2993 = vmatpush1.msra.mxu0 0.0
  %2994 = vmatprep.subr.mxu0 0.0
  %2995 = vmatpush1.msra.mxu0 0.0
  %2996 = vmatprep.subr.mxu0 0.0
  %2997 = vmatpush1.msra.mxu0 0.0
  %2998 = vmatprep.subr.mxu0 0.0
  %2999 = vmatpush1.msra.mxu0 0.0
  %3000 = vmatprep.subr.mxu0 0.0
  %3001 = vmatpush1.msra.mxu0 0.0
  %3002 = vmatprep.subr.mxu0 0.0
  %3003 = vmatpush1.msra.mxu0 0.0
  %3004 = vmatprep.subr.mxu0 %v2968
  %3005 = vmatpush1.msra.mxu0 %v2969
  %3006 = vmatprep.subr.mxu0 0.0
  %3007 = vmatpush2.msra.mxu0 0.0
  %3008 = vmatprep.subr.mxu0 0.0
  %3009 = vmatpush2.msra.mxu0 0.0
  %3010 = vmatprep.subr.mxu0 0.0
  %3011 = vmatpush2.msra.mxu0 0.0
  %3012 = vmatprep.subr.mxu0 0.0
  %3013 = vmatpush2.msra.mxu0 0.0
  %3014 = vmatprep.subr.mxu0 0.0
  %3015 = vmatpush2.msra.mxu0 0.0
  %3016 = vmatprep.subr.mxu0 0.0
  %3017 = vmatpush2.msra.mxu0 0.0
  %3018 = vmatprep.subr.mxu0 0.0
  %3019 = vmatpush2.msra.mxu0 0.0
  %3020 = vmatprep.subr.mxu0 0.0
  %3021 = vmatpush2.msra.mxu0 0.0
  %3022 = vmatprep.subr.mxu0 0.0
  %3023 = vmatpush2.msra.mxu0 0.0
  %3024 = vmatprep.subr.mxu0 0.0
  %3025 = vmatpush2.msra.mxu0 0.0
  %3026 = vmatprep.subr.mxu0 0.0
  %3027 = vmatpush2.msra.mxu0 0.0
  %3028 = vmatprep.subr.mxu0 0.0
  %3029 = vmatpush2.msra.mxu0 0.0
  %3030 = vmatprep.subr.mxu0 0.0
  %3031 = vmatpush2.msra.mxu0 0.0
  %3032 = vmatprep.subr.mxu0 0.0
  %3033 = vmatpush2.msra.mxu0 0.0
  %3034 = vmatprep.subr.mxu0 0.0
  %3035 = vmatpush2.msra.mxu0 0.0
  %3036 = vmatprep.subr.mxu0 0.0
  %3037 = vmatpush2.msra.mxu0 0.0
  %3038 = vmatprep.mubr.f32.mxu0 0.0
  %3039 = vmatmul.mubr.f32.gmra.mxu0 %v2972
  %v3040 = vpop.f32.mrf.mxu0
  %v3041 = vadd.f32 0.0, %v3040
  %v3042 = vpop.f32.mrf.mxu0
  %v3043 = vadd.f32 0.0, %v3042
  %3044 = vdwg.mxu0
  %3045 = vmatprep.subr.mxu0 0.0
  %3046 = vmatpush1.msra.mxu0 0.0
  %3047 = vmatprep.subr.mxu0 0.0
  %3048 = vmatpush1.msra.mxu0 0.0
  %3049 = vmatprep.subr.mxu0 0.0
  %3050 = vmatpush1.msra.mxu0 0.0
  %3051 = vmatprep.subr.mxu0 0.0
  %3052 = vmatpush1.msra.mxu0 0.0
  %3053 = vmatprep.subr.mxu0 0.0
  %3054 = vmatpush1.msra.mxu0 0.0
  %3055 = vmatprep.subr.mxu0 0.0
  %3056 = vmatpush1.msra.mxu0 0.0
  %3057 = vmatprep.subr.mxu0 0.0
  %3058 = vmatpush1.msra.mxu0 0.0
  %3059 = vmatprep.subr.mxu0 0.0
  %3060 = vmatpush1.msra.mxu0 0.0
  %3061 = vmatprep.subr.mxu0 0.0
  %3062 = vmatpush1.msra.mxu0 0.0
  %3063 = vmatprep.subr.mxu0 0.0
  %3064 = vmatpush1.msra.mxu0 0.0
  %3065 = vmatprep.subr.mxu0 0.0
  %3066 = vmatpush1.msra.mxu0 0.0
  %3067 = vmatprep.subr.mxu0 0.0
  %3068 = vmatpush1.msra.mxu0 0.0
  %3069 = vmatprep.subr.mxu0 0.0
  %3070 = vmatpush1.msra.mxu0 0.0
  %3071 = vmatprep.subr.mxu0 0.0
  %3072 = vmatpush1.msra.mxu0 0.0
  %3073 = vmatprep.subr.mxu0 0.0
  %3074 = vmatpush1.msra.mxu0 0.0
  %3075 = vmatprep.subr.mxu0 %v2966
  %3076 = vmatpush1.msra.mxu0 %v2967
  %3077 = vmatprep.subr.mxu0 0.0
  %3078 = vmatpush2.msra.mxu0 0.0
  %3079 = vmatprep.subr.mxu0 0.0
  %3080 = vmatpush2.msra.mxu0 0.0
  %3081 = vmatprep.subr.mxu0 0.0
  %3082 = vmatpush2.msra.mxu0 0.0
  %3083 = vmatprep.subr.mxu0 0.0
  %3084 = vmatpush2.msra.mxu0 0.0
  %3085 = vmatprep.subr.mxu0 0.0
  %3086 = vmatpush2.msra.mxu0 0.0
  %3087 = vmatprep.subr.mxu0 0.0
  %3088 = vmatpush2.msra.mxu0 0.0
  %3089 = vmatprep.subr.mxu0 0.0
  %3090 = vmatpush2.msra.mxu0 0.0
  %3091 = vmatprep.subr.mxu0 0.0
  %3092 = vmatpush2.msra.mxu0 0.0
  %3093 = vmatprep.subr.mxu0 0.0
  %3094 = vmatpush2.msra.mxu0 0.0
  %3095 = vmatprep.subr.mxu0 0.0
  %3096 = vmatpush2.msra.mxu0 0.0
  %3097 = vmatprep.subr.mxu0 0.0
  %3098 = vmatpush2.msra.mxu0 0.0
  %3099 = vmatprep.subr.mxu0 0.0
  %3100 = vmatpush2.msra.mxu0 0.0
  %3101 = vmatprep.subr.mxu0 0.0
  %3102 = vmatpush2.msra.mxu0 0.0
  %3103 = vmatprep.subr.mxu0 0.0
  %3104 = vmatpush2.msra.mxu0 0.0
  %3105 = vmatprep.subr.mxu0 0.0
  %3106 = vmatpush2.msra.mxu0 0.0
  %3107 = vmatprep.subr.mxu0 0.0
  %3108 = vmatpush2.msra.mxu0 0.0
  %3109 = vmatprep.mubr.f32.mxu0 0.0
  %3110 = vmatmul.mubr.f32.gmra.mxu0 %v2972
  %v3111 = vpop.f32.mrf.mxu0
  %v3112 = vadd.f32 0.0, %v3111
  %v3113 = vpop.f32.mrf.mxu0
  %v3114 = vadd.f32 0.0, %v3113
  %3115 = vdwg.mxu0
  %3116 = vmatprep.subr.mxu0 0.0
  %3117 = vmatpush1.msra.mxu0 0.0
  %3118 = vmatprep.subr.mxu0 0.0
  %3119 = vmatpush1.msra.mxu0 0.0
  %3120 = vmatprep.subr.mxu0 0.0
  %3121 = vmatpush1.msra.mxu0 0.0
  %3122 = vmatprep.subr.mxu0 0.0
  %3123 = vmatpush1.msra.mxu0 0.0
  %3124 = vmatprep.subr.mxu0 0.0
  %3125 = vmatpush1.msra.mxu0 0.0
  %3126 = vmatprep.subr.mxu0 0.0
  %3127 = vmatpush1.msra.mxu0 0.0
  %3128 = vmatprep.subr.mxu0 0.0
  %3129 = vmatpush1.msra.mxu0 0.0
  %3130 = vmatprep.subr.mxu0 0.0
  %3131 = vmatpush1.msra.mxu0 0.0
  %3132 = vmatprep.subr.mxu0 0.0
  %3133 = vmatpush1.msra.mxu0 0.0
  %3134 = vmatprep.subr.mxu0 0.0
  %3135 = vmatpush1.msra.mxu0 0.0
  %3136 = vmatprep.subr.mxu0 0.0
  %3137 = vmatpush1.msra.mxu0 0.0
  %3138 = vmatprep.subr.mxu0 0.0
  %3139 = vmatpush1.msra.mxu0 0.0
  %3140 = vmatprep.subr.mxu0 0.0
  %3141 = vmatpush1.msra.mxu0 0.0
  %3142 = vmatprep.subr.mxu0 0.0
  %3143 = vmatpush1.msra.mxu0 0.0
  %3144 = vmatprep.subr.mxu0 0.0
  %3145 = vmatpush1.msra.mxu0 0.0
  %3146 = vmatprep.subr.mxu0 %v2964
  %3147 = vmatpush1.msra.mxu0 %v2965
  %3148 = vmatprep.subr.mxu0 0.0
  %3149 = vmatpush2.msra.mxu0 0.0
  %3150 = vmatprep.subr.mxu0 0.0
  %3151 = vmatpush2.msra.mxu0 0.0
  %3152 = vmatprep.subr.mxu0 0.0
  %3153 = vmatpush2.msra.mxu0 0.0
  %3154 = vmatprep.subr.mxu0 0.0
  %3155 = vmatpush2.msra.mxu0 0.0
  %3156 = vmatprep.subr.mxu0 0.0
  %3157 = vmatpush2.msra.mxu0 0.0
  %3158 = vmatprep.subr.mxu0 0.0
  %3159 = vmatpush2.msra.mxu0 0.0
  %3160 = vmatprep.subr.mxu0 0.0
  %3161 = vmatpush2.msra.mxu0 0.0
  %3162 = vmatprep.subr.mxu0 0.0
  %3163 = vmatpush2.msra.mxu0 0.0
  %3164 = vmatprep.subr.mxu0 0.0
  %3165 = vmatpush2.msra.mxu0 0.0
  %3166 = vmatprep.subr.mxu0 0.0
  %3167 = vmatpush2.msra.mxu0 0.0
  %3168 = vmatprep.subr.mxu0 0.0
  %3169 = vmatpush2.msra.mxu0 0.0
  %3170 = vmatprep.subr.mxu0 0.0
  %3171 = vmatpush2.msra.mxu0 0.0
  %3172 = vmatprep.subr.mxu0 0.0
  %3173 = vmatpush2.msra.mxu0 0.0
  %3174 = vmatprep.subr.mxu0 0.0
  %3175 = vmatpush2.msra.mxu0 0.0
  %3176 = vmatprep.subr.mxu0 0.0
  %3177 = vmatpush2.msra.mxu0 0.0
  %3178 = vmatprep.subr.mxu0 0.0
  %3179 = vmatpush2.msra.mxu0 0.0
  %3180 = vmatprep.mubr.f32.mxu0 0.0
  %3181 = vmatmul.mubr.f32.gmra.mxu0 %v2972
  %v3182 = vpop.f32.mrf.mxu0
  %v3183 = vadd.f32 0.0, %v3182
  %v3184 = vpop.f32.mrf.mxu0
  %v3185 = vadd.f32 0.0, %v3184
  %3186 = vdwg.mxu0
  %v3187 = vadd.f32 %v2946, %v3041
  %v3188 = vadd.f32 %v2947, %v3043
  %v3189 = vadd.f32 %v2948, %v3112
  %v3190 = vadd.f32 %v2949, %v3114
  %v3191 = vadd.f32 %v2950, %v3183
  %v3192 = vadd.f32 %v2951, %v3185
  %3193 = vrot.lane.b32.xlu0 %v2259, 96
  %v3194 = vpop.permute.xlu0 %3193
  %v3195 = vsel %vm111, %v3194, 0
  %3197 = vmatprep.subr.mxu0 0.0
  %3198 = vmatpush1.msra.mxu0 0.0
  %3199 = vmatprep.subr.mxu0 0.0
  %3200 = vmatpush1.msra.mxu0 0.0
  %3201 = vmatprep.subr.mxu0 0.0
  %3202 = vmatpush1.msra.mxu0 0.0
  %3203 = vmatprep.subr.mxu0 0.0
  %3204 = vmatpush1.msra.mxu0 0.0
  %3205 = vmatprep.subr.mxu0 0.0
  %3206 = vmatpush1.msra.mxu0 0.0
  %3207 = vmatprep.subr.mxu0 0.0
  %3208 = vmatpush1.msra.mxu0 0.0
  %3209 = vmatprep.subr.mxu0 0.0
  %3210 = vmatpush1.msra.mxu0 0.0
  %3211 = vmatprep.subr.mxu0 0.0
  %3212 = vmatpush1.msra.mxu0 0.0
  %3213 = vmatprep.subr.mxu0 0.0
  %3214 = vmatpush1.msra.mxu0 0.0
  %3215 = vmatprep.subr.mxu0 0.0
  %3216 = vmatpush1.msra.mxu0 0.0
  %3217 = vmatprep.subr.mxu0 0.0
  %3218 = vmatpush1.msra.mxu0 0.0
  %3219 = vmatprep.subr.mxu0 0.0
  %3220 = vmatpush1.msra.mxu0 0.0
  %3221 = vmatprep.subr.mxu0 0.0
  %3222 = vmatpush1.msra.mxu0 0.0
  %3223 = vmatprep.subr.mxu0 0.0
  %3224 = vmatpush1.msra.mxu0 0.0
  %3225 = vmatprep.subr.mxu0 0.0
  %3226 = vmatpush1.msra.mxu0 0.0
  %3227 = vmatprep.subr.mxu0 %v2236
  %3228 = vmatpush1.msra.mxu0 %v2235
  %3229 = vmatprep.subr.mxu0 0.0
  %3230 = vmatpush2.msra.mxu0 0.0
  %3231 = vmatprep.subr.mxu0 0.0
  %3232 = vmatpush2.msra.mxu0 0.0
  %3233 = vmatprep.subr.mxu0 0.0
  %3234 = vmatpush2.msra.mxu0 0.0
  %3235 = vmatprep.subr.mxu0 0.0
  %3236 = vmatpush2.msra.mxu0 0.0
  %3237 = vmatprep.subr.mxu0 0.0
  %3238 = vmatpush2.msra.mxu0 0.0
  %3239 = vmatprep.subr.mxu0 0.0
  %3240 = vmatpush2.msra.mxu0 0.0
  %3241 = vmatprep.subr.mxu0 0.0
  %3242 = vmatpush2.msra.mxu0 0.0
  %3243 = vmatprep.subr.mxu0 0.0
  %3244 = vmatpush2.msra.mxu0 0.0
  %3245 = vmatprep.subr.mxu0 0.0
  %3246 = vmatpush2.msra.mxu0 0.0
  %3247 = vmatprep.subr.mxu0 0.0
  %3248 = vmatpush2.msra.mxu0 0.0
  %3249 = vmatprep.subr.mxu0 0.0
  %3250 = vmatpush2.msra.mxu0 0.0
  %3251 = vmatprep.subr.mxu0 0.0
  %3252 = vmatpush2.msra.mxu0 0.0
  %3253 = vmatprep.subr.mxu0 0.0
  %3254 = vmatpush2.msra.mxu0 0.0
  %3255 = vmatprep.subr.mxu0 0.0
  %3256 = vmatpush2.msra.mxu0 0.0
  %3257 = vmatprep.subr.mxu0 0.0
  %3258 = vmatpush2.msra.mxu0 0.0
  %3259 = vmatprep.subr.mxu0 0.0
  %3260 = vmatpush2.msra.mxu0 0.0
  %3261 = vmatprep.mubr.f32.mxu0 0.0
  %3262 = vmatmul.mubr.f32.gmra.mxu0 %v3195
  %v3263 = vpop.f32.mrf.mxu0
  %v3264 = vadd.f32 0.0, %v3263
  %v3265 = vpop.f32.mrf.mxu0
  %v3266 = vadd.f32 0.0, %v3265
  %3267 = vdwg.mxu0
  %3268 = vmatprep.subr.mxu0 0.0
  %3269 = vmatpush1.msra.mxu0 0.0
  %3270 = vmatprep.subr.mxu0 0.0
  %3271 = vmatpush1.msra.mxu0 0.0
  %3272 = vmatprep.subr.mxu0 0.0
  %3273 = vmatpush1.msra.mxu0 0.0
  %3274 = vmatprep.subr.mxu0 0.0
  %3275 = vmatpush1.msra.mxu0 0.0
  %3276 = vmatprep.subr.mxu0 0.0
  %3277 = vmatpush1.msra.mxu0 0.0
  %3278 = vmatprep.subr.mxu0 0.0
  %3279 = vmatpush1.msra.mxu0 0.0
  %3280 = vmatprep.subr.mxu0 0.0
  %3281 = vmatpush1.msra.mxu0 0.0
  %3282 = vmatprep.subr.mxu0 0.0
  %3283 = vmatpush1.msra.mxu0 0.0
  %3284 = vmatprep.subr.mxu0 0.0
  %3285 = vmatpush1.msra.mxu0 0.0
  %3286 = vmatprep.subr.mxu0 0.0
  %3287 = vmatpush1.msra.mxu0 0.0
  %3288 = vmatprep.subr.mxu0 0.0
  %3289 = vmatpush1.msra.mxu0 0.0
  %3290 = vmatprep.subr.mxu0 0.0
  %3291 = vmatpush1.msra.mxu0 0.0
  %3292 = vmatprep.subr.mxu0 0.0
  %3293 = vmatpush1.msra.mxu0 0.0
  %3294 = vmatprep.subr.mxu0 0.0
  %3295 = vmatpush1.msra.mxu0 0.0
  %3296 = vmatprep.subr.mxu0 0.0
  %3297 = vmatpush1.msra.mxu0 0.0
  %3298 = vmatprep.subr.mxu0 %v2238
  %3299 = vmatpush1.msra.mxu0 %v2237
  %3300 = vmatprep.subr.mxu0 0.0
  %3301 = vmatpush2.msra.mxu0 0.0
  %3302 = vmatprep.subr.mxu0 0.0
  %3303 = vmatpush2.msra.mxu0 0.0
  %3304 = vmatprep.subr.mxu0 0.0
  %3305 = vmatpush2.msra.mxu0 0.0
  %3306 = vmatprep.subr.mxu0 0.0
  %3307 = vmatpush2.msra.mxu0 0.0
  %3308 = vmatprep.subr.mxu0 0.0
  %3309 = vmatpush2.msra.mxu0 0.0
  %3310 = vmatprep.subr.mxu0 0.0
  %3311 = vmatpush2.msra.mxu0 0.0
  %3312 = vmatprep.subr.mxu0 0.0
  %3313 = vmatpush2.msra.mxu0 0.0
  %3314 = vmatprep.subr.mxu0 0.0
  %3315 = vmatpush2.msra.mxu0 0.0
  %3316 = vmatprep.subr.mxu0 0.0
  %3317 = vmatpush2.msra.mxu0 0.0
  %3318 = vmatprep.subr.mxu0 0.0
  %3319 = vmatpush2.msra.mxu0 0.0
  %3320 = vmatprep.subr.mxu0 0.0
  %3321 = vmatpush2.msra.mxu0 0.0
  %3322 = vmatprep.subr.mxu0 0.0
  %3323 = vmatpush2.msra.mxu0 0.0
  %3324 = vmatprep.subr.mxu0 0.0
  %3325 = vmatpush2.msra.mxu0 0.0
  %3326 = vmatprep.subr.mxu0 0.0
  %3327 = vmatpush2.msra.mxu0 0.0
  %3328 = vmatprep.subr.mxu0 0.0
  %3329 = vmatpush2.msra.mxu0 0.0
  %3330 = vmatprep.subr.mxu0 0.0
  %3331 = vmatpush2.msra.mxu0 0.0
  %3332 = vmatprep.mubr.f32.mxu0 0.0
  %3333 = vmatmul.mubr.f32.gmra.mxu0 %v3195
  %v3334 = vpop.f32.mrf.mxu0
  %v3335 = vadd.f32 0.0, %v3334
  %v3336 = vpop.f32.mrf.mxu0
  %v3337 = vadd.f32 0.0, %v3336
  %3338 = vdwg.mxu0
  %3339 = vmatprep.subr.mxu0 0.0
  %3340 = vmatpush1.msra.mxu0 0.0
  %3341 = vmatprep.subr.mxu0 0.0
  %3342 = vmatpush1.msra.mxu0 0.0
  %3343 = vmatprep.subr.mxu0 0.0
  %3344 = vmatpush1.msra.mxu0 0.0
  %3345 = vmatprep.subr.mxu0 0.0
  %3346 = vmatpush1.msra.mxu0 0.0
  %3347 = vmatprep.subr.mxu0 0.0
  %3348 = vmatpush1.msra.mxu0 0.0
  %3349 = vmatprep.subr.mxu0 0.0
  %3350 = vmatpush1.msra.mxu0 0.0
  %3351 = vmatprep.subr.mxu0 0.0
  %3352 = vmatpush1.msra.mxu0 0.0
  %3353 = vmatprep.subr.mxu0 0.0
  %3354 = vmatpush1.msra.mxu0 0.0
  %3355 = vmatprep.subr.mxu0 0.0
  %3356 = vmatpush1.msra.mxu0 0.0
  %3357 = vmatprep.subr.mxu0 0.0
  %3358 = vmatpush1.msra.mxu0 0.0
  %3359 = vmatprep.subr.mxu0 0.0
  %3360 = vmatpush1.msra.mxu0 0.0
  %3361 = vmatprep.subr.mxu0 0.0
  %3362 = vmatpush1.msra.mxu0 0.0
  %3363 = vmatprep.subr.mxu0 0.0
  %3364 = vmatpush1.msra.mxu0 0.0
  %3365 = vmatprep.subr.mxu0 0.0
  %3366 = vmatpush1.msra.mxu0 0.0
  %3367 = vmatprep.subr.mxu0 0.0
  %3368 = vmatpush1.msra.mxu0 0.0
  %3369 = vmatprep.subr.mxu0 %v2240
  %3370 = vmatpush1.msra.mxu0 %v2239
  %3371 = vmatprep.subr.mxu0 0.0
  %3372 = vmatpush2.msra.mxu0 0.0
  %3373 = vmatprep.subr.mxu0 0.0
  %3374 = vmatpush2.msra.mxu0 0.0
  %3375 = vmatprep.subr.mxu0 0.0
  %3376 = vmatpush2.msra.mxu0 0.0
  %3377 = vmatprep.subr.mxu0 0.0
  %3378 = vmatpush2.msra.mxu0 0.0
  %3379 = vmatprep.subr.mxu0 0.0
  %3380 = vmatpush2.msra.mxu0 0.0
  %3381 = vmatprep.subr.mxu0 0.0
  %3382 = vmatpush2.msra.mxu0 0.0
  %3383 = vmatprep.subr.mxu0 0.0
  %3384 = vmatpush2.msra.mxu0 0.0
  %3385 = vmatprep.subr.mxu0 0.0
  %3386 = vmatpush2.msra.mxu0 0.0
  %3387 = vmatprep.subr.mxu0 0.0
  %3388 = vmatpush2.msra.mxu0 0.0
  %3389 = vmatprep.subr.mxu0 0.0
  %3390 = vmatpush2.msra.mxu0 0.0
  %3391 = vmatprep.subr.mxu0 0.0
  %3392 = vmatpush2.msra.mxu0 0.0
  %3393 = vmatprep.subr.mxu0 0.0
  %3394 = vmatpush2.msra.mxu0 0.0
  %3395 = vmatprep.subr.mxu0 0.0
  %3396 = vmatpush2.msra.mxu0 0.0
  %3397 = vmatprep.subr.mxu0 0.0
  %3398 = vmatpush2.msra.mxu0 0.0
  %3399 = vmatprep.subr.mxu0 0.0
  %3400 = vmatpush2.msra.mxu0 0.0
  %3401 = vmatprep.subr.mxu0 0.0
  %3402 = vmatpush2.msra.mxu0 0.0
  %3403 = vmatprep.mubr.f32.mxu0 0.0
  %3404 = vmatmul.mubr.f32.gmra.mxu0 %v3195
  %v3405 = vpop.f32.mrf.mxu0
  %v3406 = vadd.f32 0.0, %v3405
  %v3407 = vpop.f32.mrf.mxu0
  %v3408 = vadd.f32 0.0, %v3407
  %3409 = vdwg.mxu0
  %v3410 = vadd.f32 %v3187, %v3264
  %v3411 = vadd.f32 %v3188, %v3266
  %v3412 = vadd.f32 %v3189, %v3335
  %v3413 = vadd.f32 %v3190, %v3337
  %v3414 = vadd.f32 %v3191, %v3406
  %v3415 = vadd.f32 %v3192, %v3408
  %3416 = vrot.lane.b32.xlu0 %v2235, 127
  %v3417 = vpop.permute.xlu0 %3416
  %3418 = vrot.lane.b32.xlu0 %v2236, 127
  %v3419 = vpop.permute.xlu0 %3418
  %3420 = vrot.lane.b32.xlu0 %v2237, 127
  %v3421 = vpop.permute.xlu0 %3420
  %3422 = vrot.lane.b32.xlu0 %v2238, 127
  %v3423 = vpop.permute.xlu0 %3422
  %3424 = vrot.lane.b32.xlu0 %v2239, 127
  %v3425 = vpop.permute.xlu0 %3424
  %3426 = vrot.lane.b32.xlu0 %v2240, 127
  %v3427 = vpop.permute.xlu0 %3426
  %v3428 = vsel %vm1261, %v3425, %v3427
  %v3429 = vsel %vm1261, %v3423, %v3425
  %v3430 = vsel %vm1261, %v3421, %v3423
  %v3431 = vsel %vm1261, %v3419, %v3421
  %v3432 = vsel %vm1261, %v3417, %v3419
  %v3433 = vsel %vm1261, %v3427, %v3417
  %3434 = vrot.lane.b32.xlu0 %v2259, 88
  %v3435 = vpop.permute.xlu0 %3434
  %v3436 = vsel %vm111, %v3435, 0
  %3438 = vmatprep.subr.mxu0 0.0
  %3439 = vmatpush1.msra.mxu0 0.0
  %3440 = vmatprep.subr.mxu0 0.0
  %3441 = vmatpush1.msra.mxu0 0.0
  %3442 = vmatprep.subr.mxu0 0.0
  %3443 = vmatpush1.msra.mxu0 0.0
  %3444 = vmatprep.subr.mxu0 0.0
  %3445 = vmatpush1.msra.mxu0 0.0
  %3446 = vmatprep.subr.mxu0 0.0
  %3447 = vmatpush1.msra.mxu0 0.0
  %3448 = vmatprep.subr.mxu0 0.0
  %3449 = vmatpush1.msra.mxu0 0.0
  %3450 = vmatprep.subr.mxu0 0.0
  %3451 = vmatpush1.msra.mxu0 0.0
  %3452 = vmatprep.subr.mxu0 0.0
  %3453 = vmatpush1.msra.mxu0 0.0
  %3454 = vmatprep.subr.mxu0 0.0
  %3455 = vmatpush1.msra.mxu0 0.0
  %3456 = vmatprep.subr.mxu0 0.0
  %3457 = vmatpush1.msra.mxu0 0.0
  %3458 = vmatprep.subr.mxu0 0.0
  %3459 = vmatpush1.msra.mxu0 0.0
  %3460 = vmatprep.subr.mxu0 0.0
  %3461 = vmatpush1.msra.mxu0 0.0
  %3462 = vmatprep.subr.mxu0 0.0
  %3463 = vmatpush1.msra.mxu0 0.0
  %3464 = vmatprep.subr.mxu0 0.0
  %3465 = vmatpush1.msra.mxu0 0.0
  %3466 = vmatprep.subr.mxu0 0.0
  %3467 = vmatpush1.msra.mxu0 0.0
  %3468 = vmatprep.subr.mxu0 %v3431
  %3469 = vmatpush1.msra.mxu0 %v3432
  %3470 = vmatprep.subr.mxu0 0.0
  %3471 = vmatpush2.msra.mxu0 0.0
  %3472 = vmatprep.subr.mxu0 0.0
  %3473 = vmatpush2.msra.mxu0 0.0
  %3474 = vmatprep.subr.mxu0 0.0
  %3475 = vmatpush2.msra.mxu0 0.0
  %3476 = vmatprep.subr.mxu0 0.0
  %3477 = vmatpush2.msra.mxu0 0.0
  %3478 = vmatprep.subr.mxu0 0.0
  %3479 = vmatpush2.msra.mxu0 0.0
  %3480 = vmatprep.subr.mxu0 0.0
  %3481 = vmatpush2.msra.mxu0 0.0
  %3482 = vmatprep.subr.mxu0 0.0
  %3483 = vmatpush2.msra.mxu0 0.0
  %3484 = vmatprep.subr.mxu0 0.0
  %3485 = vmatpush2.msra.mxu0 0.0
  %3486 = vmatprep.subr.mxu0 0.0
  %3487 = vmatpush2.msra.mxu0 0.0
  %3488 = vmatprep.subr.mxu0 0.0
  %3489 = vmatpush2.msra.mxu0 0.0
  %3490 = vmatprep.subr.mxu0 0.0
  %3491 = vmatpush2.msra.mxu0 0.0
  %3492 = vmatprep.subr.mxu0 0.0
  %3493 = vmatpush2.msra.mxu0 0.0
  %3494 = vmatprep.subr.mxu0 0.0
  %3495 = vmatpush2.msra.mxu0 0.0
  %3496 = vmatprep.subr.mxu0 0.0
  %3497 = vmatpush2.msra.mxu0 0.0
  %3498 = vmatprep.subr.mxu0 0.0
  %3499 = vmatpush2.msra.mxu0 0.0
  %3500 = vmatprep.subr.mxu0 0.0
  %3501 = vmatpush2.msra.mxu0 0.0
  %3502 = vmatprep.mubr.f32.mxu0 0.0
  %3503 = vmatmul.mubr.f32.gmra.mxu0 %v3436
  %v3504 = vpop.f32.mrf.mxu0
  %v3505 = vadd.f32 0.0, %v3504
  %v3506 = vpop.f32.mrf.mxu0
  %v3507 = vadd.f32 0.0, %v3506
  %3508 = vdwg.mxu0
  %3509 = vmatprep.subr.mxu0 0.0
  %3510 = vmatpush1.msra.mxu0 0.0
  %3511 = vmatprep.subr.mxu0 0.0
  %3512 = vmatpush1.msra.mxu0 0.0
  %3513 = vmatprep.subr.mxu0 0.0
  %3514 = vmatpush1.msra.mxu0 0.0
  %3515 = vmatprep.subr.mxu0 0.0
  %3516 = vmatpush1.msra.mxu0 0.0
  %3517 = vmatprep.subr.mxu0 0.0
  %3518 = vmatpush1.msra.mxu0 0.0
  %3519 = vmatprep.subr.mxu0 0.0
  %3520 = vmatpush1.msra.mxu0 0.0
  %3521 = vmatprep.subr.mxu0 0.0
  %3522 = vmatpush1.msra.mxu0 0.0
  %3523 = vmatprep.subr.mxu0 0.0
  %3524 = vmatpush1.msra.mxu0 0.0
  %3525 = vmatprep.subr.mxu0 0.0
  %3526 = vmatpush1.msra.mxu0 0.0
  %3527 = vmatprep.subr.mxu0 0.0
  %3528 = vmatpush1.msra.mxu0 0.0
  %3529 = vmatprep.subr.mxu0 0.0
  %3530 = vmatpush1.msra.mxu0 0.0
  %3531 = vmatprep.subr.mxu0 0.0
  %3532 = vmatpush1.msra.mxu0 0.0
  %3533 = vmatprep.subr.mxu0 0.0
  %3534 = vmatpush1.msra.mxu0 0.0
  %3535 = vmatprep.subr.mxu0 0.0
  %3536 = vmatpush1.msra.mxu0 0.0
  %3537 = vmatprep.subr.mxu0 0.0
  %3538 = vmatpush1.msra.mxu0 0.0
  %3539 = vmatprep.subr.mxu0 %v3429
  %3540 = vmatpush1.msra.mxu0 %v3430
  %3541 = vmatprep.subr.mxu0 0.0
  %3542 = vmatpush2.msra.mxu0 0.0
  %3543 = vmatprep.subr.mxu0 0.0
  %3544 = vmatpush2.msra.mxu0 0.0
  %3545 = vmatprep.subr.mxu0 0.0
  %3546 = vmatpush2.msra.mxu0 0.0
  %3547 = vmatprep.subr.mxu0 0.0
  %3548 = vmatpush2.msra.mxu0 0.0
  %3549 = vmatprep.subr.mxu0 0.0
  %3550 = vmatpush2.msra.mxu0 0.0
  %3551 = vmatprep.subr.mxu0 0.0
  %3552 = vmatpush2.msra.mxu0 0.0
  %3553 = vmatprep.subr.mxu0 0.0
  %3554 = vmatpush2.msra.mxu0 0.0
  %3555 = vmatprep.subr.mxu0 0.0
  %3556 = vmatpush2.msra.mxu0 0.0
  %3557 = vmatprep.subr.mxu0 0.0
  %3558 = vmatpush2.msra.mxu0 0.0
  %3559 = vmatprep.subr.mxu0 0.0
  %3560 = vmatpush2.msra.mxu0 0.0
  %3561 = vmatprep.subr.mxu0 0.0
  %3562 = vmatpush2.msra.mxu0 0.0
  %3563 = vmatprep.subr.mxu0 0.0
  %3564 = vmatpush2.msra.mxu0 0.0
  %3565 = vmatprep.subr.mxu0 0.0
  %3566 = vmatpush2.msra.mxu0 0.0
  %3567 = vmatprep.subr.mxu0 0.0
  %3568 = vmatpush2.msra.mxu0 0.0
  %3569 = vmatprep.subr.mxu0 0.0
  %3570 = vmatpush2.msra.mxu0 0.0
  %3571 = vmatprep.subr.mxu0 0.0
  %3572 = vmatpush2.msra.mxu0 0.0
  %3573 = vmatprep.mubr.f32.mxu0 0.0
  %3574 = vmatmul.mubr.f32.gmra.mxu0 %v3436
  %v3575 = vpop.f32.mrf.mxu0
  %v3576 = vadd.f32 0.0, %v3575
  %v3577 = vpop.f32.mrf.mxu0
  %v3578 = vadd.f32 0.0, %v3577
  %3579 = vdwg.mxu0
  %3580 = vmatprep.subr.mxu0 0.0
  %3581 = vmatpush1.msra.mxu0 0.0
  %3582 = vmatprep.subr.mxu0 0.0
  %3583 = vmatpush1.msra.mxu0 0.0
  %3584 = vmatprep.subr.mxu0 0.0
  %3585 = vmatpush1.msra.mxu0 0.0
  %3586 = vmatprep.subr.mxu0 0.0
  %3587 = vmatpush1.msra.mxu0 0.0
  %3588 = vmatprep.subr.mxu0 0.0
  %3589 = vmatpush1.msra.mxu0 0.0
  %3590 = vmatprep.subr.mxu0 0.0
  %3591 = vmatpush1.msra.mxu0 0.0
  %3592 = vmatprep.subr.mxu0 0.0
  %3593 = vmatpush1.msra.mxu0 0.0
  %3594 = vmatprep.subr.mxu0 0.0
  %3595 = vmatpush1.msra.mxu0 0.0
  %3596 = vmatprep.subr.mxu0 0.0
  %3597 = vmatpush1.msra.mxu0 0.0
  %3598 = vmatprep.subr.mxu0 0.0
  %3599 = vmatpush1.msra.mxu0 0.0
  %3600 = vmatprep.subr.mxu0 0.0
  %3601 = vmatpush1.msra.mxu0 0.0
  %3602 = vmatprep.subr.mxu0 0.0
  %3603 = vmatpush1.msra.mxu0 0.0
  %3604 = vmatprep.subr.mxu0 0.0
  %3605 = vmatpush1.msra.mxu0 0.0
  %3606 = vmatprep.subr.mxu0 0.0
  %3607 = vmatpush1.msra.mxu0 0.0
  %3608 = vmatprep.subr.mxu0 0.0
  %3609 = vmatpush1.msra.mxu0 0.0
  %3610 = vmatprep.subr.mxu0 %v3433
  %3611 = vmatpush1.msra.mxu0 %v3428
  %3612 = vmatprep.subr.mxu0 0.0
  %3613 = vmatpush2.msra.mxu0 0.0
  %3614 = vmatprep.subr.mxu0 0.0
  %3615 = vmatpush2.msra.mxu0 0.0
  %3616 = vmatprep.subr.mxu0 0.0
  %3617 = vmatpush2.msra.mxu0 0.0
  %3618 = vmatprep.subr.mxu0 0.0
  %3619 = vmatpush2.msra.mxu0 0.0
  %3620 = vmatprep.subr.mxu0 0.0
  %3621 = vmatpush2.msra.mxu0 0.0
  %3622 = vmatprep.subr.mxu0 0.0
  %3623 = vmatpush2.msra.mxu0 0.0
  %3624 = vmatprep.subr.mxu0 0.0
  %3625 = vmatpush2.msra.mxu0 0.0
  %3626 = vmatprep.subr.mxu0 0.0
  %3627 = vmatpush2.msra.mxu0 0.0
  %3628 = vmatprep.subr.mxu0 0.0
  %3629 = vmatpush2.msra.mxu0 0.0
  %3630 = vmatprep.subr.mxu0 0.0
  %3631 = vmatpush2.msra.mxu0 0.0
  %3632 = vmatprep.subr.mxu0 0.0
  %3633 = vmatpush2.msra.mxu0 0.0
  %3634 = vmatprep.subr.mxu0 0.0
  %3635 = vmatpush2.msra.mxu0 0.0
  %3636 = vmatprep.subr.mxu0 0.0
  %3637 = vmatpush2.msra.mxu0 0.0
  %3638 = vmatprep.subr.mxu0 0.0
  %3639 = vmatpush2.msra.mxu0 0.0
  %3640 = vmatprep.subr.mxu0 0.0
  %3641 = vmatpush2.msra.mxu0 0.0
  %3642 = vmatprep.subr.mxu0 0.0
  %3643 = vmatpush2.msra.mxu0 0.0
  %3644 = vmatprep.mubr.f32.mxu0 0.0
  %3645 = vmatmul.mubr.f32.gmra.mxu0 %v3436
  %v3646 = vpop.f32.mrf.mxu0
  %v3647 = vadd.f32 0.0, %v3646
  %v3648 = vpop.f32.mrf.mxu0
  %v3649 = vadd.f32 0.0, %v3648
  %3650 = vdwg.mxu0
  %v3651 = vadd.f32 %v3410, %v3505
  %v3652 = vadd.f32 %v3411, %v3507
  %v3653 = vadd.f32 %v3412, %v3576
  %v3654 = vadd.f32 %v3413, %v3578
  %v3655 = vadd.f32 %v3414, %v3647
  %v3656 = vadd.f32 %v3415, %v3649
  %3657 = vrot.lane.b32.xlu0 %v2235, 111
  %v3658 = vpop.permute.xlu0 %3657
  %3659 = vrot.lane.b32.xlu0 %v2236, 111
  %v3660 = vpop.permute.xlu0 %3659
  %3661 = vrot.lane.b32.xlu0 %v2237, 111
  %v3662 = vpop.permute.xlu0 %3661
  %3663 = vrot.lane.b32.xlu0 %v2238, 111
  %v3664 = vpop.permute.xlu0 %3663
  %3665 = vrot.lane.b32.xlu0 %v2239, 111
  %v3666 = vpop.permute.xlu0 %3665
  %3667 = vrot.lane.b32.xlu0 %v2240, 111
  %v3668 = vpop.permute.xlu0 %3667
  %v3669 = vsel %vm1503, %v3666, %v3668
  %v3670 = vsel %vm1503, %v3664, %v3666
  %v3671 = vsel %vm1503, %v3662, %v3664
  %v3672 = vsel %vm1503, %v3660, %v3662
  %v3673 = vsel %vm1503, %v3658, %v3660
  %v3674 = vsel %vm1503, %v3668, %v3658
  %3675 = vrot.lane.b32.xlu0 %v2259, 80
  %v3676 = vpop.permute.xlu0 %3675
  %v3677 = vsel %vm111, %v3676, 0
  %3679 = vmatprep.subr.mxu0 0.0
  %3680 = vmatpush1.msra.mxu0 0.0
  %3681 = vmatprep.subr.mxu0 0.0
  %3682 = vmatpush1.msra.mxu0 0.0
  %3683 = vmatprep.subr.mxu0 0.0
  %3684 = vmatpush1.msra.mxu0 0.0
  %3685 = vmatprep.subr.mxu0 0.0
  %3686 = vmatpush1.msra.mxu0 0.0
  %3687 = vmatprep.subr.mxu0 0.0
  %3688 = vmatpush1.msra.mxu0 0.0
  %3689 = vmatprep.subr.mxu0 0.0
  %3690 = vmatpush1.msra.mxu0 0.0
  %3691 = vmatprep.subr.mxu0 0.0
  %3692 = vmatpush1.msra.mxu0 0.0
  %3693 = vmatprep.subr.mxu0 0.0
  %3694 = vmatpush1.msra.mxu0 0.0
  %3695 = vmatprep.subr.mxu0 0.0
  %3696 = vmatpush1.msra.mxu0 0.0
  %3697 = vmatprep.subr.mxu0 0.0
  %3698 = vmatpush1.msra.mxu0 0.0
  %3699 = vmatprep.subr.mxu0 0.0
  %3700 = vmatpush1.msra.mxu0 0.0
  %3701 = vmatprep.subr.mxu0 0.0
  %3702 = vmatpush1.msra.mxu0 0.0
  %3703 = vmatprep.subr.mxu0 0.0
  %3704 = vmatpush1.msra.mxu0 0.0
  %3705 = vmatprep.subr.mxu0 0.0
  %3706 = vmatpush1.msra.mxu0 0.0
  %3707 = vmatprep.subr.mxu0 0.0
  %3708 = vmatpush1.msra.mxu0 0.0
  %3709 = vmatprep.subr.mxu0 %v3672
  %3710 = vmatpush1.msra.mxu0 %v3673
  %3711 = vmatprep.subr.mxu0 0.0
  %3712 = vmatpush2.msra.mxu0 0.0
  %3713 = vmatprep.subr.mxu0 0.0
  %3714 = vmatpush2.msra.mxu0 0.0
  %3715 = vmatprep.subr.mxu0 0.0
  %3716 = vmatpush2.msra.mxu0 0.0
  %3717 = vmatprep.subr.mxu0 0.0
  %3718 = vmatpush2.msra.mxu0 0.0
  %3719 = vmatprep.subr.mxu0 0.0
  %3720 = vmatpush2.msra.mxu0 0.0
  %3721 = vmatprep.subr.mxu0 0.0
  %3722 = vmatpush2.msra.mxu0 0.0
  %3723 = vmatprep.subr.mxu0 0.0
  %3724 = vmatpush2.msra.mxu0 0.0
  %3725 = vmatprep.subr.mxu0 0.0
  %3726 = vmatpush2.msra.mxu0 0.0
  %3727 = vmatprep.subr.mxu0 0.0
  %3728 = vmatpush2.msra.mxu0 0.0
  %3729 = vmatprep.subr.mxu0 0.0
  %3730 = vmatpush2.msra.mxu0 0.0
  %3731 = vmatprep.subr.mxu0 0.0
  %3732 = vmatpush2.msra.mxu0 0.0
  %3733 = vmatprep.subr.mxu0 0.0
  %3734 = vmatpush2.msra.mxu0 0.0
  %3735 = vmatprep.subr.mxu0 0.0
  %3736 = vmatpush2.msra.mxu0 0.0
  %3737 = vmatprep.subr.mxu0 0.0
  %3738 = vmatpush2.msra.mxu0 0.0
  %3739 = vmatprep.subr.mxu0 0.0
  %3740 = vmatpush2.msra.mxu0 0.0
  %3741 = vmatprep.subr.mxu0 0.0
  %3742 = vmatpush2.msra.mxu0 0.0
  %3743 = vmatprep.mubr.f32.mxu0 0.0
  %3744 = vmatmul.mubr.f32.gmra.mxu0 %v3677
  %v3745 = vpop.f32.mrf.mxu0
  %v3746 = vadd.f32 0.0, %v3745
  %v3747 = vpop.f32.mrf.mxu0
  %v3748 = vadd.f32 0.0, %v3747
  %3749 = vdwg.mxu0
  %3750 = vmatprep.subr.mxu0 0.0
  %3751 = vmatpush1.msra.mxu0 0.0
  %3752 = vmatprep.subr.mxu0 0.0
  %3753 = vmatpush1.msra.mxu0 0.0
  %3754 = vmatprep.subr.mxu0 0.0
  %3755 = vmatpush1.msra.mxu0 0.0
  %3756 = vmatprep.subr.mxu0 0.0
  %3757 = vmatpush1.msra.mxu0 0.0
  %3758 = vmatprep.subr.mxu0 0.0
  %3759 = vmatpush1.msra.mxu0 0.0
  %3760 = vmatprep.subr.mxu0 0.0
  %3761 = vmatpush1.msra.mxu0 0.0
  %3762 = vmatprep.subr.mxu0 0.0
  %3763 = vmatpush1.msra.mxu0 0.0
  %3764 = vmatprep.subr.mxu0 0.0
  %3765 = vmatpush1.msra.mxu0 0.0
  %3766 = vmatprep.subr.mxu0 0.0
  %3767 = vmatpush1.msra.mxu0 0.0
  %3768 = vmatprep.subr.mxu0 0.0
  %3769 = vmatpush1.msra.mxu0 0.0
  %3770 = vmatprep.subr.mxu0 0.0
  %3771 = vmatpush1.msra.mxu0 0.0
  %3772 = vmatprep.subr.mxu0 0.0
  %3773 = vmatpush1.msra.mxu0 0.0
  %3774 = vmatprep.subr.mxu0 0.0
  %3775 = vmatpush1.msra.mxu0 0.0
  %3776 = vmatprep.subr.mxu0 0.0
  %3777 = vmatpush1.msra.mxu0 0.0
  %3778 = vmatprep.subr.mxu0 0.0
  %3779 = vmatpush1.msra.mxu0 0.0
  %3780 = vmatprep.subr.mxu0 %v3670
  %3781 = vmatpush1.msra.mxu0 %v3671
  %3782 = vmatprep.subr.mxu0 0.0
  %3783 = vmatpush2.msra.mxu0 0.0
  %3784 = vmatprep.subr.mxu0 0.0
  %3785 = vmatpush2.msra.mxu0 0.0
  %3786 = vmatprep.subr.mxu0 0.0
  %3787 = vmatpush2.msra.mxu0 0.0
  %3788 = vmatprep.subr.mxu0 0.0
  %3789 = vmatpush2.msra.mxu0 0.0
  %3790 = vmatprep.subr.mxu0 0.0
  %3791 = vmatpush2.msra.mxu0 0.0
  %3792 = vmatprep.subr.mxu0 0.0
  %3793 = vmatpush2.msra.mxu0 0.0
  %3794 = vmatprep.subr.mxu0 0.0
  %3795 = vmatpush2.msra.mxu0 0.0
  %3796 = vmatprep.subr.mxu0 0.0
  %3797 = vmatpush2.msra.mxu0 0.0
  %3798 = vmatprep.subr.mxu0 0.0
  %3799 = vmatpush2.msra.mxu0 0.0
  %3800 = vmatprep.subr.mxu0 0.0
  %3801 = vmatpush2.msra.mxu0 0.0
  %3802 = vmatprep.subr.mxu0 0.0
  %3803 = vmatpush2.msra.mxu0 0.0
  %3804 = vmatprep.subr.mxu0 0.0
  %3805 = vmatpush2.msra.mxu0 0.0
  %3806 = vmatprep.subr.mxu0 0.0
  %3807 = vmatpush2.msra.mxu0 0.0
  %3808 = vmatprep.subr.mxu0 0.0
  %3809 = vmatpush2.msra.mxu0 0.0
  %3810 = vmatprep.subr.mxu0 0.0
  %3811 = vmatpush2.msra.mxu0 0.0
  %3812 = vmatprep.subr.mxu0 0.0
  %3813 = vmatpush2.msra.mxu0 0.0
  %3814 = vmatprep.mubr.f32.mxu0 0.0
  %3815 = vmatmul.mubr.f32.gmra.mxu0 %v3677
  %v3816 = vpop.f32.mrf.mxu0
  %v3817 = vadd.f32 0.0, %v3816
  %v3818 = vpop.f32.mrf.mxu0
  %v3819 = vadd.f32 0.0, %v3818
  %3820 = vdwg.mxu0
  %3821 = vmatprep.subr.mxu0 0.0
  %3822 = vmatpush1.msra.mxu0 0.0
  %3823 = vmatprep.subr.mxu0 0.0
  %3824 = vmatpush1.msra.mxu0 0.0
  %3825 = vmatprep.subr.mxu0 0.0
  %3826 = vmatpush1.msra.mxu0 0.0
  %3827 = vmatprep.subr.mxu0 0.0
  %3828 = vmatpush1.msra.mxu0 0.0
  %3829 = vmatprep.subr.mxu0 0.0
  %3830 = vmatpush1.msra.mxu0 0.0
  %3831 = vmatprep.subr.mxu0 0.0
  %3832 = vmatpush1.msra.mxu0 0.0
  %3833 = vmatprep.subr.mxu0 0.0
  %3834 = vmatpush1.msra.mxu0 0.0
  %3835 = vmatprep.subr.mxu0 0.0
  %3836 = vmatpush1.msra.mxu0 0.0
  %3837 = vmatprep.subr.mxu0 0.0
  %3838 = vmatpush1.msra.mxu0 0.0
  %3839 = vmatprep.subr.mxu0 0.0
  %3840 = vmatpush1.msra.mxu0 0.0
  %3841 = vmatprep.subr.mxu0 0.0
  %3842 = vmatpush1.msra.mxu0 0.0
  %3843 = vmatprep.subr.mxu0 0.0
  %3844 = vmatpush1.msra.mxu0 0.0
  %3845 = vmatprep.subr.mxu0 0.0
  %3846 = vmatpush1.msra.mxu0 0.0
  %3847 = vmatprep.subr.mxu0 0.0
  %3848 = vmatpush1.msra.mxu0 0.0
  %3849 = vmatprep.subr.mxu0 0.0
  %3850 = vmatpush1.msra.mxu0 0.0
  %3851 = vmatprep.subr.mxu0 %v3674
  %3852 = vmatpush1.msra.mxu0 %v3669
  %3853 = vmatprep.subr.mxu0 0.0
  %3854 = vmatpush2.msra.mxu0 0.0
  %3855 = vmatprep.subr.mxu0 0.0
  %3856 = vmatpush2.msra.mxu0 0.0
  %3857 = vmatprep.subr.mxu0 0.0
  %3858 = vmatpush2.msra.mxu0 0.0
  %3859 = vmatprep.subr.mxu0 0.0
  %3860 = vmatpush2.msra.mxu0 0.0
  %3861 = vmatprep.subr.mxu0 0.0
  %3862 = vmatpush2.msra.mxu0 0.0
  %3863 = vmatprep.subr.mxu0 0.0
  %3864 = vmatpush2.msra.mxu0 0.0
  %3865 = vmatprep.subr.mxu0 0.0
  %3866 = vmatpush2.msra.mxu0 0.0
  %3867 = vmatprep.subr.mxu0 0.0
  %3868 = vmatpush2.msra.mxu0 0.0
  %3869 = vmatprep.subr.mxu0 0.0
  %3870 = vmatpush2.msra.mxu0 0.0
  %3871 = vmatprep.subr.mxu0 0.0
  %3872 = vmatpush2.msra.mxu0 0.0
  %3873 = vmatprep.subr.mxu0 0.0
  %3874 = vmatpush2.msra.mxu0 0.0
  %3875 = vmatprep.subr.mxu0 0.0
  %3876 = vmatpush2.msra.mxu0 0.0
  %3877 = vmatprep.subr.mxu0 0.0
  %3878 = vmatpush2.msra.mxu0 0.0
  %3879 = vmatprep.subr.mxu0 0.0
  %3880 = vmatpush2.msra.mxu0 0.0
  %3881 = vmatprep.subr.mxu0 0.0
  %3882 = vmatpush2.msra.mxu0 0.0
  %3883 = vmatprep.subr.mxu0 0.0
  %3884 = vmatpush2.msra.mxu0 0.0
  %3885 = vmatprep.mubr.f32.mxu0 0.0
  %3886 = vmatmul.mubr.f32.gmra.mxu0 %v3677
  %v3887 = vpop.f32.mrf.mxu0
  %v3888 = vadd.f32 0.0, %v3887
  %v3889 = vpop.f32.mrf.mxu0
  %v3890 = vadd.f32 0.0, %v3889
  %3891 = vdwg.mxu0
  %v3892 = vadd.f32 %v3651, %v3746
  %v3893 = vadd.f32 %v3652, %v3748
  %v3894 = vadd.f32 %v3653, %v3817
  %v3895 = vadd.f32 %v3654, %v3819
  %v3896 = vadd.f32 %v3655, %v3888
  %v3897 = vadd.f32 %v3656, %v3890
  %3898 = vrot.lane.b32.xlu0 %v2235, 110
  %v3899 = vpop.permute.xlu0 %3898
  %3900 = vrot.lane.b32.xlu0 %v2236, 110
  %v3901 = vpop.permute.xlu0 %3900
  %3902 = vrot.lane.b32.xlu0 %v2237, 110
  %v3903 = vpop.permute.xlu0 %3902
  %3904 = vrot.lane.b32.xlu0 %v2238, 110
  %v3905 = vpop.permute.xlu0 %3904
  %3906 = vrot.lane.b32.xlu0 %v2239, 110
  %v3907 = vpop.permute.xlu0 %3906
  %3908 = vrot.lane.b32.xlu0 %v2240, 110
  %v3909 = vpop.permute.xlu0 %3908
  %v3910 = vsel %vm1745, %v3907, %v3909
  %v3911 = vsel %vm1745, %v3905, %v3907
  %v3912 = vsel %vm1745, %v3903, %v3905
  %v3913 = vsel %vm1745, %v3901, %v3903
  %v3914 = vsel %vm1745, %v3899, %v3901
  %v3915 = vsel %vm1745, %v3909, %v3899
  %3916 = vrot.lane.b32.xlu0 %v2259, 72
  %v3917 = vpop.permute.xlu0 %3916
  %v3918 = vsel %vm111, %v3917, 0
  %3920 = vmatprep.subr.mxu0 0.0
  %3921 = vmatpush1.msra.mxu0 0.0
  %3922 = vmatprep.subr.mxu0 0.0
  %3923 = vmatpush1.msra.mxu0 0.0
  %3924 = vmatprep.subr.mxu0 0.0
  %3925 = vmatpush1.msra.mxu0 0.0
  %3926 = vmatprep.subr.mxu0 0.0
  %3927 = vmatpush1.msra.mxu0 0.0
  %3928 = vmatprep.subr.mxu0 0.0
  %3929 = vmatpush1.msra.mxu0 0.0
  %3930 = vmatprep.subr.mxu0 0.0
  %3931 = vmatpush1.msra.mxu0 0.0
  %3932 = vmatprep.subr.mxu0 0.0
  %3933 = vmatpush1.msra.mxu0 0.0
  %3934 = vmatprep.subr.mxu0 0.0
  %3935 = vmatpush1.msra.mxu0 0.0
  %3936 = vmatprep.subr.mxu0 0.0
  %3937 = vmatpush1.msra.mxu0 0.0
  %3938 = vmatprep.subr.mxu0 0.0
  %3939 = vmatpush1.msra.mxu0 0.0
  %3940 = vmatprep.subr.mxu0 0.0
  %3941 = vmatpush1.msra.mxu0 0.0
  %3942 = vmatprep.subr.mxu0 0.0
  %3943 = vmatpush1.msra.mxu0 0.0
  %3944 = vmatprep.subr.mxu0 0.0
  %3945 = vmatpush1.msra.mxu0 0.0
  %3946 = vmatprep.subr.mxu0 0.0
  %3947 = vmatpush1.msra.mxu0 0.0
  %3948 = vmatprep.subr.mxu0 0.0
  %3949 = vmatpush1.msra.mxu0 0.0
  %3950 = vmatprep.subr.mxu0 %v3913
  %3951 = vmatpush1.msra.mxu0 %v3914
  %3952 = vmatprep.subr.mxu0 0.0
  %3953 = vmatpush2.msra.mxu0 0.0
  %3954 = vmatprep.subr.mxu0 0.0
  %3955 = vmatpush2.msra.mxu0 0.0
  %3956 = vmatprep.subr.mxu0 0.0
  %3957 = vmatpush2.msra.mxu0 0.0
  %3958 = vmatprep.subr.mxu0 0.0
  %3959 = vmatpush2.msra.mxu0 0.0
  %3960 = vmatprep.subr.mxu0 0.0
  %3961 = vmatpush2.msra.mxu0 0.0
  %3962 = vmatprep.subr.mxu0 0.0
  %3963 = vmatpush2.msra.mxu0 0.0
  %3964 = vmatprep.subr.mxu0 0.0
  %3965 = vmatpush2.msra.mxu0 0.0
  %3966 = vmatprep.subr.mxu0 0.0
  %3967 = vmatpush2.msra.mxu0 0.0
  %3968 = vmatprep.subr.mxu0 0.0
  %3969 = vmatpush2.msra.mxu0 0.0
  %3970 = vmatprep.subr.mxu0 0.0
  %3971 = vmatpush2.msra.mxu0 0.0
  %3972 = vmatprep.subr.mxu0 0.0
  %3973 = vmatpush2.msra.mxu0 0.0
  %3974 = vmatprep.subr.mxu0 0.0
  %3975 = vmatpush2.msra.mxu0 0.0
  %3976 = vmatprep.subr.mxu0 0.0
  %3977 = vmatpush2.msra.mxu0 0.0
  %3978 = vmatprep.subr.mxu0 0.0
  %3979 = vmatpush2.msra.mxu0 0.0
  %3980 = vmatprep.subr.mxu0 0.0
  %3981 = vmatpush2.msra.mxu0 0.0
  %3982 = vmatprep.subr.mxu0 0.0
  %3983 = vmatpush2.msra.mxu0 0.0
  %3984 = vmatprep.mubr.f32.mxu0 0.0
  %3985 = vmatmul.mubr.f32.gmra.mxu0 %v3918
  %v3986 = vpop.f32.mrf.mxu0
  %v3987 = vadd.f32 0.0, %v3986
  %v3988 = vpop.f32.mrf.mxu0
  %v3989 = vadd.f32 0.0, %v3988
  %3990 = vdwg.mxu0
  %3991 = vmatprep.subr.mxu0 0.0
  %3992 = vmatpush1.msra.mxu0 0.0
  %3993 = vmatprep.subr.mxu0 0.0
  %3994 = vmatpush1.msra.mxu0 0.0
  %3995 = vmatprep.subr.mxu0 0.0
  %3996 = vmatpush1.msra.mxu0 0.0
  %3997 = vmatprep.subr.mxu0 0.0
  %3998 = vmatpush1.msra.mxu0 0.0
  %3999 = vmatprep.subr.mxu0 0.0
  %4000 = vmatpush1.msra.mxu0 0.0
  %4001 = vmatprep.subr.mxu0 0.0
  %4002 = vmatpush1.msra.mxu0 0.0
  %4003 = vmatprep.subr.mxu0 0.0
  %4004 = vmatpush1.msra.mxu0 0.0
  %4005 = vmatprep.subr.mxu0 0.0
  %4006 = vmatpush1.msra.mxu0 0.0
  %4007 = vmatprep.subr.mxu0 0.0
  %4008 = vmatpush1.msra.mxu0 0.0
  %4009 = vmatprep.subr.mxu0 0.0
  %4010 = vmatpush1.msra.mxu0 0.0
  %4011 = vmatprep.subr.mxu0 0.0
  %4012 = vmatpush1.msra.mxu0 0.0
  %4013 = vmatprep.subr.mxu0 0.0
  %4014 = vmatpush1.msra.mxu0 0.0
  %4015 = vmatprep.subr.mxu0 0.0
  %4016 = vmatpush1.msra.mxu0 0.0
  %4017 = vmatprep.subr.mxu0 0.0
  %4018 = vmatpush1.msra.mxu0 0.0
  %4019 = vmatprep.subr.mxu0 0.0
  %4020 = vmatpush1.msra.mxu0 0.0
  %4021 = vmatprep.subr.mxu0 %v3911
  %4022 = vmatpush1.msra.mxu0 %v3912
  %4023 = vmatprep.subr.mxu0 0.0
  %4024 = vmatpush2.msra.mxu0 0.0
  %4025 = vmatprep.subr.mxu0 0.0
  %4026 = vmatpush2.msra.mxu0 0.0
  %4027 = vmatprep.subr.mxu0 0.0
  %4028 = vmatpush2.msra.mxu0 0.0
  %4029 = vmatprep.subr.mxu0 0.0
  %4030 = vmatpush2.msra.mxu0 0.0
  %4031 = vmatprep.subr.mxu0 0.0
  %4032 = vmatpush2.msra.mxu0 0.0
  %4033 = vmatprep.subr.mxu0 0.0
  %4034 = vmatpush2.msra.mxu0 0.0
  %4035 = vmatprep.subr.mxu0 0.0
  %4036 = vmatpush2.msra.mxu0 0.0
  %4037 = vmatprep.subr.mxu0 0.0
  %4038 = vmatpush2.msra.mxu0 0.0
  %4039 = vmatprep.subr.mxu0 0.0
  %4040 = vmatpush2.msra.mxu0 0.0
  %4041 = vmatprep.subr.mxu0 0.0
  %4042 = vmatpush2.msra.mxu0 0.0
  %4043 = vmatprep.subr.mxu0 0.0
  %4044 = vmatpush2.msra.mxu0 0.0
  %4045 = vmatprep.subr.mxu0 0.0
  %4046 = vmatpush2.msra.mxu0 0.0
  %4047 = vmatprep.subr.mxu0 0.0
  %4048 = vmatpush2.msra.mxu0 0.0
  %4049 = vmatprep.subr.mxu0 0.0
  %4050 = vmatpush2.msra.mxu0 0.0
  %4051 = vmatprep.subr.mxu0 0.0
  %4052 = vmatpush2.msra.mxu0 0.0
  %4053 = vmatprep.subr.mxu0 0.0
  %4054 = vmatpush2.msra.mxu0 0.0
  %4055 = vmatprep.mubr.f32.mxu0 0.0
  %4056 = vmatmul.mubr.f32.gmra.mxu0 %v3918
  %v4057 = vpop.f32.mrf.mxu0
  %v4058 = vadd.f32 0.0, %v4057
  %v4059 = vpop.f32.mrf.mxu0
  %v4060 = vadd.f32 0.0, %v4059
  %4061 = vdwg.mxu0
  %4062 = vmatprep.subr.mxu0 0.0
  %4063 = vmatpush1.msra.mxu0 0.0
  %4064 = vmatprep.subr.mxu0 0.0
  %4065 = vmatpush1.msra.mxu0 0.0
  %4066 = vmatprep.subr.mxu0 0.0
  %4067 = vmatpush1.msra.mxu0 0.0
  %4068 = vmatprep.subr.mxu0 0.0
  %4069 = vmatpush1.msra.mxu0 0.0
  %4070 = vmatprep.subr.mxu0 0.0
  %4071 = vmatpush1.msra.mxu0 0.0
  %4072 = vmatprep.subr.mxu0 0.0
  %4073 = vmatpush1.msra.mxu0 0.0
  %4074 = vmatprep.subr.mxu0 0.0
  %4075 = vmatpush1.msra.mxu0 0.0
  %4076 = vmatprep.subr.mxu0 0.0
  %4077 = vmatpush1.msra.mxu0 0.0
  %4078 = vmatprep.subr.mxu0 0.0
  %4079 = vmatpush1.msra.mxu0 0.0
  %4080 = vmatprep.subr.mxu0 0.0
  %4081 = vmatpush1.msra.mxu0 0.0
  %4082 = vmatprep.subr.mxu0 0.0
  %4083 = vmatpush1.msra.mxu0 0.0
  %4084 = vmatprep.subr.mxu0 0.0
  %4085 = vmatpush1.msra.mxu0 0.0
  %4086 = vmatprep.subr.mxu0 0.0
  %4087 = vmatpush1.msra.mxu0 0.0
  %4088 = vmatprep.subr.mxu0 0.0
  %4089 = vmatpush1.msra.mxu0 0.0
  %4090 = vmatprep.subr.mxu0 0.0
  %4091 = vmatpush1.msra.mxu0 0.0
  %4092 = vmatprep.subr.mxu0 %v3915
  %4093 = vmatpush1.msra.mxu0 %v3910
  %4094 = vmatprep.subr.mxu0 0.0
  %4095 = vmatpush2.msra.mxu0 0.0
  %4096 = vmatprep.subr.mxu0 0.0
  %4097 = vmatpush2.msra.mxu0 0.0
  %4098 = vmatprep.subr.mxu0 0.0
  %4099 = vmatpush2.msra.mxu0 0.0
  %4100 = vmatprep.subr.mxu0 0.0
  %4101 = vmatpush2.msra.mxu0 0.0
  %4102 = vmatprep.subr.mxu0 0.0
  %4103 = vmatpush2.msra.mxu0 0.0
  %4104 = vmatprep.subr.mxu0 0.0
  %4105 = vmatpush2.msra.mxu0 0.0
  %4106 = vmatprep.subr.mxu0 0.0
  %4107 = vmatpush2.msra.mxu0 0.0
  %4108 = vmatprep.subr.mxu0 0.0
  %4109 = vmatpush2.msra.mxu0 0.0
  %4110 = vmatprep.subr.mxu0 0.0
  %4111 = vmatpush2.msra.mxu0 0.0
  %4112 = vmatprep.subr.mxu0 0.0
  %4113 = vmatpush2.msra.mxu0 0.0
  %4114 = vmatprep.subr.mxu0 0.0
  %4115 = vmatpush2.msra.mxu0 0.0
  %4116 = vmatprep.subr.mxu0 0.0
  %4117 = vmatpush2.msra.mxu0 0.0
  %4118 = vmatprep.subr.mxu0 0.0
  %4119 = vmatpush2.msra.mxu0 0.0
  %4120 = vmatprep.subr.mxu0 0.0
  %4121 = vmatpush2.msra.mxu0 0.0
  %4122 = vmatprep.subr.mxu0 0.0
  %4123 = vmatpush2.msra.mxu0 0.0
  %4124 = vmatprep.subr.mxu0 0.0
  %4125 = vmatpush2.msra.mxu0 0.0
  %4126 = vmatprep.mubr.f32.mxu0 0.0
  %4127 = vmatmul.mubr.f32.gmra.mxu0 %v3918
  %v4128 = vpop.f32.mrf.mxu0
  %v4129 = vadd.f32 0.0, %v4128
  %v4130 = vpop.f32.mrf.mxu0
  %v4131 = vadd.f32 0.0, %v4130
  %4132 = vdwg.mxu0
  %v4133 = vadd.f32 %v3892, %v3987
  %v4134 = vadd.f32 %v3893, %v3989
  %v4135 = vadd.f32 %v3894, %v4058
  %v4136 = vadd.f32 %v3895, %v4060
  %v4137 = vadd.f32 %v3896, %v4129
  %v4138 = vadd.f32 %v3897, %v4131
  %4139 = vrot.lane.b32.xlu0 %v2235, 109
  %v4140 = vpop.permute.xlu0 %4139
  %4141 = vrot.lane.b32.xlu0 %v2236, 109
  %v4142 = vpop.permute.xlu0 %4141
  %4143 = vrot.lane.b32.xlu0 %v2237, 109
  %v4144 = vpop.permute.xlu0 %4143
  %4145 = vrot.lane.b32.xlu0 %v2238, 109
  %v4146 = vpop.permute.xlu0 %4145
  %4147 = vrot.lane.b32.xlu0 %v2239, 109
  %v4148 = vpop.permute.xlu0 %4147
  %4149 = vrot.lane.b32.xlu0 %v2240, 109
  %v4150 = vpop.permute.xlu0 %4149
  %v4151 = vsel %vm1987, %v4148, %v4150
  %v4152 = vsel %vm1987, %v4146, %v4148
  %v4153 = vsel %vm1987, %v4144, %v4146
  %v4154 = vsel %vm1987, %v4142, %v4144
  %v4155 = vsel %vm1987, %v4140, %v4142
  %v4156 = vsel %vm1987, %v4150, %v4140
  %4157 = vrot.lane.b32.xlu0 %v2259, 64
  %v4158 = vpop.permute.xlu0 %4157
  %v4159 = vsel %vm111, %v4158, 0
  %4161 = vmatprep.subr.mxu0 0.0
  %4162 = vmatpush1.msra.mxu0 0.0
  %4163 = vmatprep.subr.mxu0 0.0
  %4164 = vmatpush1.msra.mxu0 0.0
  %4165 = vmatprep.subr.mxu0 0.0
  %4166 = vmatpush1.msra.mxu0 0.0
  %4167 = vmatprep.subr.mxu0 0.0
  %4168 = vmatpush1.msra.mxu0 0.0
  %4169 = vmatprep.subr.mxu0 0.0
  %4170 = vmatpush1.msra.mxu0 0.0
  %4171 = vmatprep.subr.mxu0 0.0
  %4172 = vmatpush1.msra.mxu0 0.0
  %4173 = vmatprep.subr.mxu0 0.0
  %4174 = vmatpush1.msra.mxu0 0.0
  %4175 = vmatprep.subr.mxu0 0.0
  %4176 = vmatpush1.msra.mxu0 0.0
  %4177 = vmatprep.subr.mxu0 0.0
  %4178 = vmatpush1.msra.mxu0 0.0
  %4179 = vmatprep.subr.mxu0 0.0
  %4180 = vmatpush1.msra.mxu0 0.0
  %4181 = vmatprep.subr.mxu0 0.0
  %4182 = vmatpush1.msra.mxu0 0.0
  %4183 = vmatprep.subr.mxu0 0.0
  %4184 = vmatpush1.msra.mxu0 0.0
  %4185 = vmatprep.subr.mxu0 0.0
  %4186 = vmatpush1.msra.mxu0 0.0
  %4187 = vmatprep.subr.mxu0 0.0
  %4188 = vmatpush1.msra.mxu0 0.0
  %4189 = vmatprep.subr.mxu0 0.0
  %4190 = vmatpush1.msra.mxu0 0.0
  %4191 = vmatprep.subr.mxu0 %v4154
  %4192 = vmatpush1.msra.mxu0 %v4155
  %4193 = vmatprep.subr.mxu0 0.0
  %4194 = vmatpush2.msra.mxu0 0.0
  %4195 = vmatprep.subr.mxu0 0.0
  %4196 = vmatpush2.msra.mxu0 0.0
  %4197 = vmatprep.subr.mxu0 0.0
  %4198 = vmatpush2.msra.mxu0 0.0
  %4199 = vmatprep.subr.mxu0 0.0
  %4200 = vmatpush2.msra.mxu0 0.0
  %4201 = vmatprep.subr.mxu0 0.0
  %4202 = vmatpush2.msra.mxu0 0.0
  %4203 = vmatprep.subr.mxu0 0.0
  %4204 = vmatpush2.msra.mxu0 0.0
  %4205 = vmatprep.subr.mxu0 0.0
  %4206 = vmatpush2.msra.mxu0 0.0
  %4207 = vmatprep.subr.mxu0 0.0
  %4208 = vmatpush2.msra.mxu0 0.0
  %4209 = vmatprep.subr.mxu0 0.0
  %4210 = vmatpush2.msra.mxu0 0.0
  %4211 = vmatprep.subr.mxu0 0.0
  %4212 = vmatpush2.msra.mxu0 0.0
  %4213 = vmatprep.subr.mxu0 0.0
  %4214 = vmatpush2.msra.mxu0 0.0
  %4215 = vmatprep.subr.mxu0 0.0
  %4216 = vmatpush2.msra.mxu0 0.0
  %4217 = vmatprep.subr.mxu0 0.0
  %4218 = vmatpush2.msra.mxu0 0.0
  %4219 = vmatprep.subr.mxu0 0.0
  %4220 = vmatpush2.msra.mxu0 0.0
  %4221 = vmatprep.subr.mxu0 0.0
  %4222 = vmatpush2.msra.mxu0 0.0
  %4223 = vmatprep.subr.mxu0 0.0
  %4224 = vmatpush2.msra.mxu0 0.0
  %4225 = vmatprep.mubr.f32.mxu0 0.0
  %4226 = vmatmul.mubr.f32.gmra.mxu0 %v4159
  %v4227 = vpop.f32.mrf.mxu0
  %v4228 = vadd.f32 0.0, %v4227
  %v4229 = vpop.f32.mrf.mxu0
  %v4230 = vadd.f32 0.0, %v4229
  %4231 = vdwg.mxu0
  %4232 = vmatprep.subr.mxu0 0.0
  %4233 = vmatpush1.msra.mxu0 0.0
  %4234 = vmatprep.subr.mxu0 0.0
  %4235 = vmatpush1.msra.mxu0 0.0
  %4236 = vmatprep.subr.mxu0 0.0
  %4237 = vmatpush1.msra.mxu0 0.0
  %4238 = vmatprep.subr.mxu0 0.0
  %4239 = vmatpush1.msra.mxu0 0.0
  %4240 = vmatprep.subr.mxu0 0.0
  %4241 = vmatpush1.msra.mxu0 0.0
  %4242 = vmatprep.subr.mxu0 0.0
  %4243 = vmatpush1.msra.mxu0 0.0
  %4244 = vmatprep.subr.mxu0 0.0
  %4245 = vmatpush1.msra.mxu0 0.0
  %4246 = vmatprep.subr.mxu0 0.0
  %4247 = vmatpush1.msra.mxu0 0.0
  %4248 = vmatprep.subr.mxu0 0.0
  %4249 = vmatpush1.msra.mxu0 0.0
  %4250 = vmatprep.subr.mxu0 0.0
  %4251 = vmatpush1.msra.mxu0 0.0
  %4252 = vmatprep.subr.mxu0 0.0
  %4253 = vmatpush1.msra.mxu0 0.0
  %4254 = vmatprep.subr.mxu0 0.0
  %4255 = vmatpush1.msra.mxu0 0.0
  %4256 = vmatprep.subr.mxu0 0.0
  %4257 = vmatpush1.msra.mxu0 0.0
  %4258 = vmatprep.subr.mxu0 0.0
  %4259 = vmatpush1.msra.mxu0 0.0
  %4260 = vmatprep.subr.mxu0 0.0
  %4261 = vmatpush1.msra.mxu0 0.0
  %4262 = vmatprep.subr.mxu0 %v4152
  %4263 = vmatpush1.msra.mxu0 %v4153
  %4264 = vmatprep.subr.mxu0 0.0
  %4265 = vmatpush2.msra.mxu0 0.0
  %4266 = vmatprep.subr.mxu0 0.0
  %4267 = vmatpush2.msra.mxu0 0.0
  %4268 = vmatprep.subr.mxu0 0.0
  %4269 = vmatpush2.msra.mxu0 0.0
  %4270 = vmatprep.subr.mxu0 0.0
  %4271 = vmatpush2.msra.mxu0 0.0
  %4272 = vmatprep.subr.mxu0 0.0
  %4273 = vmatpush2.msra.mxu0 0.0
  %4274 = vmatprep.subr.mxu0 0.0
  %4275 = vmatpush2.msra.mxu0 0.0
  %4276 = vmatprep.subr.mxu0 0.0
  %4277 = vmatpush2.msra.mxu0 0.0
  %4278 = vmatprep.subr.mxu0 0.0
  %4279 = vmatpush2.msra.mxu0 0.0
  %4280 = vmatprep.subr.mxu0 0.0
  %4281 = vmatpush2.msra.mxu0 0.0
  %4282 = vmatprep.subr.mxu0 0.0
  %4283 = vmatpush2.msra.mxu0 0.0
  %4284 = vmatprep.subr.mxu0 0.0
  %4285 = vmatpush2.msra.mxu0 0.0
  %4286 = vmatprep.subr.mxu0 0.0
  %4287 = vmatpush2.msra.mxu0 0.0
  %4288 = vmatprep.subr.mxu0 0.0
  %4289 = vmatpush2.msra.mxu0 0.0
  %4290 = vmatprep.subr.mxu0 0.0
  %4291 = vmatpush2.msra.mxu0 0.0
  %4292 = vmatprep.subr.mxu0 0.0
  %4293 = vmatpush2.msra.mxu0 0.0
  %4294 = vmatprep.subr.mxu0 0.0
  %4295 = vmatpush2.msra.mxu0 0.0
  %4296 = vmatprep.mubr.f32.mxu0 0.0
  %4297 = vmatmul.mubr.f32.gmra.mxu0 %v4159
  %v4298 = vpop.f32.mrf.mxu0
  %v4299 = vadd.f32 0.0, %v4298
  %v4300 = vpop.f32.mrf.mxu0
  %v4301 = vadd.f32 0.0, %v4300
  %4302 = vdwg.mxu0
  %4303 = vmatprep.subr.mxu0 0.0
  %4304 = vmatpush1.msra.mxu0 0.0
  %4305 = vmatprep.subr.mxu0 0.0
  %4306 = vmatpush1.msra.mxu0 0.0
  %4307 = vmatprep.subr.mxu0 0.0
  %4308 = vmatpush1.msra.mxu0 0.0
  %4309 = vmatprep.subr.mxu0 0.0
  %4310 = vmatpush1.msra.mxu0 0.0
  %4311 = vmatprep.subr.mxu0 0.0
  %4312 = vmatpush1.msra.mxu0 0.0
  %4313 = vmatprep.subr.mxu0 0.0
  %4314 = vmatpush1.msra.mxu0 0.0
  %4315 = vmatprep.subr.mxu0 0.0
  %4316 = vmatpush1.msra.mxu0 0.0
  %4317 = vmatprep.subr.mxu0 0.0
  %4318 = vmatpush1.msra.mxu0 0.0
  %4319 = vmatprep.subr.mxu0 0.0
  %4320 = vmatpush1.msra.mxu0 0.0
  %4321 = vmatprep.subr.mxu0 0.0
  %4322 = vmatpush1.msra.mxu0 0.0
  %4323 = vmatprep.subr.mxu0 0.0
  %4324 = vmatpush1.msra.mxu0 0.0
  %4325 = vmatprep.subr.mxu0 0.0
  %4326 = vmatpush1.msra.mxu0 0.0
  %4327 = vmatprep.subr.mxu0 0.0
  %4328 = vmatpush1.msra.mxu0 0.0
  %4329 = vmatprep.subr.mxu0 0.0
  %4330 = vmatpush1.msra.mxu0 0.0
  %4331 = vmatprep.subr.mxu0 0.0
  %4332 = vmatpush1.msra.mxu0 0.0
  %4333 = vmatprep.subr.mxu0 %v4156
  %4334 = vmatpush1.msra.mxu0 %v4151
  %4335 = vmatprep.subr.mxu0 0.0
  %4336 = vmatpush2.msra.mxu0 0.0
  %4337 = vmatprep.subr.mxu0 0.0
  %4338 = vmatpush2.msra.mxu0 0.0
  %4339 = vmatprep.subr.mxu0 0.0
  %4340 = vmatpush2.msra.mxu0 0.0
  %4341 = vmatprep.subr.mxu0 0.0
  %4342 = vmatpush2.msra.mxu0 0.0
  %4343 = vmatprep.subr.mxu0 0.0
  %4344 = vmatpush2.msra.mxu0 0.0
  %4345 = vmatprep.subr.mxu0 0.0
  %4346 = vmatpush2.msra.mxu0 0.0
  %4347 = vmatprep.subr.mxu0 0.0
  %4348 = vmatpush2.msra.mxu0 0.0
  %4349 = vmatprep.subr.mxu0 0.0
  %4350 = vmatpush2.msra.mxu0 0.0
  %4351 = vmatprep.subr.mxu0 0.0
  %4352 = vmatpush2.msra.mxu0 0.0
  %4353 = vmatprep.subr.mxu0 0.0
  %4354 = vmatpush2.msra.mxu0 0.0
  %4355 = vmatprep.subr.mxu0 0.0
  %4356 = vmatpush2.msra.mxu0 0.0
  %4357 = vmatprep.subr.mxu0 0.0
  %4358 = vmatpush2.msra.mxu0 0.0
  %4359 = vmatprep.subr.mxu0 0.0
  %4360 = vmatpush2.msra.mxu0 0.0
  %4361 = vmatprep.subr.mxu0 0.0
  %4362 = vmatpush2.msra.mxu0 0.0
  %4363 = vmatprep.subr.mxu0 0.0
  %4364 = vmatpush2.msra.mxu0 0.0
  %4365 = vmatprep.subr.mxu0 0.0
  %4366 = vmatpush2.msra.mxu0 0.0
  %4367 = vmatprep.mubr.f32.mxu0 0.0
  %4368 = vmatmul.mubr.f32.gmra.mxu0 %v4159
  %v4369 = vpop.f32.mrf.mxu0
  %v4370 = vadd.f32 0.0, %v4369
  %v4371 = vpop.f32.mrf.mxu0
  %v4372 = vadd.f32 0.0, %v4371
  %4373 = vdwg.mxu0
  %v4374 = vadd.f32 %v4133, %v4228
  %v4375 = vadd.f32 %v4134, %v4230
  %v4376 = vadd.f32 %v4135, %v4299
  %v4377 = vadd.f32 %v4136, %v4301
  %v4378 = vadd.f32 %v4137, %v4370
  %v4379 = vadd.f32 %v4138, %v4372
  %v4380 = vld [vmem:[%s5] sm:$0xff]
  %4382 = vset.pattern.permute.xlu0 0
  %4383 = vperm.xlu0 %4382, %v4380
  %v4384 = vpop.permute.xlu0 %4383
  %v4386 = vadd.f32 %v4374, %v4384
  %v4387 = vadd.f32 %v4375, %v4384
  %v4388 = vadd.f32 %v4376, %v4384
  %v4389 = vadd.f32 %v4377, %v4384
  %v4390 = vadd.f32 %v4378, %v4384
  %v4391 = vadd.f32 %v4379, %v4384
  %v4392 = vmax.f32 %v4386, 0.0
  %v4393 = vmax.f32 %v4387, 0.0
  %v4394 = vmax.f32 %v4388, 0.0
  %v4395 = vmax.f32 %v4389, 0.0
  %v4396 = vmax.f32 %v4390, 0.0
  %v4397 = vmax.f32 %v4391, 0.0
  %v4398 = vmul.f32 %v4392, %v34
  %v4399 = vmul.f32 %v4393, %v38
  %v4400 = vmul.f32 %v4394, %v42
  %v4401 = vmul.f32 %v4395, %v46
  %v4402 = vmul.f32 %v4396, %v50
  %v4403 = vmul.f32 %v4397, %v54
  %4404 = vrot.lane.b32.xlu0 %v4398, 19
  %v4405 = vpop.permute.xlu0 %4404
  %4406 = vrot.lane.b32.xlu0 %v4399, 19
  %v4407 = vpop.permute.xlu0 %4406
  %4408 = vrot.lane.b32.xlu0 %v4400, 19
  %v4409 = vpop.permute.xlu0 %4408
  %4410 = vrot.lane.b32.xlu0 %v4401, 19
  %v4411 = vpop.permute.xlu0 %4410
  %4412 = vrot.lane.b32.xlu0 %v4402, 19
  %v4413 = vpop.permute.xlu0 %4412
  %4414 = vrot.lane.b32.xlu0 %v4403, 19
  %v4415 = vpop.permute.xlu0 %4414
  %v4416 = vsel %vm81, %v4413, %v4415
  %v4417 = vsel %vm81, %v4411, %v4413
  %v4418 = vsel %vm81, %v4409, %v4411
  %v4419 = vsel %vm81, %v4407, %v4409
  %v4420 = vsel %vm81, %v4405, %v4407
  %v4421 = vsel %vm81, %v4415, %v4405
  %v4422 = vld [vmem:[%s6] sm:$0xff]
  %4423 = vrot.lane.b32.xlu0 %v4398, 18
  %v4424 = vpop.permute.xlu0 %4423
  %4425 = vrot.lane.b32.xlu0 %v4399, 18
  %v4426 = vpop.permute.xlu0 %4425
  %4427 = vrot.lane.b32.xlu0 %v4400, 18
  %v4428 = vpop.permute.xlu0 %4427
  %4429 = vrot.lane.b32.xlu0 %v4401, 18
  %v4430 = vpop.permute.xlu0 %4429
  %4431 = vrot.lane.b32.xlu0 %v4402, 18
  %v4432 = vpop.permute.xlu0 %4431
  %4433 = vrot.lane.b32.xlu0 %v4403, 18
  %v4434 = vpop.permute.xlu0 %4433
  %v4435 = vsel %vm101, %v4432, %v4434
  %v4436 = vsel %vm101, %v4430, %v4432
  %v4437 = vsel %vm101, %v4428, %v4430
  %v4438 = vsel %vm101, %v4426, %v4428
  %v4439 = vsel %vm101, %v4424, %v4426
  %v4440 = vsel %vm101, %v4434, %v4424
  %4442 = vrot.lane.b32.xlu0 %v4422, 120
  %v4443 = vpop.permute.xlu0 %4442
  %v4444 = vsel %vm111, %v4443, 0
  %4446 = vmatprep.subr.mxu0 0.0
  %4447 = vmatpush1.msra.mxu0 0.0
  %4448 = vmatprep.subr.mxu0 0.0
  %4449 = vmatpush1.msra.mxu0 0.0
  %4450 = vmatprep.subr.mxu0 0.0
  %4451 = vmatpush1.msra.mxu0 0.0
  %4452 = vmatprep.subr.mxu0 0.0
  %4453 = vmatpush1.msra.mxu0 0.0
  %4454 = vmatprep.subr.mxu0 0.0
  %4455 = vmatpush1.msra.mxu0 0.0
  %4456 = vmatprep.subr.mxu0 0.0
  %4457 = vmatpush1.msra.mxu0 0.0
  %4458 = vmatprep.subr.mxu0 0.0
  %4459 = vmatpush1.msra.mxu0 0.0
  %4460 = vmatprep.subr.mxu0 0.0
  %4461 = vmatpush1.msra.mxu0 0.0
  %4462 = vmatprep.subr.mxu0 0.0
  %4463 = vmatpush1.msra.mxu0 0.0
  %4464 = vmatprep.subr.mxu0 0.0
  %4465 = vmatpush1.msra.mxu0 0.0
  %4466 = vmatprep.subr.mxu0 0.0
  %4467 = vmatpush1.msra.mxu0 0.0
  %4468 = vmatprep.subr.mxu0 0.0
  %4469 = vmatpush1.msra.mxu0 0.0
  %4470 = vmatprep.subr.mxu0 0.0
  %4471 = vmatpush1.msra.mxu0 0.0
  %4472 = vmatprep.subr.mxu0 0.0
  %4473 = vmatpush1.msra.mxu0 0.0
  %4474 = vmatprep.subr.mxu0 0.0
  %4475 = vmatpush1.msra.mxu0 0.0
  %4476 = vmatprep.subr.mxu0 %v4439
  %4477 = vmatpush1.msra.mxu0 %v4440
  %4478 = vmatprep.subr.mxu0 0.0
  %4479 = vmatpush2.msra.mxu0 0.0
  %4480 = vmatprep.subr.mxu0 0.0
  %4481 = vmatpush2.msra.mxu0 0.0
  %4482 = vmatprep.subr.mxu0 0.0
  %4483 = vmatpush2.msra.mxu0 0.0
  %4484 = vmatprep.subr.mxu0 0.0
  %4485 = vmatpush2.msra.mxu0 0.0
  %4486 = vmatprep.subr.mxu0 0.0
  %4487 = vmatpush2.msra.mxu0 0.0
  %4488 = vmatprep.subr.mxu0 0.0
  %4489 = vmatpush2.msra.mxu0 0.0
  %4490 = vmatprep.subr.mxu0 0.0
  %4491 = vmatpush2.msra.mxu0 0.0
  %4492 = vmatprep.subr.mxu0 0.0
  %4493 = vmatpush2.msra.mxu0 0.0
  %4494 = vmatprep.subr.mxu0 0.0
  %4495 = vmatpush2.msra.mxu0 0.0
  %4496 = vmatprep.subr.mxu0 0.0
  %4497 = vmatpush2.msra.mxu0 0.0
  %4498 = vmatprep.subr.mxu0 0.0
  %4499 = vmatpush2.msra.mxu0 0.0
  %4500 = vmatprep.subr.mxu0 0.0
  %4501 = vmatpush2.msra.mxu0 0.0
  %4502 = vmatprep.subr.mxu0 0.0
  %4503 = vmatpush2.msra.mxu0 0.0
  %4504 = vmatprep.subr.mxu0 0.0
  %4505 = vmatpush2.msra.mxu0 0.0
  %4506 = vmatprep.subr.mxu0 0.0
  %4507 = vmatpush2.msra.mxu0 0.0
  %4508 = vmatprep.subr.mxu0 0.0
  %4509 = vmatpush2.msra.mxu0 0.0
  %4510 = vmatprep.mubr.f32.mxu0 0.0
  %4511 = vmatmul.mubr.f32.gmra.mxu0 %v4444
  %v4512 = vpop.f32.mrf.mxu0
  %v4513 = vadd.f32 0.0, %v4512
  %v4514 = vpop.f32.mrf.mxu0
  %v4515 = vadd.f32 0.0, %v4514
  %4516 = vdwg.mxu0
  %4517 = vmatprep.subr.mxu0 0.0
  %4518 = vmatpush1.msra.mxu0 0.0
  %4519 = vmatprep.subr.mxu0 0.0
  %4520 = vmatpush1.msra.mxu0 0.0
  %4521 = vmatprep.subr.mxu0 0.0
  %4522 = vmatpush1.msra.mxu0 0.0
  %4523 = vmatprep.subr.mxu0 0.0
  %4524 = vmatpush1.msra.mxu0 0.0
  %4525 = vmatprep.subr.mxu0 0.0
  %4526 = vmatpush1.msra.mxu0 0.0
  %4527 = vmatprep.subr.mxu0 0.0
  %4528 = vmatpush1.msra.mxu0 0.0
  %4529 = vmatprep.subr.mxu0 0.0
  %4530 = vmatpush1.msra.mxu0 0.0
  %4531 = vmatprep.subr.mxu0 0.0
  %4532 = vmatpush1.msra.mxu0 0.0
  %4533 = vmatprep.subr.mxu0 0.0
  %4534 = vmatpush1.msra.mxu0 0.0
  %4535 = vmatprep.subr.mxu0 0.0
  %4536 = vmatpush1.msra.mxu0 0.0
  %4537 = vmatprep.subr.mxu0 0.0
  %4538 = vmatpush1.msra.mxu0 0.0
  %4539 = vmatprep.subr.mxu0 0.0
  %4540 = vmatpush1.msra.mxu0 0.0
  %4541 = vmatprep.subr.mxu0 0.0
  %4542 = vmatpush1.msra.mxu0 0.0
  %4543 = vmatprep.subr.mxu0 0.0
  %4544 = vmatpush1.msra.mxu0 0.0
  %4545 = vmatprep.subr.mxu0 0.0
  %4546 = vmatpush1.msra.mxu0 0.0
  %4547 = vmatprep.subr.mxu0 %v4437
  %4548 = vmatpush1.msra.mxu0 %v4438
  %4549 = vmatprep.subr.mxu0 0.0
  %4550 = vmatpush2.msra.mxu0 0.0
  %4551 = vmatprep.subr.mxu0 0.0
  %4552 = vmatpush2.msra.mxu0 0.0
  %4553 = vmatprep.subr.mxu0 0.0
  %4554 = vmatpush2.msra.mxu0 0.0
  %4555 = vmatprep.subr.mxu0 0.0
  %4556 = vmatpush2.msra.mxu0 0.0
  %4557 = vmatprep.subr.mxu0 0.0
  %4558 = vmatpush2.msra.mxu0 0.0
  %4559 = vmatprep.subr.mxu0 0.0
  %4560 = vmatpush2.msra.mxu0 0.0
  %4561 = vmatprep.subr.mxu0 0.0
  %4562 = vmatpush2.msra.mxu0 0.0
  %4563 = vmatprep.subr.mxu0 0.0
  %4564 = vmatpush2.msra.mxu0 0.0
  %4565 = vmatprep.subr.mxu0 0.0
  %4566 = vmatpush2.msra.mxu0 0.0
  %4567 = vmatprep.subr.mxu0 0.0
  %4568 = vmatpush2.msra.mxu0 0.0
  %4569 = vmatprep.subr.mxu0 0.0
  %4570 = vmatpush2.msra.mxu0 0.0
  %4571 = vmatprep.subr.mxu0 0.0
  %4572 = vmatpush2.msra.mxu0 0.0
  %4573 = vmatprep.subr.mxu0 0.0
  %4574 = vmatpush2.msra.mxu0 0.0
  %4575 = vmatprep.subr.mxu0 0.0
  %4576 = vmatpush2.msra.mxu0 0.0
  %4577 = vmatprep.subr.mxu0 0.0
  %4578 = vmatpush2.msra.mxu0 0.0
  %4579 = vmatprep.subr.mxu0 0.0
  %4580 = vmatpush2.msra.mxu0 0.0
  %4581 = vmatprep.mubr.f32.mxu0 0.0
  %4582 = vmatmul.mubr.f32.gmra.mxu0 %v4444
  %v4583 = vpop.f32.mrf.mxu0
  %v4584 = vadd.f32 0.0, %v4583
  %v4585 = vpop.f32.mrf.mxu0
  %v4586 = vadd.f32 0.0, %v4585
  %4587 = vdwg.mxu0
  %4588 = vmatprep.subr.mxu0 0.0
  %4589 = vmatpush1.msra.mxu0 0.0
  %4590 = vmatprep.subr.mxu0 0.0
  %4591 = vmatpush1.msra.mxu0 0.0
  %4592 = vmatprep.subr.mxu0 0.0
  %4593 = vmatpush1.msra.mxu0 0.0
  %4594 = vmatprep.subr.mxu0 0.0
  %4595 = vmatpush1.msra.mxu0 0.0
  %4596 = vmatprep.subr.mxu0 0.0
  %4597 = vmatpush1.msra.mxu0 0.0
  %4598 = vmatprep.subr.mxu0 0.0
  %4599 = vmatpush1.msra.mxu0 0.0
  %4600 = vmatprep.subr.mxu0 0.0
  %4601 = vmatpush1.msra.mxu0 0.0
  %4602 = vmatprep.subr.mxu0 0.0
  %4603 = vmatpush1.msra.mxu0 0.0
  %4604 = vmatprep.subr.mxu0 0.0
  %4605 = vmatpush1.msra.mxu0 0.0
  %4606 = vmatprep.subr.mxu0 0.0
  %4607 = vmatpush1.msra.mxu0 0.0
  %4608 = vmatprep.subr.mxu0 0.0
  %4609 = vmatpush1.msra.mxu0 0.0
  %4610 = vmatprep.subr.mxu0 0.0
  %4611 = vmatpush1.msra.mxu0 0.0
  %4612 = vmatprep.subr.mxu0 0.0
  %4613 = vmatpush1.msra.mxu0 0.0
  %4614 = vmatprep.subr.mxu0 0.0
  %4615 = vmatpush1.msra.mxu0 0.0
  %4616 = vmatprep.subr.mxu0 0.0
  %4617 = vmatpush1.msra.mxu0 0.0
  %4618 = vmatprep.subr.mxu0 %v4435
  %4619 = vmatpush1.msra.mxu0 %v4436
  %4620 = vmatprep.subr.mxu0 0.0
  %4621 = vmatpush2.msra.mxu0 0.0
  %4622 = vmatprep.subr.mxu0 0.0
  %4623 = vmatpush2.msra.mxu0 0.0
  %4624 = vmatprep.subr.mxu0 0.0
  %4625 = vmatpush2.msra.mxu0 0.0
  %4626 = vmatprep.subr.mxu0 0.0
  %4627 = vmatpush2.msra.mxu0 0.0
  %4628 = vmatprep.subr.mxu0 0.0
  %4629 = vmatpush2.msra.mxu0 0.0
  %4630 = vmatprep.subr.mxu0 0.0
  %4631 = vmatpush2.msra.mxu0 0.0
  %4632 = vmatprep.subr.mxu0 0.0
  %4633 = vmatpush2.msra.mxu0 0.0
  %4634 = vmatprep.subr.mxu0 0.0
  %4635 = vmatpush2.msra.mxu0 0.0
  %4636 = vmatprep.subr.mxu0 0.0
  %4637 = vmatpush2.msra.mxu0 0.0
  %4638 = vmatprep.subr.mxu0 0.0
  %4639 = vmatpush2.msra.mxu0 0.0
  %4640 = vmatprep.subr.mxu0 0.0
  %4641 = vmatpush2.msra.mxu0 0.0
  %4642 = vmatprep.subr.mxu0 0.0
  %4643 = vmatpush2.msra.mxu0 0.0
  %4644 = vmatprep.subr.mxu0 0.0
  %4645 = vmatpush2.msra.mxu0 0.0
  %4646 = vmatprep.subr.mxu0 0.0
  %4647 = vmatpush2.msra.mxu0 0.0
  %4648 = vmatprep.subr.mxu0 0.0
  %4649 = vmatpush2.msra.mxu0 0.0
  %4650 = vmatprep.subr.mxu0 0.0
  %4651 = vmatpush2.msra.mxu0 0.0
  %4652 = vmatprep.mubr.f32.mxu0 0.0
  %4653 = vmatmul.mubr.f32.gmra.mxu0 %v4444
  %v4654 = vpop.f32.mrf.mxu0
  %v4655 = vadd.f32 0.0, %v4654
  %v4656 = vpop.f32.mrf.mxu0
  %v4657 = vadd.f32 0.0, %v4656
  %4658 = vdwg.mxu0
  %v4659 = vsel %vm111, %v4422, 0
  %4661 = vmatprep.subr.mxu0 0.0
  %4662 = vmatpush1.msra.mxu0 0.0
  %4663 = vmatprep.subr.mxu0 0.0
  %4664 = vmatpush1.msra.mxu0 0.0
  %4665 = vmatprep.subr.mxu0 0.0
  %4666 = vmatpush1.msra.mxu0 0.0
  %4667 = vmatprep.subr.mxu0 0.0
  %4668 = vmatpush1.msra.mxu0 0.0
  %4669 = vmatprep.subr.mxu0 0.0
  %4670 = vmatpush1.msra.mxu0 0.0
  %4671 = vmatprep.subr.mxu0 0.0
  %4672 = vmatpush1.msra.mxu0 0.0
  %4673 = vmatprep.subr.mxu0 0.0
  %4674 = vmatpush1.msra.mxu0 0.0
  %4675 = vmatprep.subr.mxu0 0.0
  %4676 = vmatpush1.msra.mxu0 0.0
  %4677 = vmatprep.subr.mxu0 0.0
  %4678 = vmatpush1.msra.mxu0 0.0
  %4679 = vmatprep.subr.mxu0 0.0
  %4680 = vmatpush1.msra.mxu0 0.0
  %4681 = vmatprep.subr.mxu0 0.0
  %4682 = vmatpush1.msra.mxu0 0.0
  %4683 = vmatprep.subr.mxu0 0.0
  %4684 = vmatpush1.msra.mxu0 0.0
  %4685 = vmatprep.subr.mxu0 0.0
  %4686 = vmatpush1.msra.mxu0 0.0
  %4687 = vmatprep.subr.mxu0 0.0
  %4688 = vmatpush1.msra.mxu0 0.0
  %4689 = vmatprep.subr.mxu0 0.0
  %4690 = vmatpush1.msra.mxu0 0.0
  %4691 = vmatprep.subr.mxu0 %v4420
  %4692 = vmatpush1.msra.mxu0 %v4421
  %4693 = vmatprep.subr.mxu0 0.0
  %4694 = vmatpush2.msra.mxu0 0.0
  %4695 = vmatprep.subr.mxu0 0.0
  %4696 = vmatpush2.msra.mxu0 0.0
  %4697 = vmatprep.subr.mxu0 0.0
  %4698 = vmatpush2.msra.mxu0 0.0
  %4699 = vmatprep.subr.mxu0 0.0
  %4700 = vmatpush2.msra.mxu0 0.0
  %4701 = vmatprep.subr.mxu0 0.0
  %4702 = vmatpush2.msra.mxu0 0.0
  %4703 = vmatprep.subr.mxu0 0.0
  %4704 = vmatpush2.msra.mxu0 0.0
  %4705 = vmatprep.subr.mxu0 0.0
  %4706 = vmatpush2.msra.mxu0 0.0
  %4707 = vmatprep.subr.mxu0 0.0
  %4708 = vmatpush2.msra.mxu0 0.0
  %4709 = vmatprep.subr.mxu0 0.0
  %4710 = vmatpush2.msra.mxu0 0.0
  %4711 = vmatprep.subr.mxu0 0.0
  %4712 = vmatpush2.msra.mxu0 0.0
  %4713 = vmatprep.subr.mxu0 0.0
  %4714 = vmatpush2.msra.mxu0 0.0
  %4715 = vmatprep.subr.mxu0 0.0
  %4716 = vmatpush2.msra.mxu0 0.0
  %4717 = vmatprep.subr.mxu0 0.0
  %4718 = vmatpush2.msra.mxu0 0.0
  %4719 = vmatprep.subr.mxu0 0.0
  %4720 = vmatpush2.msra.mxu0 0.0
  %4721 = vmatprep.subr.mxu0 0.0
  %4722 = vmatpush2.msra.mxu0 0.0
  %4723 = vmatprep.subr.mxu0 0.0
  %4724 = vmatpush2.msra.mxu0 0.0
  %4725 = vmatprep.mubr.f32.mxu0 0.0
  %4726 = vmatmul.mubr.f32.gmra.mxu0 %v4659
  %v4727 = vpop.f32.mrf.mxu0
  %v4728 = vadd.f32 %v4513, %v4727
  %v4729 = vpop.f32.mrf.mxu0
  %v4730 = vadd.f32 %v4515, %v4729
  %4731 = vdwg.mxu0
  %4732 = vmatprep.subr.mxu0 0.0
  %4733 = vmatpush1.msra.mxu0 0.0
  %4734 = vmatprep.subr.mxu0 0.0
  %4735 = vmatpush1.msra.mxu0 0.0
  %4736 = vmatprep.subr.mxu0 0.0
  %4737 = vmatpush1.msra.mxu0 0.0
  %4738 = vmatprep.subr.mxu0 0.0
  %4739 = vmatpush1.msra.mxu0 0.0
  %4740 = vmatprep.subr.mxu0 0.0
  %4741 = vmatpush1.msra.mxu0 0.0
  %4742 = vmatprep.subr.mxu0 0.0
  %4743 = vmatpush1.msra.mxu0 0.0
  %4744 = vmatprep.subr.mxu0 0.0
  %4745 = vmatpush1.msra.mxu0 0.0
  %4746 = vmatprep.subr.mxu0 0.0
  %4747 = vmatpush1.msra.mxu0 0.0
  %4748 = vmatprep.subr.mxu0 0.0
  %4749 = vmatpush1.msra.mxu0 0.0
  %4750 = vmatprep.subr.mxu0 0.0
  %4751 = vmatpush1.msra.mxu0 0.0
  %4752 = vmatprep.subr.mxu0 0.0
  %4753 = vmatpush1.msra.mxu0 0.0
  %4754 = vmatprep.subr.mxu0 0.0
  %4755 = vmatpush1.msra.mxu0 0.0
  %4756 = vmatprep.subr.mxu0 0.0
  %4757 = vmatpush1.msra.mxu0 0.0
  %4758 = vmatprep.subr.mxu0 0.0
  %4759 = vmatpush1.msra.mxu0 0.0
  %4760 = vmatprep.subr.mxu0 0.0
  %4761 = vmatpush1.msra.mxu0 0.0
  %4762 = vmatprep.subr.mxu0 %v4418
  %4763 = vmatpush1.msra.mxu0 %v4419
  %4764 = vmatprep.subr.mxu0 0.0
  %4765 = vmatpush2.msra.mxu0 0.0
  %4766 = vmatprep.subr.mxu0 0.0
  %4767 = vmatpush2.msra.mxu0 0.0
  %4768 = vmatprep.subr.mxu0 0.0
  %4769 = vmatpush2.msra.mxu0 0.0
  %4770 = vmatprep.subr.mxu0 0.0
  %4771 = vmatpush2.msra.mxu0 0.0
  %4772 = vmatprep.subr.mxu0 0.0
  %4773 = vmatpush2.msra.mxu0 0.0
  %4774 = vmatprep.subr.mxu0 0.0
  %4775 = vmatpush2.msra.mxu0 0.0
  %4776 = vmatprep.subr.mxu0 0.0
  %4777 = vmatpush2.msra.mxu0 0.0
  %4778 = vmatprep.subr.mxu0 0.0
  %4779 = vmatpush2.msra.mxu0 0.0
  %4780 = vmatprep.subr.mxu0 0.0
  %4781 = vmatpush2.msra.mxu0 0.0
  %4782 = vmatprep.subr.mxu0 0.0
  %4783 = vmatpush2.msra.mxu0 0.0
  %4784 = vmatprep.subr.mxu0 0.0
  %4785 = vmatpush2.msra.mxu0 0.0
  %4786 = vmatprep.subr.mxu0 0.0
  %4787 = vmatpush2.msra.mxu0 0.0
  %4788 = vmatprep.subr.mxu0 0.0
  %4789 = vmatpush2.msra.mxu0 0.0
  %4790 = vmatprep.subr.mxu0 0.0
  %4791 = vmatpush2.msra.mxu0 0.0
  %4792 = vmatprep.subr.mxu0 0.0
  %4793 = vmatpush2.msra.mxu0 0.0
  %4794 = vmatprep.subr.mxu0 0.0
  %4795 = vmatpush2.msra.mxu0 0.0
  %4796 = vmatprep.mubr.f32.mxu0 0.0
  %4797 = vmatmul.mubr.f32.gmra.mxu0 %v4659
  %v4798 = vpop.f32.mrf.mxu0
  %v4799 = vadd.f32 %v4584, %v4798
  %v4800 = vpop.f32.mrf.mxu0
  %v4801 = vadd.f32 %v4586, %v4800
  %4802 = vdwg.mxu0
  %4803 = vmatprep.subr.mxu0 0.0
  %4804 = vmatpush1.msra.mxu0 0.0
  %4805 = vmatprep.subr.mxu0 0.0
  %4806 = vmatpush1.msra.mxu0 0.0
  %4807 = vmatprep.subr.mxu0 0.0
  %4808 = vmatpush1.msra.mxu0 0.0
  %4809 = vmatprep.subr.mxu0 0.0
  %4810 = vmatpush1.msra.mxu0 0.0
  %4811 = vmatprep.subr.mxu0 0.0
  %4812 = vmatpush1.msra.mxu0 0.0
  %4813 = vmatprep.subr.mxu0 0.0
  %4814 = vmatpush1.msra.mxu0 0.0
  %4815 = vmatprep.subr.mxu0 0.0
  %4816 = vmatpush1.msra.mxu0 0.0
  %4817 = vmatprep.subr.mxu0 0.0
  %4818 = vmatpush1.msra.mxu0 0.0
  %4819 = vmatprep.subr.mxu0 0.0
  %4820 = vmatpush1.msra.mxu0 0.0
  %4821 = vmatprep.subr.mxu0 0.0
  %4822 = vmatpush1.msra.mxu0 0.0
  %4823 = vmatprep.subr.mxu0 0.0
  %4824 = vmatpush1.msra.mxu0 0.0
  %4825 = vmatprep.subr.mxu0 0.0
  %4826 = vmatpush1.msra.mxu0 0.0
  %4827 = vmatprep.subr.mxu0 0.0
  %4828 = vmatpush1.msra.mxu0 0.0
  %4829 = vmatprep.subr.mxu0 0.0
  %4830 = vmatpush1.msra.mxu0 0.0
  %4831 = vmatprep.subr.mxu0 0.0
  %4832 = vmatpush1.msra.mxu0 0.0
  %4833 = vmatprep.subr.mxu0 %v4416
  %4834 = vmatpush1.msra.mxu0 %v4417
  %4835 = vmatprep.subr.mxu0 0.0
  %4836 = vmatpush2.msra.mxu0 0.0
  %4837 = vmatprep.subr.mxu0 0.0
  %4838 = vmatpush2.msra.mxu0 0.0
  %4839 = vmatprep.subr.mxu0 0.0
  %4840 = vmatpush2.msra.mxu0 0.0
  %4841 = vmatprep.subr.mxu0 0.0
  %4842 = vmatpush2.msra.mxu0 0.0
  %4843 = vmatprep.subr.mxu0 0.0
  %4844 = vmatpush2.msra.mxu0 0.0
  %4845 = vmatprep.subr.mxu0 0.0
  %4846 = vmatpush2.msra.mxu0 0.0
  %4847 = vmatprep.subr.mxu0 0.0
  %4848 = vmatpush2.msra.mxu0 0.0
  %4849 = vmatprep.subr.mxu0 0.0
  %4850 = vmatpush2.msra.mxu0 0.0
  %4851 = vmatprep.subr.mxu0 0.0
  %4852 = vmatpush2.msra.mxu0 0.0
  %4853 = vmatprep.subr.mxu0 0.0
  %4854 = vmatpush2.msra.mxu0 0.0
  %4855 = vmatprep.subr.mxu0 0.0
  %4856 = vmatpush2.msra.mxu0 0.0
  %4857 = vmatprep.subr.mxu0 0.0
  %4858 = vmatpush2.msra.mxu0 0.0
  %4859 = vmatprep.subr.mxu0 0.0
  %4860 = vmatpush2.msra.mxu0 0.0
  %4861 = vmatprep.subr.mxu0 0.0
  %4862 = vmatpush2.msra.mxu0 0.0
  %4863 = vmatprep.subr.mxu0 0.0
  %4864 = vmatpush2.msra.mxu0 0.0
  %4865 = vmatprep.subr.mxu0 0.0
  %4866 = vmatpush2.msra.mxu0 0.0
  %4867 = vmatprep.mubr.f32.mxu0 0.0
  %4868 = vmatmul.mubr.f32.gmra.mxu0 %v4659
  %v4869 = vpop.f32.mrf.mxu0
  %v4870 = vadd.f32 %v4655, %v4869
  %v4871 = vpop.f32.mrf.mxu0
  %v4872 = vadd.f32 %v4657, %v4871
  %4873 = vdwg.mxu0
  %4874 = vrot.lane.b32.xlu0 %v4398, 17
  %v4875 = vpop.permute.xlu0 %4874
  %4876 = vrot.lane.b32.xlu0 %v4399, 17
  %v4877 = vpop.permute.xlu0 %4876
  %4878 = vrot.lane.b32.xlu0 %v4400, 17
  %v4879 = vpop.permute.xlu0 %4878
  %4880 = vrot.lane.b32.xlu0 %v4401, 17
  %v4881 = vpop.permute.xlu0 %4880
  %4882 = vrot.lane.b32.xlu0 %v4402, 17
  %v4883 = vpop.permute.xlu0 %4882
  %4884 = vrot.lane.b32.xlu0 %v4403, 17
  %v4885 = vpop.permute.xlu0 %4884
  %v4886 = vsel %vm554, %v4883, %v4885
  %v4887 = vsel %vm554, %v4881, %v4883
  %v4888 = vsel %vm554, %v4879, %v4881
  %v4889 = vsel %vm554, %v4877, %v4879
  %v4890 = vsel %vm554, %v4875, %v4877
  %v4891 = vsel %vm554, %v4885, %v4875
  %4892 = vrot.lane.b32.xlu0 %v4422, 112
  %v4893 = vpop.permute.xlu0 %4892
  %v4894 = vsel %vm111, %v4893, 0
  %4896 = vmatprep.subr.mxu0 0.0
  %4897 = vmatpush1.msra.mxu0 0.0
  %4898 = vmatprep.subr.mxu0 0.0
  %4899 = vmatpush1.msra.mxu0 0.0
  %4900 = vmatprep.subr.mxu0 0.0
  %4901 = vmatpush1.msra.mxu0 0.0
  %4902 = vmatprep.subr.mxu0 0.0
  %4903 = vmatpush1.msra.mxu0 0.0
  %4904 = vmatprep.subr.mxu0 0.0
  %4905 = vmatpush1.msra.mxu0 0.0
  %4906 = vmatprep.subr.mxu0 0.0
  %4907 = vmatpush1.msra.mxu0 0.0
  %4908 = vmatprep.subr.mxu0 0.0
  %4909 = vmatpush1.msra.mxu0 0.0
  %4910 = vmatprep.subr.mxu0 0.0
  %4911 = vmatpush1.msra.mxu0 0.0
  %4912 = vmatprep.subr.mxu0 0.0
  %4913 = vmatpush1.msra.mxu0 0.0
  %4914 = vmatprep.subr.mxu0 0.0
  %4915 = vmatpush1.msra.mxu0 0.0
  %4916 = vmatprep.subr.mxu0 0.0
  %4917 = vmatpush1.msra.mxu0 0.0
  %4918 = vmatprep.subr.mxu0 0.0
  %4919 = vmatpush1.msra.mxu0 0.0
  %4920 = vmatprep.subr.mxu0 0.0
  %4921 = vmatpush1.msra.mxu0 0.0
  %4922 = vmatprep.subr.mxu0 0.0
  %4923 = vmatpush1.msra.mxu0 0.0
  %4924 = vmatprep.subr.mxu0 0.0
  %4925 = vmatpush1.msra.mxu0 0.0
  %4926 = vmatprep.subr.mxu0 %v4890
  %4927 = vmatpush1.msra.mxu0 %v4891
  %4928 = vmatprep.subr.mxu0 0.0
  %4929 = vmatpush2.msra.mxu0 0.0
  %4930 = vmatprep.subr.mxu0 0.0
  %4931 = vmatpush2.msra.mxu0 0.0
  %4932 = vmatprep.subr.mxu0 0.0
  %4933 = vmatpush2.msra.mxu0 0.0
  %4934 = vmatprep.subr.mxu0 0.0
  %4935 = vmatpush2.msra.mxu0 0.0
  %4936 = vmatprep.subr.mxu0 0.0
  %4937 = vmatpush2.msra.mxu0 0.0
  %4938 = vmatprep.subr.mxu0 0.0
  %4939 = vmatpush2.msra.mxu0 0.0
  %4940 = vmatprep.subr.mxu0 0.0
  %4941 = vmatpush2.msra.mxu0 0.0
  %4942 = vmatprep.subr.mxu0 0.0
  %4943 = vmatpush2.msra.mxu0 0.0
  %4944 = vmatprep.subr.mxu0 0.0
  %4945 = vmatpush2.msra.mxu0 0.0
  %4946 = vmatprep.subr.mxu0 0.0
  %4947 = vmatpush2.msra.mxu0 0.0
  %4948 = vmatprep.subr.mxu0 0.0
  %4949 = vmatpush2.msra.mxu0 0.0
  %4950 = vmatprep.subr.mxu0 0.0
  %4951 = vmatpush2.msra.mxu0 0.0
  %4952 = vmatprep.subr.mxu0 0.0
  %4953 = vmatpush2.msra.mxu0 0.0
  %4954 = vmatprep.subr.mxu0 0.0
  %4955 = vmatpush2.msra.mxu0 0.0
  %4956 = vmatprep.subr.mxu0 0.0
  %4957 = vmatpush2.msra.mxu0 0.0
  %4958 = vmatprep.subr.mxu0 0.0
  %4959 = vmatpush2.msra.mxu0 0.0
  %4960 = vmatprep.mubr.f32.mxu0 0.0
  %4961 = vmatmul.mubr.f32.gmra.mxu0 %v4894
  %v4962 = vpop.f32.mrf.mxu0
  %v4963 = vadd.f32 0.0, %v4962
  %v4964 = vpop.f32.mrf.mxu0
  %v4965 = vadd.f32 0.0, %v4964
  %4966 = vdwg.mxu0
  %4967 = vmatprep.subr.mxu0 0.0
  %4968 = vmatpush1.msra.mxu0 0.0
  %4969 = vmatprep.subr.mxu0 0.0
  %4970 = vmatpush1.msra.mxu0 0.0
  %4971 = vmatprep.subr.mxu0 0.0
  %4972 = vmatpush1.msra.mxu0 0.0
  %4973 = vmatprep.subr.mxu0 0.0
  %4974 = vmatpush1.msra.mxu0 0.0
  %4975 = vmatprep.subr.mxu0 0.0
  %4976 = vmatpush1.msra.mxu0 0.0
  %4977 = vmatprep.subr.mxu0 0.0
  %4978 = vmatpush1.msra.mxu0 0.0
  %4979 = vmatprep.subr.mxu0 0.0
  %4980 = vmatpush1.msra.mxu0 0.0
  %4981 = vmatprep.subr.mxu0 0.0
  %4982 = vmatpush1.msra.mxu0 0.0
  %4983 = vmatprep.subr.mxu0 0.0
  %4984 = vmatpush1.msra.mxu0 0.0
  %4985 = vmatprep.subr.mxu0 0.0
  %4986 = vmatpush1.msra.mxu0 0.0
  %4987 = vmatprep.subr.mxu0 0.0
  %4988 = vmatpush1.msra.mxu0 0.0
  %4989 = vmatprep.subr.mxu0 0.0
  %4990 = vmatpush1.msra.mxu0 0.0
  %4991 = vmatprep.subr.mxu0 0.0
  %4992 = vmatpush1.msra.mxu0 0.0
  %4993 = vmatprep.subr.mxu0 0.0
  %4994 = vmatpush1.msra.mxu0 0.0
  %4995 = vmatprep.subr.mxu0 0.0
  %4996 = vmatpush1.msra.mxu0 0.0
  %4997 = vmatprep.subr.mxu0 %v4888
  %4998 = vmatpush1.msra.mxu0 %v4889
  %4999 = vmatprep.subr.mxu0 0.0
  %5000 = vmatpush2.msra.mxu0 0.0
  %5001 = vmatprep.subr.mxu0 0.0
  %5002 = vmatpush2.msra.mxu0 0.0
  %5003 = vmatprep.subr.mxu0 0.0
  %5004 = vmatpush2.msra.mxu0 0.0
  %5005 = vmatprep.subr.mxu0 0.0
  %5006 = vmatpush2.msra.mxu0 0.0
  %5007 = vmatprep.subr.mxu0 0.0
  %5008 = vmatpush2.msra.mxu0 0.0
  %5009 = vmatprep.subr.mxu0 0.0
  %5010 = vmatpush2.msra.mxu0 0.0
  %5011 = vmatprep.subr.mxu0 0.0
  %5012 = vmatpush2.msra.mxu0 0.0
  %5013 = vmatprep.subr.mxu0 0.0
  %5014 = vmatpush2.msra.mxu0 0.0
  %5015 = vmatprep.subr.mxu0 0.0
  %5016 = vmatpush2.msra.mxu0 0.0
  %5017 = vmatprep.subr.mxu0 0.0
  %5018 = vmatpush2.msra.mxu0 0.0
  %5019 = vmatprep.subr.mxu0 0.0
  %5020 = vmatpush2.msra.mxu0 0.0
  %5021 = vmatprep.subr.mxu0 0.0
  %5022 = vmatpush2.msra.mxu0 0.0
  %5023 = vmatprep.subr.mxu0 0.0
  %5024 = vmatpush2.msra.mxu0 0.0
  %5025 = vmatprep.subr.mxu0 0.0
  %5026 = vmatpush2.msra.mxu0 0.0
  %5027 = vmatprep.subr.mxu0 0.0
  %5028 = vmatpush2.msra.mxu0 0.0
  %5029 = vmatprep.subr.mxu0 0.0
  %5030 = vmatpush2.msra.mxu0 0.0
  %5031 = vmatprep.mubr.f32.mxu0 0.0
  %5032 = vmatmul.mubr.f32.gmra.mxu0 %v4894
  %v5033 = vpop.f32.mrf.mxu0
  %v5034 = vadd.f32 0.0, %v5033
  %v5035 = vpop.f32.mrf.mxu0
  %v5036 = vadd.f32 0.0, %v5035
  %5037 = vdwg.mxu0
  %5038 = vmatprep.subr.mxu0 0.0
  %5039 = vmatpush1.msra.mxu0 0.0
  %5040 = vmatprep.subr.mxu0 0.0
  %5041 = vmatpush1.msra.mxu0 0.0
  %5042 = vmatprep.subr.mxu0 0.0
  %5043 = vmatpush1.msra.mxu0 0.0
  %5044 = vmatprep.subr.mxu0 0.0
  %5045 = vmatpush1.msra.mxu0 0.0
  %5046 = vmatprep.subr.mxu0 0.0
  %5047 = vmatpush1.msra.mxu0 0.0
  %5048 = vmatprep.subr.mxu0 0.0
  %5049 = vmatpush1.msra.mxu0 0.0
  %5050 = vmatprep.subr.mxu0 0.0
  %5051 = vmatpush1.msra.mxu0 0.0
  %5052 = vmatprep.subr.mxu0 0.0
  %5053 = vmatpush1.msra.mxu0 0.0
  %5054 = vmatprep.subr.mxu0 0.0
  %5055 = vmatpush1.msra.mxu0 0.0
  %5056 = vmatprep.subr.mxu0 0.0
  %5057 = vmatpush1.msra.mxu0 0.0
  %5058 = vmatprep.subr.mxu0 0.0
  %5059 = vmatpush1.msra.mxu0 0.0
  %5060 = vmatprep.subr.mxu0 0.0
  %5061 = vmatpush1.msra.mxu0 0.0
  %5062 = vmatprep.subr.mxu0 0.0
  %5063 = vmatpush1.msra.mxu0 0.0
  %5064 = vmatprep.subr.mxu0 0.0
  %5065 = vmatpush1.msra.mxu0 0.0
  %5066 = vmatprep.subr.mxu0 0.0
  %5067 = vmatpush1.msra.mxu0 0.0
  %5068 = vmatprep.subr.mxu0 %v4886
  %5069 = vmatpush1.msra.mxu0 %v4887
  %5070 = vmatprep.subr.mxu0 0.0
  %5071 = vmatpush2.msra.mxu0 0.0
  %5072 = vmatprep.subr.mxu0 0.0
  %5073 = vmatpush2.msra.mxu0 0.0
  %5074 = vmatprep.subr.mxu0 0.0
  %5075 = vmatpush2.msra.mxu0 0.0
  %5076 = vmatprep.subr.mxu0 0.0
  %5077 = vmatpush2.msra.mxu0 0.0
  %5078 = vmatprep.subr.mxu0 0.0
  %5079 = vmatpush2.msra.mxu0 0.0
  %5080 = vmatprep.subr.mxu0 0.0
  %5081 = vmatpush2.msra.mxu0 0.0
  %5082 = vmatprep.subr.mxu0 0.0
  %5083 = vmatpush2.msra.mxu0 0.0
  %5084 = vmatprep.subr.mxu0 0.0
  %5085 = vmatpush2.msra.mxu0 0.0
  %5086 = vmatprep.subr.mxu0 0.0
  %5087 = vmatpush2.msra.mxu0 0.0
  %5088 = vmatprep.subr.mxu0 0.0
  %5089 = vmatpush2.msra.mxu0 0.0
  %5090 = vmatprep.subr.mxu0 0.0
  %5091 = vmatpush2.msra.mxu0 0.0
  %5092 = vmatprep.subr.mxu0 0.0
  %5093 = vmatpush2.msra.mxu0 0.0
  %5094 = vmatprep.subr.mxu0 0.0
  %5095 = vmatpush2.msra.mxu0 0.0
  %5096 = vmatprep.subr.mxu0 0.0
  %5097 = vmatpush2.msra.mxu0 0.0
  %5098 = vmatprep.subr.mxu0 0.0
  %5099 = vmatpush2.msra.mxu0 0.0
  %5100 = vmatprep.subr.mxu0 0.0
  %5101 = vmatpush2.msra.mxu0 0.0
  %5102 = vmatprep.mubr.f32.mxu0 0.0
  %5103 = vmatmul.mubr.f32.gmra.mxu0 %v4894
  %v5104 = vpop.f32.mrf.mxu0
  %v5105 = vadd.f32 0.0, %v5104
  %v5106 = vpop.f32.mrf.mxu0
  %v5107 = vadd.f32 0.0, %v5106
  %5108 = vdwg.mxu0
  %v5109 = vadd.f32 %v4728, %v4963
  %v5110 = vadd.f32 %v4730, %v4965
  %v5111 = vadd.f32 %v4799, %v5034
  %v5112 = vadd.f32 %v4801, %v5036
  %v5113 = vadd.f32 %v4870, %v5105
  %v5114 = vadd.f32 %v4872, %v5107
  %5115 = vrot.lane.b32.xlu0 %v4398, 1
  %v5116 = vpop.permute.xlu0 %5115
  %5117 = vrot.lane.b32.xlu0 %v4399, 1
  %v5118 = vpop.permute.xlu0 %5117
  %5119 = vrot.lane.b32.xlu0 %v4400, 1
  %v5120 = vpop.permute.xlu0 %5119
  %5121 = vrot.lane.b32.xlu0 %v4401, 1
  %v5122 = vpop.permute.xlu0 %5121
  %5123 = vrot.lane.b32.xlu0 %v4402, 1
  %v5124 = vpop.permute.xlu0 %5123
  %5125 = vrot.lane.b32.xlu0 %v4403, 1
  %v5126 = vpop.permute.xlu0 %5125
  %v5127 = vsel %vm796, %v5124, %v5126
  %v5128 = vsel %vm796, %v5122, %v5124
  %v5129 = vsel %vm796, %v5120, %v5122
  %v5130 = vsel %vm796, %v5118, %v5120
  %v5131 = vsel %vm796, %v5116, %v5118
  %v5132 = vsel %vm796, %v5126, %v5116
  %5133 = vrot.lane.b32.xlu0 %v4422, 104
  %v5134 = vpop.permute.xlu0 %5133
  %v5135 = vsel %vm111, %v5134, 0
  %5137 = vmatprep.subr.mxu0 0.0
  %5138 = vmatpush1.msra.mxu0 0.0
  %5139 = vmatprep.subr.mxu0 0.0
  %5140 = vmatpush1.msra.mxu0 0.0
  %5141 = vmatprep.subr.mxu0 0.0
  %5142 = vmatpush1.msra.mxu0 0.0
  %5143 = vmatprep.subr.mxu0 0.0
  %5144 = vmatpush1.msra.mxu0 0.0
  %5145 = vmatprep.subr.mxu0 0.0
  %5146 = vmatpush1.msra.mxu0 0.0
  %5147 = vmatprep.subr.mxu0 0.0
  %5148 = vmatpush1.msra.mxu0 0.0
  %5149 = vmatprep.subr.mxu0 0.0
  %5150 = vmatpush1.msra.mxu0 0.0
  %5151 = vmatprep.subr.mxu0 0.0
  %5152 = vmatpush1.msra.mxu0 0.0
  %5153 = vmatprep.subr.mxu0 0.0
  %5154 = vmatpush1.msra.mxu0 0.0
  %5155 = vmatprep.subr.mxu0 0.0
  %5156 = vmatpush1.msra.mxu0 0.0
  %5157 = vmatprep.subr.mxu0 0.0
  %5158 = vmatpush1.msra.mxu0 0.0
  %5159 = vmatprep.subr.mxu0 0.0
  %5160 = vmatpush1.msra.mxu0 0.0
  %5161 = vmatprep.subr.mxu0 0.0
  %5162 = vmatpush1.msra.mxu0 0.0
  %5163 = vmatprep.subr.mxu0 0.0
  %5164 = vmatpush1.msra.mxu0 0.0
  %5165 = vmatprep.subr.mxu0 0.0
  %5166 = vmatpush1.msra.mxu0 0.0
  %5167 = vmatprep.subr.mxu0 %v5131
  %5168 = vmatpush1.msra.mxu0 %v5132
  %5169 = vmatprep.subr.mxu0 0.0
  %5170 = vmatpush2.msra.mxu0 0.0
  %5171 = vmatprep.subr.mxu0 0.0
  %5172 = vmatpush2.msra.mxu0 0.0
  %5173 = vmatprep.subr.mxu0 0.0
  %5174 = vmatpush2.msra.mxu0 0.0
  %5175 = vmatprep.subr.mxu0 0.0
  %5176 = vmatpush2.msra.mxu0 0.0
  %5177 = vmatprep.subr.mxu0 0.0
  %5178 = vmatpush2.msra.mxu0 0.0
  %5179 = vmatprep.subr.mxu0 0.0
  %5180 = vmatpush2.msra.mxu0 0.0
  %5181 = vmatprep.subr.mxu0 0.0
  %5182 = vmatpush2.msra.mxu0 0.0
  %5183 = vmatprep.subr.mxu0 0.0
  %5184 = vmatpush2.msra.mxu0 0.0
  %5185 = vmatprep.subr.mxu0 0.0
  %5186 = vmatpush2.msra.mxu0 0.0
  %5187 = vmatprep.subr.mxu0 0.0
  %5188 = vmatpush2.msra.mxu0 0.0
  %5189 = vmatprep.subr.mxu0 0.0
  %5190 = vmatpush2.msra.mxu0 0.0
  %5191 = vmatprep.subr.mxu0 0.0
  %5192 = vmatpush2.msra.mxu0 0.0
  %5193 = vmatprep.subr.mxu0 0.0
  %5194 = vmatpush2.msra.mxu0 0.0
  %5195 = vmatprep.subr.mxu0 0.0
  %5196 = vmatpush2.msra.mxu0 0.0
  %5197 = vmatprep.subr.mxu0 0.0
  %5198 = vmatpush2.msra.mxu0 0.0
  %5199 = vmatprep.subr.mxu0 0.0
  %5200 = vmatpush2.msra.mxu0 0.0
  %5201 = vmatprep.mubr.f32.mxu0 0.0
  %5202 = vmatmul.mubr.f32.gmra.mxu0 %v5135
  %v5203 = vpop.f32.mrf.mxu0
  %v5204 = vadd.f32 0.0, %v5203
  %v5205 = vpop.f32.mrf.mxu0
  %v5206 = vadd.f32 0.0, %v5205
  %5207 = vdwg.mxu0
  %5208 = vmatprep.subr.mxu0 0.0
  %5209 = vmatpush1.msra.mxu0 0.0
  %5210 = vmatprep.subr.mxu0 0.0
  %5211 = vmatpush1.msra.mxu0 0.0
  %5212 = vmatprep.subr.mxu0 0.0
  %5213 = vmatpush1.msra.mxu0 0.0
  %5214 = vmatprep.subr.mxu0 0.0
  %5215 = vmatpush1.msra.mxu0 0.0
  %5216 = vmatprep.subr.mxu0 0.0
  %5217 = vmatpush1.msra.mxu0 0.0
  %5218 = vmatprep.subr.mxu0 0.0
  %5219 = vmatpush1.msra.mxu0 0.0
  %5220 = vmatprep.subr.mxu0 0.0
  %5221 = vmatpush1.msra.mxu0 0.0
  %5222 = vmatprep.subr.mxu0 0.0
  %5223 = vmatpush1.msra.mxu0 0.0
  %5224 = vmatprep.subr.mxu0 0.0
  %5225 = vmatpush1.msra.mxu0 0.0
  %5226 = vmatprep.subr.mxu0 0.0
  %5227 = vmatpush1.msra.mxu0 0.0
  %5228 = vmatprep.subr.mxu0 0.0
  %5229 = vmatpush1.msra.mxu0 0.0
  %5230 = vmatprep.subr.mxu0 0.0
  %5231 = vmatpush1.msra.mxu0 0.0
  %5232 = vmatprep.subr.mxu0 0.0
  %5233 = vmatpush1.msra.mxu0 0.0
  %5234 = vmatprep.subr.mxu0 0.0
  %5235 = vmatpush1.msra.mxu0 0.0
  %5236 = vmatprep.subr.mxu0 0.0
  %5237 = vmatpush1.msra.mxu0 0.0
  %5238 = vmatprep.subr.mxu0 %v5129
  %5239 = vmatpush1.msra.mxu0 %v5130
  %5240 = vmatprep.subr.mxu0 0.0
  %5241 = vmatpush2.msra.mxu0 0.0
  %5242 = vmatprep.subr.mxu0 0.0
  %5243 = vmatpush2.msra.mxu0 0.0
  %5244 = vmatprep.subr.mxu0 0.0
  %5245 = vmatpush2.msra.mxu0 0.0
  %5246 = vmatprep.subr.mxu0 0.0
  %5247 = vmatpush2.msra.mxu0 0.0
  %5248 = vmatprep.subr.mxu0 0.0
  %5249 = vmatpush2.msra.mxu0 0.0
  %5250 = vmatprep.subr.mxu0 0.0
  %5251 = vmatpush2.msra.mxu0 0.0
  %5252 = vmatprep.subr.mxu0 0.0
  %5253 = vmatpush2.msra.mxu0 0.0
  %5254 = vmatprep.subr.mxu0 0.0
  %5255 = vmatpush2.msra.mxu0 0.0
  %5256 = vmatprep.subr.mxu0 0.0
  %5257 = vmatpush2.msra.mxu0 0.0
  %5258 = vmatprep.subr.mxu0 0.0
  %5259 = vmatpush2.msra.mxu0 0.0
  %5260 = vmatprep.subr.mxu0 0.0
  %5261 = vmatpush2.msra.mxu0 0.0
  %5262 = vmatprep.subr.mxu0 0.0
  %5263 = vmatpush2.msra.mxu0 0.0
  %5264 = vmatprep.subr.mxu0 0.0
  %5265 = vmatpush2.msra.mxu0 0.0
  %5266 = vmatprep.subr.mxu0 0.0
  %5267 = vmatpush2.msra.mxu0 0.0
  %5268 = vmatprep.subr.mxu0 0.0
  %5269 = vmatpush2.msra.mxu0 0.0
  %5270 = vmatprep.subr.mxu0 0.0
  %5271 = vmatpush2.msra.mxu0 0.0
  %5272 = vmatprep.mubr.f32.mxu0 0.0
  %5273 = vmatmul.mubr.f32.gmra.mxu0 %v5135
  %v5274 = vpop.f32.mrf.mxu0
  %v5275 = vadd.f32 0.0, %v5274
  %v5276 = vpop.f32.mrf.mxu0
  %v5277 = vadd.f32 0.0, %v5276
  %5278 = vdwg.mxu0
  %5279 = vmatprep.subr.mxu0 0.0
  %5280 = vmatpush1.msra.mxu0 0.0
  %5281 = vmatprep.subr.mxu0 0.0
  %5282 = vmatpush1.msra.mxu0 0.0
  %5283 = vmatprep.subr.mxu0 0.0
  %5284 = vmatpush1.msra.mxu0 0.0
  %5285 = vmatprep.subr.mxu0 0.0
  %5286 = vmatpush1.msra.mxu0 0.0
  %5287 = vmatprep.subr.mxu0 0.0
  %5288 = vmatpush1.msra.mxu0 0.0
  %5289 = vmatprep.subr.mxu0 0.0
  %5290 = vmatpush1.msra.mxu0 0.0
  %5291 = vmatprep.subr.mxu0 0.0
  %5292 = vmatpush1.msra.mxu0 0.0
  %5293 = vmatprep.subr.mxu0 0.0
  %5294 = vmatpush1.msra.mxu0 0.0
  %5295 = vmatprep.subr.mxu0 0.0
  %5296 = vmatpush1.msra.mxu0 0.0
  %5297 = vmatprep.subr.mxu0 0.0
  %5298 = vmatpush1.msra.mxu0 0.0
  %5299 = vmatprep.subr.mxu0 0.0
  %5300 = vmatpush1.msra.mxu0 0.0
  %5301 = vmatprep.subr.mxu0 0.0
  %5302 = vmatpush1.msra.mxu0 0.0
  %5303 = vmatprep.subr.mxu0 0.0
  %5304 = vmatpush1.msra.mxu0 0.0
  %5305 = vmatprep.subr.mxu0 0.0
  %5306 = vmatpush1.msra.mxu0 0.0
  %5307 = vmatprep.subr.mxu0 0.0
  %5308 = vmatpush1.msra.mxu0 0.0
  %5309 = vmatprep.subr.mxu0 %v5127
  %5310 = vmatpush1.msra.mxu0 %v5128
  %5311 = vmatprep.subr.mxu0 0.0
  %5312 = vmatpush2.msra.mxu0 0.0
  %5313 = vmatprep.subr.mxu0 0.0
  %5314 = vmatpush2.msra.mxu0 0.0
  %5315 = vmatprep.subr.mxu0 0.0
  %5316 = vmatpush2.msra.mxu0 0.0
  %5317 = vmatprep.subr.mxu0 0.0
  %5318 = vmatpush2.msra.mxu0 0.0
  %5319 = vmatprep.subr.mxu0 0.0
  %5320 = vmatpush2.msra.mxu0 0.0
  %5321 = vmatprep.subr.mxu0 0.0
  %5322 = vmatpush2.msra.mxu0 0.0
  %5323 = vmatprep.subr.mxu0 0.0
  %5324 = vmatpush2.msra.mxu0 0.0
  %5325 = vmatprep.subr.mxu0 0.0
  %5326 = vmatpush2.msra.mxu0 0.0
  %5327 = vmatprep.subr.mxu0 0.0
  %5328 = vmatpush2.msra.mxu0 0.0
  %5329 = vmatprep.subr.mxu0 0.0
  %5330 = vmatpush2.msra.mxu0 0.0
  %5331 = vmatprep.subr.mxu0 0.0
  %5332 = vmatpush2.msra.mxu0 0.0
  %5333 = vmatprep.subr.mxu0 0.0
  %5334 = vmatpush2.msra.mxu0 0.0
  %5335 = vmatprep.subr.mxu0 0.0
  %5336 = vmatpush2.msra.mxu0 0.0
  %5337 = vmatprep.subr.mxu0 0.0
  %5338 = vmatpush2.msra.mxu0 0.0
  %5339 = vmatprep.subr.mxu0 0.0
  %5340 = vmatpush2.msra.mxu0 0.0
  %5341 = vmatprep.subr.mxu0 0.0
  %5342 = vmatpush2.msra.mxu0 0.0
  %5343 = vmatprep.mubr.f32.mxu0 0.0
  %5344 = vmatmul.mubr.f32.gmra.mxu0 %v5135
  %v5345 = vpop.f32.mrf.mxu0
  %v5346 = vadd.f32 0.0, %v5345
  %v5347 = vpop.f32.mrf.mxu0
  %v5348 = vadd.f32 0.0, %v5347
  %5349 = vdwg.mxu0
  %v5350 = vadd.f32 %v5109, %v5204
  %v5351 = vadd.f32 %v5110, %v5206
  %v5352 = vadd.f32 %v5111, %v5275
  %v5353 = vadd.f32 %v5112, %v5277
  %v5354 = vadd.f32 %v5113, %v5346
  %v5355 = vadd.f32 %v5114, %v5348
  %5356 = vrot.lane.b32.xlu0 %v4422, 96
  %v5357 = vpop.permute.xlu0 %5356
  %v5358 = vsel %vm111, %v5357, 0
  %5360 = vmatprep.subr.mxu0 0.0
  %5361 = vmatpush1.msra.mxu0 0.0
  %5362 = vmatprep.subr.mxu0 0.0
  %5363 = vmatpush1.msra.mxu0 0.0
  %5364 = vmatprep.subr.mxu0 0.0
  %5365 = vmatpush1.msra.mxu0 0.0
  %5366 = vmatprep.subr.mxu0 0.0
  %5367 = vmatpush1.msra.mxu0 0.0
  %5368 = vmatprep.subr.mxu0 0.0
  %5369 = vmatpush1.msra.mxu0 0.0
  %5370 = vmatprep.subr.mxu0 0.0
  %5371 = vmatpush1.msra.mxu0 0.0
  %5372 = vmatprep.subr.mxu0 0.0
  %5373 = vmatpush1.msra.mxu0 0.0
  %5374 = vmatprep.subr.mxu0 0.0
  %5375 = vmatpush1.msra.mxu0 0.0
  %5376 = vmatprep.subr.mxu0 0.0
  %5377 = vmatpush1.msra.mxu0 0.0
  %5378 = vmatprep.subr.mxu0 0.0
  %5379 = vmatpush1.msra.mxu0 0.0
  %5380 = vmatprep.subr.mxu0 0.0
  %5381 = vmatpush1.msra.mxu0 0.0
  %5382 = vmatprep.subr.mxu0 0.0
  %5383 = vmatpush1.msra.mxu0 0.0
  %5384 = vmatprep.subr.mxu0 0.0
  %5385 = vmatpush1.msra.mxu0 0.0
  %5386 = vmatprep.subr.mxu0 0.0
  %5387 = vmatpush1.msra.mxu0 0.0
  %5388 = vmatprep.subr.mxu0 0.0
  %5389 = vmatpush1.msra.mxu0 0.0
  %5390 = vmatprep.subr.mxu0 %v4399
  %5391 = vmatpush1.msra.mxu0 %v4398
  %5392 = vmatprep.subr.mxu0 0.0
  %5393 = vmatpush2.msra.mxu0 0.0
  %5394 = vmatprep.subr.mxu0 0.0
  %5395 = vmatpush2.msra.mxu0 0.0
  %5396 = vmatprep.subr.mxu0 0.0
  %5397 = vmatpush2.msra.mxu0 0.0
  %5398 = vmatprep.subr.mxu0 0.0
  %5399 = vmatpush2.msra.mxu0 0.0
  %5400 = vmatprep.subr.mxu0 0.0
  %5401 = vmatpush2.msra.mxu0 0.0
  %5402 = vmatprep.subr.mxu0 0.0
  %5403 = vmatpush2.msra.mxu0 0.0
  %5404 = vmatprep.subr.mxu0 0.0
  %5405 = vmatpush2.msra.mxu0 0.0
  %5406 = vmatprep.subr.mxu0 0.0
  %5407 = vmatpush2.msra.mxu0 0.0
  %5408 = vmatprep.subr.mxu0 0.0
  %5409 = vmatpush2.msra.mxu0 0.0
  %5410 = vmatprep.subr.mxu0 0.0
  %5411 = vmatpush2.msra.mxu0 0.0
  %5412 = vmatprep.subr.mxu0 0.0
  %5413 = vmatpush2.msra.mxu0 0.0
  %5414 = vmatprep.subr.mxu0 0.0
  %5415 = vmatpush2.msra.mxu0 0.0
  %5416 = vmatprep.subr.mxu0 0.0
  %5417 = vmatpush2.msra.mxu0 0.0
  %5418 = vmatprep.subr.mxu0 0.0
  %5419 = vmatpush2.msra.mxu0 0.0
  %5420 = vmatprep.subr.mxu0 0.0
  %5421 = vmatpush2.msra.mxu0 0.0
  %5422 = vmatprep.subr.mxu0 0.0
  %5423 = vmatpush2.msra.mxu0 0.0
  %5424 = vmatprep.mubr.f32.mxu0 0.0
  %5425 = vmatmul.mubr.f32.gmra.mxu0 %v5358
  %v5426 = vpop.f32.mrf.mxu0
  %v5427 = vadd.f32 0.0, %v5426
  %v5428 = vpop.f32.mrf.mxu0
  %v5429 = vadd.f32 0.0, %v5428
  %5430 = vdwg.mxu0
  %5431 = vmatprep.subr.mxu0 0.0
  %5432 = vmatpush1.msra.mxu0 0.0
  %5433 = vmatprep.subr.mxu0 0.0
  %5434 = vmatpush1.msra.mxu0 0.0
  %5435 = vmatprep.subr.mxu0 0.0
  %5436 = vmatpush1.msra.mxu0 0.0
  %5437 = vmatprep.subr.mxu0 0.0
  %5438 = vmatpush1.msra.mxu0 0.0
  %5439 = vmatprep.subr.mxu0 0.0
  %5440 = vmatpush1.msra.mxu0 0.0
  %5441 = vmatprep.subr.mxu0 0.0
  %5442 = vmatpush1.msra.mxu0 0.0
  %5443 = vmatprep.subr.mxu0 0.0
  %5444 = vmatpush1.msra.mxu0 0.0
  %5445 = vmatprep.subr.mxu0 0.0
  %5446 = vmatpush1.msra.mxu0 0.0
  %5447 = vmatprep.subr.mxu0 0.0
  %5448 = vmatpush1.msra.mxu0 0.0
  %5449 = vmatprep.subr.mxu0 0.0
  %5450 = vmatpush1.msra.mxu0 0.0
  %5451 = vmatprep.subr.mxu0 0.0
  %5452 = vmatpush1.msra.mxu0 0.0
  %5453 = vmatprep.subr.mxu0 0.0
  %5454 = vmatpush1.msra.mxu0 0.0
  %5455 = vmatprep.subr.mxu0 0.0
  %5456 = vmatpush1.msra.mxu0 0.0
  %5457 = vmatprep.subr.mxu0 0.0
  %5458 = vmatpush1.msra.mxu0 0.0
  %5459 = vmatprep.subr.mxu0 0.0
  %5460 = vmatpush1.msra.mxu0 0.0
  %5461 = vmatprep.subr.mxu0 %v4401
  %5462 = vmatpush1.msra.mxu0 %v4400
  %5463 = vmatprep.subr.mxu0 0.0
  %5464 = vmatpush2.msra.mxu0 0.0
  %5465 = vmatprep.subr.mxu0 0.0
  %5466 = vmatpush2.msra.mxu0 0.0
  %5467 = vmatprep.subr.mxu0 0.0
  %5468 = vmatpush2.msra.mxu0 0.0
  %5469 = vmatprep.subr.mxu0 0.0
  %5470 = vmatpush2.msra.mxu0 0.0
  %5471 = vmatprep.subr.mxu0 0.0
  %5472 = vmatpush2.msra.mxu0 0.0
  %5473 = vmatprep.subr.mxu0 0.0
  %5474 = vmatpush2.msra.mxu0 0.0
  %5475 = vmatprep.subr.mxu0 0.0
  %5476 = vmatpush2.msra.mxu0 0.0
  %5477 = vmatprep.subr.mxu0 0.0
  %5478 = vmatpush2.msra.mxu0 0.0
  %5479 = vmatprep.subr.mxu0 0.0
  %5480 = vmatpush2.msra.mxu0 0.0
  %5481 = vmatprep.subr.mxu0 0.0
  %5482 = vmatpush2.msra.mxu0 0.0
  %5483 = vmatprep.subr.mxu0 0.0
  %5484 = vmatpush2.msra.mxu0 0.0
  %5485 = vmatprep.subr.mxu0 0.0
  %5486 = vmatpush2.msra.mxu0 0.0
  %5487 = vmatprep.subr.mxu0 0.0
  %5488 = vmatpush2.msra.mxu0 0.0
  %5489 = vmatprep.subr.mxu0 0.0
  %5490 = vmatpush2.msra.mxu0 0.0
  %5491 = vmatprep.subr.mxu0 0.0
  %5492 = vmatpush2.msra.mxu0 0.0
  %5493 = vmatprep.subr.mxu0 0.0
  %5494 = vmatpush2.msra.mxu0 0.0
  %5495 = vmatprep.mubr.f32.mxu0 0.0
  %5496 = vmatmul.mubr.f32.gmra.mxu0 %v5358
  %v5497 = vpop.f32.mrf.mxu0
  %v5498 = vadd.f32 0.0, %v5497
  %v5499 = vpop.f32.mrf.mxu0
  %v5500 = vadd.f32 0.0, %v5499
  %5501 = vdwg.mxu0
  %5502 = vmatprep.subr.mxu0 0.0
  %5503 = vmatpush1.msra.mxu0 0.0
  %5504 = vmatprep.subr.mxu0 0.0
  %5505 = vmatpush1.msra.mxu0 0.0
  %5506 = vmatprep.subr.mxu0 0.0
  %5507 = vmatpush1.msra.mxu0 0.0
  %5508 = vmatprep.subr.mxu0 0.0
  %5509 = vmatpush1.msra.mxu0 0.0
  %5510 = vmatprep.subr.mxu0 0.0
  %5511 = vmatpush1.msra.mxu0 0.0
  %5512 = vmatprep.subr.mxu0 0.0
  %5513 = vmatpush1.msra.mxu0 0.0
  %5514 = vmatprep.subr.mxu0 0.0
  %5515 = vmatpush1.msra.mxu0 0.0
  %5516 = vmatprep.subr.mxu0 0.0
  %5517 = vmatpush1.msra.mxu0 0.0
  %5518 = vmatprep.subr.mxu0 0.0
  %5519 = vmatpush1.msra.mxu0 0.0
  %5520 = vmatprep.subr.mxu0 0.0
  %5521 = vmatpush1.msra.mxu0 0.0
  %5522 = vmatprep.subr.mxu0 0.0
  %5523 = vmatpush1.msra.mxu0 0.0
  %5524 = vmatprep.subr.mxu0 0.0
  %5525 = vmatpush1.msra.mxu0 0.0
  %5526 = vmatprep.subr.mxu0 0.0
  %5527 = vmatpush1.msra.mxu0 0.0
  %5528 = vmatprep.subr.mxu0 0.0
  %5529 = vmatpush1.msra.mxu0 0.0
  %5530 = vmatprep.subr.mxu0 0.0
  %5531 = vmatpush1.msra.mxu0 0.0
  %5532 = vmatprep.subr.mxu0 %v4403
  %5533 = vmatpush1.msra.mxu0 %v4402
  %5534 = vmatprep.subr.mxu0 0.0
  %5535 = vmatpush2.msra.mxu0 0.0
  %5536 = vmatprep.subr.mxu0 0.0
  %5537 = vmatpush2.msra.mxu0 0.0
  %5538 = vmatprep.subr.mxu0 0.0
  %5539 = vmatpush2.msra.mxu0 0.0
  %5540 = vmatprep.subr.mxu0 0.0
  %5541 = vmatpush2.msra.mxu0 0.0
  %5542 = vmatprep.subr.mxu0 0.0
  %5543 = vmatpush2.msra.mxu0 0.0
  %5544 = vmatprep.subr.mxu0 0.0
  %5545 = vmatpush2.msra.mxu0 0.0
  %5546 = vmatprep.subr.mxu0 0.0
  %5547 = vmatpush2.msra.mxu0 0.0
  %5548 = vmatprep.subr.mxu0 0.0
  %5549 = vmatpush2.msra.mxu0 0.0
  %5550 = vmatprep.subr.mxu0 0.0
  %5551 = vmatpush2.msra.mxu0 0.0
  %5552 = vmatprep.subr.mxu0 0.0
  %5553 = vmatpush2.msra.mxu0 0.0
  %5554 = vmatprep.subr.mxu0 0.0
  %5555 = vmatpush2.msra.mxu0 0.0
  %5556 = vmatprep.subr.mxu0 0.0
  %5557 = vmatpush2.msra.mxu0 0.0
  %5558 = vmatprep.subr.mxu0 0.0
  %5559 = vmatpush2.msra.mxu0 0.0
  %5560 = vmatprep.subr.mxu0 0.0
  %5561 = vmatpush2.msra.mxu0 0.0
  %5562 = vmatprep.subr.mxu0 0.0
  %5563 = vmatpush2.msra.mxu0 0.0
  %5564 = vmatprep.subr.mxu0 0.0
  %5565 = vmatpush2.msra.mxu0 0.0
  %5566 = vmatprep.mubr.f32.mxu0 0.0
  %5567 = vmatmul.mubr.f32.gmra.mxu0 %v5358
  %v5568 = vpop.f32.mrf.mxu0
  %v5569 = vadd.f32 0.0, %v5568
  %v5570 = vpop.f32.mrf.mxu0
  %v5571 = vadd.f32 0.0, %v5570
  %5572 = vdwg.mxu0
  %v5573 = vadd.f32 %v5350, %v5427
  %v5574 = vadd.f32 %v5351, %v5429
  %v5575 = vadd.f32 %v5352, %v5498
  %v5576 = vadd.f32 %v5353, %v5500
  %v5577 = vadd.f32 %v5354, %v5569
  %v5578 = vadd.f32 %v5355, %v5571
  %5579 = vrot.lane.b32.xlu0 %v4398, 127
  %v5580 = vpop.permute.xlu0 %5579
  %5581 = vrot.lane.b32.xlu0 %v4399, 127
  %v5582 = vpop.permute.xlu0 %5581
  %5583 = vrot.lane.b32.xlu0 %v4400, 127
  %v5584 = vpop.permute.xlu0 %5583
  %5585 = vrot.lane.b32.xlu0 %v4401, 127
  %v5586 = vpop.permute.xlu0 %5585
  %5587 = vrot.lane.b32.xlu0 %v4402, 127
  %v5588 = vpop.permute.xlu0 %5587
  %5589 = vrot.lane.b32.xlu0 %v4403, 127
  %v5590 = vpop.permute.xlu0 %5589
  %v5591 = vsel %vm1261, %v5588, %v5590
  %v5592 = vsel %vm1261, %v5586, %v5588
  %v5593 = vsel %vm1261, %v5584, %v5586
  %v5594 = vsel %vm1261, %v5582, %v5584
  %v5595 = vsel %vm1261, %v5580, %v5582
  %v5596 = vsel %vm1261, %v5590, %v5580
  %5597 = vrot.lane.b32.xlu0 %v4422, 88
  %v5598 = vpop.permute.xlu0 %5597
  %v5599 = vsel %vm111, %v5598, 0
  %5601 = vmatprep.subr.mxu0 0.0
  %5602 = vmatpush1.msra.mxu0 0.0
  %5603 = vmatprep.subr.mxu0 0.0
  %5604 = vmatpush1.msra.mxu0 0.0
  %5605 = vmatprep.subr.mxu0 0.0
  %5606 = vmatpush1.msra.mxu0 0.0
  %5607 = vmatprep.subr.mxu0 0.0
  %5608 = vmatpush1.msra.mxu0 0.0
  %5609 = vmatprep.subr.mxu0 0.0
  %5610 = vmatpush1.msra.mxu0 0.0
  %5611 = vmatprep.subr.mxu0 0.0
  %5612 = vmatpush1.msra.mxu0 0.0
  %5613 = vmatprep.subr.mxu0 0.0
  %5614 = vmatpush1.msra.mxu0 0.0
  %5615 = vmatprep.subr.mxu0 0.0
  %5616 = vmatpush1.msra.mxu0 0.0
  %5617 = vmatprep.subr.mxu0 0.0
  %5618 = vmatpush1.msra.mxu0 0.0
  %5619 = vmatprep.subr.mxu0 0.0
  %5620 = vmatpush1.msra.mxu0 0.0
  %5621 = vmatprep.subr.mxu0 0.0
  %5622 = vmatpush1.msra.mxu0 0.0
  %5623 = vmatprep.subr.mxu0 0.0
  %5624 = vmatpush1.msra.mxu0 0.0
  %5625 = vmatprep.subr.mxu0 0.0
  %5626 = vmatpush1.msra.mxu0 0.0
  %5627 = vmatprep.subr.mxu0 0.0
  %5628 = vmatpush1.msra.mxu0 0.0
  %5629 = vmatprep.subr.mxu0 0.0
  %5630 = vmatpush1.msra.mxu0 0.0
  %5631 = vmatprep.subr.mxu0 %v5594
  %5632 = vmatpush1.msra.mxu0 %v5595
  %5633 = vmatprep.subr.mxu0 0.0
  %5634 = vmatpush2.msra.mxu0 0.0
  %5635 = vmatprep.subr.mxu0 0.0
  %5636 = vmatpush2.msra.mxu0 0.0
  %5637 = vmatprep.subr.mxu0 0.0
  %5638 = vmatpush2.msra.mxu0 0.0
  %5639 = vmatprep.subr.mxu0 0.0
  %5640 = vmatpush2.msra.mxu0 0.0
  %5641 = vmatprep.subr.mxu0 0.0
  %5642 = vmatpush2.msra.mxu0 0.0
  %5643 = vmatprep.subr.mxu0 0.0
  %5644 = vmatpush2.msra.mxu0 0.0
  %5645 = vmatprep.subr.mxu0 0.0
  %5646 = vmatpush2.msra.mxu0 0.0
  %5647 = vmatprep.subr.mxu0 0.0
  %5648 = vmatpush2.msra.mxu0 0.0
  %5649 = vmatprep.subr.mxu0 0.0
  %5650 = vmatpush2.msra.mxu0 0.0
  %5651 = vmatprep.subr.mxu0 0.0
  %5652 = vmatpush2.msra.mxu0 0.0
  %5653 = vmatprep.subr.mxu0 0.0
  %5654 = vmatpush2.msra.mxu0 0.0
  %5655 = vmatprep.subr.mxu0 0.0
  %5656 = vmatpush2.msra.mxu0 0.0
  %5657 = vmatprep.subr.mxu0 0.0
  %5658 = vmatpush2.msra.mxu0 0.0
  %5659 = vmatprep.subr.mxu0 0.0
  %5660 = vmatpush2.msra.mxu0 0.0
  %5661 = vmatprep.subr.mxu0 0.0
  %5662 = vmatpush2.msra.mxu0 0.0
  %5663 = vmatprep.subr.mxu0 0.0
  %5664 = vmatpush2.msra.mxu0 0.0
  %5665 = vmatprep.mubr.f32.mxu0 0.0
  %5666 = vmatmul.mubr.f32.gmra.mxu0 %v5599
  %v5667 = vpop.f32.mrf.mxu0
  %v5668 = vadd.f32 0.0, %v5667
  %v5669 = vpop.f32.mrf.mxu0
  %v5670 = vadd.f32 0.0, %v5669
  %5671 = vdwg.mxu0
  %5672 = vmatprep.subr.mxu0 0.0
  %5673 = vmatpush1.msra.mxu0 0.0
  %5674 = vmatprep.subr.mxu0 0.0
  %5675 = vmatpush1.msra.mxu0 0.0
  %5676 = vmatprep.subr.mxu0 0.0
  %5677 = vmatpush1.msra.mxu0 0.0
  %5678 = vmatprep.subr.mxu0 0.0
  %5679 = vmatpush1.msra.mxu0 0.0
  %5680 = vmatprep.subr.mxu0 0.0
  %5681 = vmatpush1.msra.mxu0 0.0
  %5682 = vmatprep.subr.mxu0 0.0
  %5683 = vmatpush1.msra.mxu0 0.0
  %5684 = vmatprep.subr.mxu0 0.0
  %5685 = vmatpush1.msra.mxu0 0.0
  %5686 = vmatprep.subr.mxu0 0.0
  %5687 = vmatpush1.msra.mxu0 0.0
  %5688 = vmatprep.subr.mxu0 0.0
  %5689 = vmatpush1.msra.mxu0 0.0
  %5690 = vmatprep.subr.mxu0 0.0
  %5691 = vmatpush1.msra.mxu0 0.0
  %5692 = vmatprep.subr.mxu0 0.0
  %5693 = vmatpush1.msra.mxu0 0.0
  %5694 = vmatprep.subr.mxu0 0.0
  %5695 = vmatpush1.msra.mxu0 0.0
  %5696 = vmatprep.subr.mxu0 0.0
  %5697 = vmatpush1.msra.mxu0 0.0
  %5698 = vmatprep.subr.mxu0 0.0
  %5699 = vmatpush1.msra.mxu0 0.0
  %5700 = vmatprep.subr.mxu0 0.0
  %5701 = vmatpush1.msra.mxu0 0.0
  %5702 = vmatprep.subr.mxu0 %v5592
  %5703 = vmatpush1.msra.mxu0 %v5593
  %5704 = vmatprep.subr.mxu0 0.0
  %5705 = vmatpush2.msra.mxu0 0.0
  %5706 = vmatprep.subr.mxu0 0.0
  %5707 = vmatpush2.msra.mxu0 0.0
  %5708 = vmatprep.subr.mxu0 0.0
  %5709 = vmatpush2.msra.mxu0 0.0
  %5710 = vmatprep.subr.mxu0 0.0
  %5711 = vmatpush2.msra.mxu0 0.0
  %5712 = vmatprep.subr.mxu0 0.0
  %5713 = vmatpush2.msra.mxu0 0.0
  %5714 = vmatprep.subr.mxu0 0.0
  %5715 = vmatpush2.msra.mxu0 0.0
  %5716 = vmatprep.subr.mxu0 0.0
  %5717 = vmatpush2.msra.mxu0 0.0
  %5718 = vmatprep.subr.mxu0 0.0
  %5719 = vmatpush2.msra.mxu0 0.0
  %5720 = vmatprep.subr.mxu0 0.0
  %5721 = vmatpush2.msra.mxu0 0.0
  %5722 = vmatprep.subr.mxu0 0.0
  %5723 = vmatpush2.msra.mxu0 0.0
  %5724 = vmatprep.subr.mxu0 0.0
  %5725 = vmatpush2.msra.mxu0 0.0
  %5726 = vmatprep.subr.mxu0 0.0
  %5727 = vmatpush2.msra.mxu0 0.0
  %5728 = vmatprep.subr.mxu0 0.0
  %5729 = vmatpush2.msra.mxu0 0.0
  %5730 = vmatprep.subr.mxu0 0.0
  %5731 = vmatpush2.msra.mxu0 0.0
  %5732 = vmatprep.subr.mxu0 0.0
  %5733 = vmatpush2.msra.mxu0 0.0
  %5734 = vmatprep.subr.mxu0 0.0
  %5735 = vmatpush2.msra.mxu0 0.0
  %5736 = vmatprep.mubr.f32.mxu0 0.0
  %5737 = vmatmul.mubr.f32.gmra.mxu0 %v5599
  %v5738 = vpop.f32.mrf.mxu0
  %v5739 = vadd.f32 0.0, %v5738
  %v5740 = vpop.f32.mrf.mxu0
  %v5741 = vadd.f32 0.0, %v5740
  %5742 = vdwg.mxu0
  %5743 = vmatprep.subr.mxu0 0.0
  %5744 = vmatpush1.msra.mxu0 0.0
  %5745 = vmatprep.subr.mxu0 0.0
  %5746 = vmatpush1.msra.mxu0 0.0
  %5747 = vmatprep.subr.mxu0 0.0
  %5748 = vmatpush1.msra.mxu0 0.0
  %5749 = vmatprep.subr.mxu0 0.0
  %5750 = vmatpush1.msra.mxu0 0.0
  %5751 = vmatprep.subr.mxu0 0.0
  %5752 = vmatpush1.msra.mxu0 0.0
  %5753 = vmatprep.subr.mxu0 0.0
  %5754 = vmatpush1.msra.mxu0 0.0
  %5755 = vmatprep.subr.mxu0 0.0
  %5756 = vmatpush1.msra.mxu0 0.0
  %5757 = vmatprep.subr.mxu0 0.0
  %5758 = vmatpush1.msra.mxu0 0.0
  %5759 = vmatprep.subr.mxu0 0.0
  %5760 = vmatpush1.msra.mxu0 0.0
  %5761 = vmatprep.subr.mxu0 0.0
  %5762 = vmatpush1.msra.mxu0 0.0
  %5763 = vmatprep.subr.mxu0 0.0
  %5764 = vmatpush1.msra.mxu0 0.0
  %5765 = vmatprep.subr.mxu0 0.0
  %5766 = vmatpush1.msra.mxu0 0.0
  %5767 = vmatprep.subr.mxu0 0.0
  %5768 = vmatpush1.msra.mxu0 0.0
  %5769 = vmatprep.subr.mxu0 0.0
  %5770 = vmatpush1.msra.mxu0 0.0
  %5771 = vmatprep.subr.mxu0 0.0
  %5772 = vmatpush1.msra.mxu0 0.0
  %5773 = vmatprep.subr.mxu0 %v5596
  %5774 = vmatpush1.msra.mxu0 %v5591
  %5775 = vmatprep.subr.mxu0 0.0
  %5776 = vmatpush2.msra.mxu0 0.0
  %5777 = vmatprep.subr.mxu0 0.0
  %5778 = vmatpush2.msra.mxu0 0.0
  %5779 = vmatprep.subr.mxu0 0.0
  %5780 = vmatpush2.msra.mxu0 0.0
  %5781 = vmatprep.subr.mxu0 0.0
  %5782 = vmatpush2.msra.mxu0 0.0
  %5783 = vmatprep.subr.mxu0 0.0
  %5784 = vmatpush2.msra.mxu0 0.0
  %5785 = vmatprep.subr.mxu0 0.0
  %5786 = vmatpush2.msra.mxu0 0.0
  %5787 = vmatprep.subr.mxu0 0.0
  %5788 = vmatpush2.msra.mxu0 0.0
  %5789 = vmatprep.subr.mxu0 0.0
  %5790 = vmatpush2.msra.mxu0 0.0
  %5791 = vmatprep.subr.mxu0 0.0
  %5792 = vmatpush2.msra.mxu0 0.0
  %5793 = vmatprep.subr.mxu0 0.0
  %5794 = vmatpush2.msra.mxu0 0.0
  %5795 = vmatprep.subr.mxu0 0.0
  %5796 = vmatpush2.msra.mxu0 0.0
  %5797 = vmatprep.subr.mxu0 0.0
  %5798 = vmatpush2.msra.mxu0 0.0
  %5799 = vmatprep.subr.mxu0 0.0
  %5800 = vmatpush2.msra.mxu0 0.0
  %5801 = vmatprep.subr.mxu0 0.0
  %5802 = vmatpush2.msra.mxu0 0.0
  %5803 = vmatprep.subr.mxu0 0.0
  %5804 = vmatpush2.msra.mxu0 0.0
  %5805 = vmatprep.subr.mxu0 0.0
  %5806 = vmatpush2.msra.mxu0 0.0
  %5807 = vmatprep.mubr.f32.mxu0 0.0
  %5808 = vmatmul.mubr.f32.gmra.mxu0 %v5599
  %v5809 = vpop.f32.mrf.mxu0
  %v5810 = vadd.f32 0.0, %v5809
  %v5811 = vpop.f32.mrf.mxu0
  %v5812 = vadd.f32 0.0, %v5811
  %5813 = vdwg.mxu0
  %v5814 = vadd.f32 %v5573, %v5668
  %v5815 = vadd.f32 %v5574, %v5670
  %v5816 = vadd.f32 %v5575, %v5739
  %v5817 = vadd.f32 %v5576, %v5741
  %v5818 = vadd.f32 %v5577, %v5810
  %v5819 = vadd.f32 %v5578, %v5812
  %5820 = vrot.lane.b32.xlu0 %v4398, 111
  %v5821 = vpop.permute.xlu0 %5820
  %5822 = vrot.lane.b32.xlu0 %v4399, 111
  %v5823 = vpop.permute.xlu0 %5822
  %5824 = vrot.lane.b32.xlu0 %v4400, 111
  %v5825 = vpop.permute.xlu0 %5824
  %5826 = vrot.lane.b32.xlu0 %v4401, 111
  %v5827 = vpop.permute.xlu0 %5826
  %5828 = vrot.lane.b32.xlu0 %v4402, 111
  %v5829 = vpop.permute.xlu0 %5828
  %5830 = vrot.lane.b32.xlu0 %v4403, 111
  %v5831 = vpop.permute.xlu0 %5830
  %v5832 = vsel %vm1503, %v5829, %v5831
  %v5833 = vsel %vm1503, %v5827, %v5829
  %v5834 = vsel %vm1503, %v5825, %v5827
  %v5835 = vsel %vm1503, %v5823, %v5825
  %v5836 = vsel %vm1503, %v5821, %v5823
  %v5837 = vsel %vm1503, %v5831, %v5821
  %5838 = vrot.lane.b32.xlu0 %v4422, 80
  %v5839 = vpop.permute.xlu0 %5838
  %v5840 = vsel %vm111, %v5839, 0
  %5842 = vmatprep.subr.mxu0 0.0
  %5843 = vmatpush1.msra.mxu0 0.0
  %5844 = vmatprep.subr.mxu0 0.0
  %5845 = vmatpush1.msra.mxu0 0.0
  %5846 = vmatprep.subr.mxu0 0.0
  %5847 = vmatpush1.msra.mxu0 0.0
  %5848 = vmatprep.subr.mxu0 0.0
  %5849 = vmatpush1.msra.mxu0 0.0
  %5850 = vmatprep.subr.mxu0 0.0
  %5851 = vmatpush1.msra.mxu0 0.0
  %5852 = vmatprep.subr.mxu0 0.0
  %5853 = vmatpush1.msra.mxu0 0.0
  %5854 = vmatprep.subr.mxu0 0.0
  %5855 = vmatpush1.msra.mxu0 0.0
  %5856 = vmatprep.subr.mxu0 0.0
  %5857 = vmatpush1.msra.mxu0 0.0
  %5858 = vmatprep.subr.mxu0 0.0
  %5859 = vmatpush1.msra.mxu0 0.0
  %5860 = vmatprep.subr.mxu0 0.0
  %5861 = vmatpush1.msra.mxu0 0.0
  %5862 = vmatprep.subr.mxu0 0.0
  %5863 = vmatpush1.msra.mxu0 0.0
  %5864 = vmatprep.subr.mxu0 0.0
  %5865 = vmatpush1.msra.mxu0 0.0
  %5866 = vmatprep.subr.mxu0 0.0
  %5867 = vmatpush1.msra.mxu0 0.0
  %5868 = vmatprep.subr.mxu0 0.0
  %5869 = vmatpush1.msra.mxu0 0.0
  %5870 = vmatprep.subr.mxu0 0.0
  %5871 = vmatpush1.msra.mxu0 0.0
  %5872 = vmatprep.subr.mxu0 %v5835
  %5873 = vmatpush1.msra.mxu0 %v5836
  %5874 = vmatprep.subr.mxu0 0.0
  %5875 = vmatpush2.msra.mxu0 0.0
  %5876 = vmatprep.subr.mxu0 0.0
  %5877 = vmatpush2.msra.mxu0 0.0
  %5878 = vmatprep.subr.mxu0 0.0
  %5879 = vmatpush2.msra.mxu0 0.0
  %5880 = vmatprep.subr.mxu0 0.0
  %5881 = vmatpush2.msra.mxu0 0.0
  %5882 = vmatprep.subr.mxu0 0.0
  %5883 = vmatpush2.msra.mxu0 0.0
  %5884 = vmatprep.subr.mxu0 0.0
  %5885 = vmatpush2.msra.mxu0 0.0
  %5886 = vmatprep.subr.mxu0 0.0
  %5887 = vmatpush2.msra.mxu0 0.0
  %5888 = vmatprep.subr.mxu0 0.0
  %5889 = vmatpush2.msra.mxu0 0.0
  %5890 = vmatprep.subr.mxu0 0.0
  %5891 = vmatpush2.msra.mxu0 0.0
  %5892 = vmatprep.subr.mxu0 0.0
  %5893 = vmatpush2.msra.mxu0 0.0
  %5894 = vmatprep.subr.mxu0 0.0
  %5895 = vmatpush2.msra.mxu0 0.0
  %5896 = vmatprep.subr.mxu0 0.0
  %5897 = vmatpush2.msra.mxu0 0.0
  %5898 = vmatprep.subr.mxu0 0.0
  %5899 = vmatpush2.msra.mxu0 0.0
  %5900 = vmatprep.subr.mxu0 0.0
  %5901 = vmatpush2.msra.mxu0 0.0
  %5902 = vmatprep.subr.mxu0 0.0
  %5903 = vmatpush2.msra.mxu0 0.0
  %5904 = vmatprep.subr.mxu0 0.0
  %5905 = vmatpush2.msra.mxu0 0.0
  %5906 = vmatprep.mubr.f32.mxu0 0.0
  %5907 = vmatmul.mubr.f32.gmra.mxu0 %v5840
  %v5908 = vpop.f32.mrf.mxu0
  %v5909 = vadd.f32 0.0, %v5908
  %v5910 = vpop.f32.mrf.mxu0
  %v5911 = vadd.f32 0.0, %v5910
  %5912 = vdwg.mxu0
  %5913 = vmatprep.subr.mxu0 0.0
  %5914 = vmatpush1.msra.mxu0 0.0
  %5915 = vmatprep.subr.mxu0 0.0
  %5916 = vmatpush1.msra.mxu0 0.0
  %5917 = vmatprep.subr.mxu0 0.0
  %5918 = vmatpush1.msra.mxu0 0.0
  %5919 = vmatprep.subr.mxu0 0.0
  %5920 = vmatpush1.msra.mxu0 0.0
  %5921 = vmatprep.subr.mxu0 0.0
  %5922 = vmatpush1.msra.mxu0 0.0
  %5923 = vmatprep.subr.mxu0 0.0
  %5924 = vmatpush1.msra.mxu0 0.0
  %5925 = vmatprep.subr.mxu0 0.0
  %5926 = vmatpush1.msra.mxu0 0.0
  %5927 = vmatprep.subr.mxu0 0.0
  %5928 = vmatpush1.msra.mxu0 0.0
  %5929 = vmatprep.subr.mxu0 0.0
  %5930 = vmatpush1.msra.mxu0 0.0
  %5931 = vmatprep.subr.mxu0 0.0
  %5932 = vmatpush1.msra.mxu0 0.0
  %5933 = vmatprep.subr.mxu0 0.0
  %5934 = vmatpush1.msra.mxu0 0.0
  %5935 = vmatprep.subr.mxu0 0.0
  %5936 = vmatpush1.msra.mxu0 0.0
  %5937 = vmatprep.subr.mxu0 0.0
  %5938 = vmatpush1.msra.mxu0 0.0
  %5939 = vmatprep.subr.mxu0 0.0
  %5940 = vmatpush1.msra.mxu0 0.0
  %5941 = vmatprep.subr.mxu0 0.0
  %5942 = vmatpush1.msra.mxu0 0.0
  %5943 = vmatprep.subr.mxu0 %v5833
  %5944 = vmatpush1.msra.mxu0 %v5834
  %5945 = vmatprep.subr.mxu0 0.0
  %5946 = vmatpush2.msra.mxu0 0.0
  %5947 = vmatprep.subr.mxu0 0.0
  %5948 = vmatpush2.msra.mxu0 0.0
  %5949 = vmatprep.subr.mxu0 0.0
  %5950 = vmatpush2.msra.mxu0 0.0
  %5951 = vmatprep.subr.mxu0 0.0
  %5952 = vmatpush2.msra.mxu0 0.0
  %5953 = vmatprep.subr.mxu0 0.0
  %5954 = vmatpush2.msra.mxu0 0.0
  %5955 = vmatprep.subr.mxu0 0.0
  %5956 = vmatpush2.msra.mxu0 0.0
  %5957 = vmatprep.subr.mxu0 0.0
  %5958 = vmatpush2.msra.mxu0 0.0
  %5959 = vmatprep.subr.mxu0 0.0
  %5960 = vmatpush2.msra.mxu0 0.0
  %5961 = vmatprep.subr.mxu0 0.0
  %5962 = vmatpush2.msra.mxu0 0.0
  %5963 = vmatprep.subr.mxu0 0.0
  %5964 = vmatpush2.msra.mxu0 0.0
  %5965 = vmatprep.subr.mxu0 0.0
  %5966 = vmatpush2.msra.mxu0 0.0
  %5967 = vmatprep.subr.mxu0 0.0
  %5968 = vmatpush2.msra.mxu0 0.0
  %5969 = vmatprep.subr.mxu0 0.0
  %5970 = vmatpush2.msra.mxu0 0.0
  %5971 = vmatprep.subr.mxu0 0.0
  %5972 = vmatpush2.msra.mxu0 0.0
  %5973 = vmatprep.subr.mxu0 0.0
  %5974 = vmatpush2.msra.mxu0 0.0
  %5975 = vmatprep.subr.mxu0 0.0
  %5976 = vmatpush2.msra.mxu0 0.0
  %5977 = vmatprep.mubr.f32.mxu0 0.0
  %5978 = vmatmul.mubr.f32.gmra.mxu0 %v5840
  %v5979 = vpop.f32.mrf.mxu0
  %v5980 = vadd.f32 0.0, %v5979
  %v5981 = vpop.f32.mrf.mxu0
  %v5982 = vadd.f32 0.0, %v5981
  %5983 = vdwg.mxu0
  %5984 = vmatprep.subr.mxu0 0.0
  %5985 = vmatpush1.msra.mxu0 0.0
  %5986 = vmatprep.subr.mxu0 0.0
  %5987 = vmatpush1.msra.mxu0 0.0
  %5988 = vmatprep.subr.mxu0 0.0
  %5989 = vmatpush1.msra.mxu0 0.0
  %5990 = vmatprep.subr.mxu0 0.0
  %5991 = vmatpush1.msra.mxu0 0.0
  %5992 = vmatprep.subr.mxu0 0.0
  %5993 = vmatpush1.msra.mxu0 0.0
  %5994 = vmatprep.subr.mxu0 0.0
  %5995 = vmatpush1.msra.mxu0 0.0
  %5996 = vmatprep.subr.mxu0 0.0
  %5997 = vmatpush1.msra.mxu0 0.0
  %5998 = vmatprep.subr.mxu0 0.0
  %5999 = vmatpush1.msra.mxu0 0.0
  %6000 = vmatprep.subr.mxu0 0.0
  %6001 = vmatpush1.msra.mxu0 0.0
  %6002 = vmatprep.subr.mxu0 0.0
  %6003 = vmatpush1.msra.mxu0 0.0
  %6004 = vmatprep.subr.mxu0 0.0
  %6005 = vmatpush1.msra.mxu0 0.0
  %6006 = vmatprep.subr.mxu0 0.0
  %6007 = vmatpush1.msra.mxu0 0.0
  %6008 = vmatprep.subr.mxu0 0.0
  %6009 = vmatpush1.msra.mxu0 0.0
  %6010 = vmatprep.subr.mxu0 0.0
  %6011 = vmatpush1.msra.mxu0 0.0
  %6012 = vmatprep.subr.mxu0 0.0
  %6013 = vmatpush1.msra.mxu0 0.0
  %6014 = vmatprep.subr.mxu0 %v5837
  %6015 = vmatpush1.msra.mxu0 %v5832
  %6016 = vmatprep.subr.mxu0 0.0
  %6017 = vmatpush2.msra.mxu0 0.0
  %6018 = vmatprep.subr.mxu0 0.0
  %6019 = vmatpush2.msra.mxu0 0.0
  %6020 = vmatprep.subr.mxu0 0.0
  %6021 = vmatpush2.msra.mxu0 0.0
  %6022 = vmatprep.subr.mxu0 0.0
  %6023 = vmatpush2.msra.mxu0 0.0
  %6024 = vmatprep.subr.mxu0 0.0
  %6025 = vmatpush2.msra.mxu0 0.0
  %6026 = vmatprep.subr.mxu0 0.0
  %6027 = vmatpush2.msra.mxu0 0.0
  %6028 = vmatprep.subr.mxu0 0.0
  %6029 = vmatpush2.msra.mxu0 0.0
  %6030 = vmatprep.subr.mxu0 0.0
  %6031 = vmatpush2.msra.mxu0 0.0
  %6032 = vmatprep.subr.mxu0 0.0
  %6033 = vmatpush2.msra.mxu0 0.0
  %6034 = vmatprep.subr.mxu0 0.0
  %6035 = vmatpush2.msra.mxu0 0.0
  %6036 = vmatprep.subr.mxu0 0.0
  %6037 = vmatpush2.msra.mxu0 0.0
  %6038 = vmatprep.subr.mxu0 0.0
  %6039 = vmatpush2.msra.mxu0 0.0
  %6040 = vmatprep.subr.mxu0 0.0
  %6041 = vmatpush2.msra.mxu0 0.0
  %6042 = vmatprep.subr.mxu0 0.0
  %6043 = vmatpush2.msra.mxu0 0.0
  %6044 = vmatprep.subr.mxu0 0.0
  %6045 = vmatpush2.msra.mxu0 0.0
  %6046 = vmatprep.subr.mxu0 0.0
  %6047 = vmatpush2.msra.mxu0 0.0
  %6048 = vmatprep.mubr.f32.mxu0 0.0
  %6049 = vmatmul.mubr.f32.gmra.mxu0 %v5840
  %v6050 = vpop.f32.mrf.mxu0
  %v6051 = vadd.f32 0.0, %v6050
  %v6052 = vpop.f32.mrf.mxu0
  %v6053 = vadd.f32 0.0, %v6052
  %6054 = vdwg.mxu0
  %v6055 = vadd.f32 %v5814, %v5909
  %v6056 = vadd.f32 %v5815, %v5911
  %v6057 = vadd.f32 %v5816, %v5980
  %v6058 = vadd.f32 %v5817, %v5982
  %v6059 = vadd.f32 %v5818, %v6051
  %v6060 = vadd.f32 %v5819, %v6053
  %6061 = vrot.lane.b32.xlu0 %v4398, 110
  %v6062 = vpop.permute.xlu0 %6061
  %6063 = vrot.lane.b32.xlu0 %v4399, 110
  %v6064 = vpop.permute.xlu0 %6063
  %6065 = vrot.lane.b32.xlu0 %v4400, 110
  %v6066 = vpop.permute.xlu0 %6065
  %6067 = vrot.lane.b32.xlu0 %v4401, 110
  %v6068 = vpop.permute.xlu0 %6067
  %6069 = vrot.lane.b32.xlu0 %v4402, 110
  %v6070 = vpop.permute.xlu0 %6069
  %6071 = vrot.lane.b32.xlu0 %v4403, 110
  %v6072 = vpop.permute.xlu0 %6071
  %v6073 = vsel %vm1745, %v6070, %v6072
  %v6074 = vsel %vm1745, %v6068, %v6070
  %v6075 = vsel %vm1745, %v6066, %v6068
  %v6076 = vsel %vm1745, %v6064, %v6066
  %v6077 = vsel %vm1745, %v6062, %v6064
  %v6078 = vsel %vm1745, %v6072, %v6062
  %6079 = vrot.lane.b32.xlu0 %v4422, 72
  %v6080 = vpop.permute.xlu0 %6079
  %v6081 = vsel %vm111, %v6080, 0
  %6083 = vmatprep.subr.mxu0 0.0
  %6084 = vmatpush1.msra.mxu0 0.0
  %6085 = vmatprep.subr.mxu0 0.0
  %6086 = vmatpush1.msra.mxu0 0.0
  %6087 = vmatprep.subr.mxu0 0.0
  %6088 = vmatpush1.msra.mxu0 0.0
  %6089 = vmatprep.subr.mxu0 0.0
  %6090 = vmatpush1.msra.mxu0 0.0
  %6091 = vmatprep.subr.mxu0 0.0
  %6092 = vmatpush1.msra.mxu0 0.0
  %6093 = vmatprep.subr.mxu0 0.0
  %6094 = vmatpush1.msra.mxu0 0.0
  %6095 = vmatprep.subr.mxu0 0.0
  %6096 = vmatpush1.msra.mxu0 0.0
  %6097 = vmatprep.subr.mxu0 0.0
  %6098 = vmatpush1.msra.mxu0 0.0
  %6099 = vmatprep.subr.mxu0 0.0
  %6100 = vmatpush1.msra.mxu0 0.0
  %6101 = vmatprep.subr.mxu0 0.0
  %6102 = vmatpush1.msra.mxu0 0.0
  %6103 = vmatprep.subr.mxu0 0.0
  %6104 = vmatpush1.msra.mxu0 0.0
  %6105 = vmatprep.subr.mxu0 0.0
  %6106 = vmatpush1.msra.mxu0 0.0
  %6107 = vmatprep.subr.mxu0 0.0
  %6108 = vmatpush1.msra.mxu0 0.0
  %6109 = vmatprep.subr.mxu0 0.0
  %6110 = vmatpush1.msra.mxu0 0.0
  %6111 = vmatprep.subr.mxu0 0.0
  %6112 = vmatpush1.msra.mxu0 0.0
  %6113 = vmatprep.subr.mxu0 %v6076
  %6114 = vmatpush1.msra.mxu0 %v6077
  %6115 = vmatprep.subr.mxu0 0.0
  %6116 = vmatpush2.msra.mxu0 0.0
  %6117 = vmatprep.subr.mxu0 0.0
  %6118 = vmatpush2.msra.mxu0 0.0
  %6119 = vmatprep.subr.mxu0 0.0
  %6120 = vmatpush2.msra.mxu0 0.0
  %6121 = vmatprep.subr.mxu0 0.0
  %6122 = vmatpush2.msra.mxu0 0.0
  %6123 = vmatprep.subr.mxu0 0.0
  %6124 = vmatpush2.msra.mxu0 0.0
  %6125 = vmatprep.subr.mxu0 0.0
  %6126 = vmatpush2.msra.mxu0 0.0
  %6127 = vmatprep.subr.mxu0 0.0
  %6128 = vmatpush2.msra.mxu0 0.0
  %6129 = vmatprep.subr.mxu0 0.0
  %6130 = vmatpush2.msra.mxu0 0.0
  %6131 = vmatprep.subr.mxu0 0.0
  %6132 = vmatpush2.msra.mxu0 0.0
  %6133 = vmatprep.subr.mxu0 0.0
  %6134 = vmatpush2.msra.mxu0 0.0
  %6135 = vmatprep.subr.mxu0 0.0
  %6136 = vmatpush2.msra.mxu0 0.0
  %6137 = vmatprep.subr.mxu0 0.0
  %6138 = vmatpush2.msra.mxu0 0.0
  %6139 = vmatprep.subr.mxu0 0.0
  %6140 = vmatpush2.msra.mxu0 0.0
  %6141 = vmatprep.subr.mxu0 0.0
  %6142 = vmatpush2.msra.mxu0 0.0
  %6143 = vmatprep.subr.mxu0 0.0
  %6144 = vmatpush2.msra.mxu0 0.0
  %6145 = vmatprep.subr.mxu0 0.0
  %6146 = vmatpush2.msra.mxu0 0.0
  %6147 = vmatprep.mubr.f32.mxu0 0.0
  %6148 = vmatmul.mubr.f32.gmra.mxu0 %v6081
  %v6149 = vpop.f32.mrf.mxu0
  %v6150 = vadd.f32 0.0, %v6149
  %v6151 = vpop.f32.mrf.mxu0
  %v6152 = vadd.f32 0.0, %v6151
  %6153 = vdwg.mxu0
  %6154 = vmatprep.subr.mxu0 0.0
  %6155 = vmatpush1.msra.mxu0 0.0
  %6156 = vmatprep.subr.mxu0 0.0
  %6157 = vmatpush1.msra.mxu0 0.0
  %6158 = vmatprep.subr.mxu0 0.0
  %6159 = vmatpush1.msra.mxu0 0.0
  %6160 = vmatprep.subr.mxu0 0.0
  %6161 = vmatpush1.msra.mxu0 0.0
  %6162 = vmatprep.subr.mxu0 0.0
  %6163 = vmatpush1.msra.mxu0 0.0
  %6164 = vmatprep.subr.mxu0 0.0
  %6165 = vmatpush1.msra.mxu0 0.0
  %6166 = vmatprep.subr.mxu0 0.0
  %6167 = vmatpush1.msra.mxu0 0.0
  %6168 = vmatprep.subr.mxu0 0.0
  %6169 = vmatpush1.msra.mxu0 0.0
  %6170 = vmatprep.subr.mxu0 0.0
  %6171 = vmatpush1.msra.mxu0 0.0
  %6172 = vmatprep.subr.mxu0 0.0
  %6173 = vmatpush1.msra.mxu0 0.0
  %6174 = vmatprep.subr.mxu0 0.0
  %6175 = vmatpush1.msra.mxu0 0.0
  %6176 = vmatprep.subr.mxu0 0.0
  %6177 = vmatpush1.msra.mxu0 0.0
  %6178 = vmatprep.subr.mxu0 0.0
  %6179 = vmatpush1.msra.mxu0 0.0
  %6180 = vmatprep.subr.mxu0 0.0
  %6181 = vmatpush1.msra.mxu0 0.0
  %6182 = vmatprep.subr.mxu0 0.0
  %6183 = vmatpush1.msra.mxu0 0.0
  %6184 = vmatprep.subr.mxu0 %v6074
  %6185 = vmatpush1.msra.mxu0 %v6075
  %6186 = vmatprep.subr.mxu0 0.0
  %6187 = vmatpush2.msra.mxu0 0.0
  %6188 = vmatprep.subr.mxu0 0.0
  %6189 = vmatpush2.msra.mxu0 0.0
  %6190 = vmatprep.subr.mxu0 0.0
  %6191 = vmatpush2.msra.mxu0 0.0
  %6192 = vmatprep.subr.mxu0 0.0
  %6193 = vmatpush2.msra.mxu0 0.0
  %6194 = vmatprep.subr.mxu0 0.0
  %6195 = vmatpush2.msra.mxu0 0.0
  %6196 = vmatprep.subr.mxu0 0.0
  %6197 = vmatpush2.msra.mxu0 0.0
  %6198 = vmatprep.subr.mxu0 0.0
  %6199 = vmatpush2.msra.mxu0 0.0
  %6200 = vmatprep.subr.mxu0 0.0
  %6201 = vmatpush2.msra.mxu0 0.0
  %6202 = vmatprep.subr.mxu0 0.0
  %6203 = vmatpush2.msra.mxu0 0.0
  %6204 = vmatprep.subr.mxu0 0.0
  %6205 = vmatpush2.msra.mxu0 0.0
  %6206 = vmatprep.subr.mxu0 0.0
  %6207 = vmatpush2.msra.mxu0 0.0
  %6208 = vmatprep.subr.mxu0 0.0
  %6209 = vmatpush2.msra.mxu0 0.0
  %6210 = vmatprep.subr.mxu0 0.0
  %6211 = vmatpush2.msra.mxu0 0.0
  %6212 = vmatprep.subr.mxu0 0.0
  %6213 = vmatpush2.msra.mxu0 0.0
  %6214 = vmatprep.subr.mxu0 0.0
  %6215 = vmatpush2.msra.mxu0 0.0
  %6216 = vmatprep.subr.mxu0 0.0
  %6217 = vmatpush2.msra.mxu0 0.0
  %6218 = vmatprep.mubr.f32.mxu0 0.0
  %6219 = vmatmul.mubr.f32.gmra.mxu0 %v6081
  %v6220 = vpop.f32.mrf.mxu0
  %v6221 = vadd.f32 0.0, %v6220
  %v6222 = vpop.f32.mrf.mxu0
  %v6223 = vadd.f32 0.0, %v6222
  %6224 = vdwg.mxu0
  %6225 = vmatprep.subr.mxu0 0.0
  %6226 = vmatpush1.msra.mxu0 0.0
  %6227 = vmatprep.subr.mxu0 0.0
  %6228 = vmatpush1.msra.mxu0 0.0
  %6229 = vmatprep.subr.mxu0 0.0
  %6230 = vmatpush1.msra.mxu0 0.0
  %6231 = vmatprep.subr.mxu0 0.0
  %6232 = vmatpush1.msra.mxu0 0.0
  %6233 = vmatprep.subr.mxu0 0.0
  %6234 = vmatpush1.msra.mxu0 0.0
  %6235 = vmatprep.subr.mxu0 0.0
  %6236 = vmatpush1.msra.mxu0 0.0
  %6237 = vmatprep.subr.mxu0 0.0
  %6238 = vmatpush1.msra.mxu0 0.0
  %6239 = vmatprep.subr.mxu0 0.0
  %6240 = vmatpush1.msra.mxu0 0.0
  %6241 = vmatprep.subr.mxu0 0.0
  %6242 = vmatpush1.msra.mxu0 0.0
  %6243 = vmatprep.subr.mxu0 0.0
  %6244 = vmatpush1.msra.mxu0 0.0
  %6245 = vmatprep.subr.mxu0 0.0
  %6246 = vmatpush1.msra.mxu0 0.0
  %6247 = vmatprep.subr.mxu0 0.0
  %6248 = vmatpush1.msra.mxu0 0.0
  %6249 = vmatprep.subr.mxu0 0.0
  %6250 = vmatpush1.msra.mxu0 0.0
  %6251 = vmatprep.subr.mxu0 0.0
  %6252 = vmatpush1.msra.mxu0 0.0
  %6253 = vmatprep.subr.mxu0 0.0
  %6254 = vmatpush1.msra.mxu0 0.0
  %6255 = vmatprep.subr.mxu0 %v6078
  %6256 = vmatpush1.msra.mxu0 %v6073
  %6257 = vmatprep.subr.mxu0 0.0
  %6258 = vmatpush2.msra.mxu0 0.0
  %6259 = vmatprep.subr.mxu0 0.0
  %6260 = vmatpush2.msra.mxu0 0.0
  %6261 = vmatprep.subr.mxu0 0.0
  %6262 = vmatpush2.msra.mxu0 0.0
  %6263 = vmatprep.subr.mxu0 0.0
  %6264 = vmatpush2.msra.mxu0 0.0
  %6265 = vmatprep.subr.mxu0 0.0
  %6266 = vmatpush2.msra.mxu0 0.0
  %6267 = vmatprep.subr.mxu0 0.0
  %6268 = vmatpush2.msra.mxu0 0.0
  %6269 = vmatprep.subr.mxu0 0.0
  %6270 = vmatpush2.msra.mxu0 0.0
  %6271 = vmatprep.subr.mxu0 0.0
  %6272 = vmatpush2.msra.mxu0 0.0
  %6273 = vmatprep.subr.mxu0 0.0
  %6274 = vmatpush2.msra.mxu0 0.0
  %6275 = vmatprep.subr.mxu0 0.0
  %6276 = vmatpush2.msra.mxu0 0.0
  %6277 = vmatprep.subr.mxu0 0.0
  %6278 = vmatpush2.msra.mxu0 0.0
  %6279 = vmatprep.subr.mxu0 0.0
  %6280 = vmatpush2.msra.mxu0 0.0
  %6281 = vmatprep.subr.mxu0 0.0
  %6282 = vmatpush2.msra.mxu0 0.0
  %6283 = vmatprep.subr.mxu0 0.0
  %6284 = vmatpush2.msra.mxu0 0.0
  %6285 = vmatprep.subr.mxu0 0.0
  %6286 = vmatpush2.msra.mxu0 0.0
  %6287 = vmatprep.subr.mxu0 0.0
  %6288 = vmatpush2.msra.mxu0 0.0
  %6289 = vmatprep.mubr.f32.mxu0 0.0
  %6290 = vmatmul.mubr.f32.gmra.mxu0 %v6081
  %v6291 = vpop.f32.mrf.mxu0
  %v6292 = vadd.f32 0.0, %v6291
  %v6293 = vpop.f32.mrf.mxu0
  %v6294 = vadd.f32 0.0, %v6293
  %6295 = vdwg.mxu0
  %v6296 = vadd.f32 %v6055, %v6150
  %v6297 = vadd.f32 %v6056, %v6152
  %v6298 = vadd.f32 %v6057, %v6221
  %v6299 = vadd.f32 %v6058, %v6223
  %v6300 = vadd.f32 %v6059, %v6292
  %v6301 = vadd.f32 %v6060, %v6294
  %6302 = vrot.lane.b32.xlu0 %v4398, 109
  %v6303 = vpop.permute.xlu0 %6302
  %6304 = vrot.lane.b32.xlu0 %v4399, 109
  %v6305 = vpop.permute.xlu0 %6304
  %6306 = vrot.lane.b32.xlu0 %v4400, 109
  %v6307 = vpop.permute.xlu0 %6306
  %6308 = vrot.lane.b32.xlu0 %v4401, 109
  %v6309 = vpop.permute.xlu0 %6308
  %6310 = vrot.lane.b32.xlu0 %v4402, 109
  %v6311 = vpop.permute.xlu0 %6310
  %6312 = vrot.lane.b32.xlu0 %v4403, 109
  %v6313 = vpop.permute.xlu0 %6312
  %v6314 = vsel %vm1987, %v6311, %v6313
  %v6315 = vsel %vm1987, %v6309, %v6311
  %v6316 = vsel %vm1987, %v6307, %v6309
  %v6317 = vsel %vm1987, %v6305, %v6307
  %v6318 = vsel %vm1987, %v6303, %v6305
  %v6319 = vsel %vm1987, %v6313, %v6303
  %6320 = vrot.lane.b32.xlu0 %v4422, 64
  %v6321 = vpop.permute.xlu0 %6320
  %v6322 = vsel %vm111, %v6321, 0
  %6324 = vmatprep.subr.mxu0 0.0
  %6325 = vmatpush1.msra.mxu0 0.0
  %6326 = vmatprep.subr.mxu0 0.0
  %6327 = vmatpush1.msra.mxu0 0.0
  %6328 = vmatprep.subr.mxu0 0.0
  %6329 = vmatpush1.msra.mxu0 0.0
  %6330 = vmatprep.subr.mxu0 0.0
  %6331 = vmatpush1.msra.mxu0 0.0
  %6332 = vmatprep.subr.mxu0 0.0
  %6333 = vmatpush1.msra.mxu0 0.0
  %6334 = vmatprep.subr.mxu0 0.0
  %6335 = vmatpush1.msra.mxu0 0.0
  %6336 = vmatprep.subr.mxu0 0.0
  %6337 = vmatpush1.msra.mxu0 0.0
  %6338 = vmatprep.subr.mxu0 0.0
  %6339 = vmatpush1.msra.mxu0 0.0
  %6340 = vmatprep.subr.mxu0 0.0
  %6341 = vmatpush1.msra.mxu0 0.0
  %6342 = vmatprep.subr.mxu0 0.0
  %6343 = vmatpush1.msra.mxu0 0.0
  %6344 = vmatprep.subr.mxu0 0.0
  %6345 = vmatpush1.msra.mxu0 0.0
  %6346 = vmatprep.subr.mxu0 0.0
  %6347 = vmatpush1.msra.mxu0 0.0
  %6348 = vmatprep.subr.mxu0 0.0
  %6349 = vmatpush1.msra.mxu0 0.0
  %6350 = vmatprep.subr.mxu0 0.0
  %6351 = vmatpush1.msra.mxu0 0.0
  %6352 = vmatprep.subr.mxu0 0.0
  %6353 = vmatpush1.msra.mxu0 0.0
  %6354 = vmatprep.subr.mxu0 %v6317
  %6355 = vmatpush1.msra.mxu0 %v6318
  %6356 = vmatprep.subr.mxu0 0.0
  %6357 = vmatpush2.msra.mxu0 0.0
  %6358 = vmatprep.subr.mxu0 0.0
  %6359 = vmatpush2.msra.mxu0 0.0
  %6360 = vmatprep.subr.mxu0 0.0
  %6361 = vmatpush2.msra.mxu0 0.0
  %6362 = vmatprep.subr.mxu0 0.0
  %6363 = vmatpush2.msra.mxu0 0.0
  %6364 = vmatprep.subr.mxu0 0.0
  %6365 = vmatpush2.msra.mxu0 0.0
  %6366 = vmatprep.subr.mxu0 0.0
  %6367 = vmatpush2.msra.mxu0 0.0
  %6368 = vmatprep.subr.mxu0 0.0
  %6369 = vmatpush2.msra.mxu0 0.0
  %6370 = vmatprep.subr.mxu0 0.0
  %6371 = vmatpush2.msra.mxu0 0.0
  %6372 = vmatprep.subr.mxu0 0.0
  %6373 = vmatpush2.msra.mxu0 0.0
  %6374 = vmatprep.subr.mxu0 0.0
  %6375 = vmatpush2.msra.mxu0 0.0
  %6376 = vmatprep.subr.mxu0 0.0
  %6377 = vmatpush2.msra.mxu0 0.0
  %6378 = vmatprep.subr.mxu0 0.0
  %6379 = vmatpush2.msra.mxu0 0.0
  %6380 = vmatprep.subr.mxu0 0.0
  %6381 = vmatpush2.msra.mxu0 0.0
  %6382 = vmatprep.subr.mxu0 0.0
  %6383 = vmatpush2.msra.mxu0 0.0
  %6384 = vmatprep.subr.mxu0 0.0
  %6385 = vmatpush2.msra.mxu0 0.0
  %6386 = vmatprep.subr.mxu0 0.0
  %6387 = vmatpush2.msra.mxu0 0.0
  %6388 = vmatprep.mubr.f32.mxu0 0.0
  %6389 = vmatmul.mubr.f32.gmra.mxu0 %v6322
  %v6390 = vpop.f32.mrf.mxu0
  %v6391 = vadd.f32 0.0, %v6390
  %v6392 = vpop.f32.mrf.mxu0
  %v6393 = vadd.f32 0.0, %v6392
  %6394 = vdwg.mxu0
  %6395 = vmatprep.subr.mxu0 0.0
  %6396 = vmatpush1.msra.mxu0 0.0
  %6397 = vmatprep.subr.mxu0 0.0
  %6398 = vmatpush1.msra.mxu0 0.0
  %6399 = vmatprep.subr.mxu0 0.0
  %6400 = vmatpush1.msra.mxu0 0.0
  %6401 = vmatprep.subr.mxu0 0.0
  %6402 = vmatpush1.msra.mxu0 0.0
  %6403 = vmatprep.subr.mxu0 0.0
  %6404 = vmatpush1.msra.mxu0 0.0
  %6405 = vmatprep.subr.mxu0 0.0
  %6406 = vmatpush1.msra.mxu0 0.0
  %6407 = vmatprep.subr.mxu0 0.0
  %6408 = vmatpush1.msra.mxu0 0.0
  %6409 = vmatprep.subr.mxu0 0.0
  %6410 = vmatpush1.msra.mxu0 0.0
  %6411 = vmatprep.subr.mxu0 0.0
  %6412 = vmatpush1.msra.mxu0 0.0
  %6413 = vmatprep.subr.mxu0 0.0
  %6414 = vmatpush1.msra.mxu0 0.0
  %6415 = vmatprep.subr.mxu0 0.0
  %6416 = vmatpush1.msra.mxu0 0.0
  %6417 = vmatprep.subr.mxu0 0.0
  %6418 = vmatpush1.msra.mxu0 0.0
  %6419 = vmatprep.subr.mxu0 0.0
  %6420 = vmatpush1.msra.mxu0 0.0
  %6421 = vmatprep.subr.mxu0 0.0
  %6422 = vmatpush1.msra.mxu0 0.0
  %6423 = vmatprep.subr.mxu0 0.0
  %6424 = vmatpush1.msra.mxu0 0.0
  %6425 = vmatprep.subr.mxu0 %v6315
  %6426 = vmatpush1.msra.mxu0 %v6316
  %6427 = vmatprep.subr.mxu0 0.0
  %6428 = vmatpush2.msra.mxu0 0.0
  %6429 = vmatprep.subr.mxu0 0.0
  %6430 = vmatpush2.msra.mxu0 0.0
  %6431 = vmatprep.subr.mxu0 0.0
  %6432 = vmatpush2.msra.mxu0 0.0
  %6433 = vmatprep.subr.mxu0 0.0
  %6434 = vmatpush2.msra.mxu0 0.0
  %6435 = vmatprep.subr.mxu0 0.0
  %6436 = vmatpush2.msra.mxu0 0.0
  %6437 = vmatprep.subr.mxu0 0.0
  %6438 = vmatpush2.msra.mxu0 0.0
  %6439 = vmatprep.subr.mxu0 0.0
  %6440 = vmatpush2.msra.mxu0 0.0
  %6441 = vmatprep.subr.mxu0 0.0
  %6442 = vmatpush2.msra.mxu0 0.0
  %6443 = vmatprep.subr.mxu0 0.0
  %6444 = vmatpush2.msra.mxu0 0.0
  %6445 = vmatprep.subr.mxu0 0.0
  %6446 = vmatpush2.msra.mxu0 0.0
  %6447 = vmatprep.subr.mxu0 0.0
  %6448 = vmatpush2.msra.mxu0 0.0
  %6449 = vmatprep.subr.mxu0 0.0
  %6450 = vmatpush2.msra.mxu0 0.0
  %6451 = vmatprep.subr.mxu0 0.0
  %6452 = vmatpush2.msra.mxu0 0.0
  %6453 = vmatprep.subr.mxu0 0.0
  %6454 = vmatpush2.msra.mxu0 0.0
  %6455 = vmatprep.subr.mxu0 0.0
  %6456 = vmatpush2.msra.mxu0 0.0
  %6457 = vmatprep.subr.mxu0 0.0
  %6458 = vmatpush2.msra.mxu0 0.0
  %6459 = vmatprep.mubr.f32.mxu0 0.0
  %6460 = vmatmul.mubr.f32.gmra.mxu0 %v6322
  %v6461 = vpop.f32.mrf.mxu0
  %v6462 = vadd.f32 0.0, %v6461
  %v6463 = vpop.f32.mrf.mxu0
  %v6464 = vadd.f32 0.0, %v6463
  %6465 = vdwg.mxu0
  %6466 = vmatprep.subr.mxu0 0.0
  %6467 = vmatpush1.msra.mxu0 0.0
  %6468 = vmatprep.subr.mxu0 0.0
  %6469 = vmatpush1.msra.mxu0 0.0
  %6470 = vmatprep.subr.mxu0 0.0
  %6471 = vmatpush1.msra.mxu0 0.0
  %6472 = vmatprep.subr.mxu0 0.0
  %6473 = vmatpush1.msra.mxu0 0.0
  %6474 = vmatprep.subr.mxu0 0.0
  %6475 = vmatpush1.msra.mxu0 0.0
  %6476 = vmatprep.subr.mxu0 0.0
  %6477 = vmatpush1.msra.mxu0 0.0
  %6478 = vmatprep.subr.mxu0 0.0
  %6479 = vmatpush1.msra.mxu0 0.0
  %6480 = vmatprep.subr.mxu0 0.0
  %6481 = vmatpush1.msra.mxu0 0.0
  %6482 = vmatprep.subr.mxu0 0.0
  %6483 = vmatpush1.msra.mxu0 0.0
  %6484 = vmatprep.subr.mxu0 0.0
  %6485 = vmatpush1.msra.mxu0 0.0
  %6486 = vmatprep.subr.mxu0 0.0
  %6487 = vmatpush1.msra.mxu0 0.0
  %6488 = vmatprep.subr.mxu0 0.0
  %6489 = vmatpush1.msra.mxu0 0.0
  %6490 = vmatprep.subr.mxu0 0.0
  %6491 = vmatpush1.msra.mxu0 0.0
  %6492 = vmatprep.subr.mxu0 0.0
  %6493 = vmatpush1.msra.mxu0 0.0
  %6494 = vmatprep.subr.mxu0 0.0
  %6495 = vmatpush1.msra.mxu0 0.0
  %6496 = vmatprep.subr.mxu0 %v6319
  %6497 = vmatpush1.msra.mxu0 %v6314
  %6498 = vmatprep.subr.mxu0 0.0
  %6499 = vmatpush2.msra.mxu0 0.0
  %6500 = vmatprep.subr.mxu0 0.0
  %6501 = vmatpush2.msra.mxu0 0.0
  %6502 = vmatprep.subr.mxu0 0.0
  %6503 = vmatpush2.msra.mxu0 0.0
  %6504 = vmatprep.subr.mxu0 0.0
  %6505 = vmatpush2.msra.mxu0 0.0
  %6506 = vmatprep.subr.mxu0 0.0
  %6507 = vmatpush2.msra.mxu0 0.0
  %6508 = vmatprep.subr.mxu0 0.0
  %6509 = vmatpush2.msra.mxu0 0.0
  %6510 = vmatprep.subr.mxu0 0.0
  %6511 = vmatpush2.msra.mxu0 0.0
  %6512 = vmatprep.subr.mxu0 0.0
  %6513 = vmatpush2.msra.mxu0 0.0
  %6514 = vmatprep.subr.mxu0 0.0
  %6515 = vmatpush2.msra.mxu0 0.0
  %6516 = vmatprep.subr.mxu0 0.0
  %6517 = vmatpush2.msra.mxu0 0.0
  %6518 = vmatprep.subr.mxu0 0.0
  %6519 = vmatpush2.msra.mxu0 0.0
  %6520 = vmatprep.subr.mxu0 0.0
  %6521 = vmatpush2.msra.mxu0 0.0
  %6522 = vmatprep.subr.mxu0 0.0
  %6523 = vmatpush2.msra.mxu0 0.0
  %6524 = vmatprep.subr.mxu0 0.0
  %6525 = vmatpush2.msra.mxu0 0.0
  %6526 = vmatprep.subr.mxu0 0.0
  %6527 = vmatpush2.msra.mxu0 0.0
  %6528 = vmatprep.subr.mxu0 0.0
  %6529 = vmatpush2.msra.mxu0 0.0
  %6530 = vmatprep.mubr.f32.mxu0 0.0
  %6531 = vmatmul.mubr.f32.gmra.mxu0 %v6322
  %v6532 = vpop.f32.mrf.mxu0
  %v6533 = vadd.f32 0.0, %v6532
  %v6534 = vpop.f32.mrf.mxu0
  %v6535 = vadd.f32 0.0, %v6534
  %6536 = vdwg.mxu0
  %v6537 = vadd.f32 %v6296, %v6391
  %v6538 = vadd.f32 %v6297, %v6393
  %v6539 = vadd.f32 %v6298, %v6462
  %v6540 = vadd.f32 %v6299, %v6464
  %v6541 = vadd.f32 %v6300, %v6533
  %v6542 = vadd.f32 %v6301, %v6535
  %v6543 = vld [vmem:[%s7] sm:$0xff]
  %6545 = vset.pattern.permute.xlu0 0
  %6546 = vperm.xlu0 %6545, %v6543
  %v6547 = vpop.permute.xlu0 %6546
  %v6549 = vadd.f32 %v6537, %v6547
  %v6550 = vadd.f32 %v6538, %v6547
  %v6551 = vadd.f32 %v6539, %v6547
  %v6552 = vadd.f32 %v6540, %v6547
  %v6553 = vadd.f32 %v6541, %v6547
  %v6554 = vadd.f32 %v6542, %v6547
  %v6555 = vmax.f32 %v6549, 0.0
  %v6556 = vmax.f32 %v6550, 0.0
  %v6557 = vmax.f32 %v6551, 0.0
  %v6558 = vmax.f32 %v6552, 0.0
  %v6559 = vmax.f32 %v6553, 0.0
  %v6560 = vmax.f32 %v6554, 0.0
  %6561 = vst [vmem:[%s8] sm:$0xff] %v6555
  %6562 = vst [vmem:[%s8 + $0x8] sm:$0xff] %v6556
  %6563 = vst [vmem:[%s8 + $0x10] sm:$0xff] %v6557
  %6564 = vst [vmem:[%s8 + $0x18] sm:$0xff] %v6558
  %6565 = vst [vmem:[%s8 + $0x20] sm:$0xff] %v6559
  %6566 = vst [vmem:[%s8 + $0x28] sm:$0xff] %v6560
  // Predicated region
  $region34: #{naive_compressor_forward.1} parent=0 // pred_check
    _
  $region35: #{naive_compressor_forward.1} parent=0 // pred_check_branch
    %6568 = sbr.rel (0) target = $region37
  $region36: #{naive_compressor_forward.1} parent=0 // pred_region
    _
  $region37: #{naive_compressor_forward.1} parent=0 // pred_fallthru
    _
  // Predicated region
  $region38: #{naive_compressor_forward.1} parent=0 // pred_check
    _
  $region39: #{naive_compressor_forward.1} parent=0 // pred_check_branch
    %6570 = sbr.rel (0) target = $region41
  $region40: #{naive_compressor_forward.1} parent=0 // pred_region
    _
  $region41: #{naive_compressor_forward.1} parent=0 // pred_fallthru
    _

</llo_original>
